<compile_context>
chip_gen: v7x
topology: tpu7x:2x2x1
jax: 0.10.0
libtpu: 0.0.40
codegen_flags: <defaults>
</compile_context>

<pallas_src>
import functools

import jax
import jax.numpy as jnp
from jax.experimental import pallas as pl
from jax.experimental.pallas import tpu as pltpu


_G = 8  # contact-map rows produced per inner group (exactly one sublane tile)


def _decoder_kernel(a_ref, zt_ref, mi_ref, mrow_ref,
                    b1_ref, w2bd_ref, b2_ref, w3_ref, b3_ref,
                    cmap_ref, clog_ref, *, n_groups, gsize, hdim, h2dim):
    """One grid step: batch b, a tile of TI = n_groups*gsize output rows i (all cols j)."""
    f32 = jnp.float32

    zt = zt_ref[0]           # (L, Np)        bf16 MXU operand (all columns j)
    w2bd = w2bd_ref[...]     # (H2*G, G*H)    bf16 block-diagonal layer-2 weight
    b1g = b1_ref[...]        # (G*H, 1)  f32  b1 tiled per group
    b2g = b2_ref[...]        # (H2*G, 1) f32  b2 repeated per group
    w3g = w3_ref[...]        # (H2*G, 1) f32  w3 repeated per group
    b3 = b3_ref[...]         # (1, 1)    f32
    mrow = mrow_ref[0]       # (1, Np)   f32  column (j) mask

    gh = gsize * hdim
    for grp in range(n_groups):
        # ---- layer 1 (MXU):  h1[(t,h), j] = relu( sum_q A[(i,h), q] * z[j, q] + b1[h] )
        a_g = a_ref[0, grp * gh:(grp + 1) * gh, :]                  # (G*H, L) bf16
        h1 = jnp.dot(a_g, zt, preferred_element_type=f32) + b1g     # (G*H, Np) f32
        h1 = jnp.maximum(h1, 0.0)

        # ---- layer 2 (MXU, batched over the G rows via block-diagonal W2).
        #      Output rows are ordered (g*G + t) so layer 3 is pure slab adds.
        h2 = jnp.dot(w2bd, h1.astype(w2bd.dtype),
                     preferred_element_type=f32) + b2g              # (H2*G, Np) f32
        h2 = jnp.maximum(h2, 0.0)

        # ---- layer 3 (VPU):  logits[t, j] = sum_g w3[g] * h2[g*G + t, j]
        wv = h2 * w3g                                               # (H2*G, Np)
        lg = wv[0:gsize, :]
        for k in range(1, h2dim):                                   # tile-aligned (8,Np) adds
            lg = lg + wv[k * gsize:(k + 1) * gsize, :]              # (G, Np)

        # ---- bias, outer mask, sigmoid; lane-dense store of G=8 rows.
        mi_g = mi_ref[0, grp * gsize:(grp + 1) * gsize, :]          # (G, 1) row (i) mask
        lg = (lg + b3) * (mi_g * mrow)                              # (G, Np)
        clog_ref[0, grp * gsize:(grp + 1) * gsize, :] = lg
        cmap_ref[0, grp * gsize:(grp + 1) * gsize, :] = jax.nn.sigmoid(lg)


def decoder_forward(z, motif_mask, residue_mask, params, *, mxu_dtype=jnp.bfloat16):
    """Pallas Decoder forward. residue_mask is unused (matches the PyTorch forward)."""
    del residue_mask
    B, N, L = z.shape
    w1, b1, w2, b2, w3, b3 = params
    H = w1.shape[1]
    H2 = w2.shape[1]
    f32 = jnp.float32

    # ---- pad sequence length so the contact-map last dim is lane dense (mult. of 128).
    LANE = 128
    Np = ((N + LANE - 1) // LANE) * LANE
    pad = Np - N
    z_p = jnp.pad(z.astype(f32), ((0, 0), (0, pad), (0, 0)))
    m_p = jnp.pad(motif_mask.astype(f32), ((0, 0), (0, pad)))

    # ---- per-row layer-1 weights:  A[b, i*H + h, q] = sum_p z[b,i,p] * W1[p*L+q, h]
    w1_r = w1.astype(f32).reshape(L, L, H)                          # [p, q, h]
    a = jnp.einsum('bip,pqh->bihq', z_p, w1_r)                      # (B, Np, H, L)
    a = a.reshape(B, Np * H, L).astype(mxu_dtype)

    zt = jnp.swapaxes(z_p, 1, 2).astype(mxu_dtype)                  # (B, L, Np)
    mi = m_p.reshape(B, Np, 1)                                      # row (i) mask
    mrow = m_p.reshape(B, 1, Np)                                    # column (j) mask

    # ---- block-diagonal layer-2 weight:  W2bd[g*G + t, t*H + h] = W2[h, g]
    G = _G
    eye = jnp.eye(G, dtype=f32)
    w2bd = jnp.einsum('gh,ts->gtsh', jnp.transpose(w2.astype(f32)), eye)
    w2bd = w2bd.reshape(H2 * G, G * H).astype(mxu_dtype)
    b1g = jnp.tile(b1.astype(f32), G).reshape(G * H, 1)             # [t*H + h] -> b1[h]
    b2g = jnp.repeat(b2.astype(f32), G).reshape(H2 * G, 1)          # [g*G + t] -> b2[g]
    w3g = jnp.repeat(w3.astype(f32).reshape(H2), G).reshape(H2 * G, 1)
    b3c = b3.astype(f32).reshape(1, 1)

    # ---- row tile: as large as a conservative VMEM budget allows (mult. of G, divides Np).
    TI = min(128, Np)
    # 2 outputs x 2 buffers x TI*Np*4 bytes   +   lane-padded A block (bf16), double-buffered
    while TI > G and (16 * TI * Np + 512 * TI * H) > (8 << 20):
        TI //= 2
    n_groups = TI // G
    n_tiles = Np // TI

    kernel = functools.partial(_decoder_kernel, n_groups=n_groups,
                               gsize=G, hdim=H, h2dim=H2)
    const = lambda r, c: pl.BlockSpec((r, c), lambda b, it: (0, 0))

    cmap, clog = pl.pallas_call(
        kernel,
        out_shape=(jax.ShapeDtypeStruct((B, Np, Np), f32),
                   jax.ShapeDtypeStruct((B, Np, Np), f32)),
        grid=(B, n_tiles),
        in_specs=[
            pl.BlockSpec((1, TI * H, L), lambda b, it: (b, it, 0)),   # A row tile
            pl.BlockSpec((1, L, Np), lambda b, it: (b, 0, 0)),        # z^T (all j)
            pl.BlockSpec((1, TI, 1), lambda b, it: (b, it, 0)),       # mask for i rows
            pl.BlockSpec((1, 1, Np), lambda b, it: (b, 0, 0)),        # mask as j row
            const(G * H, 1),                                          # b1 tiled
            const(H2 * G, G * H),                                     # W2 block-diag
            const(H2 * G, 1),                                         # b2 repeated
            const(H2 * G, 1),                                         # w3 repeated
            const(1, 1),                                              # b3
        ],
        out_specs=(pl.BlockSpec((1, TI, Np), lambda b, it: (b, it, 0)),
                   pl.BlockSpec((1, TI, Np), lambda b, it: (b, it, 0))),
        compiler_params=pltpu.CompilerParams(
            dimension_semantics=("parallel", "parallel")),
    )(a, zt, mi, mrow, b1g, w2bd, b2g, w3g, b3c)

    if pad:
        cmap = cmap[:, :N, :N]
        clog = clog[:, :N, :N]
    return cmap, clog


def init_params(key, latent_dim, hidden_dim):
    """Deterministic PyTorch-style init. Weights stored as (in, out)."""
    LL = latent_dim * latent_dim
    H = hidden_dim
    H2 = hidden_dim // 2
    ks = jax.random.split(key, 6)

    def lin(kw, kb, fan_in, fan_out):
        bound = 1.0 / jnp.sqrt(fan_in)
        w = jax.random.uniform(kw, (fan_in, fan_out), jnp.float32, -bound, bound)
        b = jax.random.uniform(kb, (fan_out,), jnp.float32, -bound, bound)
        return w, b

    w1, b1 = lin(ks[0], ks[1], LL, H)
    w2, b2 = lin(ks[2], ks[3], H, H2)
    w3, b3 = lin(ks[4], ks[5], H2, 1)
    return (w1, b1, w2, b2, w3, b3)


def reference_forward(z, motif_mask, params):
    """Pure-JAX (f32) replica of the PyTorch module (for validation)."""
    w1, b1, w2, b2, w3, b3 = params
    B, N, L = z.shape
    outer = z[:, :, None, :, None] * z[:, None, :, None, :]          # (B,N,N,L,L)
    kron = outer.reshape(B, N, N, L * L)
    h1 = jnp.maximum(kron @ w1 + b1, 0.0)
    h2 = jnp.maximum(h1 @ w2 + b2, 0.0)
    logits = (h2 @ w3 + b3)[..., 0]                                   # (B,N,N)
    outer_mask = motif_mask[:, None, :] * motif_mask[:, :, None]
    logits = logits * outer_mask
    return jax.nn.sigmoid(logits), logits


if __name__ == "__main__":
    B, N, LATENT, HIDDEN = 2, 8, 4, 32

    key = jax.random.PRNGKey(0)
    kz, km, kp = jax.random.split(key, 3)

    z = jax.random.normal(kz, (B, N, LATENT), jnp.float32)
    motif_mask = (jax.random.uniform(km, (B, N)) > 0.3).astype(jnp.float32)
    residue_mask = jnp.ones((B, N), jnp.float32)  # unused by forward (parity with PyTorch)

    params = init_params(kp, LATENT, HIDDEN)

    cmap, clog = decoder_forward(z, motif_mask, residue_mask, params)
    jax.block_until_ready((cmap, clog))

    cmap_ref, clog_ref = reference_forward(z, motif_mask, params)
    assert cmap.shape == (B, N, N) and clog.shape == (B, N, N)
    # bf16 MXU operands with f32 accumulation -> slightly loosened logits tolerance.
    assert jnp.allclose(clog, clog_ref, rtol=3e-2, atol=3e-2), "logits mismatch"
    assert jnp.allclose(cmap, cmap_ref, rtol=1e-2, atol=1e-2), "contact map mismatch"

    print("KERNEL_OK")
</pallas_src>

<mosaic_0001>
module attributes {stable_mosaic.version = 11 : i64} {
  func.func @_decoder_kernel(%arg0: i32, %arg1: i32, %arg2: memref<1x4096x4xbf16, #tpu.memory_space<vmem>>, %arg3: memref<1x4x128xbf16, #tpu.memory_space<vmem>>, %arg4: memref<1x128x1xf32, #tpu.memory_space<vmem>>, %arg5: memref<1x1x128xf32, #tpu.memory_space<vmem>>, %arg6: memref<256x1xf32, #tpu.memory_space<vmem>>, %arg7: memref<128x256xbf16, #tpu.memory_space<vmem>>, %arg8: memref<128x1xf32, #tpu.memory_space<vmem>>, %arg9: memref<128x1xf32, #tpu.memory_space<vmem>>, %arg10: memref<1x1xf32, #tpu.memory_space<vmem>>, %arg11: memref<1x128x128xf32, #tpu.memory_space<vmem>>, %arg12: memref<1x128x128xf32, #tpu.memory_space<vmem>>) attributes {dimension_semantics = [#tpu.dimension_semantics<parallel>, #tpu.dimension_semantics<parallel>], iteration_bounds = array<i64: 2, 1>, scalar_prefetch = 0 : i64, scratch_operands = 0 : i64, tpu.core_type = #tpu.core_type<tc>, window_params = [{transform_indices = @transform_0, window_bounds = array<i64: 1, 4096, 4>}, {transform_indices = @transform_1, window_bounds = array<i64: 1, 4, 128>}, {transform_indices = @transform_2, window_bounds = array<i64: 1, 128, 1>}, {transform_indices = @transform_3, window_bounds = array<i64: 1, 1, 128>}, {pipeline_mode = #tpu.pipeline_mode<synchronous>, transform_indices = @transform_4, window_bounds = array<i64: 256, 1>}, {pipeline_mode = #tpu.pipeline_mode<synchronous>, transform_indices = @transform_5, window_bounds = array<i64: 128, 256>}, {pipeline_mode = #tpu.pipeline_mode<synchronous>, transform_indices = @transform_6, window_bounds = array<i64: 128, 1>}, {pipeline_mode = #tpu.pipeline_mode<synchronous>, transform_indices = @transform_7, window_bounds = array<i64: 128, 1>}, {pipeline_mode = #tpu.pipeline_mode<synchronous>, transform_indices = @transform_8, window_bounds = array<i64: 1, 1>}, {transform_indices = @transform_9, window_bounds = array<i64: 1, 128, 128>}, {transform_indices = @transform_10, window_bounds = array<i64: 1, 128, 128>}]} {
    %c0 = arith.constant 0 : index
    %c0_0 = arith.constant 0 : index
    %c0_1 = arith.constant 0 : index
    %0 = vector.load %arg3[%c0, %c0_0, %c0_1] : memref<1x4x128xbf16, #tpu.memory_space<vmem>>, vector<1x4x128xbf16>
    %1 = vector.shape_cast %0 : vector<1x4x128xbf16> to vector<4x128xbf16>
    %c0_2 = arith.constant 0 : index
    %c0_3 = arith.constant 0 : index
    %2 = vector.load %arg7[%c0_2, %c0_3] : memref<128x256xbf16, #tpu.memory_space<vmem>>, vector<128x256xbf16>
    %c0_4 = arith.constant 0 : index
    %c0_5 = arith.constant 0 : index
    %3 = vector.load %arg6[%c0_4, %c0_5] : memref<256x1xf32, #tpu.memory_space<vmem>>, vector<256x1xf32>
    %c0_6 = arith.constant 0 : index
    %c0_7 = arith.constant 0 : index
    %4 = vector.load %arg8[%c0_6, %c0_7] : memref<128x1xf32, #tpu.memory_space<vmem>>, vector<128x1xf32>
    %c0_8 = arith.constant 0 : index
    %c0_9 = arith.constant 0 : index
    %5 = vector.load %arg9[%c0_8, %c0_9] : memref<128x1xf32, #tpu.memory_space<vmem>>, vector<128x1xf32>
    %c0_10 = arith.constant 0 : index
    %c0_11 = arith.constant 0 : index
    %6 = vector.load %arg10[%c0_10, %c0_11] : memref<1x1xf32, #tpu.memory_space<vmem>>, vector<1x1xf32>
    %c0_12 = arith.constant 0 : index
    %c0_13 = arith.constant 0 : index
    %c0_14 = arith.constant 0 : index
    %7 = vector.load %arg5[%c0_12, %c0_13, %c0_14] : memref<1x1x128xf32, #tpu.memory_space<vmem>>, vector<1x1x128xf32>
    %8 = vector.shape_cast %7 : vector<1x1x128xf32> to vector<1x128xf32>
    %c0_15 = arith.constant 0 : index
    %c0_16 = arith.constant 0 : index
    %c0_17 = arith.constant 0 : index
    %9 = vector.load %arg2[%c0_15, %c0_16, %c0_17] : memref<1x4096x4xbf16, #tpu.memory_space<vmem>>, vector<1x256x4xbf16>
    %10 = vector.shape_cast %9 : vector<1x256x4xbf16> to vector<256x4xbf16>
    %cst = arith.constant dense<0.000000e+00> : vector<256x128xf32>
    %11 = tpu.matmul %10, %1, %cst {dimension_numbers = #tpu.dot_dimension_numbers<[1], [0], [0], [1], [0, 0, 1, 1], [], []>} : vector<256x4xbf16>, vector<4x128xbf16>, vector<256x128xf32> -> vector<256x128xf32>
    %12 = vector.broadcast %3 : vector<256x1xf32> to vector<256x128xf32>
    %13 = arith.addf %11, %12 : vector<256x128xf32>
    %cst_18 = arith.constant 0.000000e+00 : f32
    %14 = vector.broadcast %cst_18 : f32 to vector<256x128xf32>
    %15 = arith.maximumf %13, %14 : vector<256x128xf32>
    %16 = arith.truncf %15 : vector<256x128xf32> to vector<256x128xbf16>
    %cst_19 = arith.constant dense<0.000000e+00> : vector<128x128xf32>
    %17 = tpu.matmul %2, %16, %cst_19 {dimension_numbers = #tpu.dot_dimension_numbers<[1], [0], [0], [1], [0, 0, 1, 1], [], []>} : vector<128x256xbf16>, vector<256x128xbf16>, vector<128x128xf32> -> vector<128x128xf32>
    %18 = vector.broadcast %4 : vector<128x1xf32> to vector<128x128xf32>
    %19 = arith.addf %17, %18 : vector<128x128xf32>
    %cst_20 = arith.constant 0.000000e+00 : f32
    %20 = vector.broadcast %cst_20 : f32 to vector<128x128xf32>
    %21 = arith.maximumf %19, %20 : vector<128x128xf32>
    %22 = vector.broadcast %5 : vector<128x1xf32> to vector<128x128xf32>
    %23 = arith.mulf %21, %22 : vector<128x128xf32>
    %24 = vector.extract_strided_slice %23 {offsets = [0, 0], sizes = [8, 128], strides = [1, 1]} : vector<128x128xf32> to vector<8x128xf32>
    %25 = vector.extract_strided_slice %23 {offsets = [8, 0], sizes = [8, 128], strides = [1, 1]} : vector<128x128xf32> to vector<8x128xf32>
    %26 = arith.addf %24, %25 : vector<8x128xf32>
    %27 = vector.extract_strided_slice %23 {offsets = [16, 0], sizes = [8, 128], strides = [1, 1]} : vector<128x128xf32> to vector<8x128xf32>
    %28 = arith.addf %26, %27 : vector<8x128xf32>
    %29 = vector.extract_strided_slice %23 {offsets = [24, 0], sizes = [8, 128], strides = [1, 1]} : vector<128x128xf32> to vector<8x128xf32>
    %30 = arith.addf %28, %29 : vector<8x128xf32>
    %31 = vector.extract_strided_slice %23 {offsets = [32, 0], sizes = [8, 128], strides = [1, 1]} : vector<128x128xf32> to vector<8x128xf32>
    %32 = arith.addf %30, %31 : vector<8x128xf32>
    %33 = vector.extract_strided_slice %23 {offsets = [40, 0], sizes = [8, 128], strides = [1, 1]} : vector<128x128xf32> to vector<8x128xf32>
    %34 = arith.addf %32, %33 : vector<8x128xf32>
    %35 = vector.extract_strided_slice %23 {offsets = [48, 0], sizes = [8, 128], strides = [1, 1]} : vector<128x128xf32> to vector<8x128xf32>
    %36 = arith.addf %34, %35 : vector<8x128xf32>
    %37 = vector.extract_strided_slice %23 {offsets = [56, 0], sizes = [8, 128], strides = [1, 1]} : vector<128x128xf32> to vector<8x128xf32>
    %38 = arith.addf %36, %37 : vector<8x128xf32>
    %39 = vector.extract_strided_slice %23 {offsets = [64, 0], sizes = [8, 128], strides = [1, 1]} : vector<128x128xf32> to vector<8x128xf32>
    %40 = arith.addf %38, %39 : vector<8x128xf32>
    %41 = vector.extract_strided_slice %23 {offsets = [72, 0], sizes = [8, 128], strides = [1, 1]} : vector<128x128xf32> to vector<8x128xf32>
    %42 = arith.addf %40, %41 : vector<8x128xf32>
    %43 = vector.extract_strided_slice %23 {offsets = [80, 0], sizes = [8, 128], strides = [1, 1]} : vector<128x128xf32> to vector<8x128xf32>
    %44 = arith.addf %42, %43 : vector<8x128xf32>
    %45 = vector.extract_strided_slice %23 {offsets = [88, 0], sizes = [8, 128], strides = [1, 1]} : vector<128x128xf32> to vector<8x128xf32>
    %46 = arith.addf %44, %45 : vector<8x128xf32>
    %47 = vector.extract_strided_slice %23 {offsets = [96, 0], sizes = [8, 128], strides = [1, 1]} : vector<128x128xf32> to vector<8x128xf32>
    %48 = arith.addf %46, %47 : vector<8x128xf32>
    %49 = vector.extract_strided_slice %23 {offsets = [104, 0], sizes = [8, 128], strides = [1, 1]} : vector<128x128xf32> to vector<8x128xf32>
    %50 = arith.addf %48, %49 : vector<8x128xf32>
    %51 = vector.extract_strided_slice %23 {offsets = [112, 0], sizes = [8, 128], strides = [1, 1]} : vector<128x128xf32> to vector<8x128xf32>
    %52 = arith.addf %50, %51 : vector<8x128xf32>
    %53 = vector.extract_strided_slice %23 {offsets = [120, 0], sizes = [8, 128], strides = [1, 1]} : vector<128x128xf32> to vector<8x128xf32>
    %54 = arith.addf %52, %53 : vector<8x128xf32>
    %c0_21 = arith.constant 0 : index
    %c0_22 = arith.constant 0 : index
    %c0_23 = arith.constant 0 : index
    %55 = vector.load %arg4[%c0_21, %c0_22, %c0_23] : memref<1x128x1xf32, #tpu.memory_space<vmem>>, vector<1x8x1xf32>
    %56 = vector.shape_cast %55 : vector<1x8x1xf32> to vector<8x1xf32>
    %57 = vector.broadcast %6 : vector<1x1xf32> to vector<8x128xf32>
    %58 = arith.addf %54, %57 : vector<8x128xf32>
    %59 = vector.broadcast %56 : vector<8x1xf32> to vector<8x128xf32>
    %60 = vector.broadcast %8 : vector<1x128xf32> to vector<8x128xf32>
    %61 = arith.mulf %59, %60 : vector<8x128xf32>
    %62 = arith.mulf %58, %61 : vector<8x128xf32>
    %c0_24 = arith.constant 0 : index
    %c0_25 = arith.constant 0 : index
    %c0_26 = arith.constant 0 : index
    %63 = vector.load %arg12[%c0_24, %c0_25, %c0_26] : memref<1x128x128xf32, #tpu.memory_space<vmem>>, vector<1x8x128xf32>
    %64 = vector.shape_cast %63 : vector<1x8x128xf32> to vector<8x128xf32>
    %65 = vector.shape_cast %62 : vector<8x128xf32> to vector<1x8x128xf32>
    tpu.vector_store %arg12[%c0_24, %c0_25, %c0_26], %65 {strides = array<i32>} : memref<1x128x128xf32, #tpu.memory_space<vmem>>, vector<1x8x128xf32>,
    %66 = arith.negf %62 : vector<8x128xf32>
    %67 = math.exp %66 : vector<8x128xf32>
    %cst_27 = arith.constant 1.000000e+00 : f32
    %68 = vector.broadcast %cst_27 : f32 to vector<8x128xf32>
    %69 = arith.addf %68, %67 : vector<8x128xf32>
    %70 = arith.divf %68, %69 : vector<8x128xf32>
    %c0_28 = arith.constant 0 : index
    %c0_29 = arith.constant 0 : index
    %c0_30 = arith.constant 0 : index
    %71 = vector.load %arg11[%c0_28, %c0_29, %c0_30] : memref<1x128x128xf32, #tpu.memory_space<vmem>>, vector<1x8x128xf32>
    %72 = vector.shape_cast %71 : vector<1x8x128xf32> to vector<8x128xf32>
    %73 = vector.shape_cast %70 : vector<8x128xf32> to vector<1x8x128xf32>
    tpu.vector_store %arg11[%c0_28, %c0_29, %c0_30], %73 {strides = array<i32>} : memref<1x128x128xf32, #tpu.memory_space<vmem>>, vector<1x8x128xf32>,
    %c0_31 = arith.constant 0 : index
    %c256 = arith.constant 256 : index
    %c0_32 = arith.constant 0 : index
    %74 = vector.load %arg2[%c0_31, %c256, %c0_32] : memref<1x4096x4xbf16, #tpu.memory_space<vmem>>, vector<1x256x4xbf16>
    %75 = vector.shape_cast %74 : vector<1x256x4xbf16> to vector<256x4xbf16>
    %cst_33 = arith.constant dense<0.000000e+00> : vector<256x128xf32>
    %76 = tpu.matmul %75, %1, %cst_33 {dimension_numbers = #tpu.dot_dimension_numbers<[1], [0], [0], [1], [0, 0, 1, 1], [], []>} : vector<256x4xbf16>, vector<4x128xbf16>, vector<256x128xf32> -> vector<256x128xf32>
    %77 = vector.broadcast %3 : vector<256x1xf32> to vector<256x128xf32>
    %78 = arith.addf %76, %77 : vector<256x128xf32>
    %cst_34 = arith.constant 0.000000e+00 : f32
    %79 = vector.broadcast %cst_34 : f32 to vector<256x128xf32>
    %80 = arith.maximumf %78, %79 : vector<256x128xf32>
    %81 = arith.truncf %80 : vector<256x128xf32> to vector<256x128xbf16>
    %cst_35 = arith.constant dense<0.000000e+00> : vector<128x128xf32>
    %82 = tpu.matmul %2, %81, %cst_35 {dimension_numbers = #tpu.dot_dimension_numbers<[1], [0], [0], [1], [0, 0, 1, 1], [], []>} : vector<128x256xbf16>, vector<256x128xbf16>, vector<128x128xf32> -> vector<128x128xf32>
    %83 = vector.broadcast %4 : vector<128x1xf32> to vector<128x128xf32>
    %84 = arith.addf %82, %83 : vector<128x128xf32>
    %cst_36 = arith.constant 0.000000e+00 : f32
    %85 = vector.broadcast %cst_36 : f32 to vector<128x128xf32>
    %86 = arith.maximumf %84, %85 : vector<128x128xf32>
    %87 = vector.broadcast %5 : vector<128x1xf32> to vector<128x128xf32>
    %88 = arith.mulf %86, %87 : vector<128x128xf32>
    %89 = vector.extract_strided_slice %88 {offsets = [0, 0], sizes = [8, 128], strides = [1, 1]} : vector<128x128xf32> to vector<8x128xf32>
    %90 = vector.extract_strided_slice %88 {offsets = [8, 0], sizes = [8, 128], strides = [1, 1]} : vector<128x128xf32> to vector<8x128xf32>
    %91 = arith.addf %89, %90 : vector<8x128xf32>
    %92 = vector.extract_strided_slice %88 {offsets = [16, 0], sizes = [8, 128], strides = [1, 1]} : vector<128x128xf32> to vector<8x128xf32>
    %93 = arith.addf %91, %92 : vector<8x128xf32>
    %94 = vector.extract_strided_slice %88 {offsets = [24, 0], sizes = [8, 128], strides = [1, 1]} : vector<128x128xf32> to vector<8x128xf32>
    %95 = arith.addf %93, %94 : vector<8x128xf32>
    %96 = vector.extract_strided_slice %88 {offsets = [32, 0], sizes = [8, 128], strides = [1, 1]} : vector<128x128xf32> to vector<8x128xf32>
    %97 = arith.addf %95, %96 : vector<8x128xf32>
    %98 = vector.extract_strided_slice %88 {offsets = [40, 0], sizes = [8, 128], strides = [1, 1]} : vector<128x128xf32> to vector<8x128xf32>
    %99 = arith.addf %97, %98 : vector<8x128xf32>
    %100 = vector.extract_strided_slice %88 {offsets = [48, 0], sizes = [8, 128], strides = [1, 1]} : vector<128x128xf32> to vector<8x128xf32>
    %101 = arith.addf %99, %100 : vector<8x128xf32>
    %102 = vector.extract_strided_slice %88 {offsets = [56, 0], sizes = [8, 128], strides = [1, 1]} : vector<128x128xf32> to vector<8x128xf32>
    %103 = arith.addf %101, %102 : vector<8x128xf32>
    %104 = vector.extract_strided_slice %88 {offsets = [64, 0], sizes = [8, 128], strides = [1, 1]} : vector<128x128xf32> to vector<8x128xf32>
    %105 = arith.addf %103, %104 : vector<8x128xf32>
    %106 = vector.extract_strided_slice %88 {offsets = [72, 0], sizes = [8, 128], strides = [1, 1]} : vector<128x128xf32> to vector<8x128xf32>
    %107 = arith.addf %105, %106 : vector<8x128xf32>
    %108 = vector.extract_strided_slice %88 {offsets = [80, 0], sizes = [8, 128], strides = [1, 1]} : vector<128x128xf32> to vector<8x128xf32>
    %109 = arith.addf %107, %108 : vector<8x128xf32>
    %110 = vector.extract_strided_slice %88 {offsets = [88, 0], sizes = [8, 128], strides = [1, 1]} : vector<128x128xf32> to vector<8x128xf32>
    %111 = arith.addf %109, %110 : vector<8x128xf32>
    %112 = vector.extract_strided_slice %88 {offsets = [96, 0], sizes = [8, 128], strides = [1, 1]} : vector<128x128xf32> to vector<8x128xf32>
    %113 = arith.addf %111, %112 : vector<8x128xf32>
    %114 = vector.extract_strided_slice %88 {offsets = [104, 0], sizes = [8, 128], strides = [1, 1]} : vector<128x128xf32> to vector<8x128xf32>
    %115 = arith.addf %113, %114 : vector<8x128xf32>
    %116 = vector.extract_strided_slice %88 {offsets = [112, 0], sizes = [8, 128], strides = [1, 1]} : vector<128x128xf32> to vector<8x128xf32>
    %117 = arith.addf %115, %116 : vector<8x128xf32>
    %118 = vector.extract_strided_slice %88 {offsets = [120, 0], sizes = [8, 128], strides = [1, 1]} : vector<128x128xf32> to vector<8x128xf32>
    %119 = arith.addf %117, %118 : vector<8x128xf32>
    %c0_37 = arith.constant 0 : index
    %c8 = arith.constant 8 : index
    %c0_38 = arith.constant 0 : index
    %120 = vector.load %arg4[%c0_37, %c8, %c0_38] : memref<1x128x1xf32, #tpu.memory_space<vmem>>, vector<1x8x1xf32>
    %121 = vector.shape_cast %120 : vector<1x8x1xf32> to vector<8x1xf32>
    %122 = vector.broadcast %6 : vector<1x1xf32> to vector<8x128xf32>
    %123 = arith.addf %119, %122 : vector<8x128xf32>
    %124 = vector.broadcast %121 : vector<8x1xf32> to vector<8x128xf32>
    %125 = vector.broadcast %8 : vector<1x128xf32> to vector<8x128xf32>
    %126 = arith.mulf %124, %125 : vector<8x128xf32>
    %127 = arith.mulf %123, %126 : vector<8x128xf32>
    %c0_39 = arith.constant 0 : index
    %c8_40 = arith.constant 8 : index
    %c0_41 = arith.constant 0 : index
    %128 = vector.load %arg12[%c0_39, %c8_40, %c0_41] : memref<1x128x128xf32, #tpu.memory_space<vmem>>, vector<1x8x128xf32>
    %129 = vector.shape_cast %128 : vector<1x8x128xf32> to vector<8x128xf32>
    %130 = vector.shape_cast %127 : vector<8x128xf32> to vector<1x8x128xf32>
    tpu.vector_store %arg12[%c0_39, %c8_40, %c0_41], %130 {strides = array<i32>} : memref<1x128x128xf32, #tpu.memory_space<vmem>>, vector<1x8x128xf32>,
    %131 = arith.negf %127 : vector<8x128xf32>
    %132 = math.exp %131 : vector<8x128xf32>
    %cst_42 = arith.constant 1.000000e+00 : f32
    %133 = vector.broadcast %cst_42 : f32 to vector<8x128xf32>
    %134 = arith.addf %133, %132 : vector<8x128xf32>
    %135 = arith.divf %133, %134 : vector<8x128xf32>
    %c0_43 = arith.constant 0 : index
    %c8_44 = arith.constant 8 : index
    %c0_45 = arith.constant 0 : index
    %136 = vector.load %arg11[%c0_43, %c8_44, %c0_45] : memref<1x128x128xf32, #tpu.memory_space<vmem>>, vector<1x8x128xf32>
    %137 = vector.shape_cast %136 : vector<1x8x128xf32> to vector<8x128xf32>
    %138 = vector.shape_cast %135 : vector<8x128xf32> to vector<1x8x128xf32>
    tpu.vector_store %arg11[%c0_43, %c8_44, %c0_45], %138 {strides = array<i32>} : memref<1x128x128xf32, #tpu.memory_space<vmem>>, vector<1x8x128xf32>,
    %c0_46 = arith.constant 0 : index
    %c512 = arith.constant 512 : index
    %c0_47 = arith.constant 0 : index
    %139 = vector.load %arg2[%c0_46, %c512, %c0_47] : memref<1x4096x4xbf16, #tpu.memory_space<vmem>>, vector<1x256x4xbf16>
    %140 = vector.shape_cast %139 : vector<1x256x4xbf16> to vector<256x4xbf16>
    %cst_48 = arith.constant dense<0.000000e+00> : vector<256x128xf32>
    %141 = tpu.matmul %140, %1, %cst_48 {dimension_numbers = #tpu.dot_dimension_numbers<[1], [0], [0], [1], [0, 0, 1, 1], [], []>} : vector<256x4xbf16>, vector<4x128xbf16>, vector<256x128xf32> -> vector<256x128xf32>
    %142 = vector.broadcast %3 : vector<256x1xf32> to vector<256x128xf32>
    %143 = arith.addf %141, %142 : vector<256x128xf32>
    %cst_49 = arith.constant 0.000000e+00 : f32
    %144 = vector.broadcast %cst_49 : f32 to vector<256x128xf32>
    %145 = arith.maximumf %143, %144 : vector<256x128xf32>
    %146 = arith.truncf %145 : vector<256x128xf32> to vector<256x128xbf16>
    %cst_50 = arith.constant dense<0.000000e+00> : vector<128x128xf32>
    %147 = tpu.matmul %2, %146, %cst_50 {dimension_numbers = #tpu.dot_dimension_numbers<[1], [0], [0], [1], [0, 0, 1, 1], [], []>} : vector<128x256xbf16>, vector<256x128xbf16>, vector<128x128xf32> -> vector<128x128xf32>
    %148 = vector.broadcast %4 : vector<128x1xf32> to vector<128x128xf32>
    %149 = arith.addf %147, %148 : vector<128x128xf32>
    %cst_51 = arith.constant 0.000000e+00 : f32
    %150 = vector.broadcast %cst_51 : f32 to vector<128x128xf32>
    %151 = arith.maximumf %149, %150 : vector<128x128xf32>
    %152 = vector.broadcast %5 : vector<128x1xf32> to vector<128x128xf32>
    %153 = arith.mulf %151, %152 : vector<128x128xf32>
    %154 = vector.extract_strided_slice %153 {offsets = [0, 0], sizes = [8, 128], strides = [1, 1]} : vector<128x128xf32> to vector<8x128xf32>
    %155 = vector.extract_strided_slice %153 {offsets = [8, 0], sizes = [8, 128], strides = [1, 1]} : vector<128x128xf32> to vector<8x128xf32>
    %156 = arith.addf %154, %155 : vector<8x128xf32>
    %157 = vector.extract_strided_slice %153 {offsets = [16, 0], sizes = [8, 128], strides = [1, 1]} : vector<128x128xf32> to vector<8x128xf32>
    %158 = arith.addf %156, %157 : vector<8x128xf32>
    %159 = vector.extract_strided_slice %153 {offsets = [24, 0], sizes = [8, 128], strides = [1, 1]} : vector<128x128xf32> to vector<8x128xf32>
    %160 = arith.addf %158, %159 : vector<8x128xf32>
    %161 = vector.extract_strided_slice %153 {offsets = [32, 0], sizes = [8, 128], strides = [1, 1]} : vector<128x128xf32> to vector<8x128xf32>
    %162 = arith.addf %160, %161 : vector<8x128xf32>
    %163 = vector.extract_strided_slice %153 {offsets = [40, 0], sizes = [8, 128], strides = [1, 1]} : vector<128x128xf32> to vector<8x128xf32>
    %164 = arith.addf %162, %163 : vector<8x128xf32>
    %165 = vector.extract_strided_slice %153 {offsets = [48, 0], sizes = [8, 128], strides = [1, 1]} : vector<128x128xf32> to vector<8x128xf32>
    %166 = arith.addf %164, %165 : vector<8x128xf32>
    %167 = vector.extract_strided_slice %153 {offsets = [56, 0], sizes = [8, 128], strides = [1, 1]} : vector<128x128xf32> to vector<8x128xf32>
    %168 = arith.addf %166, %167 : vector<8x128xf32>
    %169 = vector.extract_strided_slice %153 {offsets = [64, 0], sizes = [8, 128], strides = [1, 1]} : vector<128x128xf32> to vector<8x128xf32>
    %170 = arith.addf %168, %169 : vector<8x128xf32>
    %171 = vector.extract_strided_slice %153 {offsets = [72, 0], sizes = [8, 128], strides = [1, 1]} : vector<128x128xf32> to vector<8x128xf32>
    %172 = arith.addf %170, %171 : vector<8x128xf32>
    %173 = vector.extract_strided_slice %153 {offsets = [80, 0], sizes = [8, 128], strides = [1, 1]} : vector<128x128xf32> to vector<8x128xf32>
    %174 = arith.addf %172, %173 : vector<8x128xf32>
    %175 = vector.extract_strided_slice %153 {offsets = [88, 0], sizes = [8, 128], strides = [1, 1]} : vector<128x128xf32> to vector<8x128xf32>
    %176 = arith.addf %174, %175 : vector<8x128xf32>
    %177 = vector.extract_strided_slice %153 {offsets = [96, 0], sizes = [8, 128], strides = [1, 1]} : vector<128x128xf32> to vector<8x128xf32>
    %178 = arith.addf %176, %177 : vector<8x128xf32>
    %179 = vector.extract_strided_slice %153 {offsets = [104, 0], sizes = [8, 128], strides = [1, 1]} : vector<128x128xf32> to vector<8x128xf32>
    %180 = arith.addf %178, %179 : vector<8x128xf32>
    %181 = vector.extract_strided_slice %153 {offsets = [112, 0], sizes = [8, 128], strides = [1, 1]} : vector<128x128xf32> to vector<8x128xf32>
    %182 = arith.addf %180, %181 : vector<8x128xf32>
    %183 = vector.extract_strided_slice %153 {offsets = [120, 0], sizes = [8, 128], strides = [1, 1]} : vector<128x128xf32> to vector<8x128xf32>
    %184 = arith.addf %182, %183 : vector<8x128xf32>
    %c0_52 = arith.constant 0 : index
    %c16 = arith.constant 16 : index
    %c0_53 = arith.constant 0 : index
    %185 = vector.load %arg4[%c0_52, %c16, %c0_53] : memref<1x128x1xf32, #tpu.memory_space<vmem>>, vector<1x8x1xf32>
    %186 = vector.shape_cast %185 : vector<1x8x1xf32> to vector<8x1xf32>
    %187 = vector.broadcast %6 : vector<1x1xf32> to vector<8x128xf32>
    %188 = arith.addf %184, %187 : vector<8x128xf32>
    %189 = vector.broadcast %186 : vector<8x1xf32> to vector<8x128xf32>
    %190 = vector.broadcast %8 : vector<1x128xf32> to vector<8x128xf32>
    %191 = arith.mulf %189, %190 : vector<8x128xf32>
    %192 = arith.mulf %188, %191 : vector<8x128xf32>
    %c0_54 = arith.constant 0 : index
    %c16_55 = arith.constant 16 : index
    %c0_56 = arith.constant 0 : index
    %193 = vector.load %arg12[%c0_54, %c16_55, %c0_56] : memref<1x128x128xf32, #tpu.memory_space<vmem>>, vector<1x8x128xf32>
    %194 = vector.shape_cast %193 : vector<1x8x128xf32> to vector<8x128xf32>
    %195 = vector.shape_cast %192 : vector<8x128xf32> to vector<1x8x128xf32>
    tpu.vector_store %arg12[%c0_54, %c16_55, %c0_56], %195 {strides = array<i32>} : memref<1x128x128xf32, #tpu.memory_space<vmem>>, vector<1x8x128xf32>,
    %196 = arith.negf %192 : vector<8x128xf32>
    %197 = math.exp %196 : vector<8x128xf32>
    %cst_57 = arith.constant 1.000000e+00 : f32
    %198 = vector.broadcast %cst_57 : f32 to vector<8x128xf32>
    %199 = arith.addf %198, %197 : vector<8x128xf32>
    %200 = arith.divf %198, %199 : vector<8x128xf32>
    %c0_58 = arith.constant 0 : index
    %c16_59 = arith.constant 16 : index
    %c0_60 = arith.constant 0 : index
    %201 = vector.load %arg11[%c0_58, %c16_59, %c0_60] : memref<1x128x128xf32, #tpu.memory_space<vmem>>, vector<1x8x128xf32>
    %202 = vector.shape_cast %201 : vector<1x8x128xf32> to vector<8x128xf32>
    %203 = vector.shape_cast %200 : vector<8x128xf32> to vector<1x8x128xf32>
    tpu.vector_store %arg11[%c0_58, %c16_59, %c0_60], %203 {strides = array<i32>} : memref<1x128x128xf32, #tpu.memory_space<vmem>>, vector<1x8x128xf32>,
    %c0_61 = arith.constant 0 : index
    %c768 = arith.constant 768 : index
    %c0_62 = arith.constant 0 : index
    %204 = vector.load %arg2[%c0_61, %c768, %c0_62] : memref<1x4096x4xbf16, #tpu.memory_space<vmem>>, vector<1x256x4xbf16>
    %205 = vector.shape_cast %204 : vector<1x256x4xbf16> to vector<256x4xbf16>
    %cst_63 = arith.constant dense<0.000000e+00> : vector<256x128xf32>
    %206 = tpu.matmul %205, %1, %cst_63 {dimension_numbers = #tpu.dot_dimension_numbers<[1], [0], [0], [1], [0, 0, 1, 1], [], []>} : vector<256x4xbf16>, vector<4x128xbf16>, vector<256x128xf32> -> vector<256x128xf32>
    %207 = vector.broadcast %3 : vector<256x1xf32> to vector<256x128xf32>
    %208 = arith.addf %206, %207 : vector<256x128xf32>
    %cst_64 = arith.constant 0.000000e+00 : f32
    %209 = vector.broadcast %cst_64 : f32 to vector<256x128xf32>
    %210 = arith.maximumf %208, %209 : vector<256x128xf32>
    %211 = arith.truncf %210 : vector<256x128xf32> to vector<256x128xbf16>
    %cst_65 = arith.constant dense<0.000000e+00> : vector<128x128xf32>
    %212 = tpu.matmul %2, %211, %cst_65 {dimension_numbers = #tpu.dot_dimension_numbers<[1], [0], [0], [1], [0, 0, 1, 1], [], []>} : vector<128x256xbf16>, vector<256x128xbf16>, vector<128x128xf32> -> vector<128x128xf32>
    %213 = vector.broadcast %4 : vector<128x1xf32> to vector<128x128xf32>
    %214 = arith.addf %212, %213 : vector<128x128xf32>
    %cst_66 = arith.constant 0.000000e+00 : f32
    %215 = vector.broadcast %cst_66 : f32 to vector<128x128xf32>
    %216 = arith.maximumf %214, %215 : vector<128x128xf32>
    %217 = vector.broadcast %5 : vector<128x1xf32> to vector<128x128xf32>
    %218 = arith.mulf %216, %217 : vector<128x128xf32>
    %219 = vector.extract_strided_slice %218 {offsets = [0, 0], sizes = [8, 128], strides = [1, 1]} : vector<128x128xf32> to vector<8x128xf32>
    %220 = vector.extract_strided_slice %218 {offsets = [8, 0], sizes = [8, 128], strides = [1, 1]} : vector<128x128xf32> to vector<8x128xf32>
    %221 = arith.addf %219, %220 : vector<8x128xf32>
    %222 = vector.extract_strided_slice %218 {offsets = [16, 0], sizes = [8, 128], strides = [1, 1]} : vector<128x128xf32> to vector<8x128xf32>
    %223 = arith.addf %221, %222 : vector<8x128xf32>
    %224 = vector.extract_strided_slice %218 {offsets = [24, 0], sizes = [8, 128], strides = [1, 1]} : vector<128x128xf32> to vector<8x128xf32>
    %225 = arith.addf %223, %224 : vector<8x128xf32>
    %226 = vector.extract_strided_slice %218 {offsets = [32, 0], sizes = [8, 128], strides = [1, 1]} : vector<128x128xf32> to vector<8x128xf32>
    %227 = arith.addf %225, %226 : vector<8x128xf32>
    %228 = vector.extract_strided_slice %218 {offsets = [40, 0], sizes = [8, 128], strides = [1, 1]} : vector<128x128xf32> to vector<8x128xf32>
    %229 = arith.addf %227, %228 : vector<8x128xf32>
    %230 = vector.extract_strided_slice %218 {offsets = [48, 0], sizes = [8, 128], strides = [1, 1]} : vector<128x128xf32> to vector<8x128xf32>
    %231 = arith.addf %229, %230 : vector<8x128xf32>
    %232 = vector.extract_strided_slice %218 {offsets = [56, 0], sizes = [8, 128], strides = [1, 1]} : vector<128x128xf32> to vector<8x128xf32>
    %233 = arith.addf %231, %232 : vector<8x128xf32>
    %234 = vector.extract_strided_slice %218 {offsets = [64, 0], sizes = [8, 128], strides = [1, 1]} : vector<128x128xf32> to vector<8x128xf32>
    %235 = arith.addf %233, %234 : vector<8x128xf32>
    %236 = vector.extract_strided_slice %218 {offsets = [72, 0], sizes = [8, 128], strides = [1, 1]} : vector<128x128xf32> to vector<8x128xf32>
    %237 = arith.addf %235, %236 : vector<8x128xf32>
    %238 = vector.extract_strided_slice %218 {offsets = [80, 0], sizes = [8, 128], strides = [1, 1]} : vector<128x128xf32> to vector<8x128xf32>
    %239 = arith.addf %237, %238 : vector<8x128xf32>
    %240 = vector.extract_strided_slice %218 {offsets = [88, 0], sizes = [8, 128], strides = [1, 1]} : vector<128x128xf32> to vector<8x128xf32>
    %241 = arith.addf %239, %240 : vector<8x128xf32>
    %242 = vector.extract_strided_slice %218 {offsets = [96, 0], sizes = [8, 128], strides = [1, 1]} : vector<128x128xf32> to vector<8x128xf32>
    %243 = arith.addf %241, %242 : vector<8x128xf32>
    %244 = vector.extract_strided_slice %218 {offsets = [104, 0], sizes = [8, 128], strides = [1, 1]} : vector<128x128xf32> to vector<8x128xf32>
    %245 = arith.addf %243, %244 : vector<8x128xf32>
    %246 = vector.extract_strided_slice %218 {offsets = [112, 0], sizes = [8, 128], strides = [1, 1]} : vector<128x128xf32> to vector<8x128xf32>
    %247 = arith.addf %245, %246 : vector<8x128xf32>
    %248 = vector.extract_strided_slice %218 {offsets = [120, 0], sizes = [8, 128], strides = [1, 1]} : vector<128x128xf32> to vector<8x128xf32>
    %249 = arith.addf %247, %248 : vector<8x128xf32>
    %c0_67 = arith.constant 0 : index
    %c24 = arith.constant 24 : index
    %c0_68 = arith.constant 0 : index
    %250 = vector.load %arg4[%c0_67, %c24, %c0_68] : memref<1x128x1xf32, #tpu.memory_space<vmem>>, vector<1x8x1xf32>
    %251 = vector.shape_cast %250 : vector<1x8x1xf32> to vector<8x1xf32>
    %252 = vector.broadcast %6 : vector<1x1xf32> to vector<8x128xf32>
    %253 = arith.addf %249, %252 : vector<8x128xf32>
    %254 = vector.broadcast %251 : vector<8x1xf32> to vector<8x128xf32>
    %255 = vector.broadcast %8 : vector<1x128xf32> to vector<8x128xf32>
    %256 = arith.mulf %254, %255 : vector<8x128xf32>
    %257 = arith.mulf %253, %256 : vector<8x128xf32>
    %c0_69 = arith.constant 0 : index
    %c24_70 = arith.constant 24 : index
    %c0_71 = arith.constant 0 : index
    %258 = vector.load %arg12[%c0_69, %c24_70, %c0_71] : memref<1x128x128xf32, #tpu.memory_space<vmem>>, vector<1x8x128xf32>
    %259 = vector.shape_cast %258 : vector<1x8x128xf32> to vector<8x128xf32>
    %260 = vector.shape_cast %257 : vector<8x128xf32> to vector<1x8x128xf32>
    tpu.vector_store %arg12[%c0_69, %c24_70, %c0_71], %260 {strides = array<i32>} : memref<1x128x128xf32, #tpu.memory_space<vmem>>, vector<1x8x128xf32>,
    %261 = arith.negf %257 : vector<8x128xf32>
    %262 = math.exp %261 : vector<8x128xf32>
    %cst_72 = arith.constant 1.000000e+00 : f32
    %263 = vector.broadcast %cst_72 : f32 to vector<8x128xf32>
    %264 = arith.addf %263, %262 : vector<8x128xf32>
    %265 = arith.divf %263, %264 : vector<8x128xf32>
    %c0_73 = arith.constant 0 : index
    %c24_74 = arith.constant 24 : index
    %c0_75 = arith.constant 0 : index
    %266 = vector.load %arg11[%c0_73, %c24_74, %c0_75] : memref<1x128x128xf32, #tpu.memory_space<vmem>>, vector<1x8x128xf32>
    %267 = vector.shape_cast %266 : vector<1x8x128xf32> to vector<8x128xf32>
    %268 = vector.shape_cast %265 : vector<8x128xf32> to vector<1x8x128xf32>
    tpu.vector_store %arg11[%c0_73, %c24_74, %c0_75], %268 {strides = array<i32>} : memref<1x128x128xf32, #tpu.memory_space<vmem>>, vector<1x8x128xf32>,
    %c0_76 = arith.constant 0 : index
    %c1024 = arith.constant 1024 : index
    %c0_77 = arith.constant 0 : index
    %269 = vector.load %arg2[%c0_76, %c1024, %c0_77] : memref<1x4096x4xbf16, #tpu.memory_space<vmem>>, vector<1x256x4xbf16>
    %270 = vector.shape_cast %269 : vector<1x256x4xbf16> to vector<256x4xbf16>
    %cst_78 = arith.constant dense<0.000000e+00> : vector<256x128xf32>
    %271 = tpu.matmul %270, %1, %cst_78 {dimension_numbers = #tpu.dot_dimension_numbers<[1], [0], [0], [1], [0, 0, 1, 1], [], []>} : vector<256x4xbf16>, vector<4x128xbf16>, vector<256x128xf32> -> vector<256x128xf32>
    %272 = vector.broadcast %3 : vector<256x1xf32> to vector<256x128xf32>
    %273 = arith.addf %271, %272 : vector<256x128xf32>
    %cst_79 = arith.constant 0.000000e+00 : f32
    %274 = vector.broadcast %cst_79 : f32 to vector<256x128xf32>
    %275 = arith.maximumf %273, %274 : vector<256x128xf32>
    %276 = arith.truncf %275 : vector<256x128xf32> to vector<256x128xbf16>
    %cst_80 = arith.constant dense<0.000000e+00> : vector<128x128xf32>
    %277 = tpu.matmul %2, %276, %cst_80 {dimension_numbers = #tpu.dot_dimension_numbers<[1], [0], [0], [1], [0, 0, 1, 1], [], []>} : vector<128x256xbf16>, vector<256x128xbf16>, vector<128x128xf32> -> vector<128x128xf32>
    %278 = vector.broadcast %4 : vector<128x1xf32> to vector<128x128xf32>
    %279 = arith.addf %277, %278 : vector<128x128xf32>
    %cst_81 = arith.constant 0.000000e+00 : f32
    %280 = vector.broadcast %cst_81 : f32 to vector<128x128xf32>
    %281 = arith.maximumf %279, %280 : vector<128x128xf32>
    %282 = vector.broadcast %5 : vector<128x1xf32> to vector<128x128xf32>
    %283 = arith.mulf %281, %282 : vector<128x128xf32>
    %284 = vector.extract_strided_slice %283 {offsets = [0, 0], sizes = [8, 128], strides = [1, 1]} : vector<128x128xf32> to vector<8x128xf32>
    %285 = vector.extract_strided_slice %283 {offsets = [8, 0], sizes = [8, 128], strides = [1, 1]} : vector<128x128xf32> to vector<8x128xf32>
    %286 = arith.addf %284, %285 : vector<8x128xf32>
    %287 = vector.extract_strided_slice %283 {offsets = [16, 0], sizes = [8, 128], strides = [1, 1]} : vector<128x128xf32> to vector<8x128xf32>
    %288 = arith.addf %286, %287 : vector<8x128xf32>
    %289 = vector.extract_strided_slice %283 {offsets = [24, 0], sizes = [8, 128], strides = [1, 1]} : vector<128x128xf32> to vector<8x128xf32>
    %290 = arith.addf %288, %289 : vector<8x128xf32>
    %291 = vector.extract_strided_slice %283 {offsets = [32, 0], sizes = [8, 128], strides = [1, 1]} : vector<128x128xf32> to vector<8x128xf32>
    %292 = arith.addf %290, %291 : vector<8x128xf32>
    %293 = vector.extract_strided_slice %283 {offsets = [40, 0], sizes = [8, 128], strides = [1, 1]} : vector<128x128xf32> to vector<8x128xf32>
    %294 = arith.addf %292, %293 : vector<8x128xf32>
    %295 = vector.extract_strided_slice %283 {offsets = [48, 0], sizes = [8, 128], strides = [1, 1]} : vector<128x128xf32> to vector<8x128xf32>
    %296 = arith.addf %294, %295 : vector<8x128xf32>
    %297 = vector.extract_strided_slice %283 {offsets = [56, 0], sizes = [8, 128], strides = [1, 1]} : vector<128x128xf32> to vector<8x128xf32>
    %298 = arith.addf %296, %297 : vector<8x128xf32>
    %299 = vector.extract_strided_slice %283 {offsets = [64, 0], sizes = [8, 128], strides = [1, 1]} : vector<128x128xf32> to vector<8x128xf32>
    %300 = arith.addf %298, %299 : vector<8x128xf32>
    %301 = vector.extract_strided_slice %283 {offsets = [72, 0], sizes = [8, 128], strides = [1, 1]} : vector<128x128xf32> to vector<8x128xf32>
    %302 = arith.addf %300, %301 : vector<8x128xf32>
    %303 = vector.extract_strided_slice %283 {offsets = [80, 0], sizes = [8, 128], strides = [1, 1]} : vector<128x128xf32> to vector<8x128xf32>
    %304 = arith.addf %302, %303 : vector<8x128xf32>
    %305 = vector.extract_strided_slice %283 {offsets = [88, 0], sizes = [8, 128], strides = [1, 1]} : vector<128x128xf32> to vector<8x128xf32>
    %306 = arith.addf %304, %305 : vector<8x128xf32>
    %307 = vector.extract_strided_slice %283 {offsets = [96, 0], sizes = [8, 128], strides = [1, 1]} : vector<128x128xf32> to vector<8x128xf32>
    %308 = arith.addf %306, %307 : vector<8x128xf32>
    %309 = vector.extract_strided_slice %283 {offsets = [104, 0], sizes = [8, 128], strides = [1, 1]} : vector<128x128xf32> to vector<8x128xf32>
    %310 = arith.addf %308, %309 : vector<8x128xf32>
    %311 = vector.extract_strided_slice %283 {offsets = [112, 0], sizes = [8, 128], strides = [1, 1]} : vector<128x128xf32> to vector<8x128xf32>
    %312 = arith.addf %310, %311 : vector<8x128xf32>
    %313 = vector.extract_strided_slice %283 {offsets = [120, 0], sizes = [8, 128], strides = [1, 1]} : vector<128x128xf32> to vector<8x128xf32>
    %314 = arith.addf %312, %313 : vector<8x128xf32>
    %c0_82 = arith.constant 0 : index
    %c32 = arith.constant 32 : index
    %c0_83 = arith.constant 0 : index
    %315 = vector.load %arg4[%c0_82, %c32, %c0_83] : memref<1x128x1xf32, #tpu.memory_space<vmem>>, vector<1x8x1xf32>
    %316 = vector.shape_cast %315 : vector<1x8x1xf32> to vector<8x1xf32>
    %317 = vector.broadcast %6 : vector<1x1xf32> to vector<8x128xf32>
    %318 = arith.addf %314, %317 : vector<8x128xf32>
    %319 = vector.broadcast %316 : vector<8x1xf32> to vector<8x128xf32>
    %320 = vector.broadcast %8 : vector<1x128xf32> to vector<8x128xf32>
    %321 = arith.mulf %319, %320 : vector<8x128xf32>
    %322 = arith.mulf %318, %321 : vector<8x128xf32>
    %c0_84 = arith.constant 0 : index
    %c32_85 = arith.constant 32 : index
    %c0_86 = arith.constant 0 : index
    %323 = vector.load %arg12[%c0_84, %c32_85, %c0_86] : memref<1x128x128xf32, #tpu.memory_space<vmem>>, vector<1x8x128xf32>
    %324 = vector.shape_cast %323 : vector<1x8x128xf32> to vector<8x128xf32>
    %325 = vector.shape_cast %322 : vector<8x128xf32> to vector<1x8x128xf32>
    tpu.vector_store %arg12[%c0_84, %c32_85, %c0_86], %325 {strides = array<i32>} : memref<1x128x128xf32, #tpu.memory_space<vmem>>, vector<1x8x128xf32>,
    %326 = arith.negf %322 : vector<8x128xf32>
    %327 = math.exp %326 : vector<8x128xf32>
    %cst_87 = arith.constant 1.000000e+00 : f32
    %328 = vector.broadcast %cst_87 : f32 to vector<8x128xf32>
    %329 = arith.addf %328, %327 : vector<8x128xf32>
    %330 = arith.divf %328, %329 : vector<8x128xf32>
    %c0_88 = arith.constant 0 : index
    %c32_89 = arith.constant 32 : index
    %c0_90 = arith.constant 0 : index
    %331 = vector.load %arg11[%c0_88, %c32_89, %c0_90] : memref<1x128x128xf32, #tpu.memory_space<vmem>>, vector<1x8x128xf32>
    %332 = vector.shape_cast %331 : vector<1x8x128xf32> to vector<8x128xf32>
    %333 = vector.shape_cast %330 : vector<8x128xf32> to vector<1x8x128xf32>
    tpu.vector_store %arg11[%c0_88, %c32_89, %c0_90], %333 {strides = array<i32>} : memref<1x128x128xf32, #tpu.memory_space<vmem>>, vector<1x8x128xf32>,
    %c0_91 = arith.constant 0 : index
    %c1280 = arith.constant 1280 : index
    %c0_92 = arith.constant 0 : index
    %334 = vector.load %arg2[%c0_91, %c1280, %c0_92] : memref<1x4096x4xbf16, #tpu.memory_space<vmem>>, vector<1x256x4xbf16>
    %335 = vector.shape_cast %334 : vector<1x256x4xbf16> to vector<256x4xbf16>
    %cst_93 = arith.constant dense<0.000000e+00> : vector<256x128xf32>
    %336 = tpu.matmul %335, %1, %cst_93 {dimension_numbers = #tpu.dot_dimension_numbers<[1], [0], [0], [1], [0, 0, 1, 1], [], []>} : vector<256x4xbf16>, vector<4x128xbf16>, vector<256x128xf32> -> vector<256x128xf32>
    %337 = vector.broadcast %3 : vector<256x1xf32> to vector<256x128xf32>
    %338 = arith.addf %336, %337 : vector<256x128xf32>
    %cst_94 = arith.constant 0.000000e+00 : f32
    %339 = vector.broadcast %cst_94 : f32 to vector<256x128xf32>
    %340 = arith.maximumf %338, %339 : vector<256x128xf32>
    %341 = arith.truncf %340 : vector<256x128xf32> to vector<256x128xbf16>
    %cst_95 = arith.constant dense<0.000000e+00> : vector<128x128xf32>
    %342 = tpu.matmul %2, %341, %cst_95 {dimension_numbers = #tpu.dot_dimension_numbers<[1], [0], [0], [1], [0, 0, 1, 1], [], []>} : vector<128x256xbf16>, vector<256x128xbf16>, vector<128x128xf32> -> vector<128x128xf32>
    %343 = vector.broadcast %4 : vector<128x1xf32> to vector<128x128xf32>
    %344 = arith.addf %342, %343 : vector<128x128xf32>
    %cst_96 = arith.constant 0.000000e+00 : f32
    %345 = vector.broadcast %cst_96 : f32 to vector<128x128xf32>
    %346 = arith.maximumf %344, %345 : vector<128x128xf32>
    %347 = vector.broadcast %5 : vector<128x1xf32> to vector<128x128xf32>
    %348 = arith.mulf %346, %347 : vector<128x128xf32>
    %349 = vector.extract_strided_slice %348 {offsets = [0, 0], sizes = [8, 128], strides = [1, 1]} : vector<128x128xf32> to vector<8x128xf32>
    %350 = vector.extract_strided_slice %348 {offsets = [8, 0], sizes = [8, 128], strides = [1, 1]} : vector<128x128xf32> to vector<8x128xf32>
    %351 = arith.addf %349, %350 : vector<8x128xf32>
    %352 = vector.extract_strided_slice %348 {offsets = [16, 0], sizes = [8, 128], strides = [1, 1]} : vector<128x128xf32> to vector<8x128xf32>
    %353 = arith.addf %351, %352 : vector<8x128xf32>
    %354 = vector.extract_strided_slice %348 {offsets = [24, 0], sizes = [8, 128], strides = [1, 1]} : vector<128x128xf32> to vector<8x128xf32>
    %355 = arith.addf %353, %354 : vector<8x128xf32>
    %356 = vector.extract_strided_slice %348 {offsets = [32, 0], sizes = [8, 128], strides = [1, 1]} : vector<128x128xf32> to vector<8x128xf32>
    %357 = arith.addf %355, %356 : vector<8x128xf32>
    %358 = vector.extract_strided_slice %348 {offsets = [40, 0], sizes = [8, 128], strides = [1, 1]} : vector<128x128xf32> to vector<8x128xf32>
    %359 = arith.addf %357, %358 : vector<8x128xf32>
    %360 = vector.extract_strided_slice %348 {offsets = [48, 0], sizes = [8, 128], strides = [1, 1]} : vector<128x128xf32> to vector<8x128xf32>
    %361 = arith.addf %359, %360 : vector<8x128xf32>
    %362 = vector.extract_strided_slice %348 {offsets = [56, 0], sizes = [8, 128], strides = [1, 1]} : vector<128x128xf32> to vector<8x128xf32>
    %363 = arith.addf %361, %362 : vector<8x128xf32>
    %364 = vector.extract_strided_slice %348 {offsets = [64, 0], sizes = [8, 128], strides = [1, 1]} : vector<128x128xf32> to vector<8x128xf32>
    %365 = arith.addf %363, %364 : vector<8x128xf32>
    %366 = vector.extract_strided_slice %348 {offsets = [72, 0], sizes = [8, 128], strides = [1, 1]} : vector<128x128xf32> to vector<8x128xf32>
    %367 = arith.addf %365, %366 : vector<8x128xf32>
    %368 = vector.extract_strided_slice %348 {offsets = [80, 0], sizes = [8, 128], strides = [1, 1]} : vector<128x128xf32> to vector<8x128xf32>
    %369 = arith.addf %367, %368 : vector<8x128xf32>
    %370 = vector.extract_strided_slice %348 {offsets = [88, 0], sizes = [8, 128], strides = [1, 1]} : vector<128x128xf32> to vector<8x128xf32>
    %371 = arith.addf %369, %370 : vector<8x128xf32>
    %372 = vector.extract_strided_slice %348 {offsets = [96, 0], sizes = [8, 128], strides = [1, 1]} : vector<128x128xf32> to vector<8x128xf32>
    %373 = arith.addf %371, %372 : vector<8x128xf32>
    %374 = vector.extract_strided_slice %348 {offsets = [104, 0], sizes = [8, 128], strides = [1, 1]} : vector<128x128xf32> to vector<8x128xf32>
    %375 = arith.addf %373, %374 : vector<8x128xf32>
    %376 = vector.extract_strided_slice %348 {offsets = [112, 0], sizes = [8, 128], strides = [1, 1]} : vector<128x128xf32> to vector<8x128xf32>
    %377 = arith.addf %375, %376 : vector<8x128xf32>
    %378 = vector.extract_strided_slice %348 {offsets = [120, 0], sizes = [8, 128], strides = [1, 1]} : vector<128x128xf32> to vector<8x128xf32>
    %379 = arith.addf %377, %378 : vector<8x128xf32>
    %c0_97 = arith.constant 0 : index
    %c40 = arith.constant 40 : index
    %c0_98 = arith.constant 0 : index
    %380 = vector.load %arg4[%c0_97, %c40, %c0_98] : memref<1x128x1xf32, #tpu.memory_space<vmem>>, vector<1x8x1xf32>
    %381 = vector.shape_cast %380 : vector<1x8x1xf32> to vector<8x1xf32>
    %382 = vector.broadcast %6 : vector<1x1xf32> to vector<8x128xf32>
    %383 = arith.addf %379, %382 : vector<8x128xf32>
    %384 = vector.broadcast %381 : vector<8x1xf32> to vector<8x128xf32>
    %385 = vector.broadcast %8 : vector<1x128xf32> to vector<8x128xf32>
    %386 = arith.mulf %384, %385 : vector<8x128xf32>
    %387 = arith.mulf %383, %386 : vector<8x128xf32>
    %c0_99 = arith.constant 0 : index
    %c40_100 = arith.constant 40 : index
    %c0_101 = arith.constant 0 : index
    %388 = vector.load %arg12[%c0_99, %c40_100, %c0_101] : memref<1x128x128xf32, #tpu.memory_space<vmem>>, vector<1x8x128xf32>
    %389 = vector.shape_cast %388 : vector<1x8x128xf32> to vector<8x128xf32>
    %390 = vector.shape_cast %387 : vector<8x128xf32> to vector<1x8x128xf32>
    tpu.vector_store %arg12[%c0_99, %c40_100, %c0_101], %390 {strides = array<i32>} : memref<1x128x128xf32, #tpu.memory_space<vmem>>, vector<1x8x128xf32>,
    %391 = arith.negf %387 : vector<8x128xf32>
    %392 = math.exp %391 : vector<8x128xf32>
    %cst_102 = arith.constant 1.000000e+00 : f32
    %393 = vector.broadcast %cst_102 : f32 to vector<8x128xf32>
    %394 = arith.addf %393, %392 : vector<8x128xf32>
    %395 = arith.divf %393, %394 : vector<8x128xf32>
    %c0_103 = arith.constant 0 : index
    %c40_104 = arith.constant 40 : index
    %c0_105 = arith.constant 0 : index
    %396 = vector.load %arg11[%c0_103, %c40_104, %c0_105] : memref<1x128x128xf32, #tpu.memory_space<vmem>>, vector<1x8x128xf32>
    %397 = vector.shape_cast %396 : vector<1x8x128xf32> to vector<8x128xf32>
    %398 = vector.shape_cast %395 : vector<8x128xf32> to vector<1x8x128xf32>
    tpu.vector_store %arg11[%c0_103, %c40_104, %c0_105], %398 {strides = array<i32>} : memref<1x128x128xf32, #tpu.memory_space<vmem>>, vector<1x8x128xf32>,
    %c0_106 = arith.constant 0 : index
    %c1536 = arith.constant 1536 : index
    %c0_107 = arith.constant 0 : index
    %399 = vector.load %arg2[%c0_106, %c1536, %c0_107] : memref<1x4096x4xbf16, #tpu.memory_space<vmem>>, vector<1x256x4xbf16>
    %400 = vector.shape_cast %399 : vector<1x256x4xbf16> to vector<256x4xbf16>
    %cst_108 = arith.constant dense<0.000000e+00> : vector<256x128xf32>
    %401 = tpu.matmul %400, %1, %cst_108 {dimension_numbers = #tpu.dot_dimension_numbers<[1], [0], [0], [1], [0, 0, 1, 1], [], []>} : vector<256x4xbf16>, vector<4x128xbf16>, vector<256x128xf32> -> vector<256x128xf32>
    %402 = vector.broadcast %3 : vector<256x1xf32> to vector<256x128xf32>
    %403 = arith.addf %401, %402 : vector<256x128xf32>
    %cst_109 = arith.constant 0.000000e+00 : f32
    %404 = vector.broadcast %cst_109 : f32 to vector<256x128xf32>
    %405 = arith.maximumf %403, %404 : vector<256x128xf32>
    %406 = arith.truncf %405 : vector<256x128xf32> to vector<256x128xbf16>
    %cst_110 = arith.constant dense<0.000000e+00> : vector<128x128xf32>
    %407 = tpu.matmul %2, %406, %cst_110 {dimension_numbers = #tpu.dot_dimension_numbers<[1], [0], [0], [1], [0, 0, 1, 1], [], []>} : vector<128x256xbf16>, vector<256x128xbf16>, vector<128x128xf32> -> vector<128x128xf32>
    %408 = vector.broadcast %4 : vector<128x1xf32> to vector<128x128xf32>
    %409 = arith.addf %407, %408 : vector<128x128xf32>
    %cst_111 = arith.constant 0.000000e+00 : f32
    %410 = vector.broadcast %cst_111 : f32 to vector<128x128xf32>
    %411 = arith.maximumf %409, %410 : vector<128x128xf32>
    %412 = vector.broadcast %5 : vector<128x1xf32> to vector<128x128xf32>
    %413 = arith.mulf %411, %412 : vector<128x128xf32>
    %414 = vector.extract_strided_slice %413 {offsets = [0, 0], sizes = [8, 128], strides = [1, 1]} : vector<128x128xf32> to vector<8x128xf32>
    %415 = vector.extract_strided_slice %413 {offsets = [8, 0], sizes = [8, 128], strides = [1, 1]} : vector<128x128xf32> to vector<8x128xf32>
    %416 = arith.addf %414, %415 : vector<8x128xf32>
    %417 = vector.extract_strided_slice %413 {offsets = [16, 0], sizes = [8, 128], strides = [1, 1]} : vector<128x128xf32> to vector<8x128xf32>
    %418 = arith.addf %416, %417 : vector<8x128xf32>
    %419 = vector.extract_strided_slice %413 {offsets = [24, 0], sizes = [8, 128], strides = [1, 1]} : vector<128x128xf32> to vector<8x128xf32>
    %420 = arith.addf %418, %419 : vector<8x128xf32>
    %421 = vector.extract_strided_slice %413 {offsets = [32, 0], sizes = [8, 128], strides = [1, 1]} : vector<128x128xf32> to vector<8x128xf32>
    %422 = arith.addf %420, %421 : vector<8x128xf32>
    %423 = vector.extract_strided_slice %413 {offsets = [40, 0], sizes = [8, 128], strides = [1, 1]} : vector<128x128xf32> to vector<8x128xf32>
    %424 = arith.addf %422, %423 : vector<8x128xf32>
    %425 = vector.extract_strided_slice %413 {offsets = [48, 0], sizes = [8, 128], strides = [1, 1]} : vector<128x128xf32> to vector<8x128xf32>
    %426 = arith.addf %424, %425 : vector<8x128xf32>
    %427 = vector.extract_strided_slice %413 {offsets = [56, 0], sizes = [8, 128], strides = [1, 1]} : vector<128x128xf32> to vector<8x128xf32>
    %428 = arith.addf %426, %427 : vector<8x128xf32>
    %429 = vector.extract_strided_slice %413 {offsets = [64, 0], sizes = [8, 128], strides = [1, 1]} : vector<128x128xf32> to vector<8x128xf32>
    %430 = arith.addf %428, %429 : vector<8x128xf32>
    %431 = vector.extract_strided_slice %413 {offsets = [72, 0], sizes = [8, 128], strides = [1, 1]} : vector<128x128xf32> to vector<8x128xf32>
    %432 = arith.addf %430, %431 : vector<8x128xf32>
    %433 = vector.extract_strided_slice %413 {offsets = [80, 0], sizes = [8, 128], strides = [1, 1]} : vector<128x128xf32> to vector<8x128xf32>
    %434 = arith.addf %432, %433 : vector<8x128xf32>
    %435 = vector.extract_strided_slice %413 {offsets = [88, 0], sizes = [8, 128], strides = [1, 1]} : vector<128x128xf32> to vector<8x128xf32>
    %436 = arith.addf %434, %435 : vector<8x128xf32>
    %437 = vector.extract_strided_slice %413 {offsets = [96, 0], sizes = [8, 128], strides = [1, 1]} : vector<128x128xf32> to vector<8x128xf32>
    %438 = arith.addf %436, %437 : vector<8x128xf32>
    %439 = vector.extract_strided_slice %413 {offsets = [104, 0], sizes = [8, 128], strides = [1, 1]} : vector<128x128xf32> to vector<8x128xf32>
    %440 = arith.addf %438, %439 : vector<8x128xf32>
    %441 = vector.extract_strided_slice %413 {offsets = [112, 0], sizes = [8, 128], strides = [1, 1]} : vector<128x128xf32> to vector<8x128xf32>
    %442 = arith.addf %440, %441 : vector<8x128xf32>
    %443 = vector.extract_strided_slice %413 {offsets = [120, 0], sizes = [8, 128], strides = [1, 1]} : vector<128x128xf32> to vector<8x128xf32>
    %444 = arith.addf %442, %443 : vector<8x128xf32>
    %c0_112 = arith.constant 0 : index
    %c48 = arith.constant 48 : index
    %c0_113 = arith.constant 0 : index
    %445 = vector.load %arg4[%c0_112, %c48, %c0_113] : memref<1x128x1xf32, #tpu.memory_space<vmem>>, vector<1x8x1xf32>
    %446 = vector.shape_cast %445 : vector<1x8x1xf32> to vector<8x1xf32>
    %447 = vector.broadcast %6 : vector<1x1xf32> to vector<8x128xf32>
    %448 = arith.addf %444, %447 : vector<8x128xf32>
    %449 = vector.broadcast %446 : vector<8x1xf32> to vector<8x128xf32>
    %450 = vector.broadcast %8 : vector<1x128xf32> to vector<8x128xf32>
    %451 = arith.mulf %449, %450 : vector<8x128xf32>
    %452 = arith.mulf %448, %451 : vector<8x128xf32>
    %c0_114 = arith.constant 0 : index
    %c48_115 = arith.constant 48 : index
    %c0_116 = arith.constant 0 : index
    %453 = vector.load %arg12[%c0_114, %c48_115, %c0_116] : memref<1x128x128xf32, #tpu.memory_space<vmem>>, vector<1x8x128xf32>
    %454 = vector.shape_cast %453 : vector<1x8x128xf32> to vector<8x128xf32>
    %455 = vector.shape_cast %452 : vector<8x128xf32> to vector<1x8x128xf32>
    tpu.vector_store %arg12[%c0_114, %c48_115, %c0_116], %455 {strides = array<i32>} : memref<1x128x128xf32, #tpu.memory_space<vmem>>, vector<1x8x128xf32>,
    %456 = arith.negf %452 : vector<8x128xf32>
    %457 = math.exp %456 : vector<8x128xf32>
    %cst_117 = arith.constant 1.000000e+00 : f32
    %458 = vector.broadcast %cst_117 : f32 to vector<8x128xf32>
    %459 = arith.addf %458, %457 : vector<8x128xf32>
    %460 = arith.divf %458, %459 : vector<8x128xf32>
    %c0_118 = arith.constant 0 : index
    %c48_119 = arith.constant 48 : index
    %c0_120 = arith.constant 0 : index
    %461 = vector.load %arg11[%c0_118, %c48_119, %c0_120] : memref<1x128x128xf32, #tpu.memory_space<vmem>>, vector<1x8x128xf32>
    %462 = vector.shape_cast %461 : vector<1x8x128xf32> to vector<8x128xf32>
    %463 = vector.shape_cast %460 : vector<8x128xf32> to vector<1x8x128xf32>
    tpu.vector_store %arg11[%c0_118, %c48_119, %c0_120], %463 {strides = array<i32>} : memref<1x128x128xf32, #tpu.memory_space<vmem>>, vector<1x8x128xf32>,
    %c0_121 = arith.constant 0 : index
    %c1792 = arith.constant 1792 : index
    %c0_122 = arith.constant 0 : index
    %464 = vector.load %arg2[%c0_121, %c1792, %c0_122] : memref<1x4096x4xbf16, #tpu.memory_space<vmem>>, vector<1x256x4xbf16>
    %465 = vector.shape_cast %464 : vector<1x256x4xbf16> to vector<256x4xbf16>
    %cst_123 = arith.constant dense<0.000000e+00> : vector<256x128xf32>
    %466 = tpu.matmul %465, %1, %cst_123 {dimension_numbers = #tpu.dot_dimension_numbers<[1], [0], [0], [1], [0, 0, 1, 1], [], []>} : vector<256x4xbf16>, vector<4x128xbf16>, vector<256x128xf32> -> vector<256x128xf32>
    %467 = vector.broadcast %3 : vector<256x1xf32> to vector<256x128xf32>
    %468 = arith.addf %466, %467 : vector<256x128xf32>
    %cst_124 = arith.constant 0.000000e+00 : f32
    %469 = vector.broadcast %cst_124 : f32 to vector<256x128xf32>
    %470 = arith.maximumf %468, %469 : vector<256x128xf32>
    %471 = arith.truncf %470 : vector<256x128xf32> to vector<256x128xbf16>
    %cst_125 = arith.constant dense<0.000000e+00> : vector<128x128xf32>
    %472 = tpu.matmul %2, %471, %cst_125 {dimension_numbers = #tpu.dot_dimension_numbers<[1], [0], [0], [1], [0, 0, 1, 1], [], []>} : vector<128x256xbf16>, vector<256x128xbf16>, vector<128x128xf32> -> vector<128x128xf32>
    %473 = vector.broadcast %4 : vector<128x1xf32> to vector<128x128xf32>
    %474 = arith.addf %472, %473 : vector<128x128xf32>
    %cst_126 = arith.constant 0.000000e+00 : f32
    %475 = vector.broadcast %cst_126 : f32 to vector<128x128xf32>
    %476 = arith.maximumf %474, %475 : vector<128x128xf32>
    %477 = vector.broadcast %5 : vector<128x1xf32> to vector<128x128xf32>
    %478 = arith.mulf %476, %477 : vector<128x128xf32>
    %479 = vector.extract_strided_slice %478 {offsets = [0, 0], sizes = [8, 128], strides = [1, 1]} : vector<128x128xf32> to vector<8x128xf32>
    %480 = vector.extract_strided_slice %478 {offsets = [8, 0], sizes = [8, 128], strides = [1, 1]} : vector<128x128xf32> to vector<8x128xf32>
    %481 = arith.addf %479, %480 : vector<8x128xf32>
    %482 = vector.extract_strided_slice %478 {offsets = [16, 0], sizes = [8, 128], strides = [1, 1]} : vector<128x128xf32> to vector<8x128xf32>
    %483 = arith.addf %481, %482 : vector<8x128xf32>
    %484 = vector.extract_strided_slice %478 {offsets = [24, 0], sizes = [8, 128], strides = [1, 1]} : vector<128x128xf32> to vector<8x128xf32>
    %485 = arith.addf %483, %484 : vector<8x128xf32>
    %486 = vector.extract_strided_slice %478 {offsets = [32, 0], sizes = [8, 128], strides = [1, 1]} : vector<128x128xf32> to vector<8x128xf32>
    %487 = arith.addf %485, %486 : vector<8x128xf32>
    %488 = vector.extract_strided_slice %478 {offsets = [40, 0], sizes = [8, 128], strides = [1, 1]} : vector<128x128xf32> to vector<8x128xf32>
    %489 = arith.addf %487, %488 : vector<8x128xf32>
    %490 = vector.extract_strided_slice %478 {offsets = [48, 0], sizes = [8, 128], strides = [1, 1]} : vector<128x128xf32> to vector<8x128xf32>
    %491 = arith.addf %489, %490 : vector<8x128xf32>
    %492 = vector.extract_strided_slice %478 {offsets = [56, 0], sizes = [8, 128], strides = [1, 1]} : vector<128x128xf32> to vector<8x128xf32>
    %493 = arith.addf %491, %492 : vector<8x128xf32>
    %494 = vector.extract_strided_slice %478 {offsets = [64, 0], sizes = [8, 128], strides = [1, 1]} : vector<128x128xf32> to vector<8x128xf32>
    %495 = arith.addf %493, %494 : vector<8x128xf32>
    %496 = vector.extract_strided_slice %478 {offsets = [72, 0], sizes = [8, 128], strides = [1, 1]} : vector<128x128xf32> to vector<8x128xf32>
    %497 = arith.addf %495, %496 : vector<8x128xf32>
    %498 = vector.extract_strided_slice %478 {offsets = [80, 0], sizes = [8, 128], strides = [1, 1]} : vector<128x128xf32> to vector<8x128xf32>
    %499 = arith.addf %497, %498 : vector<8x128xf32>
    %500 = vector.extract_strided_slice %478 {offsets = [88, 0], sizes = [8, 128], strides = [1, 1]} : vector<128x128xf32> to vector<8x128xf32>
    %501 = arith.addf %499, %500 : vector<8x128xf32>
    %502 = vector.extract_strided_slice %478 {offsets = [96, 0], sizes = [8, 128], strides = [1, 1]} : vector<128x128xf32> to vector<8x128xf32>
    %503 = arith.addf %501, %502 : vector<8x128xf32>
    %504 = vector.extract_strided_slice %478 {offsets = [104, 0], sizes = [8, 128], strides = [1, 1]} : vector<128x128xf32> to vector<8x128xf32>
    %505 = arith.addf %503, %504 : vector<8x128xf32>
    %506 = vector.extract_strided_slice %478 {offsets = [112, 0], sizes = [8, 128], strides = [1, 1]} : vector<128x128xf32> to vector<8x128xf32>
    %507 = arith.addf %505, %506 : vector<8x128xf32>
    %508 = vector.extract_strided_slice %478 {offsets = [120, 0], sizes = [8, 128], strides = [1, 1]} : vector<128x128xf32> to vector<8x128xf32>
    %509 = arith.addf %507, %508 : vector<8x128xf32>
    %c0_127 = arith.constant 0 : index
    %c56 = arith.constant 56 : index
    %c0_128 = arith.constant 0 : index
    %510 = vector.load %arg4[%c0_127, %c56, %c0_128] : memref<1x128x1xf32, #tpu.memory_space<vmem>>, vector<1x8x1xf32>
    %511 = vector.shape_cast %510 : vector<1x8x1xf32> to vector<8x1xf32>
    %512 = vector.broadcast %6 : vector<1x1xf32> to vector<8x128xf32>
    %513 = arith.addf %509, %512 : vector<8x128xf32>
    %514 = vector.broadcast %511 : vector<8x1xf32> to vector<8x128xf32>
    %515 = vector.broadcast %8 : vector<1x128xf32> to vector<8x128xf32>
    %516 = arith.mulf %514, %515 : vector<8x128xf32>
    %517 = arith.mulf %513, %516 : vector<8x128xf32>
    %c0_129 = arith.constant 0 : index
    %c56_130 = arith.constant 56 : index
    %c0_131 = arith.constant 0 : index
    %518 = vector.load %arg12[%c0_129, %c56_130, %c0_131] : memref<1x128x128xf32, #tpu.memory_space<vmem>>, vector<1x8x128xf32>
    %519 = vector.shape_cast %518 : vector<1x8x128xf32> to vector<8x128xf32>
    %520 = vector.shape_cast %517 : vector<8x128xf32> to vector<1x8x128xf32>
    tpu.vector_store %arg12[%c0_129, %c56_130, %c0_131], %520 {strides = array<i32>} : memref<1x128x128xf32, #tpu.memory_space<vmem>>, vector<1x8x128xf32>,
    %521 = arith.negf %517 : vector<8x128xf32>
    %522 = math.exp %521 : vector<8x128xf32>
    %cst_132 = arith.constant 1.000000e+00 : f32
    %523 = vector.broadcast %cst_132 : f32 to vector<8x128xf32>
    %524 = arith.addf %523, %522 : vector<8x128xf32>
    %525 = arith.divf %523, %524 : vector<8x128xf32>
    %c0_133 = arith.constant 0 : index
    %c56_134 = arith.constant 56 : index
    %c0_135 = arith.constant 0 : index
    %526 = vector.load %arg11[%c0_133, %c56_134, %c0_135] : memref<1x128x128xf32, #tpu.memory_space<vmem>>, vector<1x8x128xf32>
    %527 = vector.shape_cast %526 : vector<1x8x128xf32> to vector<8x128xf32>
    %528 = vector.shape_cast %525 : vector<8x128xf32> to vector<1x8x128xf32>
    tpu.vector_store %arg11[%c0_133, %c56_134, %c0_135], %528 {strides = array<i32>} : memref<1x128x128xf32, #tpu.memory_space<vmem>>, vector<1x8x128xf32>,
    %c0_136 = arith.constant 0 : index
    %c2048 = arith.constant 2048 : index
    %c0_137 = arith.constant 0 : index
    %529 = vector.load %arg2[%c0_136, %c2048, %c0_137] : memref<1x4096x4xbf16, #tpu.memory_space<vmem>>, vector<1x256x4xbf16>
    %530 = vector.shape_cast %529 : vector<1x256x4xbf16> to vector<256x4xbf16>
    %cst_138 = arith.constant dense<0.000000e+00> : vector<256x128xf32>
    %531 = tpu.matmul %530, %1, %cst_138 {dimension_numbers = #tpu.dot_dimension_numbers<[1], [0], [0], [1], [0, 0, 1, 1], [], []>} : vector<256x4xbf16>, vector<4x128xbf16>, vector<256x128xf32> -> vector<256x128xf32>
    %532 = vector.broadcast %3 : vector<256x1xf32> to vector<256x128xf32>
    %533 = arith.addf %531, %532 : vector<256x128xf32>
    %cst_139 = arith.constant 0.000000e+00 : f32
    %534 = vector.broadcast %cst_139 : f32 to vector<256x128xf32>
    %535 = arith.maximumf %533, %534 : vector<256x128xf32>
    %536 = arith.truncf %535 : vector<256x128xf32> to vector<256x128xbf16>
    %cst_140 = arith.constant dense<0.000000e+00> : vector<128x128xf32>
    %537 = tpu.matmul %2, %536, %cst_140 {dimension_numbers = #tpu.dot_dimension_numbers<[1], [0], [0], [1], [0, 0, 1, 1], [], []>} : vector<128x256xbf16>, vector<256x128xbf16>, vector<128x128xf32> -> vector<128x128xf32>
    %538 = vector.broadcast %4 : vector<128x1xf32> to vector<128x128xf32>
    %539 = arith.addf %537, %538 : vector<128x128xf32>
    %cst_141 = arith.constant 0.000000e+00 : f32
    %540 = vector.broadcast %cst_141 : f32 to vector<128x128xf32>
    %541 = arith.maximumf %539, %540 : vector<128x128xf32>
    %542 = vector.broadcast %5 : vector<128x1xf32> to vector<128x128xf32>
    %543 = arith.mulf %541, %542 : vector<128x128xf32>
    %544 = vector.extract_strided_slice %543 {offsets = [0, 0], sizes = [8, 128], strides = [1, 1]} : vector<128x128xf32> to vector<8x128xf32>
    %545 = vector.extract_strided_slice %543 {offsets = [8, 0], sizes = [8, 128], strides = [1, 1]} : vector<128x128xf32> to vector<8x128xf32>
    %546 = arith.addf %544, %545 : vector<8x128xf32>
    %547 = vector.extract_strided_slice %543 {offsets = [16, 0], sizes = [8, 128], strides = [1, 1]} : vector<128x128xf32> to vector<8x128xf32>
    %548 = arith.addf %546, %547 : vector<8x128xf32>
    %549 = vector.extract_strided_slice %543 {offsets = [24, 0], sizes = [8, 128], strides = [1, 1]} : vector<128x128xf32> to vector<8x128xf32>
    %550 = arith.addf %548, %549 : vector<8x128xf32>
    %551 = vector.extract_strided_slice %543 {offsets = [32, 0], sizes = [8, 128], strides = [1, 1]} : vector<128x128xf32> to vector<8x128xf32>
    %552 = arith.addf %550, %551 : vector<8x128xf32>
    %553 = vector.extract_strided_slice %543 {offsets = [40, 0], sizes = [8, 128], strides = [1, 1]} : vector<128x128xf32> to vector<8x128xf32>
    %554 = arith.addf %552, %553 : vector<8x128xf32>
    %555 = vector.extract_strided_slice %543 {offsets = [48, 0], sizes = [8, 128], strides = [1, 1]} : vector<128x128xf32> to vector<8x128xf32>
    %556 = arith.addf %554, %555 : vector<8x128xf32>
    %557 = vector.extract_strided_slice %543 {offsets = [56, 0], sizes = [8, 128], strides = [1, 1]} : vector<128x128xf32> to vector<8x128xf32>
    %558 = arith.addf %556, %557 : vector<8x128xf32>
    %559 = vector.extract_strided_slice %543 {offsets = [64, 0], sizes = [8, 128], strides = [1, 1]} : vector<128x128xf32> to vector<8x128xf32>
    %560 = arith.addf %558, %559 : vector<8x128xf32>
    %561 = vector.extract_strided_slice %543 {offsets = [72, 0], sizes = [8, 128], strides = [1, 1]} : vector<128x128xf32> to vector<8x128xf32>
    %562 = arith.addf %560, %561 : vector<8x128xf32>
    %563 = vector.extract_strided_slice %543 {offsets = [80, 0], sizes = [8, 128], strides = [1, 1]} : vector<128x128xf32> to vector<8x128xf32>
    %564 = arith.addf %562, %563 : vector<8x128xf32>
    %565 = vector.extract_strided_slice %543 {offsets = [88, 0], sizes = [8, 128], strides = [1, 1]} : vector<128x128xf32> to vector<8x128xf32>
    %566 = arith.addf %564, %565 : vector<8x128xf32>
    %567 = vector.extract_strided_slice %543 {offsets = [96, 0], sizes = [8, 128], strides = [1, 1]} : vector<128x128xf32> to vector<8x128xf32>
    %568 = arith.addf %566, %567 : vector<8x128xf32>
    %569 = vector.extract_strided_slice %543 {offsets = [104, 0], sizes = [8, 128], strides = [1, 1]} : vector<128x128xf32> to vector<8x128xf32>
    %570 = arith.addf %568, %569 : vector<8x128xf32>
    %571 = vector.extract_strided_slice %543 {offsets = [112, 0], sizes = [8, 128], strides = [1, 1]} : vector<128x128xf32> to vector<8x128xf32>
    %572 = arith.addf %570, %571 : vector<8x128xf32>
    %573 = vector.extract_strided_slice %543 {offsets = [120, 0], sizes = [8, 128], strides = [1, 1]} : vector<128x128xf32> to vector<8x128xf32>
    %574 = arith.addf %572, %573 : vector<8x128xf32>
    %c0_142 = arith.constant 0 : index
    %c64 = arith.constant 64 : index
    %c0_143 = arith.constant 0 : index
    %575 = vector.load %arg4[%c0_142, %c64, %c0_143] : memref<1x128x1xf32, #tpu.memory_space<vmem>>, vector<1x8x1xf32>
    %576 = vector.shape_cast %575 : vector<1x8x1xf32> to vector<8x1xf32>
    %577 = vector.broadcast %6 : vector<1x1xf32> to vector<8x128xf32>
    %578 = arith.addf %574, %577 : vector<8x128xf32>
    %579 = vector.broadcast %576 : vector<8x1xf32> to vector<8x128xf32>
    %580 = vector.broadcast %8 : vector<1x128xf32> to vector<8x128xf32>
    %581 = arith.mulf %579, %580 : vector<8x128xf32>
    %582 = arith.mulf %578, %581 : vector<8x128xf32>
    %c0_144 = arith.constant 0 : index
    %c64_145 = arith.constant 64 : index
    %c0_146 = arith.constant 0 : index
    %583 = vector.load %arg12[%c0_144, %c64_145, %c0_146] : memref<1x128x128xf32, #tpu.memory_space<vmem>>, vector<1x8x128xf32>
    %584 = vector.shape_cast %583 : vector<1x8x128xf32> to vector<8x128xf32>
    %585 = vector.shape_cast %582 : vector<8x128xf32> to vector<1x8x128xf32>
    tpu.vector_store %arg12[%c0_144, %c64_145, %c0_146], %585 {strides = array<i32>} : memref<1x128x128xf32, #tpu.memory_space<vmem>>, vector<1x8x128xf32>,
    %586 = arith.negf %582 : vector<8x128xf32>
    %587 = math.exp %586 : vector<8x128xf32>
    %cst_147 = arith.constant 1.000000e+00 : f32
    %588 = vector.broadcast %cst_147 : f32 to vector<8x128xf32>
    %589 = arith.addf %588, %587 : vector<8x128xf32>
    %590 = arith.divf %588, %589 : vector<8x128xf32>
    %c0_148 = arith.constant 0 : index
    %c64_149 = arith.constant 64 : index
    %c0_150 = arith.constant 0 : index
    %591 = vector.load %arg11[%c0_148, %c64_149, %c0_150] : memref<1x128x128xf32, #tpu.memory_space<vmem>>, vector<1x8x128xf32>
    %592 = vector.shape_cast %591 : vector<1x8x128xf32> to vector<8x128xf32>
    %593 = vector.shape_cast %590 : vector<8x128xf32> to vector<1x8x128xf32>
    tpu.vector_store %arg11[%c0_148, %c64_149, %c0_150], %593 {strides = array<i32>} : memref<1x128x128xf32, #tpu.memory_space<vmem>>, vector<1x8x128xf32>,
    %c0_151 = arith.constant 0 : index
    %c2304 = arith.constant 2304 : index
    %c0_152 = arith.constant 0 : index
    %594 = vector.load %arg2[%c0_151, %c2304, %c0_152] : memref<1x4096x4xbf16, #tpu.memory_space<vmem>>, vector<1x256x4xbf16>
    %595 = vector.shape_cast %594 : vector<1x256x4xbf16> to vector<256x4xbf16>
    %cst_153 = arith.constant dense<0.000000e+00> : vector<256x128xf32>
    %596 = tpu.matmul %595, %1, %cst_153 {dimension_numbers = #tpu.dot_dimension_numbers<[1], [0], [0], [1], [0, 0, 1, 1], [], []>} : vector<256x4xbf16>, vector<4x128xbf16>, vector<256x128xf32> -> vector<256x128xf32>
    %597 = vector.broadcast %3 : vector<256x1xf32> to vector<256x128xf32>
    %598 = arith.addf %596, %597 : vector<256x128xf32>
    %cst_154 = arith.constant 0.000000e+00 : f32
    %599 = vector.broadcast %cst_154 : f32 to vector<256x128xf32>
    %600 = arith.maximumf %598, %599 : vector<256x128xf32>
    %601 = arith.truncf %600 : vector<256x128xf32> to vector<256x128xbf16>
    %cst_155 = arith.constant dense<0.000000e+00> : vector<128x128xf32>
    %602 = tpu.matmul %2, %601, %cst_155 {dimension_numbers = #tpu.dot_dimension_numbers<[1], [0], [0], [1], [0, 0, 1, 1], [], []>} : vector<128x256xbf16>, vector<256x128xbf16>, vector<128x128xf32> -> vector<128x128xf32>
    %603 = vector.broadcast %4 : vector<128x1xf32> to vector<128x128xf32>
    %604 = arith.addf %602, %603 : vector<128x128xf32>
    %cst_156 = arith.constant 0.000000e+00 : f32
    %605 = vector.broadcast %cst_156 : f32 to vector<128x128xf32>
    %606 = arith.maximumf %604, %605 : vector<128x128xf32>
    %607 = vector.broadcast %5 : vector<128x1xf32> to vector<128x128xf32>
    %608 = arith.mulf %606, %607 : vector<128x128xf32>
    %609 = vector.extract_strided_slice %608 {offsets = [0, 0], sizes = [8, 128], strides = [1, 1]} : vector<128x128xf32> to vector<8x128xf32>
    %610 = vector.extract_strided_slice %608 {offsets = [8, 0], sizes = [8, 128], strides = [1, 1]} : vector<128x128xf32> to vector<8x128xf32>
    %611 = arith.addf %609, %610 : vector<8x128xf32>
    %612 = vector.extract_strided_slice %608 {offsets = [16, 0], sizes = [8, 128], strides = [1, 1]} : vector<128x128xf32> to vector<8x128xf32>
    %613 = arith.addf %611, %612 : vector<8x128xf32>
    %614 = vector.extract_strided_slice %608 {offsets = [24, 0], sizes = [8, 128], strides = [1, 1]} : vector<128x128xf32> to vector<8x128xf32>
    %615 = arith.addf %613, %614 : vector<8x128xf32>
    %616 = vector.extract_strided_slice %608 {offsets = [32, 0], sizes = [8, 128], strides = [1, 1]} : vector<128x128xf32> to vector<8x128xf32>
    %617 = arith.addf %615, %616 : vector<8x128xf32>
    %618 = vector.extract_strided_slice %608 {offsets = [40, 0], sizes = [8, 128], strides = [1, 1]} : vector<128x128xf32> to vector<8x128xf32>
    %619 = arith.addf %617, %618 : vector<8x128xf32>
    %620 = vector.extract_strided_slice %608 {offsets = [48, 0], sizes = [8, 128], strides = [1, 1]} : vector<128x128xf32> to vector<8x128xf32>
    %621 = arith.addf %619, %620 : vector<8x128xf32>
    %622 = vector.extract_strided_slice %608 {offsets = [56, 0], sizes = [8, 128], strides = [1, 1]} : vector<128x128xf32> to vector<8x128xf32>
    %623 = arith.addf %621, %622 : vector<8x128xf32>
    %624 = vector.extract_strided_slice %608 {offsets = [64, 0], sizes = [8, 128], strides = [1, 1]} : vector<128x128xf32> to vector<8x128xf32>
    %625 = arith.addf %623, %624 : vector<8x128xf32>
    %626 = vector.extract_strided_slice %608 {offsets = [72, 0], sizes = [8, 128], strides = [1, 1]} : vector<128x128xf32> to vector<8x128xf32>
    %627 = arith.addf %625, %626 : vector<8x128xf32>
    %628 = vector.extract_strided_slice %608 {offsets = [80, 0], sizes = [8, 128], strides = [1, 1]} : vector<128x128xf32> to vector<8x128xf32>
    %629 = arith.addf %627, %628 : vector<8x128xf32>
    %630 = vector.extract_strided_slice %608 {offsets = [88, 0], sizes = [8, 128], strides = [1, 1]} : vector<128x128xf32> to vector<8x128xf32>
    %631 = arith.addf %629, %630 : vector<8x128xf32>
    %632 = vector.extract_strided_slice %608 {offsets = [96, 0], sizes = [8, 128], strides = [1, 1]} : vector<128x128xf32> to vector<8x128xf32>
    %633 = arith.addf %631, %632 : vector<8x128xf32>
    %634 = vector.extract_strided_slice %608 {offsets = [104, 0], sizes = [8, 128], strides = [1, 1]} : vector<128x128xf32> to vector<8x128xf32>
    %635 = arith.addf %633, %634 : vector<8x128xf32>
    %636 = vector.extract_strided_slice %608 {offsets = [112, 0], sizes = [8, 128], strides = [1, 1]} : vector<128x128xf32> to vector<8x128xf32>
    %637 = arith.addf %635, %636 : vector<8x128xf32>
    %638 = vector.extract_strided_slice %608 {offsets = [120, 0], sizes = [8, 128], strides = [1, 1]} : vector<128x128xf32> to vector<8x128xf32>
    %639 = arith.addf %637, %638 : vector<8x128xf32>
    %c0_157 = arith.constant 0 : index
    %c72 = arith.constant 72 : index
    %c0_158 = arith.constant 0 : index
    %640 = vector.load %arg4[%c0_157, %c72, %c0_158] : memref<1x128x1xf32, #tpu.memory_space<vmem>>, vector<1x8x1xf32>
    %641 = vector.shape_cast %640 : vector<1x8x1xf32> to vector<8x1xf32>
    %642 = vector.broadcast %6 : vector<1x1xf32> to vector<8x128xf32>
    %643 = arith.addf %639, %642 : vector<8x128xf32>
    %644 = vector.broadcast %641 : vector<8x1xf32> to vector<8x128xf32>
    %645 = vector.broadcast %8 : vector<1x128xf32> to vector<8x128xf32>
    %646 = arith.mulf %644, %645 : vector<8x128xf32>
    %647 = arith.mulf %643, %646 : vector<8x128xf32>
    %c0_159 = arith.constant 0 : index
    %c72_160 = arith.constant 72 : index
    %c0_161 = arith.constant 0 : index
    %648 = vector.load %arg12[%c0_159, %c72_160, %c0_161] : memref<1x128x128xf32, #tpu.memory_space<vmem>>, vector<1x8x128xf32>
    %649 = vector.shape_cast %648 : vector<1x8x128xf32> to vector<8x128xf32>
    %650 = vector.shape_cast %647 : vector<8x128xf32> to vector<1x8x128xf32>
    tpu.vector_store %arg12[%c0_159, %c72_160, %c0_161], %650 {strides = array<i32>} : memref<1x128x128xf32, #tpu.memory_space<vmem>>, vector<1x8x128xf32>,
    %651 = arith.negf %647 : vector<8x128xf32>
    %652 = math.exp %651 : vector<8x128xf32>
    %cst_162 = arith.constant 1.000000e+00 : f32
    %653 = vector.broadcast %cst_162 : f32 to vector<8x128xf32>
    %654 = arith.addf %653, %652 : vector<8x128xf32>
    %655 = arith.divf %653, %654 : vector<8x128xf32>
    %c0_163 = arith.constant 0 : index
    %c72_164 = arith.constant 72 : index
    %c0_165 = arith.constant 0 : index
    %656 = vector.load %arg11[%c0_163, %c72_164, %c0_165] : memref<1x128x128xf32, #tpu.memory_space<vmem>>, vector<1x8x128xf32>
    %657 = vector.shape_cast %656 : vector<1x8x128xf32> to vector<8x128xf32>
    %658 = vector.shape_cast %655 : vector<8x128xf32> to vector<1x8x128xf32>
    tpu.vector_store %arg11[%c0_163, %c72_164, %c0_165], %658 {strides = array<i32>} : memref<1x128x128xf32, #tpu.memory_space<vmem>>, vector<1x8x128xf32>,
    %c0_166 = arith.constant 0 : index
    %c2560 = arith.constant 2560 : index
    %c0_167 = arith.constant 0 : index
    %659 = vector.load %arg2[%c0_166, %c2560, %c0_167] : memref<1x4096x4xbf16, #tpu.memory_space<vmem>>, vector<1x256x4xbf16>
    %660 = vector.shape_cast %659 : vector<1x256x4xbf16> to vector<256x4xbf16>
    %cst_168 = arith.constant dense<0.000000e+00> : vector<256x128xf32>
    %661 = tpu.matmul %660, %1, %cst_168 {dimension_numbers = #tpu.dot_dimension_numbers<[1], [0], [0], [1], [0, 0, 1, 1], [], []>} : vector<256x4xbf16>, vector<4x128xbf16>, vector<256x128xf32> -> vector<256x128xf32>
    %662 = vector.broadcast %3 : vector<256x1xf32> to vector<256x128xf32>
    %663 = arith.addf %661, %662 : vector<256x128xf32>
    %cst_169 = arith.constant 0.000000e+00 : f32
    %664 = vector.broadcast %cst_169 : f32 to vector<256x128xf32>
    %665 = arith.maximumf %663, %664 : vector<256x128xf32>
    %666 = arith.truncf %665 : vector<256x128xf32> to vector<256x128xbf16>
    %cst_170 = arith.constant dense<0.000000e+00> : vector<128x128xf32>
    %667 = tpu.matmul %2, %666, %cst_170 {dimension_numbers = #tpu.dot_dimension_numbers<[1], [0], [0], [1], [0, 0, 1, 1], [], []>} : vector<128x256xbf16>, vector<256x128xbf16>, vector<128x128xf32> -> vector<128x128xf32>
    %668 = vector.broadcast %4 : vector<128x1xf32> to vector<128x128xf32>
    %669 = arith.addf %667, %668 : vector<128x128xf32>
    %cst_171 = arith.constant 0.000000e+00 : f32
    %670 = vector.broadcast %cst_171 : f32 to vector<128x128xf32>
    %671 = arith.maximumf %669, %670 : vector<128x128xf32>
    %672 = vector.broadcast %5 : vector<128x1xf32> to vector<128x128xf32>
    %673 = arith.mulf %671, %672 : vector<128x128xf32>
    %674 = vector.extract_strided_slice %673 {offsets = [0, 0], sizes = [8, 128], strides = [1, 1]} : vector<128x128xf32> to vector<8x128xf32>
    %675 = vector.extract_strided_slice %673 {offsets = [8, 0], sizes = [8, 128], strides = [1, 1]} : vector<128x128xf32> to vector<8x128xf32>
    %676 = arith.addf %674, %675 : vector<8x128xf32>
    %677 = vector.extract_strided_slice %673 {offsets = [16, 0], sizes = [8, 128], strides = [1, 1]} : vector<128x128xf32> to vector<8x128xf32>
    %678 = arith.addf %676, %677 : vector<8x128xf32>
    %679 = vector.extract_strided_slice %673 {offsets = [24, 0], sizes = [8, 128], strides = [1, 1]} : vector<128x128xf32> to vector<8x128xf32>
    %680 = arith.addf %678, %679 : vector<8x128xf32>
    %681 = vector.extract_strided_slice %673 {offsets = [32, 0], sizes = [8, 128], strides = [1, 1]} : vector<128x128xf32> to vector<8x128xf32>
    %682 = arith.addf %680, %681 : vector<8x128xf32>
    %683 = vector.extract_strided_slice %673 {offsets = [40, 0], sizes = [8, 128], strides = [1, 1]} : vector<128x128xf32> to vector<8x128xf32>
    %684 = arith.addf %682, %683 : vector<8x128xf32>
    %685 = vector.extract_strided_slice %673 {offsets = [48, 0], sizes = [8, 128], strides = [1, 1]} : vector<128x128xf32> to vector<8x128xf32>
    %686 = arith.addf %684, %685 : vector<8x128xf32>
    %687 = vector.extract_strided_slice %673 {offsets = [56, 0], sizes = [8, 128], strides = [1, 1]} : vector<128x128xf32> to vector<8x128xf32>
    %688 = arith.addf %686, %687 : vector<8x128xf32>
    %689 = vector.extract_strided_slice %673 {offsets = [64, 0], sizes = [8, 128], strides = [1, 1]} : vector<128x128xf32> to vector<8x128xf32>
    %690 = arith.addf %688, %689 : vector<8x128xf32>
    %691 = vector.extract_strided_slice %673 {offsets = [72, 0], sizes = [8, 128], strides = [1, 1]} : vector<128x128xf32> to vector<8x128xf32>
    %692 = arith.addf %690, %691 : vector<8x128xf32>
    %693 = vector.extract_strided_slice %673 {offsets = [80, 0], sizes = [8, 128], strides = [1, 1]} : vector<128x128xf32> to vector<8x128xf32>
    %694 = arith.addf %692, %693 : vector<8x128xf32>
    %695 = vector.extract_strided_slice %673 {offsets = [88, 0], sizes = [8, 128], strides = [1, 1]} : vector<128x128xf32> to vector<8x128xf32>
    %696 = arith.addf %694, %695 : vector<8x128xf32>
    %697 = vector.extract_strided_slice %673 {offsets = [96, 0], sizes = [8, 128], strides = [1, 1]} : vector<128x128xf32> to vector<8x128xf32>
    %698 = arith.addf %696, %697 : vector<8x128xf32>
    %699 = vector.extract_strided_slice %673 {offsets = [104, 0], sizes = [8, 128], strides = [1, 1]} : vector<128x128xf32> to vector<8x128xf32>
    %700 = arith.addf %698, %699 : vector<8x128xf32>
    %701 = vector.extract_strided_slice %673 {offsets = [112, 0], sizes = [8, 128], strides = [1, 1]} : vector<128x128xf32> to vector<8x128xf32>
    %702 = arith.addf %700, %701 : vector<8x128xf32>
    %703 = vector.extract_strided_slice %673 {offsets = [120, 0], sizes = [8, 128], strides = [1, 1]} : vector<128x128xf32> to vector<8x128xf32>
    %704 = arith.addf %702, %703 : vector<8x128xf32>
    %c0_172 = arith.constant 0 : index
    %c80 = arith.constant 80 : index
    %c0_173 = arith.constant 0 : index
    %705 = vector.load %arg4[%c0_172, %c80, %c0_173] : memref<1x128x1xf32, #tpu.memory_space<vmem>>, vector<1x8x1xf32>
    %706 = vector.shape_cast %705 : vector<1x8x1xf32> to vector<8x1xf32>
    %707 = vector.broadcast %6 : vector<1x1xf32> to vector<8x128xf32>
    %708 = arith.addf %704, %707 : vector<8x128xf32>
    %709 = vector.broadcast %706 : vector<8x1xf32> to vector<8x128xf32>
    %710 = vector.broadcast %8 : vector<1x128xf32> to vector<8x128xf32>
    %711 = arith.mulf %709, %710 : vector<8x128xf32>
    %712 = arith.mulf %708, %711 : vector<8x128xf32>
    %c0_174 = arith.constant 0 : index
    %c80_175 = arith.constant 80 : index
    %c0_176 = arith.constant 0 : index
    %713 = vector.load %arg12[%c0_174, %c80_175, %c0_176] : memref<1x128x128xf32, #tpu.memory_space<vmem>>, vector<1x8x128xf32>
    %714 = vector.shape_cast %713 : vector<1x8x128xf32> to vector<8x128xf32>
    %715 = vector.shape_cast %712 : vector<8x128xf32> to vector<1x8x128xf32>
    tpu.vector_store %arg12[%c0_174, %c80_175, %c0_176], %715 {strides = array<i32>} : memref<1x128x128xf32, #tpu.memory_space<vmem>>, vector<1x8x128xf32>,
    %716 = arith.negf %712 : vector<8x128xf32>
    %717 = math.exp %716 : vector<8x128xf32>
    %cst_177 = arith.constant 1.000000e+00 : f32
    %718 = vector.broadcast %cst_177 : f32 to vector<8x128xf32>
    %719 = arith.addf %718, %717 : vector<8x128xf32>
    %720 = arith.divf %718, %719 : vector<8x128xf32>
    %c0_178 = arith.constant 0 : index
    %c80_179 = arith.constant 80 : index
    %c0_180 = arith.constant 0 : index
    %721 = vector.load %arg11[%c0_178, %c80_179, %c0_180] : memref<1x128x128xf32, #tpu.memory_space<vmem>>, vector<1x8x128xf32>
    %722 = vector.shape_cast %721 : vector<1x8x128xf32> to vector<8x128xf32>
    %723 = vector.shape_cast %720 : vector<8x128xf32> to vector<1x8x128xf32>
    tpu.vector_store %arg11[%c0_178, %c80_179, %c0_180], %723 {strides = array<i32>} : memref<1x128x128xf32, #tpu.memory_space<vmem>>, vector<1x8x128xf32>,
    %c0_181 = arith.constant 0 : index
    %c2816 = arith.constant 2816 : index
    %c0_182 = arith.constant 0 : index
    %724 = vector.load %arg2[%c0_181, %c2816, %c0_182] : memref<1x4096x4xbf16, #tpu.memory_space<vmem>>, vector<1x256x4xbf16>
    %725 = vector.shape_cast %724 : vector<1x256x4xbf16> to vector<256x4xbf16>
    %cst_183 = arith.constant dense<0.000000e+00> : vector<256x128xf32>
    %726 = tpu.matmul %725, %1, %cst_183 {dimension_numbers = #tpu.dot_dimension_numbers<[1], [0], [0], [1], [0, 0, 1, 1], [], []>} : vector<256x4xbf16>, vector<4x128xbf16>, vector<256x128xf32> -> vector<256x128xf32>
    %727 = vector.broadcast %3 : vector<256x1xf32> to vector<256x128xf32>
    %728 = arith.addf %726, %727 : vector<256x128xf32>
    %cst_184 = arith.constant 0.000000e+00 : f32
    %729 = vector.broadcast %cst_184 : f32 to vector<256x128xf32>
    %730 = arith.maximumf %728, %729 : vector<256x128xf32>
    %731 = arith.truncf %730 : vector<256x128xf32> to vector<256x128xbf16>
    %cst_185 = arith.constant dense<0.000000e+00> : vector<128x128xf32>
    %732 = tpu.matmul %2, %731, %cst_185 {dimension_numbers = #tpu.dot_dimension_numbers<[1], [0], [0], [1], [0, 0, 1, 1], [], []>} : vector<128x256xbf16>, vector<256x128xbf16>, vector<128x128xf32> -> vector<128x128xf32>
    %733 = vector.broadcast %4 : vector<128x1xf32> to vector<128x128xf32>
    %734 = arith.addf %732, %733 : vector<128x128xf32>
    %cst_186 = arith.constant 0.000000e+00 : f32
    %735 = vector.broadcast %cst_186 : f32 to vector<128x128xf32>
    %736 = arith.maximumf %734, %735 : vector<128x128xf32>
    %737 = vector.broadcast %5 : vector<128x1xf32> to vector<128x128xf32>
    %738 = arith.mulf %736, %737 : vector<128x128xf32>
    %739 = vector.extract_strided_slice %738 {offsets = [0, 0], sizes = [8, 128], strides = [1, 1]} : vector<128x128xf32> to vector<8x128xf32>
    %740 = vector.extract_strided_slice %738 {offsets = [8, 0], sizes = [8, 128], strides = [1, 1]} : vector<128x128xf32> to vector<8x128xf32>
    %741 = arith.addf %739, %740 : vector<8x128xf32>
    %742 = vector.extract_strided_slice %738 {offsets = [16, 0], sizes = [8, 128], strides = [1, 1]} : vector<128x128xf32> to vector<8x128xf32>
    %743 = arith.addf %741, %742 : vector<8x128xf32>
    %744 = vector.extract_strided_slice %738 {offsets = [24, 0], sizes = [8, 128], strides = [1, 1]} : vector<128x128xf32> to vector<8x128xf32>
    %745 = arith.addf %743, %744 : vector<8x128xf32>
    %746 = vector.extract_strided_slice %738 {offsets = [32, 0], sizes = [8, 128], strides = [1, 1]} : vector<128x128xf32> to vector<8x128xf32>
    %747 = arith.addf %745, %746 : vector<8x128xf32>
    %748 = vector.extract_strided_slice %738 {offsets = [40, 0], sizes = [8, 128], strides = [1, 1]} : vector<128x128xf32> to vector<8x128xf32>
    %749 = arith.addf %747, %748 : vector<8x128xf32>
    %750 = vector.extract_strided_slice %738 {offsets = [48, 0], sizes = [8, 128], strides = [1, 1]} : vector<128x128xf32> to vector<8x128xf32>
    %751 = arith.addf %749, %750 : vector<8x128xf32>
    %752 = vector.extract_strided_slice %738 {offsets = [56, 0], sizes = [8, 128], strides = [1, 1]} : vector<128x128xf32> to vector<8x128xf32>
    %753 = arith.addf %751, %752 : vector<8x128xf32>
    %754 = vector.extract_strided_slice %738 {offsets = [64, 0], sizes = [8, 128], strides = [1, 1]} : vector<128x128xf32> to vector<8x128xf32>
    %755 = arith.addf %753, %754 : vector<8x128xf32>
    %756 = vector.extract_strided_slice %738 {offsets = [72, 0], sizes = [8, 128], strides = [1, 1]} : vector<128x128xf32> to vector<8x128xf32>
    %757 = arith.addf %755, %756 : vector<8x128xf32>
    %758 = vector.extract_strided_slice %738 {offsets = [80, 0], sizes = [8, 128], strides = [1, 1]} : vector<128x128xf32> to vector<8x128xf32>
    %759 = arith.addf %757, %758 : vector<8x128xf32>
    %760 = vector.extract_strided_slice %738 {offsets = [88, 0], sizes = [8, 128], strides = [1, 1]} : vector<128x128xf32> to vector<8x128xf32>
    %761 = arith.addf %759, %760 : vector<8x128xf32>
    %762 = vector.extract_strided_slice %738 {offsets = [96, 0], sizes = [8, 128], strides = [1, 1]} : vector<128x128xf32> to vector<8x128xf32>
    %763 = arith.addf %761, %762 : vector<8x128xf32>
    %764 = vector.extract_strided_slice %738 {offsets = [104, 0], sizes = [8, 128], strides = [1, 1]} : vector<128x128xf32> to vector<8x128xf32>
    %765 = arith.addf %763, %764 : vector<8x128xf32>
    %766 = vector.extract_strided_slice %738 {offsets = [112, 0], sizes = [8, 128], strides = [1, 1]} : vector<128x128xf32> to vector<8x128xf32>
    %767 = arith.addf %765, %766 : vector<8x128xf32>
    %768 = vector.extract_strided_slice %738 {offsets = [120, 0], sizes = [8, 128], strides = [1, 1]} : vector<128x128xf32> to vector<8x128xf32>
    %769 = arith.addf %767, %768 : vector<8x128xf32>
    %c0_187 = arith.constant 0 : index
    %c88 = arith.constant 88 : index
    %c0_188 = arith.constant 0 : index
    %770 = vector.load %arg4[%c0_187, %c88, %c0_188] : memref<1x128x1xf32, #tpu.memory_space<vmem>>, vector<1x8x1xf32>
    %771 = vector.shape_cast %770 : vector<1x8x1xf32> to vector<8x1xf32>
    %772 = vector.broadcast %6 : vector<1x1xf32> to vector<8x128xf32>
    %773 = arith.addf %769, %772 : vector<8x128xf32>
    %774 = vector.broadcast %771 : vector<8x1xf32> to vector<8x128xf32>
    %775 = vector.broadcast %8 : vector<1x128xf32> to vector<8x128xf32>
    %776 = arith.mulf %774, %775 : vector<8x128xf32>
    %777 = arith.mulf %773, %776 : vector<8x128xf32>
    %c0_189 = arith.constant 0 : index
    %c88_190 = arith.constant 88 : index
    %c0_191 = arith.constant 0 : index
    %778 = vector.load %arg12[%c0_189, %c88_190, %c0_191] : memref<1x128x128xf32, #tpu.memory_space<vmem>>, vector<1x8x128xf32>
    %779 = vector.shape_cast %778 : vector<1x8x128xf32> to vector<8x128xf32>
    %780 = vector.shape_cast %777 : vector<8x128xf32> to vector<1x8x128xf32>
    tpu.vector_store %arg12[%c0_189, %c88_190, %c0_191], %780 {strides = array<i32>} : memref<1x128x128xf32, #tpu.memory_space<vmem>>, vector<1x8x128xf32>,
    %781 = arith.negf %777 : vector<8x128xf32>
    %782 = math.exp %781 : vector<8x128xf32>
    %cst_192 = arith.constant 1.000000e+00 : f32
    %783 = vector.broadcast %cst_192 : f32 to vector<8x128xf32>
    %784 = arith.addf %783, %782 : vector<8x128xf32>
    %785 = arith.divf %783, %784 : vector<8x128xf32>
    %c0_193 = arith.constant 0 : index
    %c88_194 = arith.constant 88 : index
    %c0_195 = arith.constant 0 : index
    %786 = vector.load %arg11[%c0_193, %c88_194, %c0_195] : memref<1x128x128xf32, #tpu.memory_space<vmem>>, vector<1x8x128xf32>
    %787 = vector.shape_cast %786 : vector<1x8x128xf32> to vector<8x128xf32>
    %788 = vector.shape_cast %785 : vector<8x128xf32> to vector<1x8x128xf32>
    tpu.vector_store %arg11[%c0_193, %c88_194, %c0_195], %788 {strides = array<i32>} : memref<1x128x128xf32, #tpu.memory_space<vmem>>, vector<1x8x128xf32>,
    %c0_196 = arith.constant 0 : index
    %c3072 = arith.constant 3072 : index
    %c0_197 = arith.constant 0 : index
    %789 = vector.load %arg2[%c0_196, %c3072, %c0_197] : memref<1x4096x4xbf16, #tpu.memory_space<vmem>>, vector<1x256x4xbf16>
    %790 = vector.shape_cast %789 : vector<1x256x4xbf16> to vector<256x4xbf16>
    %cst_198 = arith.constant dense<0.000000e+00> : vector<256x128xf32>
    %791 = tpu.matmul %790, %1, %cst_198 {dimension_numbers = #tpu.dot_dimension_numbers<[1], [0], [0], [1], [0, 0, 1, 1], [], []>} : vector<256x4xbf16>, vector<4x128xbf16>, vector<256x128xf32> -> vector<256x128xf32>
    %792 = vector.broadcast %3 : vector<256x1xf32> to vector<256x128xf32>
    %793 = arith.addf %791, %792 : vector<256x128xf32>
    %cst_199 = arith.constant 0.000000e+00 : f32
    %794 = vector.broadcast %cst_199 : f32 to vector<256x128xf32>
    %795 = arith.maximumf %793, %794 : vector<256x128xf32>
    %796 = arith.truncf %795 : vector<256x128xf32> to vector<256x128xbf16>
    %cst_200 = arith.constant dense<0.000000e+00> : vector<128x128xf32>
    %797 = tpu.matmul %2, %796, %cst_200 {dimension_numbers = #tpu.dot_dimension_numbers<[1], [0], [0], [1], [0, 0, 1, 1], [], []>} : vector<128x256xbf16>, vector<256x128xbf16>, vector<128x128xf32> -> vector<128x128xf32>
    %798 = vector.broadcast %4 : vector<128x1xf32> to vector<128x128xf32>
    %799 = arith.addf %797, %798 : vector<128x128xf32>
    %cst_201 = arith.constant 0.000000e+00 : f32
    %800 = vector.broadcast %cst_201 : f32 to vector<128x128xf32>
    %801 = arith.maximumf %799, %800 : vector<128x128xf32>
    %802 = vector.broadcast %5 : vector<128x1xf32> to vector<128x128xf32>
    %803 = arith.mulf %801, %802 : vector<128x128xf32>
    %804 = vector.extract_strided_slice %803 {offsets = [0, 0], sizes = [8, 128], strides = [1, 1]} : vector<128x128xf32> to vector<8x128xf32>
    %805 = vector.extract_strided_slice %803 {offsets = [8, 0], sizes = [8, 128], strides = [1, 1]} : vector<128x128xf32> to vector<8x128xf32>
    %806 = arith.addf %804, %805 : vector<8x128xf32>
    %807 = vector.extract_strided_slice %803 {offsets = [16, 0], sizes = [8, 128], strides = [1, 1]} : vector<128x128xf32> to vector<8x128xf32>
    %808 = arith.addf %806, %807 : vector<8x128xf32>
    %809 = vector.extract_strided_slice %803 {offsets = [24, 0], sizes = [8, 128], strides = [1, 1]} : vector<128x128xf32> to vector<8x128xf32>
    %810 = arith.addf %808, %809 : vector<8x128xf32>
    %811 = vector.extract_strided_slice %803 {offsets = [32, 0], sizes = [8, 128], strides = [1, 1]} : vector<128x128xf32> to vector<8x128xf32>
    %812 = arith.addf %810, %811 : vector<8x128xf32>
    %813 = vector.extract_strided_slice %803 {offsets = [40, 0], sizes = [8, 128], strides = [1, 1]} : vector<128x128xf32> to vector<8x128xf32>
    %814 = arith.addf %812, %813 : vector<8x128xf32>
    %815 = vector.extract_strided_slice %803 {offsets = [48, 0], sizes = [8, 128], strides = [1, 1]} : vector<128x128xf32> to vector<8x128xf32>
    %816 = arith.addf %814, %815 : vector<8x128xf32>
    %817 = vector.extract_strided_slice %803 {offsets = [56, 0], sizes = [8, 128], strides = [1, 1]} : vector<128x128xf32> to vector<8x128xf32>
    %818 = arith.addf %816, %817 : vector<8x128xf32>
    %819 = vector.extract_strided_slice %803 {offsets = [64, 0], sizes = [8, 128], strides = [1, 1]} : vector<128x128xf32> to vector<8x128xf32>
    %820 = arith.addf %818, %819 : vector<8x128xf32>
    %821 = vector.extract_strided_slice %803 {offsets = [72, 0], sizes = [8, 128], strides = [1, 1]} : vector<128x128xf32> to vector<8x128xf32>
    %822 = arith.addf %820, %821 : vector<8x128xf32>
    %823 = vector.extract_strided_slice %803 {offsets = [80, 0], sizes = [8, 128], strides = [1, 1]} : vector<128x128xf32> to vector<8x128xf32>
    %824 = arith.addf %822, %823 : vector<8x128xf32>
    %825 = vector.extract_strided_slice %803 {offsets = [88, 0], sizes = [8, 128], strides = [1, 1]} : vector<128x128xf32> to vector<8x128xf32>
    %826 = arith.addf %824, %825 : vector<8x128xf32>
    %827 = vector.extract_strided_slice %803 {offsets = [96, 0], sizes = [8, 128], strides = [1, 1]} : vector<128x128xf32> to vector<8x128xf32>
    %828 = arith.addf %826, %827 : vector<8x128xf32>
    %829 = vector.extract_strided_slice %803 {offsets = [104, 0], sizes = [8, 128], strides = [1, 1]} : vector<128x128xf32> to vector<8x128xf32>
    %830 = arith.addf %828, %829 : vector<8x128xf32>
    %831 = vector.extract_strided_slice %803 {offsets = [112, 0], sizes = [8, 128], strides = [1, 1]} : vector<128x128xf32> to vector<8x128xf32>
    %832 = arith.addf %830, %831 : vector<8x128xf32>
    %833 = vector.extract_strided_slice %803 {offsets = [120, 0], sizes = [8, 128], strides = [1, 1]} : vector<128x128xf32> to vector<8x128xf32>
    %834 = arith.addf %832, %833 : vector<8x128xf32>
    %c0_202 = arith.constant 0 : index
    %c96 = arith.constant 96 : index
    %c0_203 = arith.constant 0 : index
    %835 = vector.load %arg4[%c0_202, %c96, %c0_203] : memref<1x128x1xf32, #tpu.memory_space<vmem>>, vector<1x8x1xf32>
    %836 = vector.shape_cast %835 : vector<1x8x1xf32> to vector<8x1xf32>
    %837 = vector.broadcast %6 : vector<1x1xf32> to vector<8x128xf32>
    %838 = arith.addf %834, %837 : vector<8x128xf32>
    %839 = vector.broadcast %836 : vector<8x1xf32> to vector<8x128xf32>
    %840 = vector.broadcast %8 : vector<1x128xf32> to vector<8x128xf32>
    %841 = arith.mulf %839, %840 : vector<8x128xf32>
    %842 = arith.mulf %838, %841 : vector<8x128xf32>
    %c0_204 = arith.constant 0 : index
    %c96_205 = arith.constant 96 : index
    %c0_206 = arith.constant 0 : index
    %843 = vector.load %arg12[%c0_204, %c96_205, %c0_206] : memref<1x128x128xf32, #tpu.memory_space<vmem>>, vector<1x8x128xf32>
    %844 = vector.shape_cast %843 : vector<1x8x128xf32> to vector<8x128xf32>
    %845 = vector.shape_cast %842 : vector<8x128xf32> to vector<1x8x128xf32>
    tpu.vector_store %arg12[%c0_204, %c96_205, %c0_206], %845 {strides = array<i32>} : memref<1x128x128xf32, #tpu.memory_space<vmem>>, vector<1x8x128xf32>,
    %846 = arith.negf %842 : vector<8x128xf32>
    %847 = math.exp %846 : vector<8x128xf32>
    %cst_207 = arith.constant 1.000000e+00 : f32
    %848 = vector.broadcast %cst_207 : f32 to vector<8x128xf32>
    %849 = arith.addf %848, %847 : vector<8x128xf32>
    %850 = arith.divf %848, %849 : vector<8x128xf32>
    %c0_208 = arith.constant 0 : index
    %c96_209 = arith.constant 96 : index
    %c0_210 = arith.constant 0 : index
    %851 = vector.load %arg11[%c0_208, %c96_209, %c0_210] : memref<1x128x128xf32, #tpu.memory_space<vmem>>, vector<1x8x128xf32>
    %852 = vector.shape_cast %851 : vector<1x8x128xf32> to vector<8x128xf32>
    %853 = vector.shape_cast %850 : vector<8x128xf32> to vector<1x8x128xf32>
    tpu.vector_store %arg11[%c0_208, %c96_209, %c0_210], %853 {strides = array<i32>} : memref<1x128x128xf32, #tpu.memory_space<vmem>>, vector<1x8x128xf32>,
    %c0_211 = arith.constant 0 : index
    %c3328 = arith.constant 3328 : index
    %c0_212 = arith.constant 0 : index
    %854 = vector.load %arg2[%c0_211, %c3328, %c0_212] : memref<1x4096x4xbf16, #tpu.memory_space<vmem>>, vector<1x256x4xbf16>
    %855 = vector.shape_cast %854 : vector<1x256x4xbf16> to vector<256x4xbf16>
    %cst_213 = arith.constant dense<0.000000e+00> : vector<256x128xf32>
    %856 = tpu.matmul %855, %1, %cst_213 {dimension_numbers = #tpu.dot_dimension_numbers<[1], [0], [0], [1], [0, 0, 1, 1], [], []>} : vector<256x4xbf16>, vector<4x128xbf16>, vector<256x128xf32> -> vector<256x128xf32>
    %857 = vector.broadcast %3 : vector<256x1xf32> to vector<256x128xf32>
    %858 = arith.addf %856, %857 : vector<256x128xf32>
    %cst_214 = arith.constant 0.000000e+00 : f32
    %859 = vector.broadcast %cst_214 : f32 to vector<256x128xf32>
    %860 = arith.maximumf %858, %859 : vector<256x128xf32>
    %861 = arith.truncf %860 : vector<256x128xf32> to vector<256x128xbf16>
    %cst_215 = arith.constant dense<0.000000e+00> : vector<128x128xf32>
    %862 = tpu.matmul %2, %861, %cst_215 {dimension_numbers = #tpu.dot_dimension_numbers<[1], [0], [0], [1], [0, 0, 1, 1], [], []>} : vector<128x256xbf16>, vector<256x128xbf16>, vector<128x128xf32> -> vector<128x128xf32>
    %863 = vector.broadcast %4 : vector<128x1xf32> to vector<128x128xf32>
    %864 = arith.addf %862, %863 : vector<128x128xf32>
    %cst_216 = arith.constant 0.000000e+00 : f32
    %865 = vector.broadcast %cst_216 : f32 to vector<128x128xf32>
    %866 = arith.maximumf %864, %865 : vector<128x128xf32>
    %867 = vector.broadcast %5 : vector<128x1xf32> to vector<128x128xf32>
    %868 = arith.mulf %866, %867 : vector<128x128xf32>
    %869 = vector.extract_strided_slice %868 {offsets = [0, 0], sizes = [8, 128], strides = [1, 1]} : vector<128x128xf32> to vector<8x128xf32>
    %870 = vector.extract_strided_slice %868 {offsets = [8, 0], sizes = [8, 128], strides = [1, 1]} : vector<128x128xf32> to vector<8x128xf32>
    %871 = arith.addf %869, %870 : vector<8x128xf32>
    %872 = vector.extract_strided_slice %868 {offsets = [16, 0], sizes = [8, 128], strides = [1, 1]} : vector<128x128xf32> to vector<8x128xf32>
    %873 = arith.addf %871, %872 : vector<8x128xf32>
    %874 = vector.extract_strided_slice %868 {offsets = [24, 0], sizes = [8, 128], strides = [1, 1]} : vector<128x128xf32> to vector<8x128xf32>
    %875 = arith.addf %873, %874 : vector<8x128xf32>
    %876 = vector.extract_strided_slice %868 {offsets = [32, 0], sizes = [8, 128], strides = [1, 1]} : vector<128x128xf32> to vector<8x128xf32>
    %877 = arith.addf %875, %876 : vector<8x128xf32>
    %878 = vector.extract_strided_slice %868 {offsets = [40, 0], sizes = [8, 128], strides = [1, 1]} : vector<128x128xf32> to vector<8x128xf32>
    %879 = arith.addf %877, %878 : vector<8x128xf32>
    %880 = vector.extract_strided_slice %868 {offsets = [48, 0], sizes = [8, 128], strides = [1, 1]} : vector<128x128xf32> to vector<8x128xf32>
    %881 = arith.addf %879, %880 : vector<8x128xf32>
    %882 = vector.extract_strided_slice %868 {offsets = [56, 0], sizes = [8, 128], strides = [1, 1]} : vector<128x128xf32> to vector<8x128xf32>
    %883 = arith.addf %881, %882 : vector<8x128xf32>
    %884 = vector.extract_strided_slice %868 {offsets = [64, 0], sizes = [8, 128], strides = [1, 1]} : vector<128x128xf32> to vector<8x128xf32>
    %885 = arith.addf %883, %884 : vector<8x128xf32>
    %886 = vector.extract_strided_slice %868 {offsets = [72, 0], sizes = [8, 128], strides = [1, 1]} : vector<128x128xf32> to vector<8x128xf32>
    %887 = arith.addf %885, %886 : vector<8x128xf32>
    %888 = vector.extract_strided_slice %868 {offsets = [80, 0], sizes = [8, 128], strides = [1, 1]} : vector<128x128xf32> to vector<8x128xf32>
    %889 = arith.addf %887, %888 : vector<8x128xf32>
    %890 = vector.extract_strided_slice %868 {offsets = [88, 0], sizes = [8, 128], strides = [1, 1]} : vector<128x128xf32> to vector<8x128xf32>
    %891 = arith.addf %889, %890 : vector<8x128xf32>
    %892 = vector.extract_strided_slice %868 {offsets = [96, 0], sizes = [8, 128], strides = [1, 1]} : vector<128x128xf32> to vector<8x128xf32>
    %893 = arith.addf %891, %892 : vector<8x128xf32>
    %894 = vector.extract_strided_slice %868 {offsets = [104, 0], sizes = [8, 128], strides = [1, 1]} : vector<128x128xf32> to vector<8x128xf32>
    %895 = arith.addf %893, %894 : vector<8x128xf32>
    %896 = vector.extract_strided_slice %868 {offsets = [112, 0], sizes = [8, 128], strides = [1, 1]} : vector<128x128xf32> to vector<8x128xf32>
    %897 = arith.addf %895, %896 : vector<8x128xf32>
    %898 = vector.extract_strided_slice %868 {offsets = [120, 0], sizes = [8, 128], strides = [1, 1]} : vector<128x128xf32> to vector<8x128xf32>
    %899 = arith.addf %897, %898 : vector<8x128xf32>
    %c0_217 = arith.constant 0 : index
    %c104 = arith.constant 104 : index
    %c0_218 = arith.constant 0 : index
    %900 = vector.load %arg4[%c0_217, %c104, %c0_218] : memref<1x128x1xf32, #tpu.memory_space<vmem>>, vector<1x8x1xf32>
    %901 = vector.shape_cast %900 : vector<1x8x1xf32> to vector<8x1xf32>
    %902 = vector.broadcast %6 : vector<1x1xf32> to vector<8x128xf32>
    %903 = arith.addf %899, %902 : vector<8x128xf32>
    %904 = vector.broadcast %901 : vector<8x1xf32> to vector<8x128xf32>
    %905 = vector.broadcast %8 : vector<1x128xf32> to vector<8x128xf32>
    %906 = arith.mulf %904, %905 : vector<8x128xf32>
    %907 = arith.mulf %903, %906 : vector<8x128xf32>
    %c0_219 = arith.constant 0 : index
    %c104_220 = arith.constant 104 : index
    %c0_221 = arith.constant 0 : index
    %908 = vector.load %arg12[%c0_219, %c104_220, %c0_221] : memref<1x128x128xf32, #tpu.memory_space<vmem>>, vector<1x8x128xf32>
    %909 = vector.shape_cast %908 : vector<1x8x128xf32> to vector<8x128xf32>
    %910 = vector.shape_cast %907 : vector<8x128xf32> to vector<1x8x128xf32>
    tpu.vector_store %arg12[%c0_219, %c104_220, %c0_221], %910 {strides = array<i32>} : memref<1x128x128xf32, #tpu.memory_space<vmem>>, vector<1x8x128xf32>,
    %911 = arith.negf %907 : vector<8x128xf32>
    %912 = math.exp %911 : vector<8x128xf32>
    %cst_222 = arith.constant 1.000000e+00 : f32
    %913 = vector.broadcast %cst_222 : f32 to vector<8x128xf32>
    %914 = arith.addf %913, %912 : vector<8x128xf32>
    %915 = arith.divf %913, %914 : vector<8x128xf32>
    %c0_223 = arith.constant 0 : index
    %c104_224 = arith.constant 104 : index
    %c0_225 = arith.constant 0 : index
    %916 = vector.load %arg11[%c0_223, %c104_224, %c0_225] : memref<1x128x128xf32, #tpu.memory_space<vmem>>, vector<1x8x128xf32>
    %917 = vector.shape_cast %916 : vector<1x8x128xf32> to vector<8x128xf32>
    %918 = vector.shape_cast %915 : vector<8x128xf32> to vector<1x8x128xf32>
    tpu.vector_store %arg11[%c0_223, %c104_224, %c0_225], %918 {strides = array<i32>} : memref<1x128x128xf32, #tpu.memory_space<vmem>>, vector<1x8x128xf32>,
    %c0_226 = arith.constant 0 : index
    %c3584 = arith.constant 3584 : index
    %c0_227 = arith.constant 0 : index
    %919 = vector.load %arg2[%c0_226, %c3584, %c0_227] : memref<1x4096x4xbf16, #tpu.memory_space<vmem>>, vector<1x256x4xbf16>
    %920 = vector.shape_cast %919 : vector<1x256x4xbf16> to vector<256x4xbf16>
    %cst_228 = arith.constant dense<0.000000e+00> : vector<256x128xf32>
    %921 = tpu.matmul %920, %1, %cst_228 {dimension_numbers = #tpu.dot_dimension_numbers<[1], [0], [0], [1], [0, 0, 1, 1], [], []>} : vector<256x4xbf16>, vector<4x128xbf16>, vector<256x128xf32> -> vector<256x128xf32>
    %922 = vector.broadcast %3 : vector<256x1xf32> to vector<256x128xf32>
    %923 = arith.addf %921, %922 : vector<256x128xf32>
    %cst_229 = arith.constant 0.000000e+00 : f32
    %924 = vector.broadcast %cst_229 : f32 to vector<256x128xf32>
    %925 = arith.maximumf %923, %924 : vector<256x128xf32>
    %926 = arith.truncf %925 : vector<256x128xf32> to vector<256x128xbf16>
    %cst_230 = arith.constant dense<0.000000e+00> : vector<128x128xf32>
    %927 = tpu.matmul %2, %926, %cst_230 {dimension_numbers = #tpu.dot_dimension_numbers<[1], [0], [0], [1], [0, 0, 1, 1], [], []>} : vector<128x256xbf16>, vector<256x128xbf16>, vector<128x128xf32> -> vector<128x128xf32>
    %928 = vector.broadcast %4 : vector<128x1xf32> to vector<128x128xf32>
    %929 = arith.addf %927, %928 : vector<128x128xf32>
    %cst_231 = arith.constant 0.000000e+00 : f32
    %930 = vector.broadcast %cst_231 : f32 to vector<128x128xf32>
    %931 = arith.maximumf %929, %930 : vector<128x128xf32>
    %932 = vector.broadcast %5 : vector<128x1xf32> to vector<128x128xf32>
    %933 = arith.mulf %931, %932 : vector<128x128xf32>
    %934 = vector.extract_strided_slice %933 {offsets = [0, 0], sizes = [8, 128], strides = [1, 1]} : vector<128x128xf32> to vector<8x128xf32>
    %935 = vector.extract_strided_slice %933 {offsets = [8, 0], sizes = [8, 128], strides = [1, 1]} : vector<128x128xf32> to vector<8x128xf32>
    %936 = arith.addf %934, %935 : vector<8x128xf32>
    %937 = vector.extract_strided_slice %933 {offsets = [16, 0], sizes = [8, 128], strides = [1, 1]} : vector<128x128xf32> to vector<8x128xf32>
    %938 = arith.addf %936, %937 : vector<8x128xf32>
    %939 = vector.extract_strided_slice %933 {offsets = [24, 0], sizes = [8, 128], strides = [1, 1]} : vector<128x128xf32> to vector<8x128xf32>
    %940 = arith.addf %938, %939 : vector<8x128xf32>
    %941 = vector.extract_strided_slice %933 {offsets = [32, 0], sizes = [8, 128], strides = [1, 1]} : vector<128x128xf32> to vector<8x128xf32>
    %942 = arith.addf %940, %941 : vector<8x128xf32>
    %943 = vector.extract_strided_slice %933 {offsets = [40, 0], sizes = [8, 128], strides = [1, 1]} : vector<128x128xf32> to vector<8x128xf32>
    %944 = arith.addf %942, %943 : vector<8x128xf32>
    %945 = vector.extract_strided_slice %933 {offsets = [48, 0], sizes = [8, 128], strides = [1, 1]} : vector<128x128xf32> to vector<8x128xf32>
    %946 = arith.addf %944, %945 : vector<8x128xf32>
    %947 = vector.extract_strided_slice %933 {offsets = [56, 0], sizes = [8, 128], strides = [1, 1]} : vector<128x128xf32> to vector<8x128xf32>
    %948 = arith.addf %946, %947 : vector<8x128xf32>
    %949 = vector.extract_strided_slice %933 {offsets = [64, 0], sizes = [8, 128], strides = [1, 1]} : vector<128x128xf32> to vector<8x128xf32>
    %950 = arith.addf %948, %949 : vector<8x128xf32>
    %951 = vector.extract_strided_slice %933 {offsets = [72, 0], sizes = [8, 128], strides = [1, 1]} : vector<128x128xf32> to vector<8x128xf32>
    %952 = arith.addf %950, %951 : vector<8x128xf32>
    %953 = vector.extract_strided_slice %933 {offsets = [80, 0], sizes = [8, 128], strides = [1, 1]} : vector<128x128xf32> to vector<8x128xf32>
    %954 = arith.addf %952, %953 : vector<8x128xf32>
    %955 = vector.extract_strided_slice %933 {offsets = [88, 0], sizes = [8, 128], strides = [1, 1]} : vector<128x128xf32> to vector<8x128xf32>
    %956 = arith.addf %954, %955 : vector<8x128xf32>
    %957 = vector.extract_strided_slice %933 {offsets = [96, 0], sizes = [8, 128], strides = [1, 1]} : vector<128x128xf32> to vector<8x128xf32>
    %958 = arith.addf %956, %957 : vector<8x128xf32>
    %959 = vector.extract_strided_slice %933 {offsets = [104, 0], sizes = [8, 128], strides = [1, 1]} : vector<128x128xf32> to vector<8x128xf32>
    %960 = arith.addf %958, %959 : vector<8x128xf32>
    %961 = vector.extract_strided_slice %933 {offsets = [112, 0], sizes = [8, 128], strides = [1, 1]} : vector<128x128xf32> to vector<8x128xf32>
    %962 = arith.addf %960, %961 : vector<8x128xf32>
    %963 = vector.extract_strided_slice %933 {offsets = [120, 0], sizes = [8, 128], strides = [1, 1]} : vector<128x128xf32> to vector<8x128xf32>
    %964 = arith.addf %962, %963 : vector<8x128xf32>
    %c0_232 = arith.constant 0 : index
    %c112 = arith.constant 112 : index
    %c0_233 = arith.constant 0 : index
    %965 = vector.load %arg4[%c0_232, %c112, %c0_233] : memref<1x128x1xf32, #tpu.memory_space<vmem>>, vector<1x8x1xf32>
    %966 = vector.shape_cast %965 : vector<1x8x1xf32> to vector<8x1xf32>
    %967 = vector.broadcast %6 : vector<1x1xf32> to vector<8x128xf32>
    %968 = arith.addf %964, %967 : vector<8x128xf32>
    %969 = vector.broadcast %966 : vector<8x1xf32> to vector<8x128xf32>
    %970 = vector.broadcast %8 : vector<1x128xf32> to vector<8x128xf32>
    %971 = arith.mulf %969, %970 : vector<8x128xf32>
    %972 = arith.mulf %968, %971 : vector<8x128xf32>
    %c0_234 = arith.constant 0 : index
    %c112_235 = arith.constant 112 : index
    %c0_236 = arith.constant 0 : index
    %973 = vector.load %arg12[%c0_234, %c112_235, %c0_236] : memref<1x128x128xf32, #tpu.memory_space<vmem>>, vector<1x8x128xf32>
    %974 = vector.shape_cast %973 : vector<1x8x128xf32> to vector<8x128xf32>
    %975 = vector.shape_cast %972 : vector<8x128xf32> to vector<1x8x128xf32>
    tpu.vector_store %arg12[%c0_234, %c112_235, %c0_236], %975 {strides = array<i32>} : memref<1x128x128xf32, #tpu.memory_space<vmem>>, vector<1x8x128xf32>,
    %976 = arith.negf %972 : vector<8x128xf32>
    %977 = math.exp %976 : vector<8x128xf32>
    %cst_237 = arith.constant 1.000000e+00 : f32
    %978 = vector.broadcast %cst_237 : f32 to vector<8x128xf32>
    %979 = arith.addf %978, %977 : vector<8x128xf32>
    %980 = arith.divf %978, %979 : vector<8x128xf32>
    %c0_238 = arith.constant 0 : index
    %c112_239 = arith.constant 112 : index
    %c0_240 = arith.constant 0 : index
    %981 = vector.load %arg11[%c0_238, %c112_239, %c0_240] : memref<1x128x128xf32, #tpu.memory_space<vmem>>, vector<1x8x128xf32>
    %982 = vector.shape_cast %981 : vector<1x8x128xf32> to vector<8x128xf32>
    %983 = vector.shape_cast %980 : vector<8x128xf32> to vector<1x8x128xf32>
    tpu.vector_store %arg11[%c0_238, %c112_239, %c0_240], %983 {strides = array<i32>} : memref<1x128x128xf32, #tpu.memory_space<vmem>>, vector<1x8x128xf32>,
    %c0_241 = arith.constant 0 : index
    %c3840 = arith.constant 3840 : index
    %c0_242 = arith.constant 0 : index
    %984 = vector.load %arg2[%c0_241, %c3840, %c0_242] : memref<1x4096x4xbf16, #tpu.memory_space<vmem>>, vector<1x256x4xbf16>
    %985 = vector.shape_cast %984 : vector<1x256x4xbf16> to vector<256x4xbf16>
    %cst_243 = arith.constant dense<0.000000e+00> : vector<256x128xf32>
    %986 = tpu.matmul %985, %1, %cst_243 {dimension_numbers = #tpu.dot_dimension_numbers<[1], [0], [0], [1], [0, 0, 1, 1], [], []>} : vector<256x4xbf16>, vector<4x128xbf16>, vector<256x128xf32> -> vector<256x128xf32>
    %987 = vector.broadcast %3 : vector<256x1xf32> to vector<256x128xf32>
    %988 = arith.addf %986, %987 : vector<256x128xf32>
    %cst_244 = arith.constant 0.000000e+00 : f32
    %989 = vector.broadcast %cst_244 : f32 to vector<256x128xf32>
    %990 = arith.maximumf %988, %989 : vector<256x128xf32>
    %991 = arith.truncf %990 : vector<256x128xf32> to vector<256x128xbf16>
    %cst_245 = arith.constant dense<0.000000e+00> : vector<128x128xf32>
    %992 = tpu.matmul %2, %991, %cst_245 {dimension_numbers = #tpu.dot_dimension_numbers<[1], [0], [0], [1], [0, 0, 1, 1], [], []>} : vector<128x256xbf16>, vector<256x128xbf16>, vector<128x128xf32> -> vector<128x128xf32>
    %993 = vector.broadcast %4 : vector<128x1xf32> to vector<128x128xf32>
    %994 = arith.addf %992, %993 : vector<128x128xf32>
    %cst_246 = arith.constant 0.000000e+00 : f32
    %995 = vector.broadcast %cst_246 : f32 to vector<128x128xf32>
    %996 = arith.maximumf %994, %995 : vector<128x128xf32>
    %997 = vector.broadcast %5 : vector<128x1xf32> to vector<128x128xf32>
    %998 = arith.mulf %996, %997 : vector<128x128xf32>
    %999 = vector.extract_strided_slice %998 {offsets = [0, 0], sizes = [8, 128], strides = [1, 1]} : vector<128x128xf32> to vector<8x128xf32>
    %1000 = vector.extract_strided_slice %998 {offsets = [8, 0], sizes = [8, 128], strides = [1, 1]} : vector<128x128xf32> to vector<8x128xf32>
    %1001 = arith.addf %999, %1000 : vector<8x128xf32>
    %1002 = vector.extract_strided_slice %998 {offsets = [16, 0], sizes = [8, 128], strides = [1, 1]} : vector<128x128xf32> to vector<8x128xf32>
    %1003 = arith.addf %1001, %1002 : vector<8x128xf32>
    %1004 = vector.extract_strided_slice %998 {offsets = [24, 0], sizes = [8, 128], strides = [1, 1]} : vector<128x128xf32> to vector<8x128xf32>
    %1005 = arith.addf %1003, %1004 : vector<8x128xf32>
    %1006 = vector.extract_strided_slice %998 {offsets = [32, 0], sizes = [8, 128], strides = [1, 1]} : vector<128x128xf32> to vector<8x128xf32>
    %1007 = arith.addf %1005, %1006 : vector<8x128xf32>
    %1008 = vector.extract_strided_slice %998 {offsets = [40, 0], sizes = [8, 128], strides = [1, 1]} : vector<128x128xf32> to vector<8x128xf32>
    %1009 = arith.addf %1007, %1008 : vector<8x128xf32>
    %1010 = vector.extract_strided_slice %998 {offsets = [48, 0], sizes = [8, 128], strides = [1, 1]} : vector<128x128xf32> to vector<8x128xf32>
    %1011 = arith.addf %1009, %1010 : vector<8x128xf32>
    %1012 = vector.extract_strided_slice %998 {offsets = [56, 0], sizes = [8, 128], strides = [1, 1]} : vector<128x128xf32> to vector<8x128xf32>
    %1013 = arith.addf %1011, %1012 : vector<8x128xf32>
    %1014 = vector.extract_strided_slice %998 {offsets = [64, 0], sizes = [8, 128], strides = [1, 1]} : vector<128x128xf32> to vector<8x128xf32>
    %1015 = arith.addf %1013, %1014 : vector<8x128xf32>
    %1016 = vector.extract_strided_slice %998 {offsets = [72, 0], sizes = [8, 128], strides = [1, 1]} : vector<128x128xf32> to vector<8x128xf32>
    %1017 = arith.addf %1015, %1016 : vector<8x128xf32>
    %1018 = vector.extract_strided_slice %998 {offsets = [80, 0], sizes = [8, 128], strides = [1, 1]} : vector<128x128xf32> to vector<8x128xf32>
    %1019 = arith.addf %1017, %1018 : vector<8x128xf32>
    %1020 = vector.extract_strided_slice %998 {offsets = [88, 0], sizes = [8, 128], strides = [1, 1]} : vector<128x128xf32> to vector<8x128xf32>
    %1021 = arith.addf %1019, %1020 : vector<8x128xf32>
    %1022 = vector.extract_strided_slice %998 {offsets = [96, 0], sizes = [8, 128], strides = [1, 1]} : vector<128x128xf32> to vector<8x128xf32>
    %1023 = arith.addf %1021, %1022 : vector<8x128xf32>
    %1024 = vector.extract_strided_slice %998 {offsets = [104, 0], sizes = [8, 128], strides = [1, 1]} : vector<128x128xf32> to vector<8x128xf32>
    %1025 = arith.addf %1023, %1024 : vector<8x128xf32>
    %1026 = vector.extract_strided_slice %998 {offsets = [112, 0], sizes = [8, 128], strides = [1, 1]} : vector<128x128xf32> to vector<8x128xf32>
    %1027 = arith.addf %1025, %1026 : vector<8x128xf32>
    %1028 = vector.extract_strided_slice %998 {offsets = [120, 0], sizes = [8, 128], strides = [1, 1]} : vector<128x128xf32> to vector<8x128xf32>
    %1029 = arith.addf %1027, %1028 : vector<8x128xf32>
    %c0_247 = arith.constant 0 : index
    %c120 = arith.constant 120 : index
    %c0_248 = arith.constant 0 : index
    %1030 = vector.load %arg4[%c0_247, %c120, %c0_248] : memref<1x128x1xf32, #tpu.memory_space<vmem>>, vector<1x8x1xf32>
    %1031 = vector.shape_cast %1030 : vector<1x8x1xf32> to vector<8x1xf32>
    %1032 = vector.broadcast %6 : vector<1x1xf32> to vector<8x128xf32>
    %1033 = arith.addf %1029, %1032 : vector<8x128xf32>
    %1034 = vector.broadcast %1031 : vector<8x1xf32> to vector<8x128xf32>
    %1035 = vector.broadcast %8 : vector<1x128xf32> to vector<8x128xf32>
    %1036 = arith.mulf %1034, %1035 : vector<8x128xf32>
    %1037 = arith.mulf %1033, %1036 : vector<8x128xf32>
    %c0_249 = arith.constant 0 : index
    %c120_250 = arith.constant 120 : index
    %c0_251 = arith.constant 0 : index
    %1038 = vector.load %arg12[%c0_249, %c120_250, %c0_251] : memref<1x128x128xf32, #tpu.memory_space<vmem>>, vector<1x8x128xf32>
    %1039 = vector.shape_cast %1038 : vector<1x8x128xf32> to vector<8x128xf32>
    %1040 = vector.shape_cast %1037 : vector<8x128xf32> to vector<1x8x128xf32>
    tpu.vector_store %arg12[%c0_249, %c120_250, %c0_251], %1040 {strides = array<i32>} : memref<1x128x128xf32, #tpu.memory_space<vmem>>, vector<1x8x128xf32>,
    %1041 = arith.negf %1037 : vector<8x128xf32>
    %1042 = math.exp %1041 : vector<8x128xf32>
    %cst_252 = arith.constant 1.000000e+00 : f32
    %1043 = vector.broadcast %cst_252 : f32 to vector<8x128xf32>
    %1044 = arith.addf %1043, %1042 : vector<8x128xf32>
    %1045 = arith.divf %1043, %1044 : vector<8x128xf32>
    %c0_253 = arith.constant 0 : index
    %c120_254 = arith.constant 120 : index
    %c0_255 = arith.constant 0 : index
    %1046 = vector.load %arg11[%c0_253, %c120_254, %c0_255] : memref<1x128x128xf32, #tpu.memory_space<vmem>>, vector<1x8x128xf32>
    %1047 = vector.shape_cast %1046 : vector<1x8x128xf32> to vector<8x128xf32>
    %1048 = vector.shape_cast %1045 : vector<8x128xf32> to vector<1x8x128xf32>
    tpu.vector_store %arg11[%c0_253, %c120_254, %c0_255], %1048 {strides = array<i32>} : memref<1x128x128xf32, #tpu.memory_space<vmem>>, vector<1x8x128xf32>,
    return
  }
  func.func @transform_0(%arg0: i32, %arg1: i32) -> (i32, i32, i32) {
    %c0_i32 = arith.constant 0 : i32
    %c0_i32_0 = arith.constant 0 : i32
    return %arg0, %arg1, %c0_i32 : i32, i32, i32
  }
  func.func @transform_1(%arg0: i32, %arg1: i32) -> (i32, i32, i32) {
    %c0_i32 = arith.constant 0 : i32
    %c0_i32_0 = arith.constant 0 : i32
    %c0_i32_1 = arith.constant 0 : i32
    return %arg0, %c0_i32, %c0_i32_0 : i32, i32, i32
  }
  func.func @transform_2(%arg0: i32, %arg1: i32) -> (i32, i32, i32) {
    %c0_i32 = arith.constant 0 : i32
    %c0_i32_0 = arith.constant 0 : i32
    return %arg0, %arg1, %c0_i32 : i32, i32, i32
  }
  func.func @transform_3(%arg0: i32, %arg1: i32) -> (i32, i32, i32) {
    %c0_i32 = arith.constant 0 : i32
    %c0_i32_0 = arith.constant 0 : i32
    %c0_i32_1 = arith.constant 0 : i32
    return %arg0, %c0_i32, %c0_i32_0 : i32, i32, i32
  }
  func.func @transform_4(%arg0: i32, %arg1: i32) -> (i32, i32) {
    %c0_i32 = arith.constant 0 : i32
    %c0_i32_0 = arith.constant 0 : i32
    %c0_i32_1 = arith.constant 0 : i32
    return %c0_i32, %c0_i32_0 : i32, i32
  }
  func.func @transform_5(%arg0: i32, %arg1: i32) -> (i32, i32) {
    %c0_i32 = arith.constant 0 : i32
    %c0_i32_0 = arith.constant 0 : i32
    %c0_i32_1 = arith.constant 0 : i32
    return %c0_i32, %c0_i32_0 : i32, i32
  }
  func.func @transform_6(%arg0: i32, %arg1: i32) -> (i32, i32) {
    %c0_i32 = arith.constant 0 : i32
    %c0_i32_0 = arith.constant 0 : i32
    %c0_i32_1 = arith.constant 0 : i32
    return %c0_i32, %c0_i32_0 : i32, i32
  }
  func.func @transform_7(%arg0: i32, %arg1: i32) -> (i32, i32) {
    %c0_i32 = arith.constant 0 : i32
    %c0_i32_0 = arith.constant 0 : i32
    %c0_i32_1 = arith.constant 0 : i32
    return %c0_i32, %c0_i32_0 : i32, i32
  }
  func.func @transform_8(%arg0: i32, %arg1: i32) -> (i32, i32) {
    %c0_i32 = arith.constant 0 : i32
    %c0_i32_0 = arith.constant 0 : i32
    %c0_i32_1 = arith.constant 0 : i32
    return %c0_i32, %c0_i32_0 : i32, i32
  }
  func.func @transform_9(%arg0: i32, %arg1: i32) -> (i32, i32, i32) {
    %c0_i32 = arith.constant 0 : i32
    %c0_i32_0 = arith.constant 0 : i32
    return %arg0, %arg1, %c0_i32 : i32, i32, i32
  }
  func.func @transform_10(%arg0: i32, %arg1: i32) -> (i32, i32, i32) {
    %c0_i32 = arith.constant 0 : i32
    %c0_i32_0 = arith.constant 0 : i32
    return %arg0, %arg1, %c0_i32 : i32, i32, i32
  }
}

</mosaic_0001>

<llo_original>
// kernel: tpu_custom_call.1
$region0: #{tpu_custom_call.1}
  #allocation0 [shape = 'u32[]', space=smem, size = 0x4, offset = 0x4, fixed_abs, tag = 'smem constant byte address 0x4 - core index']
  #allocation1 [shape = 'u32[144,128]{1,0:T(1,128)}', space=vmem, size = 0x12000, scoped, tag = 'internal scratch']
  #allocation2 [shape = 'f32[1,1]{1,0:T(1,128)S(1)}', space=vmem, size = 0x200, scoped, tag = 'scoped memory for tpu_custom_call.1']
  %s0 = inlined_call_operand.vmem [shape: bf16[2,4096,4], index: 0, kind: input, shape index: {}]
  %s1 = inlined_call_operand.vmem [shape: bf16[2,4,128], index: 1, kind: input, shape index: {}]
  %s2 = inlined_call_operand.vmem [shape: f32[2,128,1], index: 2, kind: input, shape index: {}]
  %s3 = inlined_call_operand.vmem [shape: f32[2,1,128], index: 3, kind: input, shape index: {}]
  %s4 = inlined_call_operand.vmem [shape: f32[256,1], index: 4, kind: input, shape index: {}]
  %s5 = inlined_call_operand.vmem [shape: bf16[128,256], index: 5, kind: input, shape index: {}]
  %s6 = inlined_call_operand.vmem [shape: f32[128,1], index: 6, kind: input, shape index: {}]
  %s7 = inlined_call_operand.vmem [shape: f32[128,1], index: 7, kind: input, shape index: {}]
  %s8 = inlined_call_operand.<no memory space> [shape: f32[1,1], index: 8, kind: input, shape index: {}]
  %s9 = inlined_call_operand.hbm [shape: f32[2,128,128], index: 9, kind: output, shape index: {0}]
  %s10 = inlined_call_operand.hbm [shape: f32[2,128,128], index: 10, kind: output, shape index: {1}]
  %11 = xla_tuple %s9, %s10
  %s12 = sld [smem:[#allocation0]]
  $region77: #{tpu_custom_call.1} parent=0
    _
  %s14 = ssub.s32 1, %s12
  %s15 = scalar_select 0, %s14, %s12
  %v16 = vstv %s8
  %17 = vst [vmem:[#allocation2] sm:$0x1] %v16
  $region1: #{tpu_custom_call.1} parent=0
    #allocation3 [shape = 'u8[131072]{0}', space=vmem, size = 0x20000, scoped, tag = 'output window, operand 0']
    #allocation4 [shape = 's32[2]{0}', space=sflag, size = 0x8, scoped, tag = 'scoped memory for tpu_custom_call.1']
    #allocation5 [shape = 'u8[131072]{0}', space=vmem, size = 0x20000, scoped, tag = 'output window, operand 1']
    #allocation6 [shape = 's32[2]{0}', space=sflag, size = 0x8, scoped, tag = 'scoped memory for tpu_custom_call.1']
    %18 = vsyncpa [#allocation4], 0
    %s19 = scalar_lea.sflag [#allocation4], 1
    %20 = vsyncpa %s19, 0
    %21 = vsyncpa [#allocation6], 0
    %s22 = scalar_lea.sflag [#allocation6], 1
    %23 = vsyncpa %s22, 0
    loop: start=0, step=1, limit=4
    $region2: #{tpu_custom_call.1} parent=1 // loop_pre_header
      _
    $region3: #{tpu_custom_call.1} parent=1 // loop_header
      %s25 = sphi 0, %s29
      %p26 = scmp.ge.s32.totalorder %s25, 4
      %s32 = sphi 0, %s44
      %s33 = sphi 0, %s40
      %s34 = sphi 0, %s32
      %s35 = sphi 0, %s33
      %s36 = sphi 0, %s34
      %s37 = sphi 0, %s35
      %s49 = sphi 0, %s51
      %s52 = sphi 0, %s49
      %s53 = sphi 0, %s52
      %s69 = sphi 0, %s53
      %s75 = sphi 0, %s77
      %s78 = sphi 0, %s75
      %s79 = sphi 0, %s78
      %s95 = sphi 0, %s79
      %s103 = sphi 0, %s105
      %s106 = sphi 0, %s103
      %s107 = sphi 0, %s106
      %s123 = sphi 0, %s107
      %s129 = sphi 0, %s131
      %s132 = sphi 0, %s129
      %s133 = sphi 0, %s132
      %s149 = sphi 0, %s133
      %s153 = sphi 0, %s153
      %s155 = sphi 0, %s153
      %s156 = sphi 0, %s155
      %s170 = sphi 0, %s156
      %s174 = sphi 0, %s174
      %s176 = sphi 0, %s174
      %s177 = sphi 0, %s176
      %s191 = sphi 0, %s177
      %s195 = sphi 0, %s195
      %s197 = sphi 0, %s195
      %s198 = sphi 0, %s197
      %s212 = sphi 0, %s198
      %s216 = sphi 0, %s216
      %s218 = sphi 0, %s216
      %s219 = sphi 0, %s218
      %s233 = sphi 0, %s219
      %s237 = sphi 0, %s237
      %s239 = sphi 0, %s237
      %s240 = sphi 0, %s239
      %s254 = sphi 0, %s240
      %s262 = sphi 0, %s264
      %s265 = sphi 0, %s262
      %s266 = sphi 0, %s265
      %s282 = sphi 0, %s266
      %s290 = sphi 0, %s292
      %s293 = sphi 0, %s290
      %s294 = sphi 0, %s293
      %s310 = sphi 0, %s294
    $region4: #{tpu_custom_call.1} parent=1 // loop_header_branch
      %28 = sbr.rel (%p26) target = $region8
    $region5: #{tpu_custom_call.1} parent=1 // loop_body
      %s30 = ssub.s32 %s25, 1
      %s31 = ssub.s32 %s25, 2
      %s38 = sadd.s32 1, %s33
      %p39 = scmp.ge.s32.totalorder %s38, 1
      %s40 = scalar_select %p39, 0, %s38
      %s41 = sadd.s32 1, %s32
      %s42 = scalar_select %p39, %s41, %s32
      %p43 = scmp.ge.s32.totalorder %s42, 2
      %s44 = scalar_select %p43, 0, %s42
      %s45 = ssub.s32 %s32, %s44
      %s46 = ssub.s32 %s33, %s40
      %s47 = sor.u32 %s45, %s46
      %p48 = scmp.eq.s32.totalorder %s47, 0
      %s50 = sadd.s32 %s49, 1
      %s51 = scalar_select %p48, %s49, %s50
      %p54 = pneg %p48
      %p55 = scmp.eq.s32.totalorder %s25, 1
      %p56 = por %p54, %p55
      %p57 = scmp.ne.s32.totalorder %s49, %s52
      %p58 = scmp.eq.s32.totalorder %s25, 0
      %p59 = por %p57, %p58
      %p60 = scmp.ne.s32.totalorder %s49, %s52
      %p61 = scmp.eq.s32.totalorder %s30, 1
      %p62 = por %p60, %p61
      %p63 = scmp.ne.s32.totalorder %s52, %s53
      %p64 = scmp.eq.s32.totalorder %s30, 0
      %p65 = por %p63, %p64
      %p66 = scmp.ne.s32.totalorder %s52, %s53
      %p67 = scmp.eq.s32.totalorder %s31, 1
      %p68 = por %p66, %p67
      %p70 = scmp.ne.s32.totalorder %s53, %s69
      %p71 = scmp.eq.s32.totalorder %s31, 0
      %p72 = por %p70, %p71
      %s73 = ssub.s32 %s32, %s44
      %p74 = scmp.eq.s32.totalorder %s73, 0
      %s76 = sadd.s32 %s75, 1
      %s77 = scalar_select %p74, %s75, %s76
      %p80 = pneg %p74
      %p81 = scmp.eq.s32.totalorder %s25, 1
      %p82 = por %p80, %p81
      %p83 = scmp.ne.s32.totalorder %s75, %s78
      %p84 = scmp.eq.s32.totalorder %s25, 0
      %p85 = por %p83, %p84
      %p86 = scmp.ne.s32.totalorder %s75, %s78
      %p87 = scmp.eq.s32.totalorder %s30, 1
      %p88 = por %p86, %p87
      %p89 = scmp.ne.s32.totalorder %s78, %s79
      %p90 = scmp.eq.s32.totalorder %s30, 0
      %p91 = por %p89, %p90
      %p92 = scmp.ne.s32.totalorder %s78, %s79
      %p93 = scmp.eq.s32.totalorder %s31, 1
      %p94 = por %p92, %p93
      %p96 = scmp.ne.s32.totalorder %s79, %s95
      %p97 = scmp.eq.s32.totalorder %s31, 0
      %p98 = por %p96, %p97
      %s99 = ssub.s32 %s32, %s44
      %s100 = ssub.s32 %s33, %s40
      %s101 = sor.u32 %s99, %s100
      %p102 = scmp.eq.s32.totalorder %s101, 0
      %s104 = sadd.s32 %s103, 1
      %s105 = scalar_select %p102, %s103, %s104
      %p108 = pneg %p102
      %p109 = scmp.eq.s32.totalorder %s25, 1
      %p110 = por %p108, %p109
      %p111 = scmp.ne.s32.totalorder %s103, %s106
      %p112 = scmp.eq.s32.totalorder %s25, 0
      %p113 = por %p111, %p112
      %p114 = scmp.ne.s32.totalorder %s103, %s106
      %p115 = scmp.eq.s32.totalorder %s30, 1
      %p116 = por %p114, %p115
      %p117 = scmp.ne.s32.totalorder %s106, %s107
      %p118 = scmp.eq.s32.totalorder %s30, 0
      %p119 = por %p117, %p118
      %p120 = scmp.ne.s32.totalorder %s106, %s107
      %p121 = scmp.eq.s32.totalorder %s31, 1
      %p122 = por %p120, %p121
      %p124 = scmp.ne.s32.totalorder %s107, %s123
      %p125 = scmp.eq.s32.totalorder %s31, 0
      %p126 = por %p124, %p125
      %s127 = ssub.s32 %s32, %s44
      %p128 = scmp.eq.s32.totalorder %s127, 0
      %s130 = sadd.s32 %s129, 1
      %s131 = scalar_select %p128, %s129, %s130
      %p134 = pneg %p128
      %p135 = scmp.eq.s32.totalorder %s25, 1
      %p136 = por %p134, %p135
      %p137 = scmp.ne.s32.totalorder %s129, %s132
      %p138 = scmp.eq.s32.totalorder %s25, 0
      %p139 = por %p137, %p138
      %p140 = scmp.ne.s32.totalorder %s129, %s132
      %p141 = scmp.eq.s32.totalorder %s30, 1
      %p142 = por %p140, %p141
      %p143 = scmp.ne.s32.totalorder %s132, %s133
      %p144 = scmp.eq.s32.totalorder %s30, 0
      %p145 = por %p143, %p144
      %p146 = scmp.ne.s32.totalorder %s132, %s133
      %p147 = scmp.eq.s32.totalorder %s31, 1
      %p148 = por %p146, %p147
      %p150 = scmp.ne.s32.totalorder %s133, %s149
      %p151 = scmp.eq.s32.totalorder %s31, 0
      %p152 = por %p150, %p151
      %s154 = sadd.s32 %s153, 1
      %p157 = scmp.eq.s32.totalorder %s25, 1
      %p158 = scmp.ne.s32.totalorder %s153, %s155
      %p159 = scmp.eq.s32.totalorder %s25, 0
      %p160 = por %p158, %p159
      %p161 = scmp.ne.s32.totalorder %s153, %s155
      %p162 = scmp.eq.s32.totalorder %s30, 1
      %p163 = por %p161, %p162
      %p164 = scmp.ne.s32.totalorder %s155, %s156
      %p165 = scmp.eq.s32.totalorder %s30, 0
      %p166 = por %p164, %p165
      %p167 = scmp.ne.s32.totalorder %s155, %s156
      %p168 = scmp.eq.s32.totalorder %s31, 1
      %p169 = por %p167, %p168
      %p171 = scmp.ne.s32.totalorder %s156, %s170
      %p172 = scmp.eq.s32.totalorder %s31, 0
      %p173 = por %p171, %p172
      %s175 = sadd.s32 %s174, 1
      %p178 = scmp.eq.s32.totalorder %s25, 1
      %p179 = scmp.ne.s32.totalorder %s174, %s176
      %p180 = scmp.eq.s32.totalorder %s25, 0
      %p181 = por %p179, %p180
      %p182 = scmp.ne.s32.totalorder %s174, %s176
      %p183 = scmp.eq.s32.totalorder %s30, 1
      %p184 = por %p182, %p183
      %p185 = scmp.ne.s32.totalorder %s176, %s177
      %p186 = scmp.eq.s32.totalorder %s30, 0
      %p187 = por %p185, %p186
      %p188 = scmp.ne.s32.totalorder %s176, %s177
      %p189 = scmp.eq.s32.totalorder %s31, 1
      %p190 = por %p188, %p189
      %p192 = scmp.ne.s32.totalorder %s177, %s191
      %p193 = scmp.eq.s32.totalorder %s31, 0
      %p194 = por %p192, %p193
      %s196 = sadd.s32 %s195, 1
      %p199 = scmp.eq.s32.totalorder %s25, 1
      %p200 = scmp.ne.s32.totalorder %s195, %s197
      %p201 = scmp.eq.s32.totalorder %s25, 0
      %p202 = por %p200, %p201
      %p203 = scmp.ne.s32.totalorder %s195, %s197
      %p204 = scmp.eq.s32.totalorder %s30, 1
      %p205 = por %p203, %p204
      %p206 = scmp.ne.s32.totalorder %s197, %s198
      %p207 = scmp.eq.s32.totalorder %s30, 0
      %p208 = por %p206, %p207
      %p209 = scmp.ne.s32.totalorder %s197, %s198
      %p210 = scmp.eq.s32.totalorder %s31, 1
      %p211 = por %p209, %p210
      %p213 = scmp.ne.s32.totalorder %s198, %s212
      %p214 = scmp.eq.s32.totalorder %s31, 0
      %p215 = por %p213, %p214
      %s217 = sadd.s32 %s216, 1
      %p220 = scmp.eq.s32.totalorder %s25, 1
      %p221 = scmp.ne.s32.totalorder %s216, %s218
      %p222 = scmp.eq.s32.totalorder %s25, 0
      %p223 = por %p221, %p222
      %p224 = scmp.ne.s32.totalorder %s216, %s218
      %p225 = scmp.eq.s32.totalorder %s30, 1
      %p226 = por %p224, %p225
      %p227 = scmp.ne.s32.totalorder %s218, %s219
      %p228 = scmp.eq.s32.totalorder %s30, 0
      %p229 = por %p227, %p228
      %p230 = scmp.ne.s32.totalorder %s218, %s219
      %p231 = scmp.eq.s32.totalorder %s31, 1
      %p232 = por %p230, %p231
      %p234 = scmp.ne.s32.totalorder %s219, %s233
      %p235 = scmp.eq.s32.totalorder %s31, 0
      %p236 = por %p234, %p235
      %s238 = sadd.s32 %s237, 1
      %p241 = scmp.eq.s32.totalorder %s25, 1
      %p242 = scmp.ne.s32.totalorder %s237, %s239
      %p243 = scmp.eq.s32.totalorder %s25, 0
      %p244 = por %p242, %p243
      %p245 = scmp.ne.s32.totalorder %s237, %s239
      %p246 = scmp.eq.s32.totalorder %s30, 1
      %p247 = por %p245, %p246
      %p248 = scmp.ne.s32.totalorder %s239, %s240
      %p249 = scmp.eq.s32.totalorder %s30, 0
      %p250 = por %p248, %p249
      %p251 = scmp.ne.s32.totalorder %s239, %s240
      %p252 = scmp.eq.s32.totalorder %s31, 1
      %p253 = por %p251, %p252
      %p255 = scmp.ne.s32.totalorder %s240, %s254
      %p256 = scmp.eq.s32.totalorder %s31, 0
      %p257 = por %p255, %p256
      %s258 = ssub.s32 %s32, %s44
      %s259 = ssub.s32 %s33, %s40
      %s260 = sor.u32 %s258, %s259
      %p261 = scmp.eq.s32.totalorder %s260, 0
      %s263 = sadd.s32 %s262, 1
      %s264 = scalar_select %p261, %s262, %s263
      %p267 = pneg %p261
      %p268 = scmp.eq.s32.totalorder %s25, 1
      %p269 = por %p267, %p268
      %p270 = scmp.ne.s32.totalorder %s262, %s265
      %p271 = scmp.eq.s32.totalorder %s25, 0
      %p272 = por %p270, %p271
      %p273 = scmp.ne.s32.totalorder %s262, %s265
      %p274 = scmp.eq.s32.totalorder %s30, 1
      %p275 = por %p273, %p274
      %p276 = scmp.ne.s32.totalorder %s265, %s266
      %p277 = scmp.eq.s32.totalorder %s30, 0
      %p278 = por %p276, %p277
      %p279 = scmp.ne.s32.totalorder %s265, %s266
      %p280 = scmp.eq.s32.totalorder %s31, 1
      %p281 = por %p279, %p280
      %p283 = scmp.ne.s32.totalorder %s266, %s282
      %p284 = scmp.eq.s32.totalorder %s31, 0
      %p285 = por %p283, %p284
      %s286 = ssub.s32 %s32, %s44
      %s287 = ssub.s32 %s33, %s40
      %s288 = sor.u32 %s286, %s287
      %p289 = scmp.eq.s32.totalorder %s288, 0
      %s291 = sadd.s32 %s290, 1
      %s292 = scalar_select %p289, %s290, %s291
      %p295 = pneg %p289
      %p296 = scmp.eq.s32.totalorder %s25, 1
      %p297 = por %p295, %p296
      %p298 = scmp.ne.s32.totalorder %s290, %s293
      %p299 = scmp.eq.s32.totalorder %s25, 0
      %p300 = por %p298, %p299
      %p301 = scmp.ne.s32.totalorder %s290, %s293
      %p302 = scmp.eq.s32.totalorder %s30, 1
      %p303 = por %p301, %p302
      %p304 = scmp.ne.s32.totalorder %s293, %s294
      %p305 = scmp.eq.s32.totalorder %s30, 0
      %p306 = por %p304, %p305
      %p307 = scmp.ne.s32.totalorder %s293, %s294
      %p308 = scmp.eq.s32.totalorder %s31, 1
      %p309 = por %p307, %p308
      %p311 = scmp.ne.s32.totalorder %s294, %s310
      %p312 = scmp.eq.s32.totalorder %s31, 0
      %p313 = por %p311, %p312
      %p314 = scmp.le.s32.totalorder 1, %s25
      %p315 = scmp.lt.s32.totalorder %s25, 3
      %p316 = pnand %p314, %p315
      %p317 = pneg %p316
      // Predicated region
      $region9: #{tpu_custom_call.1} parent=5 // pred_check
        _
      $region10: #{tpu_custom_call.1} parent=5 // pred_check_branch
        %319 = sbr.rel (%p316) target = $region12
      $region11: #{tpu_custom_call.1} parent=5 // pred_region
        %s320 = ssub.s32 %s25, 1
        // Predicated region
        $region13: #{tpu_custom_call.1} parent=11 // pred_check
          %p321 = pneg %p166
        $region14: #{tpu_custom_call.1} parent=11 // pred_check_branch
          %323 = sbr.rel (%p321) target = $region16
        $region15: #{tpu_custom_call.1} parent=11 // pred_region
          _
        $region16: #{tpu_custom_call.1} parent=11 // pred_fallthru
          _
        // Predicated region
        $region17: #{tpu_custom_call.1} parent=11 // pred_check
          %p324 = pneg %p187
        $region18: #{tpu_custom_call.1} parent=11 // pred_check_branch
          %326 = sbr.rel (%p324) target = $region20
        $region19: #{tpu_custom_call.1} parent=11 // pred_region
          _
        $region20: #{tpu_custom_call.1} parent=11 // pred_fallthru
          _
        // Predicated region
        $region21: #{tpu_custom_call.1} parent=11 // pred_check
          %p327 = pneg %p208
        $region22: #{tpu_custom_call.1} parent=11 // pred_check_branch
          %329 = sbr.rel (%p327) target = $region24
        $region23: #{tpu_custom_call.1} parent=11 // pred_region
          _
        $region24: #{tpu_custom_call.1} parent=11 // pred_fallthru
          _
        // Predicated region
        $region25: #{tpu_custom_call.1} parent=11 // pred_check
          %p330 = pneg %p229
        $region26: #{tpu_custom_call.1} parent=11 // pred_check_branch
          %332 = sbr.rel (%p330) target = $region28
        $region27: #{tpu_custom_call.1} parent=11 // pred_region
          _
        $region28: #{tpu_custom_call.1} parent=11 // pred_fallthru
          _
        // Predicated region
        $region29: #{tpu_custom_call.1} parent=11 // pred_check
          %p333 = pneg %p250
        $region30: #{tpu_custom_call.1} parent=11 // pred_check_branch
          %335 = sbr.rel (%p333) target = $region32
        $region31: #{tpu_custom_call.1} parent=11 // pred_region
          _
        $region32: #{tpu_custom_call.1} parent=11 // pred_fallthru
          _
      $region12: #{tpu_custom_call.1} parent=5 // pred_fallthru
        _
      %p336 = scmp.lt.s32.totalorder %s25, 2
      // Predicated region
      $region33: #{tpu_custom_call.1} parent=5 // pred_check
        %p337 = pneg %p336
      $region34: #{tpu_custom_call.1} parent=5 // pred_check_branch
        %339 = sbr.rel (%p337) target = $region36
      $region35: #{tpu_custom_call.1} parent=5 // pred_region
        // Predicated region
        $region37: #{tpu_custom_call.1} parent=35 // pred_check
          %p340 = pneg %p59
        $region38: #{tpu_custom_call.1} parent=35 // pred_check_branch
          %342 = sbr.rel (%p340) target = $region40
        $region39: #{tpu_custom_call.1} parent=35 // pred_region
          %s343 = smul.u32 512, %s33
          %p344 = scmp.lt.s32.totalorder %s32, 1
          %s345 = scalar_select %p344, %s32, 1
          %p346 = scmp.lt.s32.totalorder %s343, 511
          %s347 = scalar_select %p346, %s343, 511
          %s348 = smul.addr %s345, 512
          %s349 = sadd.s32 %s347, %s348
          %s350 = smul.addr %s349, 4
          %s351 = scalar_lea.vmem %s0, %s350
          %s352 = smul.u32 512, %s33
        $region40: #{tpu_custom_call.1} parent=35 // pred_fallthru
          _
        // Predicated region
        $region41: #{tpu_custom_call.1} parent=35 // pred_check
          %p353 = pneg %p85
        $region42: #{tpu_custom_call.1} parent=35 // pred_check_branch
          %355 = sbr.rel (%p353) target = $region44
        $region43: #{tpu_custom_call.1} parent=35 // pred_region
          %p356 = scmp.lt.s32.totalorder %s32, 1
          %s357 = scalar_select %p356, %s32, 1
          %s358 = smul.addr %s357, 2
          %s359 = scalar_lea.vmem %s1, %s358
        $region44: #{tpu_custom_call.1} parent=35 // pred_fallthru
          _
        // Predicated region
        $region45: #{tpu_custom_call.1} parent=35 // pred_check
          %p360 = pneg %p113
        $region46: #{tpu_custom_call.1} parent=35 // pred_check_branch
          %362 = sbr.rel (%p360) target = $region48
        $region47: #{tpu_custom_call.1} parent=35 // pred_region
          %s363 = smul.u32 16, %s33
          %p364 = scmp.lt.s32.totalorder %s32, 1
          %s365 = scalar_select %p364, %s32, 1
          %p366 = scmp.lt.s32.totalorder %s363, 15
          %s367 = scalar_select %p366, %s363, 15
          %s368 = smul.addr %s365, 16
          %s369 = sadd.s32 %s367, %s368
          %s370 = smul.addr %s369, 8
          %s371 = scalar_lea.vmem %s2, %s370
          %s372 = smul.u32 16, %s33
        $region48: #{tpu_custom_call.1} parent=35 // pred_fallthru
          _
        // Predicated region
        $region49: #{tpu_custom_call.1} parent=35 // pred_check
          %p373 = pneg %p139
        $region50: #{tpu_custom_call.1} parent=35 // pred_check_branch
          %375 = sbr.rel (%p373) target = $region52
        $region51: #{tpu_custom_call.1} parent=35 // pred_region
          %p376 = scmp.lt.s32.totalorder %s32, 1
          %s377 = scalar_select %p376, %s32, 1
          %s378 = scalar_lea.vmem %s3, %s377
        $region52: #{tpu_custom_call.1} parent=35 // pred_fallthru
          _
      $region36: #{tpu_custom_call.1} parent=5 // pred_fallthru
        _
      %p379 = scmp.le.s32.totalorder 1, %s25
      %p380 = scmp.lt.s32.totalorder %s25, 3
      %p381 = pnand %p379, %p380
      %p382 = pneg %p381
      // Predicated region
      $region53: #{tpu_custom_call.1} parent=5 // pred_check
        _
      $region54: #{tpu_custom_call.1} parent=5 // pred_check_branch
        %384 = sbr.rel (%p381) target = $region56
      $region55: #{tpu_custom_call.1} parent=5 // pred_region
        %s385 = ssub.s32 %s25, 1
        %s386 = smul.u32 512, %s35
        %p387 = scmp.lt.s32.totalorder %s34, 1
        %s388 = scalar_select %p387, %s34, 1
        %p389 = scmp.lt.s32.totalorder %s386, 511
        %s390 = scalar_select %p389, %s386, 511
        %s391 = smul.addr %s388, 512
        %s392 = sadd.s32 %s390, %s391
        %s393 = smul.addr %s392, 4
        %s394 = scalar_lea.vmem %s0, %s393
        %p395 = pneg %p65
        %p396 = pneg %p62
        %p397 = scmp.lt.s32.totalorder %s34, 1
        %s398 = scalar_select %p397, %s34, 1
        %s399 = smul.addr %s398, 2
        %s400 = scalar_lea.vmem %s1, %s399
        %p401 = pneg %p91
        %p402 = pneg %p88
        %s403 = smul.u32 16, %s35
        %p404 = scmp.lt.s32.totalorder %s34, 1
        %s405 = scalar_select %p404, %s34, 1
        %p406 = scmp.lt.s32.totalorder %s403, 15
        %s407 = scalar_select %p406, %s403, 15
        %s408 = smul.addr %s405, 16
        %s409 = sadd.s32 %s407, %s408
        %s410 = smul.addr %s409, 8
        %s411 = scalar_lea.vmem %s2, %s410
        %p412 = pneg %p119
        %p413 = pneg %p116
        %p414 = scmp.lt.s32.totalorder %s34, 1
        %s415 = scalar_select %p414, %s34, 1
        %s416 = scalar_lea.vmem %s3, %s415
        %p417 = pneg %p145
        %p418 = pneg %p142
        %p419 = pneg %p166
        %p420 = pneg %p163
        %p421 = pneg %p187
        %p422 = pneg %p184
        %p423 = pneg %p208
        %p424 = pneg %p205
        %p425 = pneg %p229
        %p426 = pneg %p226
        %p427 = pneg %p250
        %p428 = pneg %p247
        %p429 = pneg %p278
        %p430 = pneg %p275
        %s431 = sand.u32 %s265, 1
        %s432 = scalar_lea.sflag [#allocation4], %s431
        %s433 = sand.u32 %s265, 1
        %s434 = smul.addr %s433, 128
        %s435 = scalar_lea.vmem [#allocation3], %s434
        %p436 = pneg %p306
        %p437 = pneg %p303
        %s438 = sand.u32 %s293, 1
        %s439 = scalar_lea.sflag [#allocation6], %s438
        %s440 = sand.u32 %s293, 1
        %s441 = smul.addr %s440, 128
        %s442 = scalar_lea.vmem [#allocation5], %s441
        %s443 = smul.u32 512, %s35
        %p444 = scmp.lt.s32.totalorder %s34, 1
        %s445 = scalar_select %p444, %s34, 1
        %p446 = scmp.lt.s32.totalorder %s443, 511
        %s447 = scalar_select %p446, %s443, 511
        %s448 = smul.addr %s445, 512
        %s449 = sadd.s32 %s447, %s448
        %s450 = smul.addr %s449, 4
        %s451 = scalar_lea.vmem %s0, %s450
        %s452 = smul.u32 512, %s35
        %p453 = scmp.lt.s32.totalorder %s34, 1
        %s454 = scalar_select %p453, %s34, 1
        %s455 = smul.addr %s454, 2
        %s456 = scalar_lea.vmem %s1, %s455
        %s457 = smul.u32 16, %s35
        %p458 = scmp.lt.s32.totalorder %s34, 1
        %s459 = scalar_select %p458, %s34, 1
        %p460 = scmp.lt.s32.totalorder %s457, 15
        %s461 = scalar_select %p460, %s457, 15
        %s462 = smul.addr %s459, 16
        %s463 = sadd.s32 %s461, %s462
        %s464 = smul.addr %s463, 8
        %s465 = scalar_lea.vmem %s2, %s464
        %s466 = smul.u32 16, %s35
        %p467 = scmp.lt.s32.totalorder %s34, 1
        %s468 = scalar_select %p467, %s34, 1
        %s469 = scalar_lea.vmem %s3, %s468
        %s470 = smul.u32 16, %s35
        %s471 = smul.u32 16, %s35
        %v473 = vld [vmem:[%s456] sm:$0x3]
        %v474 = vld [vmem:[%s5] sm:$0xff]
        %v475 = vld [vmem:[%s5 + $0x8] sm:$0xff]
        %v476 = vld [vmem:[%s5 + $0x10] sm:$0xff]
        %v477 = vld [vmem:[%s5 + $0x18] sm:$0xff]
        %v478 = vld [vmem:[%s5 + $0x20] sm:$0xff]
        %v479 = vld [vmem:[%s5 + $0x28] sm:$0xff]
        %v480 = vld [vmem:[%s5 + $0x30] sm:$0xff]
        %v481 = vld [vmem:[%s5 + $0x38] sm:$0xff]
        %v482 = vld [vmem:[%s5 + $0x40] sm:$0xff]
        %v483 = vld [vmem:[%s5 + $0x48] sm:$0xff]
        %v484 = vld [vmem:[%s5 + $0x50] sm:$0xff]
        %v485 = vld [vmem:[%s5 + $0x58] sm:$0xff]
        %v486 = vld [vmem:[%s5 + $0x60] sm:$0xff]
        %v487 = vld [vmem:[%s5 + $0x68] sm:$0xff]
        %v488 = vld [vmem:[%s5 + $0x70] sm:$0xff]
        %v489 = vld [vmem:[%s5 + $0x78] sm:$0xff]
        %v490 = vld [vmem:[%s4] sm:$0xff]
        %v491 = vld [vmem:[%s4 + $0x8] sm:$0xff]
        %v492 = vld [vmem:[%s4 + $0x10] sm:$0xff]
        %v493 = vld [vmem:[%s4 + $0x18] sm:$0xff]
        %v494 = vld [vmem:[%s4 + $0x20] sm:$0xff]
        %v495 = vld [vmem:[%s4 + $0x28] sm:$0xff]
        %v496 = vld [vmem:[%s4 + $0x30] sm:$0xff]
        %v497 = vld [vmem:[%s4 + $0x38] sm:$0xff]
        %v498 = vld [vmem:[%s4 + $0x40] sm:$0xff]
        %v499 = vld [vmem:[%s4 + $0x48] sm:$0xff]
        %v500 = vld [vmem:[%s4 + $0x50] sm:$0xff]
        %v501 = vld [vmem:[%s4 + $0x58] sm:$0xff]
        %v502 = vld [vmem:[%s4 + $0x60] sm:$0xff]
        %v503 = vld [vmem:[%s4 + $0x68] sm:$0xff]
        %v504 = vld [vmem:[%s4 + $0x70] sm:$0xff]
        %v505 = vld [vmem:[%s4 + $0x78] sm:$0xff]
        %v506 = vld [vmem:[%s4 + $0x80] sm:$0xff]
        %v507 = vld [vmem:[%s4 + $0x88] sm:$0xff]
        %v508 = vld [vmem:[%s4 + $0x90] sm:$0xff]
        %v509 = vld [vmem:[%s4 + $0x98] sm:$0xff]
        %v510 = vld [vmem:[%s4 + $0xa0] sm:$0xff]
        %v511 = vld [vmem:[%s4 + $0xa8] sm:$0xff]
        %v512 = vld [vmem:[%s4 + $0xb0] sm:$0xff]
        %v513 = vld [vmem:[%s4 + $0xb8] sm:$0xff]
        %v514 = vld [vmem:[%s4 + $0xc0] sm:$0xff]
        %v515 = vld [vmem:[%s4 + $0xc8] sm:$0xff]
        %v516 = vld [vmem:[%s4 + $0xd0] sm:$0xff]
        %v517 = vld [vmem:[%s4 + $0xd8] sm:$0xff]
        %v518 = vld [vmem:[%s4 + $0xe0] sm:$0xff]
        %v519 = vld [vmem:[%s4 + $0xe8] sm:$0xff]
        %v520 = vld [vmem:[%s4 + $0xf0] sm:$0xff]
        %v521 = vld [vmem:[%s4 + $0xf8] sm:$0xff]
        %v522 = vld [vmem:[%s6] sm:$0xff]
        %v523 = vld [vmem:[%s6 + $0x8] sm:$0xff]
        %v524 = vld [vmem:[%s6 + $0x10] sm:$0xff]
        %v525 = vld [vmem:[%s6 + $0x18] sm:$0xff]
        %v526 = vld [vmem:[%s6 + $0x20] sm:$0xff]
        %v527 = vld [vmem:[%s6 + $0x28] sm:$0xff]
        %v528 = vld [vmem:[%s6 + $0x30] sm:$0xff]
        %v529 = vld [vmem:[%s6 + $0x38] sm:$0xff]
        %v530 = vld [vmem:[%s6 + $0x40] sm:$0xff]
        %v531 = vld [vmem:[%s6 + $0x48] sm:$0xff]
        %v532 = vld [vmem:[%s6 + $0x50] sm:$0xff]
        %v533 = vld [vmem:[%s6 + $0x58] sm:$0xff]
        %v534 = vld [vmem:[%s6 + $0x60] sm:$0xff]
        %v535 = vld [vmem:[%s6 + $0x68] sm:$0xff]
        %v536 = vld [vmem:[%s6 + $0x70] sm:$0xff]
        %v537 = vld [vmem:[%s6 + $0x78] sm:$0xff]
        %v538 = vld [vmem:[%s7] sm:$0xff]
        %v539 = vld [vmem:[%s7 + $0x8] sm:$0xff]
        %v540 = vld [vmem:[%s7 + $0x10] sm:$0xff]
        %v541 = vld [vmem:[%s7 + $0x18] sm:$0xff]
        %v542 = vld [vmem:[%s7 + $0x20] sm:$0xff]
        %v543 = vld [vmem:[%s7 + $0x28] sm:$0xff]
        %v544 = vld [vmem:[%s7 + $0x30] sm:$0xff]
        %v545 = vld [vmem:[%s7 + $0x38] sm:$0xff]
        %v546 = vld [vmem:[%s7 + $0x40] sm:$0xff]
        %v547 = vld [vmem:[%s7 + $0x48] sm:$0xff]
        %v548 = vld [vmem:[%s7 + $0x50] sm:$0xff]
        %v549 = vld [vmem:[%s7 + $0x58] sm:$0xff]
        %v550 = vld [vmem:[%s7 + $0x60] sm:$0xff]
        %v551 = vld [vmem:[%s7 + $0x68] sm:$0xff]
        %v552 = vld [vmem:[%s7 + $0x70] sm:$0xff]
        %v553 = vld [vmem:[%s7 + $0x78] sm:$0xff]
        %v554 = vld [vmem:[#allocation2] sm:$0x1]
        %v555 = vld [vmem:[%s469] sm:$0x1]
        %v556 = vld [vmem:[%s451] sm:$0xf]
        %v557 = vld [vmem:[%s451 + $0x4] sm:$0xf]
        %v558 = vld [vmem:[%s451 + $0x8] sm:$0xf]
        %v559 = vld [vmem:[%s451 + $0xc] sm:$0xf]
        %v560 = vld [vmem:[%s451 + $0x10] sm:$0xf]
        %v561 = vld [vmem:[%s451 + $0x14] sm:$0xf]
        %v562 = vld [vmem:[%s451 + $0x18] sm:$0xf]
        %v563 = vld [vmem:[%s451 + $0x1c] sm:$0xf]
        %v564 = vld [vmem:[%s451 + $0x20] sm:$0xf]
        %v565 = vld [vmem:[%s451 + $0x24] sm:$0xf]
        %v566 = vld [vmem:[%s451 + $0x28] sm:$0xf]
        %v567 = vld [vmem:[%s451 + $0x2c] sm:$0xf]
        %v568 = vld [vmem:[%s451 + $0x30] sm:$0xf]
        %v569 = vld [vmem:[%s451 + $0x34] sm:$0xf]
        %v570 = vld [vmem:[%s451 + $0x38] sm:$0xf]
        %v571 = vld [vmem:[%s451 + $0x3c] sm:$0xf]
        %v572 = vld [vmem:[%s451 + $0x40] sm:$0xf]
        %v573 = vld [vmem:[%s451 + $0x44] sm:$0xf]
        %v574 = vld [vmem:[%s451 + $0x48] sm:$0xf]
        %v575 = vld [vmem:[%s451 + $0x4c] sm:$0xf]
        %v576 = vld [vmem:[%s451 + $0x50] sm:$0xf]
        %v577 = vld [vmem:[%s451 + $0x54] sm:$0xf]
        %v578 = vld [vmem:[%s451 + $0x58] sm:$0xf]
        %v579 = vld [vmem:[%s451 + $0x5c] sm:$0xf]
        %v580 = vld [vmem:[%s451 + $0x60] sm:$0xf]
        %v581 = vld [vmem:[%s451 + $0x64] sm:$0xf]
        %v582 = vld [vmem:[%s451 + $0x68] sm:$0xf]
        %v583 = vld [vmem:[%s451 + $0x6c] sm:$0xf]
        %v584 = vld [vmem:[%s451 + $0x70] sm:$0xf]
        %v585 = vld [vmem:[%s451 + $0x74] sm:$0xf]
        %v586 = vld [vmem:[%s451 + $0x78] sm:$0xf]
        %v587 = vld [vmem:[%s451 + $0x7c] sm:$0xf]
        %589 = vset.pattern.permute.xlu0 0
        %590 = vperm.xlu0 %589, %v490
        %v591 = vpop.permute.xlu0 %590
        %594 = vset.pattern.permute.xlu0 0
        %595 = vperm.xlu0 %594, %v491
        %v596 = vpop.permute.xlu0 %595
        %599 = vset.pattern.permute.xlu0 0
        %600 = vperm.xlu0 %599, %v492
        %v601 = vpop.permute.xlu0 %600
        %604 = vset.pattern.permute.xlu0 0
        %605 = vperm.xlu0 %604, %v493
        %v606 = vpop.permute.xlu0 %605
        %609 = vset.pattern.permute.xlu0 0
        %610 = vperm.xlu0 %609, %v494
        %v611 = vpop.permute.xlu0 %610
        %614 = vset.pattern.permute.xlu0 0
        %615 = vperm.xlu0 %614, %v495
        %v616 = vpop.permute.xlu0 %615
        %619 = vset.pattern.permute.xlu0 0
        %620 = vperm.xlu0 %619, %v496
        %v621 = vpop.permute.xlu0 %620
        %624 = vset.pattern.permute.xlu0 0
        %625 = vperm.xlu0 %624, %v497
        %v626 = vpop.permute.xlu0 %625
        %629 = vset.pattern.permute.xlu0 0
        %630 = vperm.xlu0 %629, %v498
        %v631 = vpop.permute.xlu0 %630
        %634 = vset.pattern.permute.xlu0 0
        %635 = vperm.xlu0 %634, %v499
        %v636 = vpop.permute.xlu0 %635
        %639 = vset.pattern.permute.xlu0 0
        %640 = vperm.xlu0 %639, %v500
        %v641 = vpop.permute.xlu0 %640
        %644 = vset.pattern.permute.xlu0 0
        %645 = vperm.xlu0 %644, %v501
        %v646 = vpop.permute.xlu0 %645
        %649 = vset.pattern.permute.xlu0 0
        %650 = vperm.xlu0 %649, %v502
        %v651 = vpop.permute.xlu0 %650
        %654 = vset.pattern.permute.xlu0 0
        %655 = vperm.xlu0 %654, %v503
        %v656 = vpop.permute.xlu0 %655
        %659 = vset.pattern.permute.xlu0 0
        %660 = vperm.xlu0 %659, %v504
        %v661 = vpop.permute.xlu0 %660
        %664 = vset.pattern.permute.xlu0 0
        %665 = vperm.xlu0 %664, %v505
        %v666 = vpop.permute.xlu0 %665
        %669 = vset.pattern.permute.xlu0 0
        %670 = vperm.xlu0 %669, %v506
        %v671 = vpop.permute.xlu0 %670
        %674 = vset.pattern.permute.xlu0 0
        %675 = vperm.xlu0 %674, %v507
        %v676 = vpop.permute.xlu0 %675
        %679 = vset.pattern.permute.xlu0 0
        %680 = vperm.xlu0 %679, %v508
        %v681 = vpop.permute.xlu0 %680
        %684 = vset.pattern.permute.xlu0 0
        %685 = vperm.xlu0 %684, %v509
        %v686 = vpop.permute.xlu0 %685
        %689 = vset.pattern.permute.xlu0 0
        %690 = vperm.xlu0 %689, %v510
        %v691 = vpop.permute.xlu0 %690
        %694 = vset.pattern.permute.xlu0 0
        %695 = vperm.xlu0 %694, %v511
        %v696 = vpop.permute.xlu0 %695
        %699 = vset.pattern.permute.xlu0 0
        %700 = vperm.xlu0 %699, %v512
        %v701 = vpop.permute.xlu0 %700
        %704 = vset.pattern.permute.xlu0 0
        %705 = vperm.xlu0 %704, %v513
        %v706 = vpop.permute.xlu0 %705
        %709 = vset.pattern.permute.xlu0 0
        %710 = vperm.xlu0 %709, %v514
        %v711 = vpop.permute.xlu0 %710
        %714 = vset.pattern.permute.xlu0 0
        %715 = vperm.xlu0 %714, %v515
        %v716 = vpop.permute.xlu0 %715
        %719 = vset.pattern.permute.xlu0 0
        %720 = vperm.xlu0 %719, %v516
        %v721 = vpop.permute.xlu0 %720
        %724 = vset.pattern.permute.xlu0 0
        %725 = vperm.xlu0 %724, %v517
        %v726 = vpop.permute.xlu0 %725
        %729 = vset.pattern.permute.xlu0 0
        %730 = vperm.xlu0 %729, %v518
        %v731 = vpop.permute.xlu0 %730
        %734 = vset.pattern.permute.xlu0 0
        %735 = vperm.xlu0 %734, %v519
        %v736 = vpop.permute.xlu0 %735
        %739 = vset.pattern.permute.xlu0 0
        %740 = vperm.xlu0 %739, %v520
        %v741 = vpop.permute.xlu0 %740
        %744 = vset.pattern.permute.xlu0 0
        %745 = vperm.xlu0 %744, %v521
        %v746 = vpop.permute.xlu0 %745
        %v780 = vunpack.c.l.b16 %v556
        %v781 = vunpack.c.l.b16 %v557
        %v782 = vunpack.c.l.b16 %v558
        %v783 = vunpack.c.l.b16 %v559
        %v784 = vunpack.c.l.b16 %v560
        %v785 = vunpack.c.l.b16 %v561
        %v786 = vunpack.c.l.b16 %v562
        %v787 = vunpack.c.l.b16 %v563
        %v788 = vunpack.c.l.b16 %v564
        %v789 = vunpack.c.l.b16 %v565
        %v790 = vunpack.c.l.b16 %v566
        %v791 = vunpack.c.l.b16 %v567
        %v792 = vunpack.c.l.b16 %v568
        %v793 = vunpack.c.l.b16 %v569
        %v794 = vunpack.c.l.b16 %v570
        %v795 = vunpack.c.l.b16 %v571
        %v796 = vunpack.c.l.b16 %v572
        %v797 = vunpack.c.l.b16 %v573
        %v798 = vunpack.c.l.b16 %v574
        %v799 = vunpack.c.l.b16 %v575
        %v800 = vunpack.c.l.b16 %v576
        %v801 = vunpack.c.l.b16 %v577
        %v802 = vunpack.c.l.b16 %v578
        %v803 = vunpack.c.l.b16 %v579
        %v804 = vunpack.c.l.b16 %v580
        %v805 = vunpack.c.l.b16 %v581
        %v806 = vunpack.c.l.b16 %v582
        %v807 = vunpack.c.l.b16 %v583
        %v808 = vunpack.c.l.b16 %v584
        %v809 = vunpack.c.l.b16 %v585
        %v810 = vunpack.c.l.b16 %v586
        %v811 = vunpack.c.l.b16 %v587
        %v812 = vpack.c.b16 %v781, %v780
        %v813 = vpack.c.b16 %v783, %v782
        %v814 = vpack.c.b16 %v785, %v784
        %v815 = vpack.c.b16 %v787, %v786
        %v816 = vpack.c.b16 %v789, %v788
        %v817 = vpack.c.b16 %v791, %v790
        %v818 = vpack.c.b16 %v793, %v792
        %v819 = vpack.c.b16 %v795, %v794
        %v820 = vpack.c.b16 %v797, %v796
        %v821 = vpack.c.b16 %v799, %v798
        %v822 = vpack.c.b16 %v801, %v800
        %v823 = vpack.c.b16 %v803, %v802
        %v824 = vpack.c.b16 %v805, %v804
        %v825 = vpack.c.b16 %v807, %v806
        %v826 = vpack.c.b16 %v809, %v808
        %v827 = vpack.c.b16 %v811, %v810
        %vm828 = vcmask 31744
        %v830 = vsel %vm828, %v812, 0
        %v833 = vsel %vm828, %v813, 0
        %v836 = vsel %vm828, %v814, 0
        %v839 = vsel %vm828, %v815, 0
        %v842 = vsel %vm828, %v816, 0
        %v845 = vsel %vm828, %v817, 0
        %v848 = vsel %vm828, %v818, 0
        %v851 = vsel %vm828, %v819, 0
        %v854 = vsel %vm828, %v820, 0
        %v857 = vsel %vm828, %v821, 0
        %v860 = vsel %vm828, %v822, 0
        %v863 = vsel %vm828, %v823, 0
        %v866 = vsel %vm828, %v824, 0
        %v869 = vsel %vm828, %v825, 0
        %v872 = vsel %vm828, %v826, 0
        %v875 = vsel %vm828, %v827, 0
        %vm877 = vcmask 1041408
        %v879 = vsel %vm877, %v473, 0
        %881 = vmatprep.subr.bf16.mxu0 0
        %882 = vmatpush1.bf16.msra.mxu0 %v879
        %883 = vmatprep.subr.bf16.mxu0 0
        %884 = vmatpush1.bf16.msra.mxu0 0
        %885 = vmatprep.subr.bf16.mxu0 0
        %886 = vmatpush1.bf16.msra.mxu0 0
        %887 = vmatprep.subr.bf16.mxu0 0
        %888 = vmatpush1.bf16.msra.mxu0 0
        %889 = vmatprep.subr.bf16.mxu0 0
        %890 = vmatpush1.bf16.msra.mxu0 0
        %891 = vmatprep.subr.bf16.mxu0 0
        %892 = vmatpush1.bf16.msra.mxu0 0
        %893 = vmatprep.subr.bf16.mxu0 0
        %894 = vmatpush1.bf16.msra.mxu0 0
        %895 = vmatprep.subr.bf16.mxu0 0
        %896 = vmatpush1.bf16.msra.mxu0 0
        %897 = vmatprep.subr.bf16.mxu0 0
        %898 = vmatpush1.bf16.msra.mxu0 0
        %899 = vmatprep.subr.bf16.mxu0 0
        %900 = vmatpush1.bf16.msra.mxu0 0
        %901 = vmatprep.subr.bf16.mxu0 0
        %902 = vmatpush1.bf16.msra.mxu0 0
        %903 = vmatprep.subr.bf16.mxu0 0
        %904 = vmatpush1.bf16.msra.mxu0 0
        %905 = vmatprep.subr.bf16.mxu0 0
        %906 = vmatpush1.bf16.msra.mxu0 0
        %907 = vmatprep.subr.bf16.mxu0 0
        %908 = vmatpush1.bf16.msra.mxu0 0
        %909 = vmatprep.subr.bf16.mxu0 0
        %910 = vmatpush1.bf16.msra.mxu0 0
        %911 = vmatprep.subr.bf16.mxu0 0
        %912 = vmatpush1.bf16.msra.mxu0 0
        %913 = vmatprep.mubr.bf16.mxu0 0
        %914 = vmatmul.mubr.bf16.gmra.mrb[0].mxu0 %v830
        %v915 = vpop.f32.mrb[0].mxu0
        %v916 = vadd.f32 %v591, %v915
        %v917 = vpop.f32.mrb[0].mxu0
        %v918 = vpop.f32.mrb[0].mxu0
        %v919 = vadd.f32 %v596, %v918
        %v920 = vpop.f32.mrb[0].mxu0
        %921 = vmatprep.mubr.bf16.mxu0 0
        %922 = vmatmul.mubr.bf16.gmra.mrb[0].mxu0 %v833
        %v923 = vpop.f32.mrb[0].mxu0
        %v924 = vadd.f32 %v601, %v923
        %v925 = vpop.f32.mrb[0].mxu0
        %v926 = vpop.f32.mrb[0].mxu0
        %v927 = vadd.f32 %v606, %v926
        %v928 = vpop.f32.mrb[0].mxu0
        %929 = vmatprep.mubr.bf16.mxu0 0
        %930 = vmatmul.mubr.bf16.gmra.mrb[0].mxu0 %v836
        %v931 = vpop.f32.mrb[0].mxu0
        %v932 = vadd.f32 %v611, %v931
        %v933 = vpop.f32.mrb[0].mxu0
        %v934 = vpop.f32.mrb[0].mxu0
        %v935 = vadd.f32 %v616, %v934
        %v936 = vpop.f32.mrb[0].mxu0
        %937 = vmatprep.mubr.bf16.mxu0 0
        %938 = vmatmul.mubr.bf16.gmra.mrb[0].mxu0 %v839
        %v939 = vpop.f32.mrb[0].mxu0
        %v940 = vadd.f32 %v621, %v939
        %v941 = vpop.f32.mrb[0].mxu0
        %v942 = vpop.f32.mrb[0].mxu0
        %v943 = vadd.f32 %v626, %v942
        %v944 = vpop.f32.mrb[0].mxu0
        %945 = vmatprep.mubr.bf16.mxu0 0
        %946 = vmatmul.mubr.bf16.gmra.mrb[0].mxu0 %v842
        %v947 = vpop.f32.mrb[0].mxu0
        %v948 = vadd.f32 %v631, %v947
        %v949 = vpop.f32.mrb[0].mxu0
        %v950 = vpop.f32.mrb[0].mxu0
        %v951 = vadd.f32 %v636, %v950
        %v952 = vpop.f32.mrb[0].mxu0
        %953 = vmatprep.mubr.bf16.mxu0 0
        %954 = vmatmul.mubr.bf16.gmra.mrb[0].mxu0 %v845
        %v955 = vpop.f32.mrb[0].mxu0
        %v956 = vadd.f32 %v641, %v955
        %v957 = vpop.f32.mrb[0].mxu0
        %v958 = vpop.f32.mrb[0].mxu0
        %v959 = vadd.f32 %v646, %v958
        %v960 = vpop.f32.mrb[0].mxu0
        %961 = vmatprep.mubr.bf16.mxu0 0
        %962 = vmatmul.mubr.bf16.gmra.mrb[0].mxu0 %v848
        %v963 = vpop.f32.mrb[0].mxu0
        %v964 = vadd.f32 %v651, %v963
        %v965 = vpop.f32.mrb[0].mxu0
        %v966 = vpop.f32.mrb[0].mxu0
        %v967 = vadd.f32 %v656, %v966
        %v968 = vpop.f32.mrb[0].mxu0
        %969 = vmatprep.mubr.bf16.mxu0 0
        %970 = vmatmul.mubr.bf16.gmra.mrb[0].mxu0 %v851
        %v971 = vpop.f32.mrb[0].mxu0
        %v972 = vadd.f32 %v661, %v971
        %v973 = vpop.f32.mrb[0].mxu0
        %v974 = vpop.f32.mrb[0].mxu0
        %v975 = vadd.f32 %v666, %v974
        %v976 = vpop.f32.mrb[0].mxu0
        %977 = vmatprep.mubr.bf16.mxu0 0
        %978 = vmatmul.mubr.bf16.gmra.mrb[0].mxu0 %v854
        %v979 = vpop.f32.mrb[0].mxu0
        %v980 = vadd.f32 %v671, %v979
        %v981 = vpop.f32.mrb[0].mxu0
        %v982 = vpop.f32.mrb[0].mxu0
        %v983 = vadd.f32 %v676, %v982
        %v984 = vpop.f32.mrb[0].mxu0
        %985 = vmatprep.mubr.bf16.mxu0 0
        %986 = vmatmul.mubr.bf16.gmra.mrb[0].mxu0 %v857
        %v987 = vpop.f32.mrb[0].mxu0
        %v988 = vadd.f32 %v681, %v987
        %v989 = vpop.f32.mrb[0].mxu0
        %v990 = vpop.f32.mrb[0].mxu0
        %v991 = vadd.f32 %v686, %v990
        %v992 = vpop.f32.mrb[0].mxu0
        %993 = vmatprep.mubr.bf16.mxu0 0
        %994 = vmatmul.mubr.bf16.gmra.mrb[0].mxu0 %v860
        %v995 = vpop.f32.mrb[0].mxu0
        %v996 = vadd.f32 %v691, %v995
        %v997 = vpop.f32.mrb[0].mxu0
        %v998 = vpop.f32.mrb[0].mxu0
        %v999 = vadd.f32 %v696, %v998
        %v1000 = vpop.f32.mrb[0].mxu0
        %1001 = vmatprep.mubr.bf16.mxu0 0
        %1002 = vmatmul.mubr.bf16.gmra.mrb[0].mxu0 %v863
        %v1003 = vpop.f32.mrb[0].mxu0
        %v1004 = vadd.f32 %v701, %v1003
        %v1005 = vpop.f32.mrb[0].mxu0
        %v1006 = vpop.f32.mrb[0].mxu0
        %v1007 = vadd.f32 %v706, %v1006
        %v1008 = vpop.f32.mrb[0].mxu0
        %1009 = vmatprep.mubr.bf16.mxu0 0
        %1010 = vmatmul.mubr.bf16.gmra.mrb[0].mxu0 %v866
        %v1011 = vpop.f32.mrb[0].mxu0
        %v1012 = vadd.f32 %v711, %v1011
        %v1013 = vpop.f32.mrb[0].mxu0
        %v1014 = vpop.f32.mrb[0].mxu0
        %v1015 = vadd.f32 %v716, %v1014
        %v1016 = vpop.f32.mrb[0].mxu0
        %1017 = vmatprep.mubr.bf16.mxu0 0
        %1018 = vmatmul.mubr.bf16.gmra.mrb[0].mxu0 %v869
        %v1019 = vpop.f32.mrb[0].mxu0
        %v1020 = vadd.f32 %v721, %v1019
        %v1021 = vpop.f32.mrb[0].mxu0
        %v1022 = vpop.f32.mrb[0].mxu0
        %v1023 = vadd.f32 %v726, %v1022
        %v1024 = vpop.f32.mrb[0].mxu0
        %1025 = vmatprep.mubr.bf16.mxu0 0
        %1026 = vmatmul.mubr.bf16.gmra.mrb[0].mxu0 %v872
        %v1027 = vpop.f32.mrb[0].mxu0
        %v1028 = vadd.f32 %v731, %v1027
        %v1029 = vpop.f32.mrb[0].mxu0
        %v1030 = vpop.f32.mrb[0].mxu0
        %v1031 = vadd.f32 %v736, %v1030
        %v1032 = vpop.f32.mrb[0].mxu0
        %1033 = vmatprep.mubr.bf16.mxu0 0
        %1034 = vmatmul.mubr.bf16.gmra.mrb[0].mxu0 %v875
        %v1035 = vpop.f32.mrb[0].mxu0
        %v1036 = vadd.f32 %v741, %v1035
        %v1037 = vpop.f32.mrb[0].mxu0
        %v1038 = vpop.f32.mrb[0].mxu0
        %v1039 = vadd.f32 %v746, %v1038
        %v1040 = vpop.f32.mrb[0].mxu0
        %1041 = vdwg.mxu0
        %v1042 = vmax.f32 %v916, 0.0
        %v1043 = vmax.f32 %v919, 0.0
        %v1044 = vmax.f32 %v924, 0.0
        %v1045 = vmax.f32 %v927, 0.0
        %v1046 = vmax.f32 %v932, 0.0
        %v1047 = vmax.f32 %v935, 0.0
        %v1048 = vmax.f32 %v940, 0.0
        %v1049 = vmax.f32 %v943, 0.0
        %v1050 = vmax.f32 %v948, 0.0
        %v1051 = vmax.f32 %v951, 0.0
        %v1052 = vmax.f32 %v956, 0.0
        %v1053 = vmax.f32 %v959, 0.0
        %v1054 = vmax.f32 %v964, 0.0
        %v1055 = vmax.f32 %v967, 0.0
        %v1056 = vmax.f32 %v972, 0.0
        %v1057 = vmax.f32 %v975, 0.0
        %v1058 = vmax.f32 %v980, 0.0
        %v1059 = vmax.f32 %v983, 0.0
        %v1060 = vmax.f32 %v988, 0.0
        %v1061 = vmax.f32 %v991, 0.0
        %v1062 = vmax.f32 %v996, 0.0
        %v1063 = vmax.f32 %v999, 0.0
        %v1064 = vmax.f32 %v1004, 0.0
        %v1065 = vmax.f32 %v1007, 0.0
        %v1066 = vmax.f32 %v1012, 0.0
        %v1067 = vmax.f32 %v1015, 0.0
        %v1068 = vmax.f32 %v1020, 0.0
        %v1069 = vmax.f32 %v1023, 0.0
        %v1070 = vmax.f32 %v1028, 0.0
        %v1071 = vmax.f32 %v1031, 0.0
        %v1072 = vmax.f32 %v1036, 0.0
        %v1073 = vmax.f32 %v1039, 0.0
        %v1074 = vpack.c.bf16 %v1043, %v1042
        %v1075 = vpack.c.bf16 %v1045, %v1044
        %v1076 = vpack.c.bf16 %v1047, %v1046
        %v1077 = vpack.c.bf16 %v1049, %v1048
        %v1078 = vpack.c.bf16 %v1051, %v1050
        %v1079 = vpack.c.bf16 %v1053, %v1052
        %v1080 = vpack.c.bf16 %v1055, %v1054
        %v1081 = vpack.c.bf16 %v1057, %v1056
        %v1082 = vpack.c.bf16 %v1059, %v1058
        %v1083 = vpack.c.bf16 %v1061, %v1060
        %v1084 = vpack.c.bf16 %v1063, %v1062
        %v1085 = vpack.c.bf16 %v1065, %v1064
        %v1086 = vpack.c.bf16 %v1067, %v1066
        %v1087 = vpack.c.bf16 %v1069, %v1068
        %v1088 = vpack.c.bf16 %v1071, %v1070
        %v1089 = vpack.c.bf16 %v1073, %v1072
        %1091 = vset.pattern.permute.xlu0 0
        %1092 = vperm.xlu0 %1091, %v522
        %v1093 = vpop.permute.xlu0 %1092
        %1096 = vset.pattern.permute.xlu0 0
        %1097 = vperm.xlu0 %1096, %v523
        %v1098 = vpop.permute.xlu0 %1097
        %1101 = vset.pattern.permute.xlu0 0
        %1102 = vperm.xlu0 %1101, %v524
        %v1103 = vpop.permute.xlu0 %1102
        %1106 = vset.pattern.permute.xlu0 0
        %1107 = vperm.xlu0 %1106, %v525
        %v1108 = vpop.permute.xlu0 %1107
        %1111 = vset.pattern.permute.xlu0 0
        %1112 = vperm.xlu0 %1111, %v526
        %v1113 = vpop.permute.xlu0 %1112
        %1116 = vset.pattern.permute.xlu0 0
        %1117 = vperm.xlu0 %1116, %v527
        %v1118 = vpop.permute.xlu0 %1117
        %1121 = vset.pattern.permute.xlu0 0
        %1122 = vperm.xlu0 %1121, %v528
        %v1123 = vpop.permute.xlu0 %1122
        %1126 = vset.pattern.permute.xlu0 0
        %1127 = vperm.xlu0 %1126, %v529
        %v1128 = vpop.permute.xlu0 %1127
        %1131 = vset.pattern.permute.xlu0 0
        %1132 = vperm.xlu0 %1131, %v530
        %v1133 = vpop.permute.xlu0 %1132
        %1136 = vset.pattern.permute.xlu0 0
        %1137 = vperm.xlu0 %1136, %v531
        %v1138 = vpop.permute.xlu0 %1137
        %1141 = vset.pattern.permute.xlu0 0
        %1142 = vperm.xlu0 %1141, %v532
        %v1143 = vpop.permute.xlu0 %1142
        %1146 = vset.pattern.permute.xlu0 0
        %1147 = vperm.xlu0 %1146, %v533
        %v1148 = vpop.permute.xlu0 %1147
        %1151 = vset.pattern.permute.xlu0 0
        %1152 = vperm.xlu0 %1151, %v534
        %v1153 = vpop.permute.xlu0 %1152
        %1156 = vset.pattern.permute.xlu0 0
        %1157 = vperm.xlu0 %1156, %v535
        %v1158 = vpop.permute.xlu0 %1157
        %1161 = vset.pattern.permute.xlu0 0
        %1162 = vperm.xlu0 %1161, %v536
        %v1163 = vpop.permute.xlu0 %1162
        %1166 = vset.pattern.permute.xlu0 0
        %1167 = vperm.xlu0 %1166, %v537
        %v1168 = vpop.permute.xlu0 %1167
        %v1186 = vunpack.c.l.b16 %v474
        %v1187 = vunpack.c.h.b16 %v474
        %v1188 = vunpack.c.l.b16 %v475
        %v1189 = vunpack.c.h.b16 %v475
        %v1190 = vunpack.c.l.b16 %v476
        %v1191 = vunpack.c.h.b16 %v476
        %v1192 = vunpack.c.l.b16 %v477
        %v1193 = vunpack.c.h.b16 %v477
        %v1194 = vunpack.c.l.b16 %v478
        %v1195 = vunpack.c.h.b16 %v478
        %v1196 = vunpack.c.l.b16 %v479
        %v1197 = vunpack.c.h.b16 %v479
        %v1198 = vunpack.c.l.b16 %v480
        %v1199 = vunpack.c.h.b16 %v480
        %v1200 = vunpack.c.l.b16 %v481
        %v1201 = vunpack.c.h.b16 %v481
        %v1202 = vunpack.c.l.b16 %v482
        %v1203 = vunpack.c.h.b16 %v482
        %v1204 = vunpack.c.l.b16 %v483
        %v1205 = vunpack.c.h.b16 %v483
        %v1206 = vunpack.c.l.b16 %v484
        %v1207 = vunpack.c.h.b16 %v484
        %v1208 = vunpack.c.l.b16 %v485
        %v1209 = vunpack.c.h.b16 %v485
        %v1210 = vunpack.c.l.b16 %v486
        %v1211 = vunpack.c.h.b16 %v486
        %v1212 = vunpack.c.l.b16 %v487
        %v1213 = vunpack.c.h.b16 %v487
        %v1214 = vunpack.c.l.b16 %v488
        %v1215 = vunpack.c.h.b16 %v488
        %v1216 = vunpack.c.l.b16 %v489
        %v1217 = vunpack.c.h.b16 %v489
        %v1218 = vpack.c.b16 %v1188, %v1186
        %v1219 = vpack.c.b16 %v1189, %v1187
        %v1220 = vpack.c.b16 %v1192, %v1190
        %v1221 = vpack.c.b16 %v1193, %v1191
        %v1222 = vpack.c.b16 %v1196, %v1194
        %v1223 = vpack.c.b16 %v1197, %v1195
        %v1224 = vpack.c.b16 %v1200, %v1198
        %v1225 = vpack.c.b16 %v1201, %v1199
        %v1226 = vpack.c.b16 %v1204, %v1202
        %v1227 = vpack.c.b16 %v1205, %v1203
        %v1228 = vpack.c.b16 %v1208, %v1206
        %v1229 = vpack.c.b16 %v1209, %v1207
        %v1230 = vpack.c.b16 %v1212, %v1210
        %v1231 = vpack.c.b16 %v1213, %v1211
        %v1232 = vpack.c.b16 %v1216, %v1214
        %v1233 = vpack.c.b16 %v1217, %v1215
        %1250 = vmatprep.subr.bf16.mxu0 0
        %1251 = vmatpush1.bf16.msra.mxu0 %v1074
        %1252 = vmatprep.subr.bf16.mxu0 0
        %1253 = vmatpush1.bf16.msra.mxu0 %v1075
        %1254 = vmatprep.subr.bf16.mxu0 0
        %1255 = vmatpush1.bf16.msra.mxu0 %v1076
        %1256 = vmatprep.subr.bf16.mxu0 0
        %1257 = vmatpush1.bf16.msra.mxu0 %v1077
        %1258 = vmatprep.subr.bf16.mxu0 0
        %1259 = vmatpush1.bf16.msra.mxu0 %v1078
        %1260 = vmatprep.subr.bf16.mxu0 0
        %1261 = vmatpush1.bf16.msra.mxu0 %v1079
        %1262 = vmatprep.subr.bf16.mxu0 0
        %1263 = vmatpush1.bf16.msra.mxu0 %v1080
        %1264 = vmatprep.subr.bf16.mxu0 0
        %1265 = vmatpush1.bf16.msra.mxu0 %v1081
        %1266 = vmatprep.subr.bf16.mxu0 0
        %1267 = vmatpush1.bf16.msra.mxu0 %v1082
        %1268 = vmatprep.subr.bf16.mxu0 0
        %1269 = vmatpush1.bf16.msra.mxu0 %v1083
        %1270 = vmatprep.subr.bf16.mxu0 0
        %1271 = vmatpush1.bf16.msra.mxu0 %v1084
        %1272 = vmatprep.subr.bf16.mxu0 0
        %1273 = vmatpush1.bf16.msra.mxu0 %v1085
        %1274 = vmatprep.subr.bf16.mxu0 0
        %1275 = vmatpush1.bf16.msra.mxu0 %v1086
        %1276 = vmatprep.subr.bf16.mxu0 0
        %1277 = vmatpush1.bf16.msra.mxu0 %v1087
        %1278 = vmatprep.subr.bf16.mxu0 0
        %1279 = vmatpush1.bf16.msra.mxu0 %v1088
        %1280 = vmatprep.subr.bf16.mxu0 0
        %1281 = vmatpush1.bf16.msra.mxu0 %v1089
        %1282 = vmatprep.mubr.bf16.mxu0 %v1219
        %1283 = vmatmul.mubr.bf16.gmra.mrb[0].mxu0 %v1218
        %v1284 = vpop.f32.mrb[0].mxu0
        %v1285 = vadd.f32 %v1093, %v1284
        %v1286 = vpop.f32.mrb[0].mxu0
        %v1287 = vpop.f32.mrb[0].mxu0
        %v1288 = vadd.f32 %v1098, %v1287
        %v1289 = vpop.f32.mrb[0].mxu0
        %1290 = vmatprep.mubr.bf16.mxu0 %v1221
        %1291 = vmatmul.mubr.bf16.gmra.mrb[0].mxu0 %v1220
        %v1292 = vpop.f32.mrb[0].mxu0
        %v1293 = vadd.f32 %v1103, %v1292
        %v1294 = vpop.f32.mrb[0].mxu0
        %v1295 = vpop.f32.mrb[0].mxu0
        %v1296 = vadd.f32 %v1108, %v1295
        %v1297 = vpop.f32.mrb[0].mxu0
        %1298 = vmatprep.mubr.bf16.mxu0 %v1223
        %1299 = vmatmul.mubr.bf16.gmra.mrb[0].mxu0 %v1222
        %v1300 = vpop.f32.mrb[0].mxu0
        %v1301 = vadd.f32 %v1113, %v1300
        %v1302 = vpop.f32.mrb[0].mxu0
        %v1303 = vpop.f32.mrb[0].mxu0
        %v1304 = vadd.f32 %v1118, %v1303
        %v1305 = vpop.f32.mrb[0].mxu0
        %1306 = vmatprep.mubr.bf16.mxu0 %v1225
        %1307 = vmatmul.mubr.bf16.gmra.mrb[0].mxu0 %v1224
        %v1308 = vpop.f32.mrb[0].mxu0
        %v1309 = vadd.f32 %v1123, %v1308
        %v1310 = vpop.f32.mrb[0].mxu0
        %v1311 = vpop.f32.mrb[0].mxu0
        %v1312 = vadd.f32 %v1128, %v1311
        %v1313 = vpop.f32.mrb[0].mxu0
        %1314 = vmatprep.mubr.bf16.mxu0 %v1227
        %1315 = vmatmul.mubr.bf16.gmra.mrb[0].mxu0 %v1226
        %v1316 = vpop.f32.mrb[0].mxu0
        %v1317 = vadd.f32 %v1133, %v1316
        %v1318 = vpop.f32.mrb[0].mxu0
        %v1319 = vpop.f32.mrb[0].mxu0
        %v1320 = vadd.f32 %v1138, %v1319
        %v1321 = vpop.f32.mrb[0].mxu0
        %1322 = vmatprep.mubr.bf16.mxu0 %v1229
        %1323 = vmatmul.mubr.bf16.gmra.mrb[0].mxu0 %v1228
        %v1324 = vpop.f32.mrb[0].mxu0
        %v1325 = vadd.f32 %v1143, %v1324
        %v1326 = vpop.f32.mrb[0].mxu0
        %v1327 = vpop.f32.mrb[0].mxu0
        %v1328 = vadd.f32 %v1148, %v1327
        %v1329 = vpop.f32.mrb[0].mxu0
        %1330 = vmatprep.mubr.bf16.mxu0 %v1231
        %1331 = vmatmul.mubr.bf16.gmra.mrb[0].mxu0 %v1230
        %v1332 = vpop.f32.mrb[0].mxu0
        %v1333 = vadd.f32 %v1153, %v1332
        %v1334 = vpop.f32.mrb[0].mxu0
        %v1335 = vpop.f32.mrb[0].mxu0
        %v1336 = vadd.f32 %v1158, %v1335
        %v1337 = vpop.f32.mrb[0].mxu0
        %1338 = vmatprep.mubr.bf16.mxu0 %v1233
        %1339 = vmatmul.mubr.bf16.gmra.mrb[0].mxu0 %v1232
        %v1340 = vpop.f32.mrb[0].mxu0
        %v1341 = vadd.f32 %v1163, %v1340
        %v1342 = vpop.f32.mrb[0].mxu0
        %v1343 = vpop.f32.mrb[0].mxu0
        %v1344 = vadd.f32 %v1168, %v1343
        %v1345 = vpop.f32.mrb[0].mxu0
        %1346 = vdwg.mxu0
        %v1347 = vmax.f32 %v1285, 0.0
        %v1348 = vmax.f32 %v1288, 0.0
        %v1349 = vmax.f32 %v1293, 0.0
        %v1350 = vmax.f32 %v1296, 0.0
        %v1351 = vmax.f32 %v1301, 0.0
        %v1352 = vmax.f32 %v1304, 0.0
        %v1353 = vmax.f32 %v1309, 0.0
        %v1354 = vmax.f32 %v1312, 0.0
        %v1355 = vmax.f32 %v1317, 0.0
        %v1356 = vmax.f32 %v1320, 0.0
        %v1357 = vmax.f32 %v1325, 0.0
        %v1358 = vmax.f32 %v1328, 0.0
        %v1359 = vmax.f32 %v1333, 0.0
        %v1360 = vmax.f32 %v1336, 0.0
        %v1361 = vmax.f32 %v1341, 0.0
        %v1362 = vmax.f32 %v1344, 0.0
        %1364 = vset.pattern.permute.xlu0 0
        %1365 = vperm.xlu0 %1364, %v538
        %v1366 = vpop.permute.xlu0 %1365
        %1369 = vset.pattern.permute.xlu0 0
        %1370 = vperm.xlu0 %1369, %v539
        %v1371 = vpop.permute.xlu0 %1370
        %1374 = vset.pattern.permute.xlu0 0
        %1375 = vperm.xlu0 %1374, %v540
        %v1376 = vpop.permute.xlu0 %1375
        %1379 = vset.pattern.permute.xlu0 0
        %1380 = vperm.xlu0 %1379, %v541
        %v1381 = vpop.permute.xlu0 %1380
        %1384 = vset.pattern.permute.xlu0 0
        %1385 = vperm.xlu0 %1384, %v542
        %v1386 = vpop.permute.xlu0 %1385
        %1389 = vset.pattern.permute.xlu0 0
        %1390 = vperm.xlu0 %1389, %v543
        %v1391 = vpop.permute.xlu0 %1390
        %1394 = vset.pattern.permute.xlu0 0
        %1395 = vperm.xlu0 %1394, %v544
        %v1396 = vpop.permute.xlu0 %1395
        %1399 = vset.pattern.permute.xlu0 0
        %1400 = vperm.xlu0 %1399, %v545
        %v1401 = vpop.permute.xlu0 %1400
        %1404 = vset.pattern.permute.xlu0 0
        %1405 = vperm.xlu0 %1404, %v546
        %v1406 = vpop.permute.xlu0 %1405
        %1409 = vset.pattern.permute.xlu0 0
        %1410 = vperm.xlu0 %1409, %v547
        %v1411 = vpop.permute.xlu0 %1410
        %1414 = vset.pattern.permute.xlu0 0
        %1415 = vperm.xlu0 %1414, %v548
        %v1416 = vpop.permute.xlu0 %1415
        %1419 = vset.pattern.permute.xlu0 0
        %1420 = vperm.xlu0 %1419, %v549
        %v1421 = vpop.permute.xlu0 %1420
        %1424 = vset.pattern.permute.xlu0 0
        %1425 = vperm.xlu0 %1424, %v550
        %v1426 = vpop.permute.xlu0 %1425
        %1429 = vset.pattern.permute.xlu0 0
        %1430 = vperm.xlu0 %1429, %v551
        %v1431 = vpop.permute.xlu0 %1430
        %1434 = vset.pattern.permute.xlu0 0
        %1435 = vperm.xlu0 %1434, %v552
        %v1436 = vpop.permute.xlu0 %1435
        %1439 = vset.pattern.permute.xlu0 0
        %1440 = vperm.xlu0 %1439, %v553
        %v1441 = vpop.permute.xlu0 %1440
        %v1443 = vmul.f32 %v1347, %v1366
        %v1444 = vmul.f32 %v1348, %v1371
        %v1445 = vmul.f32 %v1349, %v1376
        %v1446 = vmul.f32 %v1350, %v1381
        %v1447 = vmul.f32 %v1351, %v1386
        %v1448 = vmul.f32 %v1352, %v1391
        %v1449 = vmul.f32 %v1353, %v1396
        %v1450 = vmul.f32 %v1354, %v1401
        %v1451 = vmul.f32 %v1355, %v1406
        %v1452 = vmul.f32 %v1356, %v1411
        %v1453 = vmul.f32 %v1357, %v1416
        %v1454 = vmul.f32 %v1358, %v1421
        %v1455 = vmul.f32 %v1359, %v1426
        %v1456 = vmul.f32 %v1360, %v1431
        %v1457 = vmul.f32 %v1361, %v1436
        %v1458 = vmul.f32 %v1362, %v1441
        %v1459 = vadd.f32 %v1443, %v1444
        %v1460 = vadd.f32 %v1459, %v1445
        %v1461 = vadd.f32 %v1460, %v1446
        %v1462 = vadd.f32 %v1461, %v1447
        %v1463 = vadd.f32 %v1462, %v1448
        %v1464 = vadd.f32 %v1463, %v1449
        %v1465 = vadd.f32 %v1464, %v1450
        %v1466 = vadd.f32 %v1465, %v1451
        %v1467 = vadd.f32 %v1466, %v1452
        %v1468 = vadd.f32 %v1467, %v1453
        %v1469 = vadd.f32 %v1468, %v1454
        %v1470 = vadd.f32 %v1469, %v1455
        %v1471 = vadd.f32 %v1470, %v1456
        %v1472 = vadd.f32 %v1471, %v1457
        %v1473 = vadd.f32 %v1472, %v1458
        %v1474 = vld [vmem:[%s465] sm:$0xff]
        %v1476 = vlaneseq
        %v1477 = vshrl.u32 %v1476, 7
        %v1478 = vsub.s32 0, %v1477
        %v1479 = vrot.slane %v554, %v1478
        %1480 = vset.pattern.permute.xlu0 0
        %1481 = vperm.xlu0 %1480, %v1479
        %v1482 = vpop.permute.xlu0 %1481
        %v1484 = vadd.f32 %v1473, %v1482
        %1486 = vset.pattern.permute.xlu0 0
        %1487 = vperm.xlu0 %1486, %v1474
        %v1488 = vpop.permute.xlu0 %1487
        %v1491 = vlaneseq
        %v1492 = vshrl.u32 %v1491, 7
        %v1493 = vsub.s32 0, %v1492
        %v1494 = vrot.slane %v555, %v1493
        %v1496 = vmul.f32 %v1488, %v1494
        %v1497 = vmul.f32 %v1484, %v1496
        %1498 = vst [vmem:[%s442] sm:$0xff] %v1497
        %v1499 = vxor.u32 %v1497, 2147483648
        %v1500 = vmul.f32 %v1499, 1.442695
        %v1501 = vpow.pop %v1500
        %v1502 = vadd.f32 %v1501, 1.0
        %v1503 = vrcp.pop %v1502
        %v1504 = vmul.f32 1.0, %v1503
        %1505 = vst [vmem:[%s435] sm:$0xff] %v1504
        %v1506 = vld [vmem:[%s451 + $0x80] sm:$0xf]
        %v1507 = vld [vmem:[%s451 + $0x84] sm:$0xf]
        %v1508 = vld [vmem:[%s451 + $0x88] sm:$0xf]
        %v1509 = vld [vmem:[%s451 + $0x8c] sm:$0xf]
        %v1510 = vld [vmem:[%s451 + $0x90] sm:$0xf]
        %v1511 = vld [vmem:[%s451 + $0x94] sm:$0xf]
        %v1512 = vld [vmem:[%s451 + $0x98] sm:$0xf]
        %v1513 = vld [vmem:[%s451 + $0x9c] sm:$0xf]
        %v1514 = vld [vmem:[%s451 + $0xa0] sm:$0xf]
        %v1515 = vld [vmem:[%s451 + $0xa4] sm:$0xf]
        %v1516 = vld [vmem:[%s451 + $0xa8] sm:$0xf]
        %v1517 = vld [vmem:[%s451 + $0xac] sm:$0xf]
        %v1518 = vld [vmem:[%s451 + $0xb0] sm:$0xf]
        %v1519 = vld [vmem:[%s451 + $0xb4] sm:$0xf]
        %v1520 = vld [vmem:[%s451 + $0xb8] sm:$0xf]
        %v1521 = vld [vmem:[%s451 + $0xbc] sm:$0xf]
        %v1522 = vld [vmem:[%s451 + $0xc0] sm:$0xf]
        %v1523 = vld [vmem:[%s451 + $0xc4] sm:$0xf]
        %v1524 = vld [vmem:[%s451 + $0xc8] sm:$0xf]
        %v1525 = vld [vmem:[%s451 + $0xcc] sm:$0xf]
        %v1526 = vld [vmem:[%s451 + $0xd0] sm:$0xf]
        %v1527 = vld [vmem:[%s451 + $0xd4] sm:$0xf]
        %v1528 = vld [vmem:[%s451 + $0xd8] sm:$0xf]
        %v1529 = vld [vmem:[%s451 + $0xdc] sm:$0xf]
        %v1530 = vld [vmem:[%s451 + $0xe0] sm:$0xf]
        %v1531 = vld [vmem:[%s451 + $0xe4] sm:$0xf]
        %v1532 = vld [vmem:[%s451 + $0xe8] sm:$0xf]
        %v1533 = vld [vmem:[%s451 + $0xec] sm:$0xf]
        %v1534 = vld [vmem:[%s451 + $0xf0] sm:$0xf]
        %v1535 = vld [vmem:[%s451 + $0xf4] sm:$0xf]
        %v1536 = vld [vmem:[%s451 + $0xf8] sm:$0xf]
        %v1537 = vld [vmem:[%s451 + $0xfc] sm:$0xf]
        %v1570 = vunpack.c.l.b16 %v1506
        %v1571 = vunpack.c.l.b16 %v1507
        %v1572 = vunpack.c.l.b16 %v1508
        %v1573 = vunpack.c.l.b16 %v1509
        %v1574 = vunpack.c.l.b16 %v1510
        %v1575 = vunpack.c.l.b16 %v1511
        %v1576 = vunpack.c.l.b16 %v1512
        %v1577 = vunpack.c.l.b16 %v1513
        %v1578 = vunpack.c.l.b16 %v1514
        %v1579 = vunpack.c.l.b16 %v1515
        %v1580 = vunpack.c.l.b16 %v1516
        %v1581 = vunpack.c.l.b16 %v1517
        %v1582 = vunpack.c.l.b16 %v1518
        %v1583 = vunpack.c.l.b16 %v1519
        %v1584 = vunpack.c.l.b16 %v1520
        %v1585 = vunpack.c.l.b16 %v1521
        %v1586 = vunpack.c.l.b16 %v1522
        %v1587 = vunpack.c.l.b16 %v1523
        %v1588 = vunpack.c.l.b16 %v1524
        %v1589 = vunpack.c.l.b16 %v1525
        %v1590 = vunpack.c.l.b16 %v1526
        %v1591 = vunpack.c.l.b16 %v1527
        %v1592 = vunpack.c.l.b16 %v1528
        %v1593 = vunpack.c.l.b16 %v1529
        %v1594 = vunpack.c.l.b16 %v1530
        %v1595 = vunpack.c.l.b16 %v1531
        %v1596 = vunpack.c.l.b16 %v1532
        %v1597 = vunpack.c.l.b16 %v1533
        %v1598 = vunpack.c.l.b16 %v1534
        %v1599 = vunpack.c.l.b16 %v1535
        %v1600 = vunpack.c.l.b16 %v1536
        %v1601 = vunpack.c.l.b16 %v1537
        %v1602 = vpack.c.b16 %v1571, %v1570
        %v1603 = vpack.c.b16 %v1573, %v1572
        %v1604 = vpack.c.b16 %v1575, %v1574
        %v1605 = vpack.c.b16 %v1577, %v1576
        %v1606 = vpack.c.b16 %v1579, %v1578
        %v1607 = vpack.c.b16 %v1581, %v1580
        %v1608 = vpack.c.b16 %v1583, %v1582
        %v1609 = vpack.c.b16 %v1585, %v1584
        %v1610 = vpack.c.b16 %v1587, %v1586
        %v1611 = vpack.c.b16 %v1589, %v1588
        %v1612 = vpack.c.b16 %v1591, %v1590
        %v1613 = vpack.c.b16 %v1593, %v1592
        %v1614 = vpack.c.b16 %v1595, %v1594
        %v1615 = vpack.c.b16 %v1597, %v1596
        %v1616 = vpack.c.b16 %v1599, %v1598
        %v1617 = vpack.c.b16 %v1601, %v1600
        %v1619 = vsel %vm828, %v1602, 0
        %v1622 = vsel %vm828, %v1603, 0
        %v1625 = vsel %vm828, %v1604, 0
        %v1628 = vsel %vm828, %v1605, 0
        %v1631 = vsel %vm828, %v1606, 0
        %v1634 = vsel %vm828, %v1607, 0
        %v1637 = vsel %vm828, %v1608, 0
        %v1640 = vsel %vm828, %v1609, 0
        %v1643 = vsel %vm828, %v1610, 0
        %v1646 = vsel %vm828, %v1611, 0
        %v1649 = vsel %vm828, %v1612, 0
        %v1652 = vsel %vm828, %v1613, 0
        %v1655 = vsel %vm828, %v1614, 0
        %v1658 = vsel %vm828, %v1615, 0
        %v1661 = vsel %vm828, %v1616, 0
        %v1664 = vsel %vm828, %v1617, 0
        %1666 = vmatprep.subr.bf16.mxu0 0
        %1667 = vmatpush1.bf16.msra.mxu0 %v879
        %1668 = vmatprep.subr.bf16.mxu0 0
        %1669 = vmatpush1.bf16.msra.mxu0 0
        %1670 = vmatprep.subr.bf16.mxu0 0
        %1671 = vmatpush1.bf16.msra.mxu0 0
        %1672 = vmatprep.subr.bf16.mxu0 0
        %1673 = vmatpush1.bf16.msra.mxu0 0
        %1674 = vmatprep.subr.bf16.mxu0 0
        %1675 = vmatpush1.bf16.msra.mxu0 0
        %1676 = vmatprep.subr.bf16.mxu0 0
        %1677 = vmatpush1.bf16.msra.mxu0 0
        %1678 = vmatprep.subr.bf16.mxu0 0
        %1679 = vmatpush1.bf16.msra.mxu0 0
        %1680 = vmatprep.subr.bf16.mxu0 0
        %1681 = vmatpush1.bf16.msra.mxu0 0
        %1682 = vmatprep.subr.bf16.mxu0 0
        %1683 = vmatpush1.bf16.msra.mxu0 0
        %1684 = vmatprep.subr.bf16.mxu0 0
        %1685 = vmatpush1.bf16.msra.mxu0 0
        %1686 = vmatprep.subr.bf16.mxu0 0
        %1687 = vmatpush1.bf16.msra.mxu0 0
        %1688 = vmatprep.subr.bf16.mxu0 0
        %1689 = vmatpush1.bf16.msra.mxu0 0
        %1690 = vmatprep.subr.bf16.mxu0 0
        %1691 = vmatpush1.bf16.msra.mxu0 0
        %1692 = vmatprep.subr.bf16.mxu0 0
        %1693 = vmatpush1.bf16.msra.mxu0 0
        %1694 = vmatprep.subr.bf16.mxu0 0
        %1695 = vmatpush1.bf16.msra.mxu0 0
        %1696 = vmatprep.subr.bf16.mxu0 0
        %1697 = vmatpush1.bf16.msra.mxu0 0
        %1698 = vmatprep.mubr.bf16.mxu0 0
        %1699 = vmatmul.mubr.bf16.gmra.mrb[0].mxu0 %v1619
        %v1700 = vpop.f32.mrb[0].mxu0
        %v1701 = vadd.f32 %v591, %v1700
        %v1702 = vpop.f32.mrb[0].mxu0
        %v1703 = vpop.f32.mrb[0].mxu0
        %v1704 = vadd.f32 %v596, %v1703
        %v1705 = vpop.f32.mrb[0].mxu0
        %1706 = vmatprep.mubr.bf16.mxu0 0
        %1707 = vmatmul.mubr.bf16.gmra.mrb[0].mxu0 %v1622
        %v1708 = vpop.f32.mrb[0].mxu0
        %v1709 = vadd.f32 %v601, %v1708
        %v1710 = vpop.f32.mrb[0].mxu0
        %v1711 = vpop.f32.mrb[0].mxu0
        %v1712 = vadd.f32 %v606, %v1711
        %v1713 = vpop.f32.mrb[0].mxu0
        %1714 = vmatprep.mubr.bf16.mxu0 0
        %1715 = vmatmul.mubr.bf16.gmra.mrb[0].mxu0 %v1625
        %v1716 = vpop.f32.mrb[0].mxu0
        %v1717 = vadd.f32 %v611, %v1716
        %v1718 = vpop.f32.mrb[0].mxu0
        %v1719 = vpop.f32.mrb[0].mxu0
        %v1720 = vadd.f32 %v616, %v1719
        %v1721 = vpop.f32.mrb[0].mxu0
        %1722 = vmatprep.mubr.bf16.mxu0 0
        %1723 = vmatmul.mubr.bf16.gmra.mrb[0].mxu0 %v1628
        %v1724 = vpop.f32.mrb[0].mxu0
        %v1725 = vadd.f32 %v621, %v1724
        %v1726 = vpop.f32.mrb[0].mxu0
        %v1727 = vpop.f32.mrb[0].mxu0
        %v1728 = vadd.f32 %v626, %v1727
        %v1729 = vpop.f32.mrb[0].mxu0
        %1730 = vmatprep.mubr.bf16.mxu0 0
        %1731 = vmatmul.mubr.bf16.gmra.mrb[0].mxu0 %v1631
        %v1732 = vpop.f32.mrb[0].mxu0
        %v1733 = vadd.f32 %v631, %v1732
        %v1734 = vpop.f32.mrb[0].mxu0
        %v1735 = vpop.f32.mrb[0].mxu0
        %v1736 = vadd.f32 %v636, %v1735
        %v1737 = vpop.f32.mrb[0].mxu0
        %1738 = vmatprep.mubr.bf16.mxu0 0
        %1739 = vmatmul.mubr.bf16.gmra.mrb[0].mxu0 %v1634
        %v1740 = vpop.f32.mrb[0].mxu0
        %v1741 = vadd.f32 %v641, %v1740
        %v1742 = vpop.f32.mrb[0].mxu0
        %v1743 = vpop.f32.mrb[0].mxu0
        %v1744 = vadd.f32 %v646, %v1743
        %v1745 = vpop.f32.mrb[0].mxu0
        %1746 = vmatprep.mubr.bf16.mxu0 0
        %1747 = vmatmul.mubr.bf16.gmra.mrb[0].mxu0 %v1637
        %v1748 = vpop.f32.mrb[0].mxu0
        %v1749 = vadd.f32 %v651, %v1748
        %v1750 = vpop.f32.mrb[0].mxu0
        %v1751 = vpop.f32.mrb[0].mxu0
        %v1752 = vadd.f32 %v656, %v1751
        %v1753 = vpop.f32.mrb[0].mxu0
        %1754 = vmatprep.mubr.bf16.mxu0 0
        %1755 = vmatmul.mubr.bf16.gmra.mrb[0].mxu0 %v1640
        %v1756 = vpop.f32.mrb[0].mxu0
        %v1757 = vadd.f32 %v661, %v1756
        %v1758 = vpop.f32.mrb[0].mxu0
        %v1759 = vpop.f32.mrb[0].mxu0
        %v1760 = vadd.f32 %v666, %v1759
        %v1761 = vpop.f32.mrb[0].mxu0
        %1762 = vmatprep.mubr.bf16.mxu0 0
        %1763 = vmatmul.mubr.bf16.gmra.mrb[0].mxu0 %v1643
        %v1764 = vpop.f32.mrb[0].mxu0
        %v1765 = vadd.f32 %v671, %v1764
        %v1766 = vpop.f32.mrb[0].mxu0
        %v1767 = vpop.f32.mrb[0].mxu0
        %v1768 = vadd.f32 %v676, %v1767
        %v1769 = vpop.f32.mrb[0].mxu0
        %1770 = vmatprep.mubr.bf16.mxu0 0
        %1771 = vmatmul.mubr.bf16.gmra.mrb[0].mxu0 %v1646
        %v1772 = vpop.f32.mrb[0].mxu0
        %v1773 = vadd.f32 %v681, %v1772
        %v1774 = vpop.f32.mrb[0].mxu0
        %v1775 = vpop.f32.mrb[0].mxu0
        %v1776 = vadd.f32 %v686, %v1775
        %v1777 = vpop.f32.mrb[0].mxu0
        %1778 = vmatprep.mubr.bf16.mxu0 0
        %1779 = vmatmul.mubr.bf16.gmra.mrb[0].mxu0 %v1649
        %v1780 = vpop.f32.mrb[0].mxu0
        %v1781 = vadd.f32 %v691, %v1780
        %v1782 = vpop.f32.mrb[0].mxu0
        %v1783 = vpop.f32.mrb[0].mxu0
        %v1784 = vadd.f32 %v696, %v1783
        %v1785 = vpop.f32.mrb[0].mxu0
        %1786 = vmatprep.mubr.bf16.mxu0 0
        %1787 = vmatmul.mubr.bf16.gmra.mrb[0].mxu0 %v1652
        %v1788 = vpop.f32.mrb[0].mxu0
        %v1789 = vadd.f32 %v701, %v1788
        %v1790 = vpop.f32.mrb[0].mxu0
        %v1791 = vpop.f32.mrb[0].mxu0
        %v1792 = vadd.f32 %v706, %v1791
        %v1793 = vpop.f32.mrb[0].mxu0
        %1794 = vmatprep.mubr.bf16.mxu0 0
        %1795 = vmatmul.mubr.bf16.gmra.mrb[0].mxu0 %v1655
        %v1796 = vpop.f32.mrb[0].mxu0
        %v1797 = vadd.f32 %v711, %v1796
        %v1798 = vpop.f32.mrb[0].mxu0
        %v1799 = vpop.f32.mrb[0].mxu0
        %v1800 = vadd.f32 %v716, %v1799
        %v1801 = vpop.f32.mrb[0].mxu0
        %1802 = vmatprep.mubr.bf16.mxu0 0
        %1803 = vmatmul.mubr.bf16.gmra.mrb[0].mxu0 %v1658
        %v1804 = vpop.f32.mrb[0].mxu0
        %v1805 = vadd.f32 %v721, %v1804
        %v1806 = vpop.f32.mrb[0].mxu0
        %v1807 = vpop.f32.mrb[0].mxu0
        %v1808 = vadd.f32 %v726, %v1807
        %v1809 = vpop.f32.mrb[0].mxu0
        %1810 = vmatprep.mubr.bf16.mxu0 0
        %1811 = vmatmul.mubr.bf16.gmra.mrb[0].mxu0 %v1661
        %v1812 = vpop.f32.mrb[0].mxu0
        %v1813 = vadd.f32 %v731, %v1812
        %v1814 = vpop.f32.mrb[0].mxu0
        %v1815 = vpop.f32.mrb[0].mxu0
        %v1816 = vadd.f32 %v736, %v1815
        %v1817 = vpop.f32.mrb[0].mxu0
        %1818 = vmatprep.mubr.bf16.mxu0 0
        %1819 = vmatmul.mubr.bf16.gmra.mrb[0].mxu0 %v1664
        %v1820 = vpop.f32.mrb[0].mxu0
        %v1821 = vadd.f32 %v741, %v1820
        %v1822 = vpop.f32.mrb[0].mxu0
        %v1823 = vpop.f32.mrb[0].mxu0
        %v1824 = vadd.f32 %v746, %v1823
        %v1825 = vpop.f32.mrb[0].mxu0
        %1826 = vdwg.mxu0
        %v1827 = vmax.f32 %v1701, 0.0
        %v1828 = vmax.f32 %v1704, 0.0
        %v1829 = vmax.f32 %v1709, 0.0
        %v1830 = vmax.f32 %v1712, 0.0
        %v1831 = vmax.f32 %v1717, 0.0
        %v1832 = vmax.f32 %v1720, 0.0
        %v1833 = vmax.f32 %v1725, 0.0
        %v1834 = vmax.f32 %v1728, 0.0
        %v1835 = vmax.f32 %v1733, 0.0
        %v1836 = vmax.f32 %v1736, 0.0
        %v1837 = vmax.f32 %v1741, 0.0
        %v1838 = vmax.f32 %v1744, 0.0
        %v1839 = vmax.f32 %v1749, 0.0
        %v1840 = vmax.f32 %v1752, 0.0
        %v1841 = vmax.f32 %v1757, 0.0
        %v1842 = vmax.f32 %v1760, 0.0
        %v1843 = vmax.f32 %v1765, 0.0
        %v1844 = vmax.f32 %v1768, 0.0
        %v1845 = vmax.f32 %v1773, 0.0
        %v1846 = vmax.f32 %v1776, 0.0
        %v1847 = vmax.f32 %v1781, 0.0
        %v1848 = vmax.f32 %v1784, 0.0
        %v1849 = vmax.f32 %v1789, 0.0
        %v1850 = vmax.f32 %v1792, 0.0
        %v1851 = vmax.f32 %v1797, 0.0
        %v1852 = vmax.f32 %v1800, 0.0
        %v1853 = vmax.f32 %v1805, 0.0
        %v1854 = vmax.f32 %v1808, 0.0
        %v1855 = vmax.f32 %v1813, 0.0
        %v1856 = vmax.f32 %v1816, 0.0
        %v1857 = vmax.f32 %v1821, 0.0
        %v1858 = vmax.f32 %v1824, 0.0
        %v1859 = vpack.c.bf16 %v1828, %v1827
        %v1860 = vpack.c.bf16 %v1830, %v1829
        %v1861 = vpack.c.bf16 %v1832, %v1831
        %v1862 = vpack.c.bf16 %v1834, %v1833
        %v1863 = vpack.c.bf16 %v1836, %v1835
        %v1864 = vpack.c.bf16 %v1838, %v1837
        %v1865 = vpack.c.bf16 %v1840, %v1839
        %v1866 = vpack.c.bf16 %v1842, %v1841
        %v1867 = vpack.c.bf16 %v1844, %v1843
        %v1868 = vpack.c.bf16 %v1846, %v1845
        %v1869 = vpack.c.bf16 %v1848, %v1847
        %v1870 = vpack.c.bf16 %v1850, %v1849
        %v1871 = vpack.c.bf16 %v1852, %v1851
        %v1872 = vpack.c.bf16 %v1854, %v1853
        %v1873 = vpack.c.bf16 %v1856, %v1855
        %v1874 = vpack.c.bf16 %v1858, %v1857
        %1875 = vmatprep.subr.bf16.mxu0 0
        %1876 = vmatpush1.bf16.msra.mxu0 %v1859
        %1877 = vmatprep.subr.bf16.mxu0 0
        %1878 = vmatpush1.bf16.msra.mxu0 %v1860
        %1879 = vmatprep.subr.bf16.mxu0 0
        %1880 = vmatpush1.bf16.msra.mxu0 %v1861
        %1881 = vmatprep.subr.bf16.mxu0 0
        %1882 = vmatpush1.bf16.msra.mxu0 %v1862
        %1883 = vmatprep.subr.bf16.mxu0 0
        %1884 = vmatpush1.bf16.msra.mxu0 %v1863
        %1885 = vmatprep.subr.bf16.mxu0 0
        %1886 = vmatpush1.bf16.msra.mxu0 %v1864
        %1887 = vmatprep.subr.bf16.mxu0 0
        %1888 = vmatpush1.bf16.msra.mxu0 %v1865
        %1889 = vmatprep.subr.bf16.mxu0 0
        %1890 = vmatpush1.bf16.msra.mxu0 %v1866
        %1891 = vmatprep.subr.bf16.mxu0 0
        %1892 = vmatpush1.bf16.msra.mxu0 %v1867
        %1893 = vmatprep.subr.bf16.mxu0 0
        %1894 = vmatpush1.bf16.msra.mxu0 %v1868
        %1895 = vmatprep.subr.bf16.mxu0 0
        %1896 = vmatpush1.bf16.msra.mxu0 %v1869
        %1897 = vmatprep.subr.bf16.mxu0 0
        %1898 = vmatpush1.bf16.msra.mxu0 %v1870
        %1899 = vmatprep.subr.bf16.mxu0 0
        %1900 = vmatpush1.bf16.msra.mxu0 %v1871
        %1901 = vmatprep.subr.bf16.mxu0 0
        %1902 = vmatpush1.bf16.msra.mxu0 %v1872
        %1903 = vmatprep.subr.bf16.mxu0 0
        %1904 = vmatpush1.bf16.msra.mxu0 %v1873
        %1905 = vmatprep.subr.bf16.mxu0 0
        %1906 = vmatpush1.bf16.msra.mxu0 %v1874
        %1907 = vmatprep.mubr.bf16.mxu0 %v1219
        %1908 = vmatmul.mubr.bf16.gmra.mrb[0].mxu0 %v1218
        %v1909 = vpop.f32.mrb[0].mxu0
        %v1910 = vadd.f32 %v1093, %v1909
        %v1911 = vpop.f32.mrb[0].mxu0
        %v1912 = vpop.f32.mrb[0].mxu0
        %v1913 = vadd.f32 %v1098, %v1912
        %v1914 = vpop.f32.mrb[0].mxu0
        %1915 = vmatprep.mubr.bf16.mxu0 %v1221
        %1916 = vmatmul.mubr.bf16.gmra.mrb[0].mxu0 %v1220
        %v1917 = vpop.f32.mrb[0].mxu0
        %v1918 = vadd.f32 %v1103, %v1917
        %v1919 = vpop.f32.mrb[0].mxu0
        %v1920 = vpop.f32.mrb[0].mxu0
        %v1921 = vadd.f32 %v1108, %v1920
        %v1922 = vpop.f32.mrb[0].mxu0
        %1923 = vmatprep.mubr.bf16.mxu0 %v1223
        %1924 = vmatmul.mubr.bf16.gmra.mrb[0].mxu0 %v1222
        %v1925 = vpop.f32.mrb[0].mxu0
        %v1926 = vadd.f32 %v1113, %v1925
        %v1927 = vpop.f32.mrb[0].mxu0
        %v1928 = vpop.f32.mrb[0].mxu0
        %v1929 = vadd.f32 %v1118, %v1928
        %v1930 = vpop.f32.mrb[0].mxu0
        %1931 = vmatprep.mubr.bf16.mxu0 %v1225
        %1932 = vmatmul.mubr.bf16.gmra.mrb[0].mxu0 %v1224
        %v1933 = vpop.f32.mrb[0].mxu0
        %v1934 = vadd.f32 %v1123, %v1933
        %v1935 = vpop.f32.mrb[0].mxu0
        %v1936 = vpop.f32.mrb[0].mxu0
        %v1937 = vadd.f32 %v1128, %v1936
        %v1938 = vpop.f32.mrb[0].mxu0
        %1939 = vmatprep.mubr.bf16.mxu0 %v1227
        %1940 = vmatmul.mubr.bf16.gmra.mrb[0].mxu0 %v1226
        %v1941 = vpop.f32.mrb[0].mxu0
        %v1942 = vadd.f32 %v1133, %v1941
        %v1943 = vpop.f32.mrb[0].mxu0
        %v1944 = vpop.f32.mrb[0].mxu0
        %v1945 = vadd.f32 %v1138, %v1944
        %v1946 = vpop.f32.mrb[0].mxu0
        %1947 = vmatprep.mubr.bf16.mxu0 %v1229
        %1948 = vmatmul.mubr.bf16.gmra.mrb[0].mxu0 %v1228
        %v1949 = vpop.f32.mrb[0].mxu0
        %v1950 = vadd.f32 %v1143, %v1949
        %v1951 = vpop.f32.mrb[0].mxu0
        %v1952 = vpop.f32.mrb[0].mxu0
        %v1953 = vadd.f32 %v1148, %v1952
        %v1954 = vpop.f32.mrb[0].mxu0
        %1955 = vmatprep.mubr.bf16.mxu0 %v1231
        %1956 = vmatmul.mubr.bf16.gmra.mrb[0].mxu0 %v1230
        %v1957 = vpop.f32.mrb[0].mxu0
        %v1958 = vadd.f32 %v1153, %v1957
        %v1959 = vpop.f32.mrb[0].mxu0
        %v1960 = vpop.f32.mrb[0].mxu0
        %v1961 = vadd.f32 %v1158, %v1960
        %v1962 = vpop.f32.mrb[0].mxu0
        %1963 = vmatprep.mubr.bf16.mxu0 %v1233
        %1964 = vmatmul.mubr.bf16.gmra.mrb[0].mxu0 %v1232
        %v1965 = vpop.f32.mrb[0].mxu0
        %v1966 = vadd.f32 %v1163, %v1965
        %v1967 = vpop.f32.mrb[0].mxu0
        %v1968 = vpop.f32.mrb[0].mxu0
        %v1969 = vadd.f32 %v1168, %v1968
        %v1970 = vpop.f32.mrb[0].mxu0
        %1971 = vdwg.mxu0
        %v1972 = vmax.f32 %v1910, 0.0
        %v1973 = vmax.f32 %v1913, 0.0
        %v1974 = vmax.f32 %v1918, 0.0
        %v1975 = vmax.f32 %v1921, 0.0
        %v1976 = vmax.f32 %v1926, 0.0
        %v1977 = vmax.f32 %v1929, 0.0
        %v1978 = vmax.f32 %v1934, 0.0
        %v1979 = vmax.f32 %v1937, 0.0
        %v1980 = vmax.f32 %v1942, 0.0
        %v1981 = vmax.f32 %v1945, 0.0
        %v1982 = vmax.f32 %v1950, 0.0
        %v1983 = vmax.f32 %v1953, 0.0
        %v1984 = vmax.f32 %v1958, 0.0
        %v1985 = vmax.f32 %v1961, 0.0
        %v1986 = vmax.f32 %v1966, 0.0
        %v1987 = vmax.f32 %v1969, 0.0
        %v1988 = vmul.f32 %v1972, %v1366
        %v1989 = vmul.f32 %v1973, %v1371
        %v1990 = vmul.f32 %v1974, %v1376
        %v1991 = vmul.f32 %v1975, %v1381
        %v1992 = vmul.f32 %v1976, %v1386
        %v1993 = vmul.f32 %v1977, %v1391
        %v1994 = vmul.f32 %v1978, %v1396
        %v1995 = vmul.f32 %v1979, %v1401
        %v1996 = vmul.f32 %v1980, %v1406
        %v1997 = vmul.f32 %v1981, %v1411
        %v1998 = vmul.f32 %v1982, %v1416
        %v1999 = vmul.f32 %v1983, %v1421
        %v2000 = vmul.f32 %v1984, %v1426
        %v2001 = vmul.f32 %v1985, %v1431
        %v2002 = vmul.f32 %v1986, %v1436
        %v2003 = vmul.f32 %v1987, %v1441
        %v2004 = vadd.f32 %v1988, %v1989
        %v2005 = vadd.f32 %v2004, %v1990
        %v2006 = vadd.f32 %v2005, %v1991
        %v2007 = vadd.f32 %v2006, %v1992
        %v2008 = vadd.f32 %v2007, %v1993
        %v2009 = vadd.f32 %v2008, %v1994
        %v2010 = vadd.f32 %v2009, %v1995
        %v2011 = vadd.f32 %v2010, %v1996
        %v2012 = vadd.f32 %v2011, %v1997
        %v2013 = vadd.f32 %v2012, %v1998
        %v2014 = vadd.f32 %v2013, %v1999
        %v2015 = vadd.f32 %v2014, %v2000
        %v2016 = vadd.f32 %v2015, %v2001
        %v2017 = vadd.f32 %v2016, %v2002
        %v2018 = vadd.f32 %v2017, %v2003
        %v2019 = vld [vmem:[%s465 + $0x8] sm:$0xff]
        %v2020 = vadd.f32 %v2018, %v1482
        %2022 = vset.pattern.permute.xlu0 0
        %2023 = vperm.xlu0 %2022, %v2019
        %v2024 = vpop.permute.xlu0 %2023
        %v2026 = vmul.f32 %v2024, %v1494
        %v2027 = vmul.f32 %v2020, %v2026
        %2028 = vst [vmem:[%s442 + $0x8] sm:$0xff] %v2027
        %v2029 = vxor.u32 %v2027, 2147483648
        %v2030 = vmul.f32 %v2029, 1.442695
        %v2031 = vpow.pop %v2030
        %v2032 = vadd.f32 %v2031, 1.0
        %v2033 = vrcp.pop %v2032
        %v2034 = vmul.f32 1.0, %v2033
        %2035 = vst [vmem:[%s435 + $0x8] sm:$0xff] %v2034
        %v2036 = vld [vmem:[%s451 + $0x100] sm:$0xf]
        %v2037 = vld [vmem:[%s451 + $0x104] sm:$0xf]
        %v2038 = vld [vmem:[%s451 + $0x108] sm:$0xf]
        %v2039 = vld [vmem:[%s451 + $0x10c] sm:$0xf]
        %v2040 = vld [vmem:[%s451 + $0x110] sm:$0xf]
        %v2041 = vld [vmem:[%s451 + $0x114] sm:$0xf]
        %v2042 = vld [vmem:[%s451 + $0x118] sm:$0xf]
        %v2043 = vld [vmem:[%s451 + $0x11c] sm:$0xf]
        %v2044 = vld [vmem:[%s451 + $0x120] sm:$0xf]
        %v2045 = vld [vmem:[%s451 + $0x124] sm:$0xf]
        %v2046 = vld [vmem:[%s451 + $0x128] sm:$0xf]
        %v2047 = vld [vmem:[%s451 + $0x12c] sm:$0xf]
        %v2048 = vld [vmem:[%s451 + $0x130] sm:$0xf]
        %v2049 = vld [vmem:[%s451 + $0x134] sm:$0xf]
        %v2050 = vld [vmem:[%s451 + $0x138] sm:$0xf]
        %v2051 = vld [vmem:[%s451 + $0x13c] sm:$0xf]
        %v2052 = vld [vmem:[%s451 + $0x140] sm:$0xf]
        %v2053 = vld [vmem:[%s451 + $0x144] sm:$0xf]
        %v2054 = vld [vmem:[%s451 + $0x148] sm:$0xf]
        %v2055 = vld [vmem:[%s451 + $0x14c] sm:$0xf]
        %v2056 = vld [vmem:[%s451 + $0x150] sm:$0xf]
        %v2057 = vld [vmem:[%s451 + $0x154] sm:$0xf]
        %v2058 = vld [vmem:[%s451 + $0x158] sm:$0xf]
        %v2059 = vld [vmem:[%s451 + $0x15c] sm:$0xf]
        %v2060 = vld [vmem:[%s451 + $0x160] sm:$0xf]
        %v2061 = vld [vmem:[%s451 + $0x164] sm:$0xf]
        %v2062 = vld [vmem:[%s451 + $0x168] sm:$0xf]
        %v2063 = vld [vmem:[%s451 + $0x16c] sm:$0xf]
        %v2064 = vld [vmem:[%s451 + $0x170] sm:$0xf]
        %v2065 = vld [vmem:[%s451 + $0x174] sm:$0xf]
        %v2066 = vld [vmem:[%s451 + $0x178] sm:$0xf]
        %v2067 = vld [vmem:[%s451 + $0x17c] sm:$0xf]
        %v2100 = vunpack.c.l.b16 %v2036
        %v2101 = vunpack.c.l.b16 %v2037
        %v2102 = vunpack.c.l.b16 %v2038
        %v2103 = vunpack.c.l.b16 %v2039
        %v2104 = vunpack.c.l.b16 %v2040
        %v2105 = vunpack.c.l.b16 %v2041
        %v2106 = vunpack.c.l.b16 %v2042
        %v2107 = vunpack.c.l.b16 %v2043
        %v2108 = vunpack.c.l.b16 %v2044
        %v2109 = vunpack.c.l.b16 %v2045
        %v2110 = vunpack.c.l.b16 %v2046
        %v2111 = vunpack.c.l.b16 %v2047
        %v2112 = vunpack.c.l.b16 %v2048
        %v2113 = vunpack.c.l.b16 %v2049
        %v2114 = vunpack.c.l.b16 %v2050
        %v2115 = vunpack.c.l.b16 %v2051
        %v2116 = vunpack.c.l.b16 %v2052
        %v2117 = vunpack.c.l.b16 %v2053
        %v2118 = vunpack.c.l.b16 %v2054
        %v2119 = vunpack.c.l.b16 %v2055
        %v2120 = vunpack.c.l.b16 %v2056
        %v2121 = vunpack.c.l.b16 %v2057
        %v2122 = vunpack.c.l.b16 %v2058
        %v2123 = vunpack.c.l.b16 %v2059
        %v2124 = vunpack.c.l.b16 %v2060
        %v2125 = vunpack.c.l.b16 %v2061
        %v2126 = vunpack.c.l.b16 %v2062
        %v2127 = vunpack.c.l.b16 %v2063
        %v2128 = vunpack.c.l.b16 %v2064
        %v2129 = vunpack.c.l.b16 %v2065
        %v2130 = vunpack.c.l.b16 %v2066
        %v2131 = vunpack.c.l.b16 %v2067
        %v2132 = vpack.c.b16 %v2101, %v2100
        %v2133 = vpack.c.b16 %v2103, %v2102
        %v2134 = vpack.c.b16 %v2105, %v2104
        %v2135 = vpack.c.b16 %v2107, %v2106
        %v2136 = vpack.c.b16 %v2109, %v2108
        %v2137 = vpack.c.b16 %v2111, %v2110
        %v2138 = vpack.c.b16 %v2113, %v2112
        %v2139 = vpack.c.b16 %v2115, %v2114
        %v2140 = vpack.c.b16 %v2117, %v2116
        %v2141 = vpack.c.b16 %v2119, %v2118
        %v2142 = vpack.c.b16 %v2121, %v2120
        %v2143 = vpack.c.b16 %v2123, %v2122
        %v2144 = vpack.c.b16 %v2125, %v2124
        %v2145 = vpack.c.b16 %v2127, %v2126
        %v2146 = vpack.c.b16 %v2129, %v2128
        %v2147 = vpack.c.b16 %v2131, %v2130
        %v2149 = vsel %vm828, %v2132, 0
        %v2152 = vsel %vm828, %v2133, 0
        %v2155 = vsel %vm828, %v2134, 0
        %v2158 = vsel %vm828, %v2135, 0
        %v2161 = vsel %vm828, %v2136, 0
        %v2164 = vsel %vm828, %v2137, 0
        %v2167 = vsel %vm828, %v2138, 0
        %v2170 = vsel %vm828, %v2139, 0
        %v2173 = vsel %vm828, %v2140, 0
        %v2176 = vsel %vm828, %v2141, 0
        %v2179 = vsel %vm828, %v2142, 0
        %v2182 = vsel %vm828, %v2143, 0
        %v2185 = vsel %vm828, %v2144, 0
        %v2188 = vsel %vm828, %v2145, 0
        %v2191 = vsel %vm828, %v2146, 0
        %v2194 = vsel %vm828, %v2147, 0
        %2196 = vmatprep.subr.bf16.mxu0 0
        %2197 = vmatpush1.bf16.msra.mxu0 %v879
        %2198 = vmatprep.subr.bf16.mxu0 0
        %2199 = vmatpush1.bf16.msra.mxu0 0
        %2200 = vmatprep.subr.bf16.mxu0 0
        %2201 = vmatpush1.bf16.msra.mxu0 0
        %2202 = vmatprep.subr.bf16.mxu0 0
        %2203 = vmatpush1.bf16.msra.mxu0 0
        %2204 = vmatprep.subr.bf16.mxu0 0
        %2205 = vmatpush1.bf16.msra.mxu0 0
        %2206 = vmatprep.subr.bf16.mxu0 0
        %2207 = vmatpush1.bf16.msra.mxu0 0
        %2208 = vmatprep.subr.bf16.mxu0 0
        %2209 = vmatpush1.bf16.msra.mxu0 0
        %2210 = vmatprep.subr.bf16.mxu0 0
        %2211 = vmatpush1.bf16.msra.mxu0 0
        %2212 = vmatprep.subr.bf16.mxu0 0
        %2213 = vmatpush1.bf16.msra.mxu0 0
        %2214 = vmatprep.subr.bf16.mxu0 0
        %2215 = vmatpush1.bf16.msra.mxu0 0
        %2216 = vmatprep.subr.bf16.mxu0 0
        %2217 = vmatpush1.bf16.msra.mxu0 0
        %2218 = vmatprep.subr.bf16.mxu0 0
        %2219 = vmatpush1.bf16.msra.mxu0 0
        %2220 = vmatprep.subr.bf16.mxu0 0
        %2221 = vmatpush1.bf16.msra.mxu0 0
        %2222 = vmatprep.subr.bf16.mxu0 0
        %2223 = vmatpush1.bf16.msra.mxu0 0
        %2224 = vmatprep.subr.bf16.mxu0 0
        %2225 = vmatpush1.bf16.msra.mxu0 0
        %2226 = vmatprep.subr.bf16.mxu0 0
        %2227 = vmatpush1.bf16.msra.mxu0 0
        %2228 = vmatprep.mubr.bf16.mxu0 0
        %2229 = vmatmul.mubr.bf16.gmra.mrb[0].mxu0 %v2149
        %v2230 = vpop.f32.mrb[0].mxu0
        %v2231 = vadd.f32 %v591, %v2230
        %v2232 = vpop.f32.mrb[0].mxu0
        %v2233 = vpop.f32.mrb[0].mxu0
        %v2234 = vadd.f32 %v596, %v2233
        %v2235 = vpop.f32.mrb[0].mxu0
        %2236 = vmatprep.mubr.bf16.mxu0 0
        %2237 = vmatmul.mubr.bf16.gmra.mrb[0].mxu0 %v2152
        %v2238 = vpop.f32.mrb[0].mxu0
        %v2239 = vadd.f32 %v601, %v2238
        %v2240 = vpop.f32.mrb[0].mxu0
        %v2241 = vpop.f32.mrb[0].mxu0
        %v2242 = vadd.f32 %v606, %v2241
        %v2243 = vpop.f32.mrb[0].mxu0
        %2244 = vmatprep.mubr.bf16.mxu0 0
        %2245 = vmatmul.mubr.bf16.gmra.mrb[0].mxu0 %v2155
        %v2246 = vpop.f32.mrb[0].mxu0
        %v2247 = vadd.f32 %v611, %v2246
        %v2248 = vpop.f32.mrb[0].mxu0
        %v2249 = vpop.f32.mrb[0].mxu0
        %v2250 = vadd.f32 %v616, %v2249
        %v2251 = vpop.f32.mrb[0].mxu0
        %2252 = vmatprep.mubr.bf16.mxu0 0
        %2253 = vmatmul.mubr.bf16.gmra.mrb[0].mxu0 %v2158
        %v2254 = vpop.f32.mrb[0].mxu0
        %v2255 = vadd.f32 %v621, %v2254
        %v2256 = vpop.f32.mrb[0].mxu0
        %v2257 = vpop.f32.mrb[0].mxu0
        %v2258 = vadd.f32 %v626, %v2257
        %v2259 = vpop.f32.mrb[0].mxu0
        %2260 = vmatprep.mubr.bf16.mxu0 0
        %2261 = vmatmul.mubr.bf16.gmra.mrb[0].mxu0 %v2161
        %v2262 = vpop.f32.mrb[0].mxu0
        %v2263 = vadd.f32 %v631, %v2262
        %v2264 = vpop.f32.mrb[0].mxu0
        %v2265 = vpop.f32.mrb[0].mxu0
        %v2266 = vadd.f32 %v636, %v2265
        %v2267 = vpop.f32.mrb[0].mxu0
        %2268 = vmatprep.mubr.bf16.mxu0 0
        %2269 = vmatmul.mubr.bf16.gmra.mrb[0].mxu0 %v2164
        %v2270 = vpop.f32.mrb[0].mxu0
        %v2271 = vadd.f32 %v641, %v2270
        %v2272 = vpop.f32.mrb[0].mxu0
        %v2273 = vpop.f32.mrb[0].mxu0
        %v2274 = vadd.f32 %v646, %v2273
        %v2275 = vpop.f32.mrb[0].mxu0
        %2276 = vmatprep.mubr.bf16.mxu0 0
        %2277 = vmatmul.mubr.bf16.gmra.mrb[0].mxu0 %v2167
        %v2278 = vpop.f32.mrb[0].mxu0
        %v2279 = vadd.f32 %v651, %v2278
        %v2280 = vpop.f32.mrb[0].mxu0
        %v2281 = vpop.f32.mrb[0].mxu0
        %v2282 = vadd.f32 %v656, %v2281
        %v2283 = vpop.f32.mrb[0].mxu0
        %2284 = vmatprep.mubr.bf16.mxu0 0
        %2285 = vmatmul.mubr.bf16.gmra.mrb[0].mxu0 %v2170
        %v2286 = vpop.f32.mrb[0].mxu0
        %v2287 = vadd.f32 %v661, %v2286
        %v2288 = vpop.f32.mrb[0].mxu0
        %v2289 = vpop.f32.mrb[0].mxu0
        %v2290 = vadd.f32 %v666, %v2289
        %v2291 = vpop.f32.mrb[0].mxu0
        %2292 = vmatprep.mubr.bf16.mxu0 0
        %2293 = vmatmul.mubr.bf16.gmra.mrb[0].mxu0 %v2173
        %v2294 = vpop.f32.mrb[0].mxu0
        %v2295 = vadd.f32 %v671, %v2294
        %v2296 = vpop.f32.mrb[0].mxu0
        %v2297 = vpop.f32.mrb[0].mxu0
        %v2298 = vadd.f32 %v676, %v2297
        %v2299 = vpop.f32.mrb[0].mxu0
        %2300 = vmatprep.mubr.bf16.mxu0 0
        %2301 = vmatmul.mubr.bf16.gmra.mrb[0].mxu0 %v2176
        %v2302 = vpop.f32.mrb[0].mxu0
        %v2303 = vadd.f32 %v681, %v2302
        %v2304 = vpop.f32.mrb[0].mxu0
        %v2305 = vpop.f32.mrb[0].mxu0
        %v2306 = vadd.f32 %v686, %v2305
        %v2307 = vpop.f32.mrb[0].mxu0
        %2308 = vmatprep.mubr.bf16.mxu0 0
        %2309 = vmatmul.mubr.bf16.gmra.mrb[0].mxu0 %v2179
        %v2310 = vpop.f32.mrb[0].mxu0
        %v2311 = vadd.f32 %v691, %v2310
        %v2312 = vpop.f32.mrb[0].mxu0
        %v2313 = vpop.f32.mrb[0].mxu0
        %v2314 = vadd.f32 %v696, %v2313
        %v2315 = vpop.f32.mrb[0].mxu0
        %2316 = vmatprep.mubr.bf16.mxu0 0
        %2317 = vmatmul.mubr.bf16.gmra.mrb[0].mxu0 %v2182
        %v2318 = vpop.f32.mrb[0].mxu0
        %v2319 = vadd.f32 %v701, %v2318
        %v2320 = vpop.f32.mrb[0].mxu0
        %v2321 = vpop.f32.mrb[0].mxu0
        %v2322 = vadd.f32 %v706, %v2321
        %v2323 = vpop.f32.mrb[0].mxu0
        %2324 = vmatprep.mubr.bf16.mxu0 0
        %2325 = vmatmul.mubr.bf16.gmra.mrb[0].mxu0 %v2185
        %v2326 = vpop.f32.mrb[0].mxu0
        %v2327 = vadd.f32 %v711, %v2326
        %v2328 = vpop.f32.mrb[0].mxu0
        %v2329 = vpop.f32.mrb[0].mxu0
        %v2330 = vadd.f32 %v716, %v2329
        %v2331 = vpop.f32.mrb[0].mxu0
        %2332 = vmatprep.mubr.bf16.mxu0 0
        %2333 = vmatmul.mubr.bf16.gmra.mrb[0].mxu0 %v2188
        %v2334 = vpop.f32.mrb[0].mxu0
        %v2335 = vadd.f32 %v721, %v2334
        %v2336 = vpop.f32.mrb[0].mxu0
        %v2337 = vpop.f32.mrb[0].mxu0
        %v2338 = vadd.f32 %v726, %v2337
        %v2339 = vpop.f32.mrb[0].mxu0
        %2340 = vmatprep.mubr.bf16.mxu0 0
        %2341 = vmatmul.mubr.bf16.gmra.mrb[0].mxu0 %v2191
        %v2342 = vpop.f32.mrb[0].mxu0
        %v2343 = vadd.f32 %v731, %v2342
        %v2344 = vpop.f32.mrb[0].mxu0
        %v2345 = vpop.f32.mrb[0].mxu0
        %v2346 = vadd.f32 %v736, %v2345
        %v2347 = vpop.f32.mrb[0].mxu0
        %2348 = vmatprep.mubr.bf16.mxu0 0
        %2349 = vmatmul.mubr.bf16.gmra.mrb[0].mxu0 %v2194
        %v2350 = vpop.f32.mrb[0].mxu0
        %v2351 = vadd.f32 %v741, %v2350
        %v2352 = vpop.f32.mrb[0].mxu0
        %v2353 = vpop.f32.mrb[0].mxu0
        %v2354 = vadd.f32 %v746, %v2353
        %v2355 = vpop.f32.mrb[0].mxu0
        %2356 = vdwg.mxu0
        %v2357 = vmax.f32 %v2231, 0.0
        %v2358 = vmax.f32 %v2234, 0.0
        %v2359 = vmax.f32 %v2239, 0.0
        %v2360 = vmax.f32 %v2242, 0.0
        %v2361 = vmax.f32 %v2247, 0.0
        %v2362 = vmax.f32 %v2250, 0.0
        %v2363 = vmax.f32 %v2255, 0.0
        %v2364 = vmax.f32 %v2258, 0.0
        %v2365 = vmax.f32 %v2263, 0.0
        %v2366 = vmax.f32 %v2266, 0.0
        %v2367 = vmax.f32 %v2271, 0.0
        %v2368 = vmax.f32 %v2274, 0.0
        %v2369 = vmax.f32 %v2279, 0.0
        %v2370 = vmax.f32 %v2282, 0.0
        %v2371 = vmax.f32 %v2287, 0.0
        %v2372 = vmax.f32 %v2290, 0.0
        %v2373 = vmax.f32 %v2295, 0.0
        %v2374 = vmax.f32 %v2298, 0.0
        %v2375 = vmax.f32 %v2303, 0.0
        %v2376 = vmax.f32 %v2306, 0.0
        %v2377 = vmax.f32 %v2311, 0.0
        %v2378 = vmax.f32 %v2314, 0.0
        %v2379 = vmax.f32 %v2319, 0.0
        %v2380 = vmax.f32 %v2322, 0.0
        %v2381 = vmax.f32 %v2327, 0.0
        %v2382 = vmax.f32 %v2330, 0.0
        %v2383 = vmax.f32 %v2335, 0.0
        %v2384 = vmax.f32 %v2338, 0.0
        %v2385 = vmax.f32 %v2343, 0.0
        %v2386 = vmax.f32 %v2346, 0.0
        %v2387 = vmax.f32 %v2351, 0.0
        %v2388 = vmax.f32 %v2354, 0.0
        %v2389 = vpack.c.bf16 %v2358, %v2357
        %v2390 = vpack.c.bf16 %v2360, %v2359
        %v2391 = vpack.c.bf16 %v2362, %v2361
        %v2392 = vpack.c.bf16 %v2364, %v2363
        %v2393 = vpack.c.bf16 %v2366, %v2365
        %v2394 = vpack.c.bf16 %v2368, %v2367
        %v2395 = vpack.c.bf16 %v2370, %v2369
        %v2396 = vpack.c.bf16 %v2372, %v2371
        %v2397 = vpack.c.bf16 %v2374, %v2373
        %v2398 = vpack.c.bf16 %v2376, %v2375
        %v2399 = vpack.c.bf16 %v2378, %v2377
        %v2400 = vpack.c.bf16 %v2380, %v2379
        %v2401 = vpack.c.bf16 %v2382, %v2381
        %v2402 = vpack.c.bf16 %v2384, %v2383
        %v2403 = vpack.c.bf16 %v2386, %v2385
        %v2404 = vpack.c.bf16 %v2388, %v2387
        %2405 = vmatprep.subr.bf16.mxu0 0
        %2406 = vmatpush1.bf16.msra.mxu0 %v2389
        %2407 = vmatprep.subr.bf16.mxu0 0
        %2408 = vmatpush1.bf16.msra.mxu0 %v2390
        %2409 = vmatprep.subr.bf16.mxu0 0
        %2410 = vmatpush1.bf16.msra.mxu0 %v2391
        %2411 = vmatprep.subr.bf16.mxu0 0
        %2412 = vmatpush1.bf16.msra.mxu0 %v2392
        %2413 = vmatprep.subr.bf16.mxu0 0
        %2414 = vmatpush1.bf16.msra.mxu0 %v2393
        %2415 = vmatprep.subr.bf16.mxu0 0
        %2416 = vmatpush1.bf16.msra.mxu0 %v2394
        %2417 = vmatprep.subr.bf16.mxu0 0
        %2418 = vmatpush1.bf16.msra.mxu0 %v2395
        %2419 = vmatprep.subr.bf16.mxu0 0
        %2420 = vmatpush1.bf16.msra.mxu0 %v2396
        %2421 = vmatprep.subr.bf16.mxu0 0
        %2422 = vmatpush1.bf16.msra.mxu0 %v2397
        %2423 = vmatprep.subr.bf16.mxu0 0
        %2424 = vmatpush1.bf16.msra.mxu0 %v2398
        %2425 = vmatprep.subr.bf16.mxu0 0
        %2426 = vmatpush1.bf16.msra.mxu0 %v2399
        %2427 = vmatprep.subr.bf16.mxu0 0
        %2428 = vmatpush1.bf16.msra.mxu0 %v2400
        %2429 = vmatprep.subr.bf16.mxu0 0
        %2430 = vmatpush1.bf16.msra.mxu0 %v2401
        %2431 = vmatprep.subr.bf16.mxu0 0
        %2432 = vmatpush1.bf16.msra.mxu0 %v2402
        %2433 = vmatprep.subr.bf16.mxu0 0
        %2434 = vmatpush1.bf16.msra.mxu0 %v2403
        %2435 = vmatprep.subr.bf16.mxu0 0
        %2436 = vmatpush1.bf16.msra.mxu0 %v2404
        %2437 = vmatprep.mubr.bf16.mxu0 %v1219
        %2438 = vmatmul.mubr.bf16.gmra.mrb[0].mxu0 %v1218
        %v2439 = vpop.f32.mrb[0].mxu0
        %v2440 = vadd.f32 %v1093, %v2439
        %v2441 = vpop.f32.mrb[0].mxu0
        %v2442 = vpop.f32.mrb[0].mxu0
        %v2443 = vadd.f32 %v1098, %v2442
        %v2444 = vpop.f32.mrb[0].mxu0
        %2445 = vmatprep.mubr.bf16.mxu0 %v1221
        %2446 = vmatmul.mubr.bf16.gmra.mrb[0].mxu0 %v1220
        %v2447 = vpop.f32.mrb[0].mxu0
        %v2448 = vadd.f32 %v1103, %v2447
        %v2449 = vpop.f32.mrb[0].mxu0
        %v2450 = vpop.f32.mrb[0].mxu0
        %v2451 = vadd.f32 %v1108, %v2450
        %v2452 = vpop.f32.mrb[0].mxu0
        %2453 = vmatprep.mubr.bf16.mxu0 %v1223
        %2454 = vmatmul.mubr.bf16.gmra.mrb[0].mxu0 %v1222
        %v2455 = vpop.f32.mrb[0].mxu0
        %v2456 = vadd.f32 %v1113, %v2455
        %v2457 = vpop.f32.mrb[0].mxu0
        %v2458 = vpop.f32.mrb[0].mxu0
        %v2459 = vadd.f32 %v1118, %v2458
        %v2460 = vpop.f32.mrb[0].mxu0
        %2461 = vmatprep.mubr.bf16.mxu0 %v1225
        %2462 = vmatmul.mubr.bf16.gmra.mrb[0].mxu0 %v1224
        %v2463 = vpop.f32.mrb[0].mxu0
        %v2464 = vadd.f32 %v1123, %v2463
        %v2465 = vpop.f32.mrb[0].mxu0
        %v2466 = vpop.f32.mrb[0].mxu0
        %v2467 = vadd.f32 %v1128, %v2466
        %v2468 = vpop.f32.mrb[0].mxu0
        %2469 = vmatprep.mubr.bf16.mxu0 %v1227
        %2470 = vmatmul.mubr.bf16.gmra.mrb[0].mxu0 %v1226
        %v2471 = vpop.f32.mrb[0].mxu0
        %v2472 = vadd.f32 %v1133, %v2471
        %v2473 = vpop.f32.mrb[0].mxu0
        %v2474 = vpop.f32.mrb[0].mxu0
        %v2475 = vadd.f32 %v1138, %v2474
        %v2476 = vpop.f32.mrb[0].mxu0
        %2477 = vmatprep.mubr.bf16.mxu0 %v1229
        %2478 = vmatmul.mubr.bf16.gmra.mrb[0].mxu0 %v1228
        %v2479 = vpop.f32.mrb[0].mxu0
        %v2480 = vadd.f32 %v1143, %v2479
        %v2481 = vpop.f32.mrb[0].mxu0
        %v2482 = vpop.f32.mrb[0].mxu0
        %v2483 = vadd.f32 %v1148, %v2482
        %v2484 = vpop.f32.mrb[0].mxu0
        %2485 = vmatprep.mubr.bf16.mxu0 %v1231
        %2486 = vmatmul.mubr.bf16.gmra.mrb[0].mxu0 %v1230
        %v2487 = vpop.f32.mrb[0].mxu0
        %v2488 = vadd.f32 %v1153, %v2487
        %v2489 = vpop.f32.mrb[0].mxu0
        %v2490 = vpop.f32.mrb[0].mxu0
        %v2491 = vadd.f32 %v1158, %v2490
        %v2492 = vpop.f32.mrb[0].mxu0
        %2493 = vmatprep.mubr.bf16.mxu0 %v1233
        %2494 = vmatmul.mubr.bf16.gmra.mrb[0].mxu0 %v1232
        %v2495 = vpop.f32.mrb[0].mxu0
        %v2496 = vadd.f32 %v1163, %v2495
        %v2497 = vpop.f32.mrb[0].mxu0
        %v2498 = vpop.f32.mrb[0].mxu0
        %v2499 = vadd.f32 %v1168, %v2498
        %v2500 = vpop.f32.mrb[0].mxu0
        %2501 = vdwg.mxu0
        %v2502 = vmax.f32 %v2440, 0.0
        %v2503 = vmax.f32 %v2443, 0.0
        %v2504 = vmax.f32 %v2448, 0.0
        %v2505 = vmax.f32 %v2451, 0.0
        %v2506 = vmax.f32 %v2456, 0.0
        %v2507 = vmax.f32 %v2459, 0.0
        %v2508 = vmax.f32 %v2464, 0.0
        %v2509 = vmax.f32 %v2467, 0.0
        %v2510 = vmax.f32 %v2472, 0.0
        %v2511 = vmax.f32 %v2475, 0.0
        %v2512 = vmax.f32 %v2480, 0.0
        %v2513 = vmax.f32 %v2483, 0.0
        %v2514 = vmax.f32 %v2488, 0.0
        %v2515 = vmax.f32 %v2491, 0.0
        %v2516 = vmax.f32 %v2496, 0.0
        %v2517 = vmax.f32 %v2499, 0.0
        %v2518 = vmul.f32 %v2502, %v1366
        %v2519 = vmul.f32 %v2503, %v1371
        %v2520 = vmul.f32 %v2504, %v1376
        %v2521 = vmul.f32 %v2505, %v1381
        %v2522 = vmul.f32 %v2506, %v1386
        %v2523 = vmul.f32 %v2507, %v1391
        %v2524 = vmul.f32 %v2508, %v1396
        %v2525 = vmul.f32 %v2509, %v1401
        %v2526 = vmul.f32 %v2510, %v1406
        %v2527 = vmul.f32 %v2511, %v1411
        %v2528 = vmul.f32 %v2512, %v1416
        %v2529 = vmul.f32 %v2513, %v1421
        %v2530 = vmul.f32 %v2514, %v1426
        %v2531 = vmul.f32 %v2515, %v1431
        %v2532 = vmul.f32 %v2516, %v1436
        %v2533 = vmul.f32 %v2517, %v1441
        %v2534 = vadd.f32 %v2518, %v2519
        %v2535 = vadd.f32 %v2534, %v2520
        %v2536 = vadd.f32 %v2535, %v2521
        %v2537 = vadd.f32 %v2536, %v2522
        %v2538 = vadd.f32 %v2537, %v2523
        %v2539 = vadd.f32 %v2538, %v2524
        %v2540 = vadd.f32 %v2539, %v2525
        %v2541 = vadd.f32 %v2540, %v2526
        %v2542 = vadd.f32 %v2541, %v2527
        %v2543 = vadd.f32 %v2542, %v2528
        %v2544 = vadd.f32 %v2543, %v2529
        %v2545 = vadd.f32 %v2544, %v2530
        %v2546 = vadd.f32 %v2545, %v2531
        %v2547 = vadd.f32 %v2546, %v2532
        %v2548 = vadd.f32 %v2547, %v2533
        %v2549 = vld [vmem:[%s465 + $0x10] sm:$0xff]
        %v2550 = vadd.f32 %v2548, %v1482
        %2552 = vset.pattern.permute.xlu0 0
        %2553 = vperm.xlu0 %2552, %v2549
        %v2554 = vpop.permute.xlu0 %2553
        %v2556 = vmul.f32 %v2554, %v1494
        %v2557 = vmul.f32 %v2550, %v2556
        %2558 = vst [vmem:[%s442 + $0x10] sm:$0xff] %v2557
        %v2559 = vxor.u32 %v2557, 2147483648
        %v2560 = vmul.f32 %v2559, 1.442695
        %v2561 = vpow.pop %v2560
        %v2562 = vadd.f32 %v2561, 1.0
        %v2563 = vrcp.pop %v2562
        %v2564 = vmul.f32 1.0, %v2563
        %2565 = vst [vmem:[%s435 + $0x10] sm:$0xff] %v2564
        %v2566 = vld [vmem:[%s451 + $0x180] sm:$0xf]
        %v2567 = vld [vmem:[%s451 + $0x184] sm:$0xf]
        %v2568 = vld [vmem:[%s451 + $0x188] sm:$0xf]
        %v2569 = vld [vmem:[%s451 + $0x18c] sm:$0xf]
        %v2570 = vld [vmem:[%s451 + $0x190] sm:$0xf]
        %v2571 = vld [vmem:[%s451 + $0x194] sm:$0xf]
        %v2572 = vld [vmem:[%s451 + $0x198] sm:$0xf]
        %v2573 = vld [vmem:[%s451 + $0x19c] sm:$0xf]
        %v2574 = vld [vmem:[%s451 + $0x1a0] sm:$0xf]
        %v2575 = vld [vmem:[%s451 + $0x1a4] sm:$0xf]
        %v2576 = vld [vmem:[%s451 + $0x1a8] sm:$0xf]
        %v2577 = vld [vmem:[%s451 + $0x1ac] sm:$0xf]
        %v2578 = vld [vmem:[%s451 + $0x1b0] sm:$0xf]
        %v2579 = vld [vmem:[%s451 + $0x1b4] sm:$0xf]
        %v2580 = vld [vmem:[%s451 + $0x1b8] sm:$0xf]
        %v2581 = vld [vmem:[%s451 + $0x1bc] sm:$0xf]
        %v2582 = vld [vmem:[%s451 + $0x1c0] sm:$0xf]
        %v2583 = vld [vmem:[%s451 + $0x1c4] sm:$0xf]
        %v2584 = vld [vmem:[%s451 + $0x1c8] sm:$0xf]
        %v2585 = vld [vmem:[%s451 + $0x1cc] sm:$0xf]
        %v2586 = vld [vmem:[%s451 + $0x1d0] sm:$0xf]
        %v2587 = vld [vmem:[%s451 + $0x1d4] sm:$0xf]
        %v2588 = vld [vmem:[%s451 + $0x1d8] sm:$0xf]
        %v2589 = vld [vmem:[%s451 + $0x1dc] sm:$0xf]
        %v2590 = vld [vmem:[%s451 + $0x1e0] sm:$0xf]
        %v2591 = vld [vmem:[%s451 + $0x1e4] sm:$0xf]
        %v2592 = vld [vmem:[%s451 + $0x1e8] sm:$0xf]
        %v2593 = vld [vmem:[%s451 + $0x1ec] sm:$0xf]
        %v2594 = vld [vmem:[%s451 + $0x1f0] sm:$0xf]
        %v2595 = vld [vmem:[%s451 + $0x1f4] sm:$0xf]
        %v2596 = vld [vmem:[%s451 + $0x1f8] sm:$0xf]
        %v2597 = vld [vmem:[%s451 + $0x1fc] sm:$0xf]
        %v2630 = vunpack.c.l.b16 %v2566
        %v2631 = vunpack.c.l.b16 %v2567
        %v2632 = vunpack.c.l.b16 %v2568
        %v2633 = vunpack.c.l.b16 %v2569
        %v2634 = vunpack.c.l.b16 %v2570
        %v2635 = vunpack.c.l.b16 %v2571
        %v2636 = vunpack.c.l.b16 %v2572
        %v2637 = vunpack.c.l.b16 %v2573
        %v2638 = vunpack.c.l.b16 %v2574
        %v2639 = vunpack.c.l.b16 %v2575
        %v2640 = vunpack.c.l.b16 %v2576
        %v2641 = vunpack.c.l.b16 %v2577
        %v2642 = vunpack.c.l.b16 %v2578
        %v2643 = vunpack.c.l.b16 %v2579
        %v2644 = vunpack.c.l.b16 %v2580
        %v2645 = vunpack.c.l.b16 %v2581
        %v2646 = vunpack.c.l.b16 %v2582
        %v2647 = vunpack.c.l.b16 %v2583
        %v2648 = vunpack.c.l.b16 %v2584
        %v2649 = vunpack.c.l.b16 %v2585
        %v2650 = vunpack.c.l.b16 %v2586
        %v2651 = vunpack.c.l.b16 %v2587
        %v2652 = vunpack.c.l.b16 %v2588
        %v2653 = vunpack.c.l.b16 %v2589
        %v2654 = vunpack.c.l.b16 %v2590
        %v2655 = vunpack.c.l.b16 %v2591
        %v2656 = vunpack.c.l.b16 %v2592
        %v2657 = vunpack.c.l.b16 %v2593
        %v2658 = vunpack.c.l.b16 %v2594
        %v2659 = vunpack.c.l.b16 %v2595
        %v2660 = vunpack.c.l.b16 %v2596
        %v2661 = vunpack.c.l.b16 %v2597
        %v2662 = vpack.c.b16 %v2631, %v2630
        %v2663 = vpack.c.b16 %v2633, %v2632
        %v2664 = vpack.c.b16 %v2635, %v2634
        %v2665 = vpack.c.b16 %v2637, %v2636
        %v2666 = vpack.c.b16 %v2639, %v2638
        %v2667 = vpack.c.b16 %v2641, %v2640
        %v2668 = vpack.c.b16 %v2643, %v2642
        %v2669 = vpack.c.b16 %v2645, %v2644
        %v2670 = vpack.c.b16 %v2647, %v2646
        %v2671 = vpack.c.b16 %v2649, %v2648
        %v2672 = vpack.c.b16 %v2651, %v2650
        %v2673 = vpack.c.b16 %v2653, %v2652
        %v2674 = vpack.c.b16 %v2655, %v2654
        %v2675 = vpack.c.b16 %v2657, %v2656
        %v2676 = vpack.c.b16 %v2659, %v2658
        %v2677 = vpack.c.b16 %v2661, %v2660
        %v2679 = vsel %vm828, %v2662, 0
        %v2682 = vsel %vm828, %v2663, 0
        %v2685 = vsel %vm828, %v2664, 0
        %v2688 = vsel %vm828, %v2665, 0
        %v2691 = vsel %vm828, %v2666, 0
        %v2694 = vsel %vm828, %v2667, 0
        %v2697 = vsel %vm828, %v2668, 0
        %v2700 = vsel %vm828, %v2669, 0
        %v2703 = vsel %vm828, %v2670, 0
        %v2706 = vsel %vm828, %v2671, 0
        %v2709 = vsel %vm828, %v2672, 0
        %v2712 = vsel %vm828, %v2673, 0
        %v2715 = vsel %vm828, %v2674, 0
        %v2718 = vsel %vm828, %v2675, 0
        %v2721 = vsel %vm828, %v2676, 0
        %v2724 = vsel %vm828, %v2677, 0
        %2726 = vmatprep.subr.bf16.mxu0 0
        %2727 = vmatpush1.bf16.msra.mxu0 %v879
        %2728 = vmatprep.subr.bf16.mxu0 0
        %2729 = vmatpush1.bf16.msra.mxu0 0
        %2730 = vmatprep.subr.bf16.mxu0 0
        %2731 = vmatpush1.bf16.msra.mxu0 0
        %2732 = vmatprep.subr.bf16.mxu0 0
        %2733 = vmatpush1.bf16.msra.mxu0 0
        %2734 = vmatprep.subr.bf16.mxu0 0
        %2735 = vmatpush1.bf16.msra.mxu0 0
        %2736 = vmatprep.subr.bf16.mxu0 0
        %2737 = vmatpush1.bf16.msra.mxu0 0
        %2738 = vmatprep.subr.bf16.mxu0 0
        %2739 = vmatpush1.bf16.msra.mxu0 0
        %2740 = vmatprep.subr.bf16.mxu0 0
        %2741 = vmatpush1.bf16.msra.mxu0 0
        %2742 = vmatprep.subr.bf16.mxu0 0
        %2743 = vmatpush1.bf16.msra.mxu0 0
        %2744 = vmatprep.subr.bf16.mxu0 0
        %2745 = vmatpush1.bf16.msra.mxu0 0
        %2746 = vmatprep.subr.bf16.mxu0 0
        %2747 = vmatpush1.bf16.msra.mxu0 0
        %2748 = vmatprep.subr.bf16.mxu0 0
        %2749 = vmatpush1.bf16.msra.mxu0 0
        %2750 = vmatprep.subr.bf16.mxu0 0
        %2751 = vmatpush1.bf16.msra.mxu0 0
        %2752 = vmatprep.subr.bf16.mxu0 0
        %2753 = vmatpush1.bf16.msra.mxu0 0
        %2754 = vmatprep.subr.bf16.mxu0 0
        %2755 = vmatpush1.bf16.msra.mxu0 0
        %2756 = vmatprep.subr.bf16.mxu0 0
        %2757 = vmatpush1.bf16.msra.mxu0 0
        %2758 = vmatprep.mubr.bf16.mxu0 0
        %2759 = vmatmul.mubr.bf16.gmra.mrb[0].mxu0 %v2679
        %v2760 = vpop.f32.mrb[0].mxu0
        %v2761 = vadd.f32 %v591, %v2760
        %v2762 = vpop.f32.mrb[0].mxu0
        %v2763 = vpop.f32.mrb[0].mxu0
        %v2764 = vadd.f32 %v596, %v2763
        %v2765 = vpop.f32.mrb[0].mxu0
        %2766 = vmatprep.mubr.bf16.mxu0 0
        %2767 = vmatmul.mubr.bf16.gmra.mrb[0].mxu0 %v2682
        %v2768 = vpop.f32.mrb[0].mxu0
        %v2769 = vadd.f32 %v601, %v2768
        %v2770 = vpop.f32.mrb[0].mxu0
        %v2771 = vpop.f32.mrb[0].mxu0
        %v2772 = vadd.f32 %v606, %v2771
        %v2773 = vpop.f32.mrb[0].mxu0
        %2774 = vmatprep.mubr.bf16.mxu0 0
        %2775 = vmatmul.mubr.bf16.gmra.mrb[0].mxu0 %v2685
        %v2776 = vpop.f32.mrb[0].mxu0
        %v2777 = vadd.f32 %v611, %v2776
        %v2778 = vpop.f32.mrb[0].mxu0
        %v2779 = vpop.f32.mrb[0].mxu0
        %v2780 = vadd.f32 %v616, %v2779
        %v2781 = vpop.f32.mrb[0].mxu0
        %2782 = vmatprep.mubr.bf16.mxu0 0
        %2783 = vmatmul.mubr.bf16.gmra.mrb[0].mxu0 %v2688
        %v2784 = vpop.f32.mrb[0].mxu0
        %v2785 = vadd.f32 %v621, %v2784
        %v2786 = vpop.f32.mrb[0].mxu0
        %v2787 = vpop.f32.mrb[0].mxu0
        %v2788 = vadd.f32 %v626, %v2787
        %v2789 = vpop.f32.mrb[0].mxu0
        %2790 = vmatprep.mubr.bf16.mxu0 0
        %2791 = vmatmul.mubr.bf16.gmra.mrb[0].mxu0 %v2691
        %v2792 = vpop.f32.mrb[0].mxu0
        %v2793 = vadd.f32 %v631, %v2792
        %v2794 = vpop.f32.mrb[0].mxu0
        %v2795 = vpop.f32.mrb[0].mxu0
        %v2796 = vadd.f32 %v636, %v2795
        %v2797 = vpop.f32.mrb[0].mxu0
        %2798 = vmatprep.mubr.bf16.mxu0 0
        %2799 = vmatmul.mubr.bf16.gmra.mrb[0].mxu0 %v2694
        %v2800 = vpop.f32.mrb[0].mxu0
        %v2801 = vadd.f32 %v641, %v2800
        %v2802 = vpop.f32.mrb[0].mxu0
        %v2803 = vpop.f32.mrb[0].mxu0
        %v2804 = vadd.f32 %v646, %v2803
        %v2805 = vpop.f32.mrb[0].mxu0
        %2806 = vmatprep.mubr.bf16.mxu0 0
        %2807 = vmatmul.mubr.bf16.gmra.mrb[0].mxu0 %v2697
        %v2808 = vpop.f32.mrb[0].mxu0
        %v2809 = vadd.f32 %v651, %v2808
        %v2810 = vpop.f32.mrb[0].mxu0
        %v2811 = vpop.f32.mrb[0].mxu0
        %v2812 = vadd.f32 %v656, %v2811
        %v2813 = vpop.f32.mrb[0].mxu0
        %2814 = vmatprep.mubr.bf16.mxu0 0
        %2815 = vmatmul.mubr.bf16.gmra.mrb[0].mxu0 %v2700
        %v2816 = vpop.f32.mrb[0].mxu0
        %v2817 = vadd.f32 %v661, %v2816
        %v2818 = vpop.f32.mrb[0].mxu0
        %v2819 = vpop.f32.mrb[0].mxu0
        %v2820 = vadd.f32 %v666, %v2819
        %v2821 = vpop.f32.mrb[0].mxu0
        %2822 = vmatprep.mubr.bf16.mxu0 0
        %2823 = vmatmul.mubr.bf16.gmra.mrb[0].mxu0 %v2703
        %v2824 = vpop.f32.mrb[0].mxu0
        %v2825 = vadd.f32 %v671, %v2824
        %v2826 = vpop.f32.mrb[0].mxu0
        %v2827 = vpop.f32.mrb[0].mxu0
        %v2828 = vadd.f32 %v676, %v2827
        %v2829 = vpop.f32.mrb[0].mxu0
        %2830 = vmatprep.mubr.bf16.mxu0 0
        %2831 = vmatmul.mubr.bf16.gmra.mrb[0].mxu0 %v2706
        %v2832 = vpop.f32.mrb[0].mxu0
        %v2833 = vadd.f32 %v681, %v2832
        %v2834 = vpop.f32.mrb[0].mxu0
        %v2835 = vpop.f32.mrb[0].mxu0
        %v2836 = vadd.f32 %v686, %v2835
        %v2837 = vpop.f32.mrb[0].mxu0
        %2838 = vmatprep.mubr.bf16.mxu0 0
        %2839 = vmatmul.mubr.bf16.gmra.mrb[0].mxu0 %v2709
        %v2840 = vpop.f32.mrb[0].mxu0
        %v2841 = vadd.f32 %v691, %v2840
        %v2842 = vpop.f32.mrb[0].mxu0
        %v2843 = vpop.f32.mrb[0].mxu0
        %v2844 = vadd.f32 %v696, %v2843
        %v2845 = vpop.f32.mrb[0].mxu0
        %2846 = vmatprep.mubr.bf16.mxu0 0
        %2847 = vmatmul.mubr.bf16.gmra.mrb[0].mxu0 %v2712
        %v2848 = vpop.f32.mrb[0].mxu0
        %v2849 = vadd.f32 %v701, %v2848
        %v2850 = vpop.f32.mrb[0].mxu0
        %v2851 = vpop.f32.mrb[0].mxu0
        %v2852 = vadd.f32 %v706, %v2851
        %v2853 = vpop.f32.mrb[0].mxu0
        %2854 = vmatprep.mubr.bf16.mxu0 0
        %2855 = vmatmul.mubr.bf16.gmra.mrb[0].mxu0 %v2715
        %v2856 = vpop.f32.mrb[0].mxu0
        %v2857 = vadd.f32 %v711, %v2856
        %v2858 = vpop.f32.mrb[0].mxu0
        %v2859 = vpop.f32.mrb[0].mxu0
        %v2860 = vadd.f32 %v716, %v2859
        %v2861 = vpop.f32.mrb[0].mxu0
        %2862 = vmatprep.mubr.bf16.mxu0 0
        %2863 = vmatmul.mubr.bf16.gmra.mrb[0].mxu0 %v2718
        %v2864 = vpop.f32.mrb[0].mxu0
        %v2865 = vadd.f32 %v721, %v2864
        %v2866 = vpop.f32.mrb[0].mxu0
        %v2867 = vpop.f32.mrb[0].mxu0
        %v2868 = vadd.f32 %v726, %v2867
        %v2869 = vpop.f32.mrb[0].mxu0
        %2870 = vmatprep.mubr.bf16.mxu0 0
        %2871 = vmatmul.mubr.bf16.gmra.mrb[0].mxu0 %v2721
        %v2872 = vpop.f32.mrb[0].mxu0
        %v2873 = vadd.f32 %v731, %v2872
        %v2874 = vpop.f32.mrb[0].mxu0
        %v2875 = vpop.f32.mrb[0].mxu0
        %v2876 = vadd.f32 %v736, %v2875
        %v2877 = vpop.f32.mrb[0].mxu0
        %2878 = vmatprep.mubr.bf16.mxu0 0
        %2879 = vmatmul.mubr.bf16.gmra.mrb[0].mxu0 %v2724
        %v2880 = vpop.f32.mrb[0].mxu0
        %v2881 = vadd.f32 %v741, %v2880
        %v2882 = vpop.f32.mrb[0].mxu0
        %v2883 = vpop.f32.mrb[0].mxu0
        %v2884 = vadd.f32 %v746, %v2883
        %v2885 = vpop.f32.mrb[0].mxu0
        %2886 = vdwg.mxu0
        %v2887 = vmax.f32 %v2761, 0.0
        %v2888 = vmax.f32 %v2764, 0.0
        %v2889 = vmax.f32 %v2769, 0.0
        %v2890 = vmax.f32 %v2772, 0.0
        %v2891 = vmax.f32 %v2777, 0.0
        %v2892 = vmax.f32 %v2780, 0.0
        %v2893 = vmax.f32 %v2785, 0.0
        %v2894 = vmax.f32 %v2788, 0.0
        %v2895 = vmax.f32 %v2793, 0.0
        %v2896 = vmax.f32 %v2796, 0.0
        %v2897 = vmax.f32 %v2801, 0.0
        %v2898 = vmax.f32 %v2804, 0.0
        %v2899 = vmax.f32 %v2809, 0.0
        %v2900 = vmax.f32 %v2812, 0.0
        %v2901 = vmax.f32 %v2817, 0.0
        %v2902 = vmax.f32 %v2820, 0.0
        %v2903 = vmax.f32 %v2825, 0.0
        %v2904 = vmax.f32 %v2828, 0.0
        %v2905 = vmax.f32 %v2833, 0.0
        %v2906 = vmax.f32 %v2836, 0.0
        %v2907 = vmax.f32 %v2841, 0.0
        %v2908 = vmax.f32 %v2844, 0.0
        %v2909 = vmax.f32 %v2849, 0.0
        %v2910 = vmax.f32 %v2852, 0.0
        %v2911 = vmax.f32 %v2857, 0.0
        %v2912 = vmax.f32 %v2860, 0.0
        %v2913 = vmax.f32 %v2865, 0.0
        %v2914 = vmax.f32 %v2868, 0.0
        %v2915 = vmax.f32 %v2873, 0.0
        %v2916 = vmax.f32 %v2876, 0.0
        %v2917 = vmax.f32 %v2881, 0.0
        %v2918 = vmax.f32 %v2884, 0.0
        %v2919 = vpack.c.bf16 %v2888, %v2887
        %v2920 = vpack.c.bf16 %v2890, %v2889
        %v2921 = vpack.c.bf16 %v2892, %v2891
        %v2922 = vpack.c.bf16 %v2894, %v2893
        %v2923 = vpack.c.bf16 %v2896, %v2895
        %v2924 = vpack.c.bf16 %v2898, %v2897
        %v2925 = vpack.c.bf16 %v2900, %v2899
        %v2926 = vpack.c.bf16 %v2902, %v2901
        %v2927 = vpack.c.bf16 %v2904, %v2903
        %v2928 = vpack.c.bf16 %v2906, %v2905
        %v2929 = vpack.c.bf16 %v2908, %v2907
        %v2930 = vpack.c.bf16 %v2910, %v2909
        %v2931 = vpack.c.bf16 %v2912, %v2911
        %v2932 = vpack.c.bf16 %v2914, %v2913
        %v2933 = vpack.c.bf16 %v2916, %v2915
        %v2934 = vpack.c.bf16 %v2918, %v2917
        %2935 = vmatprep.subr.bf16.mxu0 0
        %2936 = vmatpush1.bf16.msra.mxu0 %v2919
        %2937 = vmatprep.subr.bf16.mxu0 0
        %2938 = vmatpush1.bf16.msra.mxu0 %v2920
        %2939 = vmatprep.subr.bf16.mxu0 0
        %2940 = vmatpush1.bf16.msra.mxu0 %v2921
        %2941 = vmatprep.subr.bf16.mxu0 0
        %2942 = vmatpush1.bf16.msra.mxu0 %v2922
        %2943 = vmatprep.subr.bf16.mxu0 0
        %2944 = vmatpush1.bf16.msra.mxu0 %v2923
        %2945 = vmatprep.subr.bf16.mxu0 0
        %2946 = vmatpush1.bf16.msra.mxu0 %v2924
        %2947 = vmatprep.subr.bf16.mxu0 0
        %2948 = vmatpush1.bf16.msra.mxu0 %v2925
        %2949 = vmatprep.subr.bf16.mxu0 0
        %2950 = vmatpush1.bf16.msra.mxu0 %v2926
        %2951 = vmatprep.subr.bf16.mxu0 0
        %2952 = vmatpush1.bf16.msra.mxu0 %v2927
        %2953 = vmatprep.subr.bf16.mxu0 0
        %2954 = vmatpush1.bf16.msra.mxu0 %v2928
        %2955 = vmatprep.subr.bf16.mxu0 0
        %2956 = vmatpush1.bf16.msra.mxu0 %v2929
        %2957 = vmatprep.subr.bf16.mxu0 0
        %2958 = vmatpush1.bf16.msra.mxu0 %v2930
        %2959 = vmatprep.subr.bf16.mxu0 0
        %2960 = vmatpush1.bf16.msra.mxu0 %v2931
        %2961 = vmatprep.subr.bf16.mxu0 0
        %2962 = vmatpush1.bf16.msra.mxu0 %v2932
        %2963 = vmatprep.subr.bf16.mxu0 0
        %2964 = vmatpush1.bf16.msra.mxu0 %v2933
        %2965 = vmatprep.subr.bf16.mxu0 0
        %2966 = vmatpush1.bf16.msra.mxu0 %v2934
        %2967 = vmatprep.mubr.bf16.mxu0 %v1219
        %2968 = vmatmul.mubr.bf16.gmra.mrb[0].mxu0 %v1218
        %v2969 = vpop.f32.mrb[0].mxu0
        %v2970 = vadd.f32 %v1093, %v2969
        %v2971 = vpop.f32.mrb[0].mxu0
        %v2972 = vpop.f32.mrb[0].mxu0
        %v2973 = vadd.f32 %v1098, %v2972
        %v2974 = vpop.f32.mrb[0].mxu0
        %2975 = vmatprep.mubr.bf16.mxu0 %v1221
        %2976 = vmatmul.mubr.bf16.gmra.mrb[0].mxu0 %v1220
        %v2977 = vpop.f32.mrb[0].mxu0
        %v2978 = vadd.f32 %v1103, %v2977
        %v2979 = vpop.f32.mrb[0].mxu0
        %v2980 = vpop.f32.mrb[0].mxu0
        %v2981 = vadd.f32 %v1108, %v2980
        %v2982 = vpop.f32.mrb[0].mxu0
        %2983 = vmatprep.mubr.bf16.mxu0 %v1223
        %2984 = vmatmul.mubr.bf16.gmra.mrb[0].mxu0 %v1222
        %v2985 = vpop.f32.mrb[0].mxu0
        %v2986 = vadd.f32 %v1113, %v2985
        %v2987 = vpop.f32.mrb[0].mxu0
        %v2988 = vpop.f32.mrb[0].mxu0
        %v2989 = vadd.f32 %v1118, %v2988
        %v2990 = vpop.f32.mrb[0].mxu0
        %2991 = vmatprep.mubr.bf16.mxu0 %v1225
        %2992 = vmatmul.mubr.bf16.gmra.mrb[0].mxu0 %v1224
        %v2993 = vpop.f32.mrb[0].mxu0
        %v2994 = vadd.f32 %v1123, %v2993
        %v2995 = vpop.f32.mrb[0].mxu0
        %v2996 = vpop.f32.mrb[0].mxu0
        %v2997 = vadd.f32 %v1128, %v2996
        %v2998 = vpop.f32.mrb[0].mxu0
        %2999 = vmatprep.mubr.bf16.mxu0 %v1227
        %3000 = vmatmul.mubr.bf16.gmra.mrb[0].mxu0 %v1226
        %v3001 = vpop.f32.mrb[0].mxu0
        %v3002 = vadd.f32 %v1133, %v3001
        %v3003 = vpop.f32.mrb[0].mxu0
        %v3004 = vpop.f32.mrb[0].mxu0
        %v3005 = vadd.f32 %v1138, %v3004
        %v3006 = vpop.f32.mrb[0].mxu0
        %3007 = vmatprep.mubr.bf16.mxu0 %v1229
        %3008 = vmatmul.mubr.bf16.gmra.mrb[0].mxu0 %v1228
        %v3009 = vpop.f32.mrb[0].mxu0
        %v3010 = vadd.f32 %v1143, %v3009
        %v3011 = vpop.f32.mrb[0].mxu0
        %v3012 = vpop.f32.mrb[0].mxu0
        %v3013 = vadd.f32 %v1148, %v3012
        %v3014 = vpop.f32.mrb[0].mxu0
        %3015 = vmatprep.mubr.bf16.mxu0 %v1231
        %3016 = vmatmul.mubr.bf16.gmra.mrb[0].mxu0 %v1230
        %v3017 = vpop.f32.mrb[0].mxu0
        %v3018 = vadd.f32 %v1153, %v3017
        %v3019 = vpop.f32.mrb[0].mxu0
        %v3020 = vpop.f32.mrb[0].mxu0
        %v3021 = vadd.f32 %v1158, %v3020
        %v3022 = vpop.f32.mrb[0].mxu0
        %3023 = vmatprep.mubr.bf16.mxu0 %v1233
        %3024 = vmatmul.mubr.bf16.gmra.mrb[0].mxu0 %v1232
        %v3025 = vpop.f32.mrb[0].mxu0
        %v3026 = vadd.f32 %v1163, %v3025
        %v3027 = vpop.f32.mrb[0].mxu0
        %v3028 = vpop.f32.mrb[0].mxu0
        %v3029 = vadd.f32 %v1168, %v3028
        %v3030 = vpop.f32.mrb[0].mxu0
        %3031 = vdwg.mxu0
        %v3032 = vmax.f32 %v2970, 0.0
        %v3033 = vmax.f32 %v2973, 0.0
        %v3034 = vmax.f32 %v2978, 0.0
        %v3035 = vmax.f32 %v2981, 0.0
        %v3036 = vmax.f32 %v2986, 0.0
        %v3037 = vmax.f32 %v2989, 0.0
        %v3038 = vmax.f32 %v2994, 0.0
        %v3039 = vmax.f32 %v2997, 0.0
        %v3040 = vmax.f32 %v3002, 0.0
        %v3041 = vmax.f32 %v3005, 0.0
        %v3042 = vmax.f32 %v3010, 0.0
        %v3043 = vmax.f32 %v3013, 0.0
        %v3044 = vmax.f32 %v3018, 0.0
        %v3045 = vmax.f32 %v3021, 0.0
        %v3046 = vmax.f32 %v3026, 0.0
        %v3047 = vmax.f32 %v3029, 0.0
        %v3048 = vmul.f32 %v3032, %v1366
        %v3049 = vmul.f32 %v3033, %v1371
        %v3050 = vmul.f32 %v3034, %v1376
        %v3051 = vmul.f32 %v3035, %v1381
        %v3052 = vmul.f32 %v3036, %v1386
        %v3053 = vmul.f32 %v3037, %v1391
        %v3054 = vmul.f32 %v3038, %v1396
        %v3055 = vmul.f32 %v3039, %v1401
        %v3056 = vmul.f32 %v3040, %v1406
        %v3057 = vmul.f32 %v3041, %v1411
        %v3058 = vmul.f32 %v3042, %v1416
        %v3059 = vmul.f32 %v3043, %v1421
        %v3060 = vmul.f32 %v3044, %v1426
        %v3061 = vmul.f32 %v3045, %v1431
        %v3062 = vmul.f32 %v3046, %v1436
        %v3063 = vmul.f32 %v3047, %v1441
        %v3064 = vadd.f32 %v3048, %v3049
        %v3065 = vadd.f32 %v3064, %v3050
        %v3066 = vadd.f32 %v3065, %v3051
        %v3067 = vadd.f32 %v3066, %v3052
        %v3068 = vadd.f32 %v3067, %v3053
        %v3069 = vadd.f32 %v3068, %v3054
        %v3070 = vadd.f32 %v3069, %v3055
        %v3071 = vadd.f32 %v3070, %v3056
        %v3072 = vadd.f32 %v3071, %v3057
        %v3073 = vadd.f32 %v3072, %v3058
        %v3074 = vadd.f32 %v3073, %v3059
        %v3075 = vadd.f32 %v3074, %v3060
        %v3076 = vadd.f32 %v3075, %v3061
        %v3077 = vadd.f32 %v3076, %v3062
        %v3078 = vadd.f32 %v3077, %v3063
        %v3079 = vld [vmem:[%s465 + $0x18] sm:$0xff]
        %v3080 = vadd.f32 %v3078, %v1482
        %3082 = vset.pattern.permute.xlu0 0
        %3083 = vperm.xlu0 %3082, %v3079
        %v3084 = vpop.permute.xlu0 %3083
        %v3086 = vmul.f32 %v3084, %v1494
        %v3087 = vmul.f32 %v3080, %v3086
        %3088 = vst [vmem:[%s442 + $0x18] sm:$0xff] %v3087
        %v3089 = vxor.u32 %v3087, 2147483648
        %v3090 = vmul.f32 %v3089, 1.442695
        %v3091 = vpow.pop %v3090
        %v3092 = vadd.f32 %v3091, 1.0
        %v3093 = vrcp.pop %v3092
        %v3094 = vmul.f32 1.0, %v3093
        %3095 = vst [vmem:[%s435 + $0x18] sm:$0xff] %v3094
        %v3096 = vld [vmem:[%s451 + $0x200] sm:$0xf]
        %v3097 = vld [vmem:[%s451 + $0x204] sm:$0xf]
        %v3098 = vld [vmem:[%s451 + $0x208] sm:$0xf]
        %v3099 = vld [vmem:[%s451 + $0x20c] sm:$0xf]
        %v3100 = vld [vmem:[%s451 + $0x210] sm:$0xf]
        %v3101 = vld [vmem:[%s451 + $0x214] sm:$0xf]
        %v3102 = vld [vmem:[%s451 + $0x218] sm:$0xf]
        %v3103 = vld [vmem:[%s451 + $0x21c] sm:$0xf]
        %v3104 = vld [vmem:[%s451 + $0x220] sm:$0xf]
        %v3105 = vld [vmem:[%s451 + $0x224] sm:$0xf]
        %v3106 = vld [vmem:[%s451 + $0x228] sm:$0xf]
        %v3107 = vld [vmem:[%s451 + $0x22c] sm:$0xf]
        %v3108 = vld [vmem:[%s451 + $0x230] sm:$0xf]
        %v3109 = vld [vmem:[%s451 + $0x234] sm:$0xf]
        %v3110 = vld [vmem:[%s451 + $0x238] sm:$0xf]
        %v3111 = vld [vmem:[%s451 + $0x23c] sm:$0xf]
        %v3112 = vld [vmem:[%s451 + $0x240] sm:$0xf]
        %v3113 = vld [vmem:[%s451 + $0x244] sm:$0xf]
        %v3114 = vld [vmem:[%s451 + $0x248] sm:$0xf]
        %v3115 = vld [vmem:[%s451 + $0x24c] sm:$0xf]
        %v3116 = vld [vmem:[%s451 + $0x250] sm:$0xf]
        %v3117 = vld [vmem:[%s451 + $0x254] sm:$0xf]
        %v3118 = vld [vmem:[%s451 + $0x258] sm:$0xf]
        %v3119 = vld [vmem:[%s451 + $0x25c] sm:$0xf]
        %v3120 = vld [vmem:[%s451 + $0x260] sm:$0xf]
        %v3121 = vld [vmem:[%s451 + $0x264] sm:$0xf]
        %v3122 = vld [vmem:[%s451 + $0x268] sm:$0xf]
        %v3123 = vld [vmem:[%s451 + $0x26c] sm:$0xf]
        %v3124 = vld [vmem:[%s451 + $0x270] sm:$0xf]
        %v3125 = vld [vmem:[%s451 + $0x274] sm:$0xf]
        %v3126 = vld [vmem:[%s451 + $0x278] sm:$0xf]
        %v3127 = vld [vmem:[%s451 + $0x27c] sm:$0xf]
        %v3160 = vunpack.c.l.b16 %v3096
        %v3161 = vunpack.c.l.b16 %v3097
        %v3162 = vunpack.c.l.b16 %v3098
        %v3163 = vunpack.c.l.b16 %v3099
        %v3164 = vunpack.c.l.b16 %v3100
        %v3165 = vunpack.c.l.b16 %v3101
        %v3166 = vunpack.c.l.b16 %v3102
        %v3167 = vunpack.c.l.b16 %v3103
        %v3168 = vunpack.c.l.b16 %v3104
        %v3169 = vunpack.c.l.b16 %v3105
        %v3170 = vunpack.c.l.b16 %v3106
        %v3171 = vunpack.c.l.b16 %v3107
        %v3172 = vunpack.c.l.b16 %v3108
        %v3173 = vunpack.c.l.b16 %v3109
        %v3174 = vunpack.c.l.b16 %v3110
        %v3175 = vunpack.c.l.b16 %v3111
        %v3176 = vunpack.c.l.b16 %v3112
        %v3177 = vunpack.c.l.b16 %v3113
        %v3178 = vunpack.c.l.b16 %v3114
        %v3179 = vunpack.c.l.b16 %v3115
        %v3180 = vunpack.c.l.b16 %v3116
        %v3181 = vunpack.c.l.b16 %v3117
        %v3182 = vunpack.c.l.b16 %v3118
        %v3183 = vunpack.c.l.b16 %v3119
        %v3184 = vunpack.c.l.b16 %v3120
        %v3185 = vunpack.c.l.b16 %v3121
        %v3186 = vunpack.c.l.b16 %v3122
        %v3187 = vunpack.c.l.b16 %v3123
        %v3188 = vunpack.c.l.b16 %v3124
        %v3189 = vunpack.c.l.b16 %v3125
        %v3190 = vunpack.c.l.b16 %v3126
        %v3191 = vunpack.c.l.b16 %v3127
        %v3192 = vpack.c.b16 %v3161, %v3160
        %v3193 = vpack.c.b16 %v3163, %v3162
        %v3194 = vpack.c.b16 %v3165, %v3164
        %v3195 = vpack.c.b16 %v3167, %v3166
        %v3196 = vpack.c.b16 %v3169, %v3168
        %v3197 = vpack.c.b16 %v3171, %v3170
        %v3198 = vpack.c.b16 %v3173, %v3172
        %v3199 = vpack.c.b16 %v3175, %v3174
        %v3200 = vpack.c.b16 %v3177, %v3176
        %v3201 = vpack.c.b16 %v3179, %v3178
        %v3202 = vpack.c.b16 %v3181, %v3180
        %v3203 = vpack.c.b16 %v3183, %v3182
        %v3204 = vpack.c.b16 %v3185, %v3184
        %v3205 = vpack.c.b16 %v3187, %v3186
        %v3206 = vpack.c.b16 %v3189, %v3188
        %v3207 = vpack.c.b16 %v3191, %v3190
        %v3209 = vsel %vm828, %v3192, 0
        %v3212 = vsel %vm828, %v3193, 0
        %v3215 = vsel %vm828, %v3194, 0
        %v3218 = vsel %vm828, %v3195, 0
        %v3221 = vsel %vm828, %v3196, 0
        %v3224 = vsel %vm828, %v3197, 0
        %v3227 = vsel %vm828, %v3198, 0
        %v3230 = vsel %vm828, %v3199, 0
        %v3233 = vsel %vm828, %v3200, 0
        %v3236 = vsel %vm828, %v3201, 0
        %v3239 = vsel %vm828, %v3202, 0
        %v3242 = vsel %vm828, %v3203, 0
        %v3245 = vsel %vm828, %v3204, 0
        %v3248 = vsel %vm828, %v3205, 0
        %v3251 = vsel %vm828, %v3206, 0
        %v3254 = vsel %vm828, %v3207, 0
        %3256 = vmatprep.subr.bf16.mxu0 0
        %3257 = vmatpush1.bf16.msra.mxu0 %v879
        %3258 = vmatprep.subr.bf16.mxu0 0
        %3259 = vmatpush1.bf16.msra.mxu0 0
        %3260 = vmatprep.subr.bf16.mxu0 0
        %3261 = vmatpush1.bf16.msra.mxu0 0
        %3262 = vmatprep.subr.bf16.mxu0 0
        %3263 = vmatpush1.bf16.msra.mxu0 0
        %3264 = vmatprep.subr.bf16.mxu0 0
        %3265 = vmatpush1.bf16.msra.mxu0 0
        %3266 = vmatprep.subr.bf16.mxu0 0
        %3267 = vmatpush1.bf16.msra.mxu0 0
        %3268 = vmatprep.subr.bf16.mxu0 0
        %3269 = vmatpush1.bf16.msra.mxu0 0
        %3270 = vmatprep.subr.bf16.mxu0 0
        %3271 = vmatpush1.bf16.msra.mxu0 0
        %3272 = vmatprep.subr.bf16.mxu0 0
        %3273 = vmatpush1.bf16.msra.mxu0 0
        %3274 = vmatprep.subr.bf16.mxu0 0
        %3275 = vmatpush1.bf16.msra.mxu0 0
        %3276 = vmatprep.subr.bf16.mxu0 0
        %3277 = vmatpush1.bf16.msra.mxu0 0
        %3278 = vmatprep.subr.bf16.mxu0 0
        %3279 = vmatpush1.bf16.msra.mxu0 0
        %3280 = vmatprep.subr.bf16.mxu0 0
        %3281 = vmatpush1.bf16.msra.mxu0 0
        %3282 = vmatprep.subr.bf16.mxu0 0
        %3283 = vmatpush1.bf16.msra.mxu0 0
        %3284 = vmatprep.subr.bf16.mxu0 0
        %3285 = vmatpush1.bf16.msra.mxu0 0
        %3286 = vmatprep.subr.bf16.mxu0 0
        %3287 = vmatpush1.bf16.msra.mxu0 0
        %3288 = vmatprep.mubr.bf16.mxu0 0
        %3289 = vmatmul.mubr.bf16.gmra.mrb[0].mxu0 %v3209
        %v3290 = vpop.f32.mrb[0].mxu0
        %v3291 = vadd.f32 %v591, %v3290
        %v3292 = vpop.f32.mrb[0].mxu0
        %v3293 = vpop.f32.mrb[0].mxu0
        %v3294 = vadd.f32 %v596, %v3293
        %v3295 = vpop.f32.mrb[0].mxu0
        %3296 = vmatprep.mubr.bf16.mxu0 0
        %3297 = vmatmul.mubr.bf16.gmra.mrb[0].mxu0 %v3212
        %v3298 = vpop.f32.mrb[0].mxu0
        %v3299 = vadd.f32 %v601, %v3298
        %v3300 = vpop.f32.mrb[0].mxu0
        %v3301 = vpop.f32.mrb[0].mxu0
        %v3302 = vadd.f32 %v606, %v3301
        %v3303 = vpop.f32.mrb[0].mxu0
        %3304 = vmatprep.mubr.bf16.mxu0 0
        %3305 = vmatmul.mubr.bf16.gmra.mrb[0].mxu0 %v3215
        %v3306 = vpop.f32.mrb[0].mxu0
        %v3307 = vadd.f32 %v611, %v3306
        %v3308 = vpop.f32.mrb[0].mxu0
        %v3309 = vpop.f32.mrb[0].mxu0
        %v3310 = vadd.f32 %v616, %v3309
        %v3311 = vpop.f32.mrb[0].mxu0
        %3312 = vmatprep.mubr.bf16.mxu0 0
        %3313 = vmatmul.mubr.bf16.gmra.mrb[0].mxu0 %v3218
        %v3314 = vpop.f32.mrb[0].mxu0
        %v3315 = vadd.f32 %v621, %v3314
        %v3316 = vpop.f32.mrb[0].mxu0
        %v3317 = vpop.f32.mrb[0].mxu0
        %v3318 = vadd.f32 %v626, %v3317
        %v3319 = vpop.f32.mrb[0].mxu0
        %3320 = vmatprep.mubr.bf16.mxu0 0
        %3321 = vmatmul.mubr.bf16.gmra.mrb[0].mxu0 %v3221
        %v3322 = vpop.f32.mrb[0].mxu0
        %v3323 = vadd.f32 %v631, %v3322
        %v3324 = vpop.f32.mrb[0].mxu0
        %v3325 = vpop.f32.mrb[0].mxu0
        %v3326 = vadd.f32 %v636, %v3325
        %v3327 = vpop.f32.mrb[0].mxu0
        %3328 = vmatprep.mubr.bf16.mxu0 0
        %3329 = vmatmul.mubr.bf16.gmra.mrb[0].mxu0 %v3224
        %v3330 = vpop.f32.mrb[0].mxu0
        %v3331 = vadd.f32 %v641, %v3330
        %v3332 = vpop.f32.mrb[0].mxu0
        %v3333 = vpop.f32.mrb[0].mxu0
        %v3334 = vadd.f32 %v646, %v3333
        %v3335 = vpop.f32.mrb[0].mxu0
        %3336 = vmatprep.mubr.bf16.mxu0 0
        %3337 = vmatmul.mubr.bf16.gmra.mrb[0].mxu0 %v3227
        %v3338 = vpop.f32.mrb[0].mxu0
        %v3339 = vadd.f32 %v651, %v3338
        %v3340 = vpop.f32.mrb[0].mxu0
        %v3341 = vpop.f32.mrb[0].mxu0
        %v3342 = vadd.f32 %v656, %v3341
        %v3343 = vpop.f32.mrb[0].mxu0
        %3344 = vmatprep.mubr.bf16.mxu0 0
        %3345 = vmatmul.mubr.bf16.gmra.mrb[0].mxu0 %v3230
        %v3346 = vpop.f32.mrb[0].mxu0
        %v3347 = vadd.f32 %v661, %v3346
        %v3348 = vpop.f32.mrb[0].mxu0
        %v3349 = vpop.f32.mrb[0].mxu0
        %v3350 = vadd.f32 %v666, %v3349
        %v3351 = vpop.f32.mrb[0].mxu0
        %3352 = vmatprep.mubr.bf16.mxu0 0
        %3353 = vmatmul.mubr.bf16.gmra.mrb[0].mxu0 %v3233
        %v3354 = vpop.f32.mrb[0].mxu0
        %v3355 = vadd.f32 %v671, %v3354
        %v3356 = vpop.f32.mrb[0].mxu0
        %v3357 = vpop.f32.mrb[0].mxu0
        %v3358 = vadd.f32 %v676, %v3357
        %v3359 = vpop.f32.mrb[0].mxu0
        %3360 = vmatprep.mubr.bf16.mxu0 0
        %3361 = vmatmul.mubr.bf16.gmra.mrb[0].mxu0 %v3236
        %v3362 = vpop.f32.mrb[0].mxu0
        %v3363 = vadd.f32 %v681, %v3362
        %v3364 = vpop.f32.mrb[0].mxu0
        %v3365 = vpop.f32.mrb[0].mxu0
        %v3366 = vadd.f32 %v686, %v3365
        %v3367 = vpop.f32.mrb[0].mxu0
        %3368 = vmatprep.mubr.bf16.mxu0 0
        %3369 = vmatmul.mubr.bf16.gmra.mrb[0].mxu0 %v3239
        %v3370 = vpop.f32.mrb[0].mxu0
        %v3371 = vadd.f32 %v691, %v3370
        %v3372 = vpop.f32.mrb[0].mxu0
        %v3373 = vpop.f32.mrb[0].mxu0
        %v3374 = vadd.f32 %v696, %v3373
        %v3375 = vpop.f32.mrb[0].mxu0
        %3376 = vmatprep.mubr.bf16.mxu0 0
        %3377 = vmatmul.mubr.bf16.gmra.mrb[0].mxu0 %v3242
        %v3378 = vpop.f32.mrb[0].mxu0
        %v3379 = vadd.f32 %v701, %v3378
        %v3380 = vpop.f32.mrb[0].mxu0
        %v3381 = vpop.f32.mrb[0].mxu0
        %v3382 = vadd.f32 %v706, %v3381
        %v3383 = vpop.f32.mrb[0].mxu0
        %3384 = vmatprep.mubr.bf16.mxu0 0
        %3385 = vmatmul.mubr.bf16.gmra.mrb[0].mxu0 %v3245
        %v3386 = vpop.f32.mrb[0].mxu0
        %v3387 = vadd.f32 %v711, %v3386
        %v3388 = vpop.f32.mrb[0].mxu0
        %v3389 = vpop.f32.mrb[0].mxu0
        %v3390 = vadd.f32 %v716, %v3389
        %v3391 = vpop.f32.mrb[0].mxu0
        %3392 = vmatprep.mubr.bf16.mxu0 0
        %3393 = vmatmul.mubr.bf16.gmra.mrb[0].mxu0 %v3248
        %v3394 = vpop.f32.mrb[0].mxu0
        %v3395 = vadd.f32 %v721, %v3394
        %v3396 = vpop.f32.mrb[0].mxu0
        %v3397 = vpop.f32.mrb[0].mxu0
        %v3398 = vadd.f32 %v726, %v3397
        %v3399 = vpop.f32.mrb[0].mxu0
        %3400 = vmatprep.mubr.bf16.mxu0 0
        %3401 = vmatmul.mubr.bf16.gmra.mrb[0].mxu0 %v3251
        %v3402 = vpop.f32.mrb[0].mxu0
        %v3403 = vadd.f32 %v731, %v3402
        %v3404 = vpop.f32.mrb[0].mxu0
        %v3405 = vpop.f32.mrb[0].mxu0
        %v3406 = vadd.f32 %v736, %v3405
        %v3407 = vpop.f32.mrb[0].mxu0
        %3408 = vmatprep.mubr.bf16.mxu0 0
        %3409 = vmatmul.mubr.bf16.gmra.mrb[0].mxu0 %v3254
        %v3410 = vpop.f32.mrb[0].mxu0
        %v3411 = vadd.f32 %v741, %v3410
        %v3412 = vpop.f32.mrb[0].mxu0
        %v3413 = vpop.f32.mrb[0].mxu0
        %v3414 = vadd.f32 %v746, %v3413
        %v3415 = vpop.f32.mrb[0].mxu0
        %3416 = vdwg.mxu0
        %v3417 = vmax.f32 %v3291, 0.0
        %v3418 = vmax.f32 %v3294, 0.0
        %v3419 = vmax.f32 %v3299, 0.0
        %v3420 = vmax.f32 %v3302, 0.0
        %v3421 = vmax.f32 %v3307, 0.0
        %v3422 = vmax.f32 %v3310, 0.0
        %v3423 = vmax.f32 %v3315, 0.0
        %v3424 = vmax.f32 %v3318, 0.0
        %v3425 = vmax.f32 %v3323, 0.0
        %v3426 = vmax.f32 %v3326, 0.0
        %v3427 = vmax.f32 %v3331, 0.0
        %v3428 = vmax.f32 %v3334, 0.0
        %v3429 = vmax.f32 %v3339, 0.0
        %v3430 = vmax.f32 %v3342, 0.0
        %v3431 = vmax.f32 %v3347, 0.0
        %v3432 = vmax.f32 %v3350, 0.0
        %v3433 = vmax.f32 %v3355, 0.0
        %v3434 = vmax.f32 %v3358, 0.0
        %v3435 = vmax.f32 %v3363, 0.0
        %v3436 = vmax.f32 %v3366, 0.0
        %v3437 = vmax.f32 %v3371, 0.0
        %v3438 = vmax.f32 %v3374, 0.0
        %v3439 = vmax.f32 %v3379, 0.0
        %v3440 = vmax.f32 %v3382, 0.0
        %v3441 = vmax.f32 %v3387, 0.0
        %v3442 = vmax.f32 %v3390, 0.0
        %v3443 = vmax.f32 %v3395, 0.0
        %v3444 = vmax.f32 %v3398, 0.0
        %v3445 = vmax.f32 %v3403, 0.0
        %v3446 = vmax.f32 %v3406, 0.0
        %v3447 = vmax.f32 %v3411, 0.0
        %v3448 = vmax.f32 %v3414, 0.0
        %v3449 = vpack.c.bf16 %v3418, %v3417
        %v3450 = vpack.c.bf16 %v3420, %v3419
        %v3451 = vpack.c.bf16 %v3422, %v3421
        %v3452 = vpack.c.bf16 %v3424, %v3423
        %v3453 = vpack.c.bf16 %v3426, %v3425
        %v3454 = vpack.c.bf16 %v3428, %v3427
        %v3455 = vpack.c.bf16 %v3430, %v3429
        %v3456 = vpack.c.bf16 %v3432, %v3431
        %v3457 = vpack.c.bf16 %v3434, %v3433
        %v3458 = vpack.c.bf16 %v3436, %v3435
        %v3459 = vpack.c.bf16 %v3438, %v3437
        %v3460 = vpack.c.bf16 %v3440, %v3439
        %v3461 = vpack.c.bf16 %v3442, %v3441
        %v3462 = vpack.c.bf16 %v3444, %v3443
        %v3463 = vpack.c.bf16 %v3446, %v3445
        %v3464 = vpack.c.bf16 %v3448, %v3447
        %3465 = vmatprep.subr.bf16.mxu0 0
        %3466 = vmatpush1.bf16.msra.mxu0 %v3449
        %3467 = vmatprep.subr.bf16.mxu0 0
        %3468 = vmatpush1.bf16.msra.mxu0 %v3450
        %3469 = vmatprep.subr.bf16.mxu0 0
        %3470 = vmatpush1.bf16.msra.mxu0 %v3451
        %3471 = vmatprep.subr.bf16.mxu0 0
        %3472 = vmatpush1.bf16.msra.mxu0 %v3452
        %3473 = vmatprep.subr.bf16.mxu0 0
        %3474 = vmatpush1.bf16.msra.mxu0 %v3453
        %3475 = vmatprep.subr.bf16.mxu0 0
        %3476 = vmatpush1.bf16.msra.mxu0 %v3454
        %3477 = vmatprep.subr.bf16.mxu0 0
        %3478 = vmatpush1.bf16.msra.mxu0 %v3455
        %3479 = vmatprep.subr.bf16.mxu0 0
        %3480 = vmatpush1.bf16.msra.mxu0 %v3456
        %3481 = vmatprep.subr.bf16.mxu0 0
        %3482 = vmatpush1.bf16.msra.mxu0 %v3457
        %3483 = vmatprep.subr.bf16.mxu0 0
        %3484 = vmatpush1.bf16.msra.mxu0 %v3458
        %3485 = vmatprep.subr.bf16.mxu0 0
        %3486 = vmatpush1.bf16.msra.mxu0 %v3459
        %3487 = vmatprep.subr.bf16.mxu0 0
        %3488 = vmatpush1.bf16.msra.mxu0 %v3460
        %3489 = vmatprep.subr.bf16.mxu0 0
        %3490 = vmatpush1.bf16.msra.mxu0 %v3461
        %3491 = vmatprep.subr.bf16.mxu0 0
        %3492 = vmatpush1.bf16.msra.mxu0 %v3462
        %3493 = vmatprep.subr.bf16.mxu0 0
        %3494 = vmatpush1.bf16.msra.mxu0 %v3463
        %3495 = vmatprep.subr.bf16.mxu0 0
        %3496 = vmatpush1.bf16.msra.mxu0 %v3464
        %3497 = vmatprep.mubr.bf16.mxu0 %v1219
        %3498 = vmatmul.mubr.bf16.gmra.mrb[0].mxu0 %v1218
        %v3499 = vpop.f32.mrb[0].mxu0
        %v3500 = vadd.f32 %v1093, %v3499
        %v3501 = vpop.f32.mrb[0].mxu0
        %v3502 = vpop.f32.mrb[0].mxu0
        %v3503 = vadd.f32 %v1098, %v3502
        %v3504 = vpop.f32.mrb[0].mxu0
        %3505 = vmatprep.mubr.bf16.mxu0 %v1221
        %3506 = vmatmul.mubr.bf16.gmra.mrb[0].mxu0 %v1220
        %v3507 = vpop.f32.mrb[0].mxu0
        %v3508 = vadd.f32 %v1103, %v3507
        %v3509 = vpop.f32.mrb[0].mxu0
        %v3510 = vpop.f32.mrb[0].mxu0
        %v3511 = vadd.f32 %v1108, %v3510
        %v3512 = vpop.f32.mrb[0].mxu0
        %3513 = vmatprep.mubr.bf16.mxu0 %v1223
        %3514 = vmatmul.mubr.bf16.gmra.mrb[0].mxu0 %v1222
        %v3515 = vpop.f32.mrb[0].mxu0
        %v3516 = vadd.f32 %v1113, %v3515
        %v3517 = vpop.f32.mrb[0].mxu0
        %v3518 = vpop.f32.mrb[0].mxu0
        %v3519 = vadd.f32 %v1118, %v3518
        %v3520 = vpop.f32.mrb[0].mxu0
        %3521 = vmatprep.mubr.bf16.mxu0 %v1225
        %3522 = vmatmul.mubr.bf16.gmra.mrb[0].mxu0 %v1224
        %v3523 = vpop.f32.mrb[0].mxu0
        %v3524 = vadd.f32 %v1123, %v3523
        %v3525 = vpop.f32.mrb[0].mxu0
        %v3526 = vpop.f32.mrb[0].mxu0
        %v3527 = vadd.f32 %v1128, %v3526
        %v3528 = vpop.f32.mrb[0].mxu0
        %3529 = vmatprep.mubr.bf16.mxu0 %v1227
        %3530 = vmatmul.mubr.bf16.gmra.mrb[0].mxu0 %v1226
        %v3531 = vpop.f32.mrb[0].mxu0
        %v3532 = vadd.f32 %v1133, %v3531
        %v3533 = vpop.f32.mrb[0].mxu0
        %v3534 = vpop.f32.mrb[0].mxu0
        %v3535 = vadd.f32 %v1138, %v3534
        %v3536 = vpop.f32.mrb[0].mxu0
        %3537 = vmatprep.mubr.bf16.mxu0 %v1229
        %3538 = vmatmul.mubr.bf16.gmra.mrb[0].mxu0 %v1228
        %v3539 = vpop.f32.mrb[0].mxu0
        %v3540 = vadd.f32 %v1143, %v3539
        %v3541 = vpop.f32.mrb[0].mxu0
        %v3542 = vpop.f32.mrb[0].mxu0
        %v3543 = vadd.f32 %v1148, %v3542
        %v3544 = vpop.f32.mrb[0].mxu0
        %3545 = vmatprep.mubr.bf16.mxu0 %v1231
        %3546 = vmatmul.mubr.bf16.gmra.mrb[0].mxu0 %v1230
        %v3547 = vpop.f32.mrb[0].mxu0
        %v3548 = vadd.f32 %v1153, %v3547
        %v3549 = vpop.f32.mrb[0].mxu0
        %v3550 = vpop.f32.mrb[0].mxu0
        %v3551 = vadd.f32 %v1158, %v3550
        %v3552 = vpop.f32.mrb[0].mxu0
        %3553 = vmatprep.mubr.bf16.mxu0 %v1233
        %3554 = vmatmul.mubr.bf16.gmra.mrb[0].mxu0 %v1232
        %v3555 = vpop.f32.mrb[0].mxu0
        %v3556 = vadd.f32 %v1163, %v3555
        %v3557 = vpop.f32.mrb[0].mxu0
        %v3558 = vpop.f32.mrb[0].mxu0
        %v3559 = vadd.f32 %v1168, %v3558
        %v3560 = vpop.f32.mrb[0].mxu0
        %3561 = vdwg.mxu0
        %v3562 = vmax.f32 %v3500, 0.0
        %v3563 = vmax.f32 %v3503, 0.0
        %v3564 = vmax.f32 %v3508, 0.0
        %v3565 = vmax.f32 %v3511, 0.0
        %v3566 = vmax.f32 %v3516, 0.0
        %v3567 = vmax.f32 %v3519, 0.0
        %v3568 = vmax.f32 %v3524, 0.0
        %v3569 = vmax.f32 %v3527, 0.0
        %v3570 = vmax.f32 %v3532, 0.0
        %v3571 = vmax.f32 %v3535, 0.0
        %v3572 = vmax.f32 %v3540, 0.0
        %v3573 = vmax.f32 %v3543, 0.0
        %v3574 = vmax.f32 %v3548, 0.0
        %v3575 = vmax.f32 %v3551, 0.0
        %v3576 = vmax.f32 %v3556, 0.0
        %v3577 = vmax.f32 %v3559, 0.0
        %v3578 = vmul.f32 %v3562, %v1366
        %v3579 = vmul.f32 %v3563, %v1371
        %v3580 = vmul.f32 %v3564, %v1376
        %v3581 = vmul.f32 %v3565, %v1381
        %v3582 = vmul.f32 %v3566, %v1386
        %v3583 = vmul.f32 %v3567, %v1391
        %v3584 = vmul.f32 %v3568, %v1396
        %v3585 = vmul.f32 %v3569, %v1401
        %v3586 = vmul.f32 %v3570, %v1406
        %v3587 = vmul.f32 %v3571, %v1411
        %v3588 = vmul.f32 %v3572, %v1416
        %v3589 = vmul.f32 %v3573, %v1421
        %v3590 = vmul.f32 %v3574, %v1426
        %v3591 = vmul.f32 %v3575, %v1431
        %v3592 = vmul.f32 %v3576, %v1436
        %v3593 = vmul.f32 %v3577, %v1441
        %v3594 = vadd.f32 %v3578, %v3579
        %v3595 = vadd.f32 %v3594, %v3580
        %v3596 = vadd.f32 %v3595, %v3581
        %v3597 = vadd.f32 %v3596, %v3582
        %v3598 = vadd.f32 %v3597, %v3583
        %v3599 = vadd.f32 %v3598, %v3584
        %v3600 = vadd.f32 %v3599, %v3585
        %v3601 = vadd.f32 %v3600, %v3586
        %v3602 = vadd.f32 %v3601, %v3587
        %v3603 = vadd.f32 %v3602, %v3588
        %v3604 = vadd.f32 %v3603, %v3589
        %v3605 = vadd.f32 %v3604, %v3590
        %v3606 = vadd.f32 %v3605, %v3591
        %v3607 = vadd.f32 %v3606, %v3592
        %v3608 = vadd.f32 %v3607, %v3593
        %v3609 = vld [vmem:[%s465 + $0x20] sm:$0xff]
        %v3610 = vadd.f32 %v3608, %v1482
        %3612 = vset.pattern.permute.xlu0 0
        %3613 = vperm.xlu0 %3612, %v3609
        %v3614 = vpop.permute.xlu0 %3613
        %v3616 = vmul.f32 %v3614, %v1494
        %v3617 = vmul.f32 %v3610, %v3616
        %3618 = vst [vmem:[%s442 + $0x20] sm:$0xff] %v3617
        %v3619 = vxor.u32 %v3617, 2147483648
        %v3620 = vmul.f32 %v3619, 1.442695
        %v3621 = vpow.pop %v3620
        %v3622 = vadd.f32 %v3621, 1.0
        %v3623 = vrcp.pop %v3622
        %v3624 = vmul.f32 1.0, %v3623
        %3625 = vst [vmem:[%s435 + $0x20] sm:$0xff] %v3624
        %v3626 = vld [vmem:[%s451 + $0x280] sm:$0xf]
        %v3627 = vld [vmem:[%s451 + $0x284] sm:$0xf]
        %v3628 = vld [vmem:[%s451 + $0x288] sm:$0xf]
        %v3629 = vld [vmem:[%s451 + $0x28c] sm:$0xf]
        %v3630 = vld [vmem:[%s451 + $0x290] sm:$0xf]
        %v3631 = vld [vmem:[%s451 + $0x294] sm:$0xf]
        %v3632 = vld [vmem:[%s451 + $0x298] sm:$0xf]
        %v3633 = vld [vmem:[%s451 + $0x29c] sm:$0xf]
        %v3634 = vld [vmem:[%s451 + $0x2a0] sm:$0xf]
        %v3635 = vld [vmem:[%s451 + $0x2a4] sm:$0xf]
        %v3636 = vld [vmem:[%s451 + $0x2a8] sm:$0xf]
        %v3637 = vld [vmem:[%s451 + $0x2ac] sm:$0xf]
        %v3638 = vld [vmem:[%s451 + $0x2b0] sm:$0xf]
        %v3639 = vld [vmem:[%s451 + $0x2b4] sm:$0xf]
        %v3640 = vld [vmem:[%s451 + $0x2b8] sm:$0xf]
        %v3641 = vld [vmem:[%s451 + $0x2bc] sm:$0xf]
        %v3642 = vld [vmem:[%s451 + $0x2c0] sm:$0xf]
        %v3643 = vld [vmem:[%s451 + $0x2c4] sm:$0xf]
        %v3644 = vld [vmem:[%s451 + $0x2c8] sm:$0xf]
        %v3645 = vld [vmem:[%s451 + $0x2cc] sm:$0xf]
        %v3646 = vld [vmem:[%s451 + $0x2d0] sm:$0xf]
        %v3647 = vld [vmem:[%s451 + $0x2d4] sm:$0xf]
        %v3648 = vld [vmem:[%s451 + $0x2d8] sm:$0xf]
        %v3649 = vld [vmem:[%s451 + $0x2dc] sm:$0xf]
        %v3650 = vld [vmem:[%s451 + $0x2e0] sm:$0xf]
        %v3651 = vld [vmem:[%s451 + $0x2e4] sm:$0xf]
        %v3652 = vld [vmem:[%s451 + $0x2e8] sm:$0xf]
        %v3653 = vld [vmem:[%s451 + $0x2ec] sm:$0xf]
        %v3654 = vld [vmem:[%s451 + $0x2f0] sm:$0xf]
        %v3655 = vld [vmem:[%s451 + $0x2f4] sm:$0xf]
        %v3656 = vld [vmem:[%s451 + $0x2f8] sm:$0xf]
        %v3657 = vld [vmem:[%s451 + $0x2fc] sm:$0xf]
        %v3690 = vunpack.c.l.b16 %v3626
        %v3691 = vunpack.c.l.b16 %v3627
        %v3692 = vunpack.c.l.b16 %v3628
        %v3693 = vunpack.c.l.b16 %v3629
        %v3694 = vunpack.c.l.b16 %v3630
        %v3695 = vunpack.c.l.b16 %v3631
        %v3696 = vunpack.c.l.b16 %v3632
        %v3697 = vunpack.c.l.b16 %v3633
        %v3698 = vunpack.c.l.b16 %v3634
        %v3699 = vunpack.c.l.b16 %v3635
        %v3700 = vunpack.c.l.b16 %v3636
        %v3701 = vunpack.c.l.b16 %v3637
        %v3702 = vunpack.c.l.b16 %v3638
        %v3703 = vunpack.c.l.b16 %v3639
        %v3704 = vunpack.c.l.b16 %v3640
        %v3705 = vunpack.c.l.b16 %v3641
        %v3706 = vunpack.c.l.b16 %v3642
        %v3707 = vunpack.c.l.b16 %v3643
        %v3708 = vunpack.c.l.b16 %v3644
        %v3709 = vunpack.c.l.b16 %v3645
        %v3710 = vunpack.c.l.b16 %v3646
        %v3711 = vunpack.c.l.b16 %v3647
        %v3712 = vunpack.c.l.b16 %v3648
        %v3713 = vunpack.c.l.b16 %v3649
        %v3714 = vunpack.c.l.b16 %v3650
        %v3715 = vunpack.c.l.b16 %v3651
        %v3716 = vunpack.c.l.b16 %v3652
        %v3717 = vunpack.c.l.b16 %v3653
        %v3718 = vunpack.c.l.b16 %v3654
        %v3719 = vunpack.c.l.b16 %v3655
        %v3720 = vunpack.c.l.b16 %v3656
        %v3721 = vunpack.c.l.b16 %v3657
        %v3722 = vpack.c.b16 %v3691, %v3690
        %v3723 = vpack.c.b16 %v3693, %v3692
        %v3724 = vpack.c.b16 %v3695, %v3694
        %v3725 = vpack.c.b16 %v3697, %v3696
        %v3726 = vpack.c.b16 %v3699, %v3698
        %v3727 = vpack.c.b16 %v3701, %v3700
        %v3728 = vpack.c.b16 %v3703, %v3702
        %v3729 = vpack.c.b16 %v3705, %v3704
        %v3730 = vpack.c.b16 %v3707, %v3706
        %v3731 = vpack.c.b16 %v3709, %v3708
        %v3732 = vpack.c.b16 %v3711, %v3710
        %v3733 = vpack.c.b16 %v3713, %v3712
        %v3734 = vpack.c.b16 %v3715, %v3714
        %v3735 = vpack.c.b16 %v3717, %v3716
        %v3736 = vpack.c.b16 %v3719, %v3718
        %v3737 = vpack.c.b16 %v3721, %v3720
        %v3739 = vsel %vm828, %v3722, 0
        %v3742 = vsel %vm828, %v3723, 0
        %v3745 = vsel %vm828, %v3724, 0
        %v3748 = vsel %vm828, %v3725, 0
        %v3751 = vsel %vm828, %v3726, 0
        %v3754 = vsel %vm828, %v3727, 0
        %v3757 = vsel %vm828, %v3728, 0
        %v3760 = vsel %vm828, %v3729, 0
        %v3763 = vsel %vm828, %v3730, 0
        %v3766 = vsel %vm828, %v3731, 0
        %v3769 = vsel %vm828, %v3732, 0
        %v3772 = vsel %vm828, %v3733, 0
        %v3775 = vsel %vm828, %v3734, 0
        %v3778 = vsel %vm828, %v3735, 0
        %v3781 = vsel %vm828, %v3736, 0
        %v3784 = vsel %vm828, %v3737, 0
        %3786 = vmatprep.subr.bf16.mxu0 0
        %3787 = vmatpush1.bf16.msra.mxu0 %v879
        %3788 = vmatprep.subr.bf16.mxu0 0
        %3789 = vmatpush1.bf16.msra.mxu0 0
        %3790 = vmatprep.subr.bf16.mxu0 0
        %3791 = vmatpush1.bf16.msra.mxu0 0
        %3792 = vmatprep.subr.bf16.mxu0 0
        %3793 = vmatpush1.bf16.msra.mxu0 0
        %3794 = vmatprep.subr.bf16.mxu0 0
        %3795 = vmatpush1.bf16.msra.mxu0 0
        %3796 = vmatprep.subr.bf16.mxu0 0
        %3797 = vmatpush1.bf16.msra.mxu0 0
        %3798 = vmatprep.subr.bf16.mxu0 0
        %3799 = vmatpush1.bf16.msra.mxu0 0
        %3800 = vmatprep.subr.bf16.mxu0 0
        %3801 = vmatpush1.bf16.msra.mxu0 0
        %3802 = vmatprep.subr.bf16.mxu0 0
        %3803 = vmatpush1.bf16.msra.mxu0 0
        %3804 = vmatprep.subr.bf16.mxu0 0
        %3805 = vmatpush1.bf16.msra.mxu0 0
        %3806 = vmatprep.subr.bf16.mxu0 0
        %3807 = vmatpush1.bf16.msra.mxu0 0
        %3808 = vmatprep.subr.bf16.mxu0 0
        %3809 = vmatpush1.bf16.msra.mxu0 0
        %3810 = vmatprep.subr.bf16.mxu0 0
        %3811 = vmatpush1.bf16.msra.mxu0 0
        %3812 = vmatprep.subr.bf16.mxu0 0
        %3813 = vmatpush1.bf16.msra.mxu0 0
        %3814 = vmatprep.subr.bf16.mxu0 0
        %3815 = vmatpush1.bf16.msra.mxu0 0
        %3816 = vmatprep.subr.bf16.mxu0 0
        %3817 = vmatpush1.bf16.msra.mxu0 0
        %3818 = vmatprep.mubr.bf16.mxu0 0
        %3819 = vmatmul.mubr.bf16.gmra.mrb[0].mxu0 %v3739
        %v3820 = vpop.f32.mrb[0].mxu0
        %v3821 = vadd.f32 %v591, %v3820
        %v3822 = vpop.f32.mrb[0].mxu0
        %v3823 = vpop.f32.mrb[0].mxu0
        %v3824 = vadd.f32 %v596, %v3823
        %v3825 = vpop.f32.mrb[0].mxu0
        %3826 = vmatprep.mubr.bf16.mxu0 0
        %3827 = vmatmul.mubr.bf16.gmra.mrb[0].mxu0 %v3742
        %v3828 = vpop.f32.mrb[0].mxu0
        %v3829 = vadd.f32 %v601, %v3828
        %v3830 = vpop.f32.mrb[0].mxu0
        %v3831 = vpop.f32.mrb[0].mxu0
        %v3832 = vadd.f32 %v606, %v3831
        %v3833 = vpop.f32.mrb[0].mxu0
        %3834 = vmatprep.mubr.bf16.mxu0 0
        %3835 = vmatmul.mubr.bf16.gmra.mrb[0].mxu0 %v3745
        %v3836 = vpop.f32.mrb[0].mxu0
        %v3837 = vadd.f32 %v611, %v3836
        %v3838 = vpop.f32.mrb[0].mxu0
        %v3839 = vpop.f32.mrb[0].mxu0
        %v3840 = vadd.f32 %v616, %v3839
        %v3841 = vpop.f32.mrb[0].mxu0
        %3842 = vmatprep.mubr.bf16.mxu0 0
        %3843 = vmatmul.mubr.bf16.gmra.mrb[0].mxu0 %v3748
        %v3844 = vpop.f32.mrb[0].mxu0
        %v3845 = vadd.f32 %v621, %v3844
        %v3846 = vpop.f32.mrb[0].mxu0
        %v3847 = vpop.f32.mrb[0].mxu0
        %v3848 = vadd.f32 %v626, %v3847
        %v3849 = vpop.f32.mrb[0].mxu0
        %3850 = vmatprep.mubr.bf16.mxu0 0
        %3851 = vmatmul.mubr.bf16.gmra.mrb[0].mxu0 %v3751
        %v3852 = vpop.f32.mrb[0].mxu0
        %v3853 = vadd.f32 %v631, %v3852
        %v3854 = vpop.f32.mrb[0].mxu0
        %v3855 = vpop.f32.mrb[0].mxu0
        %v3856 = vadd.f32 %v636, %v3855
        %v3857 = vpop.f32.mrb[0].mxu0
        %3858 = vmatprep.mubr.bf16.mxu0 0
        %3859 = vmatmul.mubr.bf16.gmra.mrb[0].mxu0 %v3754
        %v3860 = vpop.f32.mrb[0].mxu0
        %v3861 = vadd.f32 %v641, %v3860
        %v3862 = vpop.f32.mrb[0].mxu0
        %v3863 = vpop.f32.mrb[0].mxu0
        %v3864 = vadd.f32 %v646, %v3863
        %v3865 = vpop.f32.mrb[0].mxu0
        %3866 = vmatprep.mubr.bf16.mxu0 0
        %3867 = vmatmul.mubr.bf16.gmra.mrb[0].mxu0 %v3757
        %v3868 = vpop.f32.mrb[0].mxu0
        %v3869 = vadd.f32 %v651, %v3868
        %v3870 = vpop.f32.mrb[0].mxu0
        %v3871 = vpop.f32.mrb[0].mxu0
        %v3872 = vadd.f32 %v656, %v3871
        %v3873 = vpop.f32.mrb[0].mxu0
        %3874 = vmatprep.mubr.bf16.mxu0 0
        %3875 = vmatmul.mubr.bf16.gmra.mrb[0].mxu0 %v3760
        %v3876 = vpop.f32.mrb[0].mxu0
        %v3877 = vadd.f32 %v661, %v3876
        %v3878 = vpop.f32.mrb[0].mxu0
        %v3879 = vpop.f32.mrb[0].mxu0
        %v3880 = vadd.f32 %v666, %v3879
        %v3881 = vpop.f32.mrb[0].mxu0
        %3882 = vmatprep.mubr.bf16.mxu0 0
        %3883 = vmatmul.mubr.bf16.gmra.mrb[0].mxu0 %v3763
        %v3884 = vpop.f32.mrb[0].mxu0
        %v3885 = vadd.f32 %v671, %v3884
        %v3886 = vpop.f32.mrb[0].mxu0
        %v3887 = vpop.f32.mrb[0].mxu0
        %v3888 = vadd.f32 %v676, %v3887
        %v3889 = vpop.f32.mrb[0].mxu0
        %3890 = vmatprep.mubr.bf16.mxu0 0
        %3891 = vmatmul.mubr.bf16.gmra.mrb[0].mxu0 %v3766
        %v3892 = vpop.f32.mrb[0].mxu0
        %v3893 = vadd.f32 %v681, %v3892
        %v3894 = vpop.f32.mrb[0].mxu0
        %v3895 = vpop.f32.mrb[0].mxu0
        %v3896 = vadd.f32 %v686, %v3895
        %v3897 = vpop.f32.mrb[0].mxu0
        %3898 = vmatprep.mubr.bf16.mxu0 0
        %3899 = vmatmul.mubr.bf16.gmra.mrb[0].mxu0 %v3769
        %v3900 = vpop.f32.mrb[0].mxu0
        %v3901 = vadd.f32 %v691, %v3900
        %v3902 = vpop.f32.mrb[0].mxu0
        %v3903 = vpop.f32.mrb[0].mxu0
        %v3904 = vadd.f32 %v696, %v3903
        %v3905 = vpop.f32.mrb[0].mxu0
        %3906 = vmatprep.mubr.bf16.mxu0 0
        %3907 = vmatmul.mubr.bf16.gmra.mrb[0].mxu0 %v3772
        %v3908 = vpop.f32.mrb[0].mxu0
        %v3909 = vadd.f32 %v701, %v3908
        %v3910 = vpop.f32.mrb[0].mxu0
        %v3911 = vpop.f32.mrb[0].mxu0
        %v3912 = vadd.f32 %v706, %v3911
        %v3913 = vpop.f32.mrb[0].mxu0
        %3914 = vmatprep.mubr.bf16.mxu0 0
        %3915 = vmatmul.mubr.bf16.gmra.mrb[0].mxu0 %v3775
        %v3916 = vpop.f32.mrb[0].mxu0
        %v3917 = vadd.f32 %v711, %v3916
        %v3918 = vpop.f32.mrb[0].mxu0
        %v3919 = vpop.f32.mrb[0].mxu0
        %v3920 = vadd.f32 %v716, %v3919
        %v3921 = vpop.f32.mrb[0].mxu0
        %3922 = vmatprep.mubr.bf16.mxu0 0
        %3923 = vmatmul.mubr.bf16.gmra.mrb[0].mxu0 %v3778
        %v3924 = vpop.f32.mrb[0].mxu0
        %v3925 = vadd.f32 %v721, %v3924
        %v3926 = vpop.f32.mrb[0].mxu0
        %v3927 = vpop.f32.mrb[0].mxu0
        %v3928 = vadd.f32 %v726, %v3927
        %v3929 = vpop.f32.mrb[0].mxu0
        %3930 = vmatprep.mubr.bf16.mxu0 0
        %3931 = vmatmul.mubr.bf16.gmra.mrb[0].mxu0 %v3781
        %v3932 = vpop.f32.mrb[0].mxu0
        %v3933 = vadd.f32 %v731, %v3932
        %v3934 = vpop.f32.mrb[0].mxu0
        %v3935 = vpop.f32.mrb[0].mxu0
        %v3936 = vadd.f32 %v736, %v3935
        %v3937 = vpop.f32.mrb[0].mxu0
        %3938 = vmatprep.mubr.bf16.mxu0 0
        %3939 = vmatmul.mubr.bf16.gmra.mrb[0].mxu0 %v3784
        %v3940 = vpop.f32.mrb[0].mxu0
        %v3941 = vadd.f32 %v741, %v3940
        %v3942 = vpop.f32.mrb[0].mxu0
        %v3943 = vpop.f32.mrb[0].mxu0
        %v3944 = vadd.f32 %v746, %v3943
        %v3945 = vpop.f32.mrb[0].mxu0
        %3946 = vdwg.mxu0
        %v3947 = vmax.f32 %v3821, 0.0
        %v3948 = vmax.f32 %v3824, 0.0
        %v3949 = vmax.f32 %v3829, 0.0
        %v3950 = vmax.f32 %v3832, 0.0
        %v3951 = vmax.f32 %v3837, 0.0
        %v3952 = vmax.f32 %v3840, 0.0
        %v3953 = vmax.f32 %v3845, 0.0
        %v3954 = vmax.f32 %v3848, 0.0
        %v3955 = vmax.f32 %v3853, 0.0
        %v3956 = vmax.f32 %v3856, 0.0
        %v3957 = vmax.f32 %v3861, 0.0
        %v3958 = vmax.f32 %v3864, 0.0
        %v3959 = vmax.f32 %v3869, 0.0
        %v3960 = vmax.f32 %v3872, 0.0
        %v3961 = vmax.f32 %v3877, 0.0
        %v3962 = vmax.f32 %v3880, 0.0
        %v3963 = vmax.f32 %v3885, 0.0
        %v3964 = vmax.f32 %v3888, 0.0
        %v3965 = vmax.f32 %v3893, 0.0
        %v3966 = vmax.f32 %v3896, 0.0
        %v3967 = vmax.f32 %v3901, 0.0
        %v3968 = vmax.f32 %v3904, 0.0
        %v3969 = vmax.f32 %v3909, 0.0
        %v3970 = vmax.f32 %v3912, 0.0
        %v3971 = vmax.f32 %v3917, 0.0
        %v3972 = vmax.f32 %v3920, 0.0
        %v3973 = vmax.f32 %v3925, 0.0
        %v3974 = vmax.f32 %v3928, 0.0
        %v3975 = vmax.f32 %v3933, 0.0
        %v3976 = vmax.f32 %v3936, 0.0
        %v3977 = vmax.f32 %v3941, 0.0
        %v3978 = vmax.f32 %v3944, 0.0
        %v3979 = vpack.c.bf16 %v3948, %v3947
        %v3980 = vpack.c.bf16 %v3950, %v3949
        %v3981 = vpack.c.bf16 %v3952, %v3951
        %v3982 = vpack.c.bf16 %v3954, %v3953
        %v3983 = vpack.c.bf16 %v3956, %v3955
        %v3984 = vpack.c.bf16 %v3958, %v3957
        %v3985 = vpack.c.bf16 %v3960, %v3959
        %v3986 = vpack.c.bf16 %v3962, %v3961
        %v3987 = vpack.c.bf16 %v3964, %v3963
        %v3988 = vpack.c.bf16 %v3966, %v3965
        %v3989 = vpack.c.bf16 %v3968, %v3967
        %v3990 = vpack.c.bf16 %v3970, %v3969
        %v3991 = vpack.c.bf16 %v3972, %v3971
        %v3992 = vpack.c.bf16 %v3974, %v3973
        %v3993 = vpack.c.bf16 %v3976, %v3975
        %v3994 = vpack.c.bf16 %v3978, %v3977
        %3995 = vmatprep.subr.bf16.mxu0 0
        %3996 = vmatpush1.bf16.msra.mxu0 %v3979
        %3997 = vmatprep.subr.bf16.mxu0 0
        %3998 = vmatpush1.bf16.msra.mxu0 %v3980
        %3999 = vmatprep.subr.bf16.mxu0 0
        %4000 = vmatpush1.bf16.msra.mxu0 %v3981
        %4001 = vmatprep.subr.bf16.mxu0 0
        %4002 = vmatpush1.bf16.msra.mxu0 %v3982
        %4003 = vmatprep.subr.bf16.mxu0 0
        %4004 = vmatpush1.bf16.msra.mxu0 %v3983
        %4005 = vmatprep.subr.bf16.mxu0 0
        %4006 = vmatpush1.bf16.msra.mxu0 %v3984
        %4007 = vmatprep.subr.bf16.mxu0 0
        %4008 = vmatpush1.bf16.msra.mxu0 %v3985
        %4009 = vmatprep.subr.bf16.mxu0 0
        %4010 = vmatpush1.bf16.msra.mxu0 %v3986
        %4011 = vmatprep.subr.bf16.mxu0 0
        %4012 = vmatpush1.bf16.msra.mxu0 %v3987
        %4013 = vmatprep.subr.bf16.mxu0 0
        %4014 = vmatpush1.bf16.msra.mxu0 %v3988
        %4015 = vmatprep.subr.bf16.mxu0 0
        %4016 = vmatpush1.bf16.msra.mxu0 %v3989
        %4017 = vmatprep.subr.bf16.mxu0 0
        %4018 = vmatpush1.bf16.msra.mxu0 %v3990
        %4019 = vmatprep.subr.bf16.mxu0 0
        %4020 = vmatpush1.bf16.msra.mxu0 %v3991
        %4021 = vmatprep.subr.bf16.mxu0 0
        %4022 = vmatpush1.bf16.msra.mxu0 %v3992
        %4023 = vmatprep.subr.bf16.mxu0 0
        %4024 = vmatpush1.bf16.msra.mxu0 %v3993
        %4025 = vmatprep.subr.bf16.mxu0 0
        %4026 = vmatpush1.bf16.msra.mxu0 %v3994
        %4027 = vmatprep.mubr.bf16.mxu0 %v1219
        %4028 = vmatmul.mubr.bf16.gmra.mrb[0].mxu0 %v1218
        %v4029 = vpop.f32.mrb[0].mxu0
        %v4030 = vadd.f32 %v1093, %v4029
        %v4031 = vpop.f32.mrb[0].mxu0
        %v4032 = vpop.f32.mrb[0].mxu0
        %v4033 = vadd.f32 %v1098, %v4032
        %v4034 = vpop.f32.mrb[0].mxu0
        %4035 = vmatprep.mubr.bf16.mxu0 %v1221
        %4036 = vmatmul.mubr.bf16.gmra.mrb[0].mxu0 %v1220
        %v4037 = vpop.f32.mrb[0].mxu0
        %v4038 = vadd.f32 %v1103, %v4037
        %v4039 = vpop.f32.mrb[0].mxu0
        %v4040 = vpop.f32.mrb[0].mxu0
        %v4041 = vadd.f32 %v1108, %v4040
        %v4042 = vpop.f32.mrb[0].mxu0
        %4043 = vmatprep.mubr.bf16.mxu0 %v1223
        %4044 = vmatmul.mubr.bf16.gmra.mrb[0].mxu0 %v1222
        %v4045 = vpop.f32.mrb[0].mxu0
        %v4046 = vadd.f32 %v1113, %v4045
        %v4047 = vpop.f32.mrb[0].mxu0
        %v4048 = vpop.f32.mrb[0].mxu0
        %v4049 = vadd.f32 %v1118, %v4048
        %v4050 = vpop.f32.mrb[0].mxu0
        %4051 = vmatprep.mubr.bf16.mxu0 %v1225
        %4052 = vmatmul.mubr.bf16.gmra.mrb[0].mxu0 %v1224
        %v4053 = vpop.f32.mrb[0].mxu0
        %v4054 = vadd.f32 %v1123, %v4053
        %v4055 = vpop.f32.mrb[0].mxu0
        %v4056 = vpop.f32.mrb[0].mxu0
        %v4057 = vadd.f32 %v1128, %v4056
        %v4058 = vpop.f32.mrb[0].mxu0
        %4059 = vmatprep.mubr.bf16.mxu0 %v1227
        %4060 = vmatmul.mubr.bf16.gmra.mrb[0].mxu0 %v1226
        %v4061 = vpop.f32.mrb[0].mxu0
        %v4062 = vadd.f32 %v1133, %v4061
        %v4063 = vpop.f32.mrb[0].mxu0
        %v4064 = vpop.f32.mrb[0].mxu0
        %v4065 = vadd.f32 %v1138, %v4064
        %v4066 = vpop.f32.mrb[0].mxu0
        %4067 = vmatprep.mubr.bf16.mxu0 %v1229
        %4068 = vmatmul.mubr.bf16.gmra.mrb[0].mxu0 %v1228
        %v4069 = vpop.f32.mrb[0].mxu0
        %v4070 = vadd.f32 %v1143, %v4069
        %v4071 = vpop.f32.mrb[0].mxu0
        %v4072 = vpop.f32.mrb[0].mxu0
        %v4073 = vadd.f32 %v1148, %v4072
        %v4074 = vpop.f32.mrb[0].mxu0
        %4075 = vmatprep.mubr.bf16.mxu0 %v1231
        %4076 = vmatmul.mubr.bf16.gmra.mrb[0].mxu0 %v1230
        %v4077 = vpop.f32.mrb[0].mxu0
        %v4078 = vadd.f32 %v1153, %v4077
        %v4079 = vpop.f32.mrb[0].mxu0
        %v4080 = vpop.f32.mrb[0].mxu0
        %v4081 = vadd.f32 %v1158, %v4080
        %v4082 = vpop.f32.mrb[0].mxu0
        %4083 = vmatprep.mubr.bf16.mxu0 %v1233
        %4084 = vmatmul.mubr.bf16.gmra.mrb[0].mxu0 %v1232
        %v4085 = vpop.f32.mrb[0].mxu0
        %v4086 = vadd.f32 %v1163, %v4085
        %v4087 = vpop.f32.mrb[0].mxu0
        %v4088 = vpop.f32.mrb[0].mxu0
        %v4089 = vadd.f32 %v1168, %v4088
        %v4090 = vpop.f32.mrb[0].mxu0
        %4091 = vdwg.mxu0
        %v4092 = vmax.f32 %v4030, 0.0
        %v4093 = vmax.f32 %v4033, 0.0
        %v4094 = vmax.f32 %v4038, 0.0
        %v4095 = vmax.f32 %v4041, 0.0
        %v4096 = vmax.f32 %v4046, 0.0
        %v4097 = vmax.f32 %v4049, 0.0
        %v4098 = vmax.f32 %v4054, 0.0
        %v4099 = vmax.f32 %v4057, 0.0
        %v4100 = vmax.f32 %v4062, 0.0
        %v4101 = vmax.f32 %v4065, 0.0
        %v4102 = vmax.f32 %v4070, 0.0
        %v4103 = vmax.f32 %v4073, 0.0
        %v4104 = vmax.f32 %v4078, 0.0
        %v4105 = vmax.f32 %v4081, 0.0
        %v4106 = vmax.f32 %v4086, 0.0
        %v4107 = vmax.f32 %v4089, 0.0
        %v4108 = vmul.f32 %v4092, %v1366
        %v4109 = vmul.f32 %v4093, %v1371
        %v4110 = vmul.f32 %v4094, %v1376
        %v4111 = vmul.f32 %v4095, %v1381
        %v4112 = vmul.f32 %v4096, %v1386
        %v4113 = vmul.f32 %v4097, %v1391
        %v4114 = vmul.f32 %v4098, %v1396
        %v4115 = vmul.f32 %v4099, %v1401
        %v4116 = vmul.f32 %v4100, %v1406
        %v4117 = vmul.f32 %v4101, %v1411
        %v4118 = vmul.f32 %v4102, %v1416
        %v4119 = vmul.f32 %v4103, %v1421
        %v4120 = vmul.f32 %v4104, %v1426
        %v4121 = vmul.f32 %v4105, %v1431
        %v4122 = vmul.f32 %v4106, %v1436
        %v4123 = vmul.f32 %v4107, %v1441
        %v4124 = vadd.f32 %v4108, %v4109
        %v4125 = vadd.f32 %v4124, %v4110
        %v4126 = vadd.f32 %v4125, %v4111
        %v4127 = vadd.f32 %v4126, %v4112
        %v4128 = vadd.f32 %v4127, %v4113
        %v4129 = vadd.f32 %v4128, %v4114
        %v4130 = vadd.f32 %v4129, %v4115
        %v4131 = vadd.f32 %v4130, %v4116
        %v4132 = vadd.f32 %v4131, %v4117
        %v4133 = vadd.f32 %v4132, %v4118
        %v4134 = vadd.f32 %v4133, %v4119
        %v4135 = vadd.f32 %v4134, %v4120
        %v4136 = vadd.f32 %v4135, %v4121
        %v4137 = vadd.f32 %v4136, %v4122
        %v4138 = vadd.f32 %v4137, %v4123
        %v4139 = vld [vmem:[%s465 + $0x28] sm:$0xff]
        %v4140 = vadd.f32 %v4138, %v1482
        %4142 = vset.pattern.permute.xlu0 0
        %4143 = vperm.xlu0 %4142, %v4139
        %v4144 = vpop.permute.xlu0 %4143
        %v4146 = vmul.f32 %v4144, %v1494
        %v4147 = vmul.f32 %v4140, %v4146
        %4148 = vst [vmem:[%s442 + $0x28] sm:$0xff] %v4147
        %v4149 = vxor.u32 %v4147, 2147483648
        %v4150 = vmul.f32 %v4149, 1.442695
        %v4151 = vpow.pop %v4150
        %v4152 = vadd.f32 %v4151, 1.0
        %v4153 = vrcp.pop %v4152
        %v4154 = vmul.f32 1.0, %v4153
        %4155 = vst [vmem:[%s435 + $0x28] sm:$0xff] %v4154
        %v4156 = vld [vmem:[%s451 + $0x300] sm:$0xf]
        %v4157 = vld [vmem:[%s451 + $0x304] sm:$0xf]
        %v4158 = vld [vmem:[%s451 + $0x308] sm:$0xf]
        %v4159 = vld [vmem:[%s451 + $0x30c] sm:$0xf]
        %v4160 = vld [vmem:[%s451 + $0x310] sm:$0xf]
        %v4161 = vld [vmem:[%s451 + $0x314] sm:$0xf]
        %v4162 = vld [vmem:[%s451 + $0x318] sm:$0xf]
        %v4163 = vld [vmem:[%s451 + $0x31c] sm:$0xf]
        %v4164 = vld [vmem:[%s451 + $0x320] sm:$0xf]
        %v4165 = vld [vmem:[%s451 + $0x324] sm:$0xf]
        %v4166 = vld [vmem:[%s451 + $0x328] sm:$0xf]
        %v4167 = vld [vmem:[%s451 + $0x32c] sm:$0xf]
        %v4168 = vld [vmem:[%s451 + $0x330] sm:$0xf]
        %v4169 = vld [vmem:[%s451 + $0x334] sm:$0xf]
        %v4170 = vld [vmem:[%s451 + $0x338] sm:$0xf]
        %v4171 = vld [vmem:[%s451 + $0x33c] sm:$0xf]
        %v4172 = vld [vmem:[%s451 + $0x340] sm:$0xf]
        %v4173 = vld [vmem:[%s451 + $0x344] sm:$0xf]
        %v4174 = vld [vmem:[%s451 + $0x348] sm:$0xf]
        %v4175 = vld [vmem:[%s451 + $0x34c] sm:$0xf]
        %v4176 = vld [vmem:[%s451 + $0x350] sm:$0xf]
        %v4177 = vld [vmem:[%s451 + $0x354] sm:$0xf]
        %v4178 = vld [vmem:[%s451 + $0x358] sm:$0xf]
        %v4179 = vld [vmem:[%s451 + $0x35c] sm:$0xf]
        %v4180 = vld [vmem:[%s451 + $0x360] sm:$0xf]
        %v4181 = vld [vmem:[%s451 + $0x364] sm:$0xf]
        %v4182 = vld [vmem:[%s451 + $0x368] sm:$0xf]
        %v4183 = vld [vmem:[%s451 + $0x36c] sm:$0xf]
        %v4184 = vld [vmem:[%s451 + $0x370] sm:$0xf]
        %v4185 = vld [vmem:[%s451 + $0x374] sm:$0xf]
        %v4186 = vld [vmem:[%s451 + $0x378] sm:$0xf]
        %v4187 = vld [vmem:[%s451 + $0x37c] sm:$0xf]
        %v4220 = vunpack.c.l.b16 %v4156
        %v4221 = vunpack.c.l.b16 %v4157
        %v4222 = vunpack.c.l.b16 %v4158
        %v4223 = vunpack.c.l.b16 %v4159
        %v4224 = vunpack.c.l.b16 %v4160
        %v4225 = vunpack.c.l.b16 %v4161
        %v4226 = vunpack.c.l.b16 %v4162
        %v4227 = vunpack.c.l.b16 %v4163
        %v4228 = vunpack.c.l.b16 %v4164
        %v4229 = vunpack.c.l.b16 %v4165
        %v4230 = vunpack.c.l.b16 %v4166
        %v4231 = vunpack.c.l.b16 %v4167
        %v4232 = vunpack.c.l.b16 %v4168
        %v4233 = vunpack.c.l.b16 %v4169
        %v4234 = vunpack.c.l.b16 %v4170
        %v4235 = vunpack.c.l.b16 %v4171
        %v4236 = vunpack.c.l.b16 %v4172
        %v4237 = vunpack.c.l.b16 %v4173
        %v4238 = vunpack.c.l.b16 %v4174
        %v4239 = vunpack.c.l.b16 %v4175
        %v4240 = vunpack.c.l.b16 %v4176
        %v4241 = vunpack.c.l.b16 %v4177
        %v4242 = vunpack.c.l.b16 %v4178
        %v4243 = vunpack.c.l.b16 %v4179
        %v4244 = vunpack.c.l.b16 %v4180
        %v4245 = vunpack.c.l.b16 %v4181
        %v4246 = vunpack.c.l.b16 %v4182
        %v4247 = vunpack.c.l.b16 %v4183
        %v4248 = vunpack.c.l.b16 %v4184
        %v4249 = vunpack.c.l.b16 %v4185
        %v4250 = vunpack.c.l.b16 %v4186
        %v4251 = vunpack.c.l.b16 %v4187
        %v4252 = vpack.c.b16 %v4221, %v4220
        %v4253 = vpack.c.b16 %v4223, %v4222
        %v4254 = vpack.c.b16 %v4225, %v4224
        %v4255 = vpack.c.b16 %v4227, %v4226
        %v4256 = vpack.c.b16 %v4229, %v4228
        %v4257 = vpack.c.b16 %v4231, %v4230
        %v4258 = vpack.c.b16 %v4233, %v4232
        %v4259 = vpack.c.b16 %v4235, %v4234
        %v4260 = vpack.c.b16 %v4237, %v4236
        %v4261 = vpack.c.b16 %v4239, %v4238
        %v4262 = vpack.c.b16 %v4241, %v4240
        %v4263 = vpack.c.b16 %v4243, %v4242
        %v4264 = vpack.c.b16 %v4245, %v4244
        %v4265 = vpack.c.b16 %v4247, %v4246
        %v4266 = vpack.c.b16 %v4249, %v4248
        %v4267 = vpack.c.b16 %v4251, %v4250
        %v4269 = vsel %vm828, %v4252, 0
        %v4272 = vsel %vm828, %v4253, 0
        %v4275 = vsel %vm828, %v4254, 0
        %v4278 = vsel %vm828, %v4255, 0
        %v4281 = vsel %vm828, %v4256, 0
        %v4284 = vsel %vm828, %v4257, 0
        %v4287 = vsel %vm828, %v4258, 0
        %v4290 = vsel %vm828, %v4259, 0
        %v4293 = vsel %vm828, %v4260, 0
        %v4296 = vsel %vm828, %v4261, 0
        %v4299 = vsel %vm828, %v4262, 0
        %v4302 = vsel %vm828, %v4263, 0
        %v4305 = vsel %vm828, %v4264, 0
        %v4308 = vsel %vm828, %v4265, 0
        %v4311 = vsel %vm828, %v4266, 0
        %v4314 = vsel %vm828, %v4267, 0
        %4316 = vmatprep.subr.bf16.mxu0 0
        %4317 = vmatpush1.bf16.msra.mxu0 %v879
        %4318 = vmatprep.subr.bf16.mxu0 0
        %4319 = vmatpush1.bf16.msra.mxu0 0
        %4320 = vmatprep.subr.bf16.mxu0 0
        %4321 = vmatpush1.bf16.msra.mxu0 0
        %4322 = vmatprep.subr.bf16.mxu0 0
        %4323 = vmatpush1.bf16.msra.mxu0 0
        %4324 = vmatprep.subr.bf16.mxu0 0
        %4325 = vmatpush1.bf16.msra.mxu0 0
        %4326 = vmatprep.subr.bf16.mxu0 0
        %4327 = vmatpush1.bf16.msra.mxu0 0
        %4328 = vmatprep.subr.bf16.mxu0 0
        %4329 = vmatpush1.bf16.msra.mxu0 0
        %4330 = vmatprep.subr.bf16.mxu0 0
        %4331 = vmatpush1.bf16.msra.mxu0 0
        %4332 = vmatprep.subr.bf16.mxu0 0
        %4333 = vmatpush1.bf16.msra.mxu0 0
        %4334 = vmatprep.subr.bf16.mxu0 0
        %4335 = vmatpush1.bf16.msra.mxu0 0
        %4336 = vmatprep.subr.bf16.mxu0 0
        %4337 = vmatpush1.bf16.msra.mxu0 0
        %4338 = vmatprep.subr.bf16.mxu0 0
        %4339 = vmatpush1.bf16.msra.mxu0 0
        %4340 = vmatprep.subr.bf16.mxu0 0
        %4341 = vmatpush1.bf16.msra.mxu0 0
        %4342 = vmatprep.subr.bf16.mxu0 0
        %4343 = vmatpush1.bf16.msra.mxu0 0
        %4344 = vmatprep.subr.bf16.mxu0 0
        %4345 = vmatpush1.bf16.msra.mxu0 0
        %4346 = vmatprep.subr.bf16.mxu0 0
        %4347 = vmatpush1.bf16.msra.mxu0 0
        %4348 = vmatprep.mubr.bf16.mxu0 0
        %4349 = vmatmul.mubr.bf16.gmra.mrb[0].mxu0 %v4269
        %v4350 = vpop.f32.mrb[0].mxu0
        %v4351 = vadd.f32 %v591, %v4350
        %v4352 = vpop.f32.mrb[0].mxu0
        %v4353 = vpop.f32.mrb[0].mxu0
        %v4354 = vadd.f32 %v596, %v4353
        %v4355 = vpop.f32.mrb[0].mxu0
        %4356 = vmatprep.mubr.bf16.mxu0 0
        %4357 = vmatmul.mubr.bf16.gmra.mrb[0].mxu0 %v4272
        %v4358 = vpop.f32.mrb[0].mxu0
        %v4359 = vadd.f32 %v601, %v4358
        %v4360 = vpop.f32.mrb[0].mxu0
        %v4361 = vpop.f32.mrb[0].mxu0
        %v4362 = vadd.f32 %v606, %v4361
        %v4363 = vpop.f32.mrb[0].mxu0
        %4364 = vmatprep.mubr.bf16.mxu0 0
        %4365 = vmatmul.mubr.bf16.gmra.mrb[0].mxu0 %v4275
        %v4366 = vpop.f32.mrb[0].mxu0
        %v4367 = vadd.f32 %v611, %v4366
        %v4368 = vpop.f32.mrb[0].mxu0
        %v4369 = vpop.f32.mrb[0].mxu0
        %v4370 = vadd.f32 %v616, %v4369
        %v4371 = vpop.f32.mrb[0].mxu0
        %4372 = vmatprep.mubr.bf16.mxu0 0
        %4373 = vmatmul.mubr.bf16.gmra.mrb[0].mxu0 %v4278
        %v4374 = vpop.f32.mrb[0].mxu0
        %v4375 = vadd.f32 %v621, %v4374
        %v4376 = vpop.f32.mrb[0].mxu0
        %v4377 = vpop.f32.mrb[0].mxu0
        %v4378 = vadd.f32 %v626, %v4377
        %v4379 = vpop.f32.mrb[0].mxu0
        %4380 = vmatprep.mubr.bf16.mxu0 0
        %4381 = vmatmul.mubr.bf16.gmra.mrb[0].mxu0 %v4281
        %v4382 = vpop.f32.mrb[0].mxu0
        %v4383 = vadd.f32 %v631, %v4382
        %v4384 = vpop.f32.mrb[0].mxu0
        %v4385 = vpop.f32.mrb[0].mxu0
        %v4386 = vadd.f32 %v636, %v4385
        %v4387 = vpop.f32.mrb[0].mxu0
        %4388 = vmatprep.mubr.bf16.mxu0 0
        %4389 = vmatmul.mubr.bf16.gmra.mrb[0].mxu0 %v4284
        %v4390 = vpop.f32.mrb[0].mxu0
        %v4391 = vadd.f32 %v641, %v4390
        %v4392 = vpop.f32.mrb[0].mxu0
        %v4393 = vpop.f32.mrb[0].mxu0
        %v4394 = vadd.f32 %v646, %v4393
        %v4395 = vpop.f32.mrb[0].mxu0
        %4396 = vmatprep.mubr.bf16.mxu0 0
        %4397 = vmatmul.mubr.bf16.gmra.mrb[0].mxu0 %v4287
        %v4398 = vpop.f32.mrb[0].mxu0
        %v4399 = vadd.f32 %v651, %v4398
        %v4400 = vpop.f32.mrb[0].mxu0
        %v4401 = vpop.f32.mrb[0].mxu0
        %v4402 = vadd.f32 %v656, %v4401
        %v4403 = vpop.f32.mrb[0].mxu0
        %4404 = vmatprep.mubr.bf16.mxu0 0
        %4405 = vmatmul.mubr.bf16.gmra.mrb[0].mxu0 %v4290
        %v4406 = vpop.f32.mrb[0].mxu0
        %v4407 = vadd.f32 %v661, %v4406
        %v4408 = vpop.f32.mrb[0].mxu0
        %v4409 = vpop.f32.mrb[0].mxu0
        %v4410 = vadd.f32 %v666, %v4409
        %v4411 = vpop.f32.mrb[0].mxu0
        %4412 = vmatprep.mubr.bf16.mxu0 0
        %4413 = vmatmul.mubr.bf16.gmra.mrb[0].mxu0 %v4293
        %v4414 = vpop.f32.mrb[0].mxu0
        %v4415 = vadd.f32 %v671, %v4414
        %v4416 = vpop.f32.mrb[0].mxu0
        %v4417 = vpop.f32.mrb[0].mxu0
        %v4418 = vadd.f32 %v676, %v4417
        %v4419 = vpop.f32.mrb[0].mxu0
        %4420 = vmatprep.mubr.bf16.mxu0 0
        %4421 = vmatmul.mubr.bf16.gmra.mrb[0].mxu0 %v4296
        %v4422 = vpop.f32.mrb[0].mxu0
        %v4423 = vadd.f32 %v681, %v4422
        %v4424 = vpop.f32.mrb[0].mxu0
        %v4425 = vpop.f32.mrb[0].mxu0
        %v4426 = vadd.f32 %v686, %v4425
        %v4427 = vpop.f32.mrb[0].mxu0
        %4428 = vmatprep.mubr.bf16.mxu0 0
        %4429 = vmatmul.mubr.bf16.gmra.mrb[0].mxu0 %v4299
        %v4430 = vpop.f32.mrb[0].mxu0
        %v4431 = vadd.f32 %v691, %v4430
        %v4432 = vpop.f32.mrb[0].mxu0
        %v4433 = vpop.f32.mrb[0].mxu0
        %v4434 = vadd.f32 %v696, %v4433
        %v4435 = vpop.f32.mrb[0].mxu0
        %4436 = vmatprep.mubr.bf16.mxu0 0
        %4437 = vmatmul.mubr.bf16.gmra.mrb[0].mxu0 %v4302
        %v4438 = vpop.f32.mrb[0].mxu0
        %v4439 = vadd.f32 %v701, %v4438
        %v4440 = vpop.f32.mrb[0].mxu0
        %v4441 = vpop.f32.mrb[0].mxu0
        %v4442 = vadd.f32 %v706, %v4441
        %v4443 = vpop.f32.mrb[0].mxu0
        %4444 = vmatprep.mubr.bf16.mxu0 0
        %4445 = vmatmul.mubr.bf16.gmra.mrb[0].mxu0 %v4305
        %v4446 = vpop.f32.mrb[0].mxu0
        %v4447 = vadd.f32 %v711, %v4446
        %v4448 = vpop.f32.mrb[0].mxu0
        %v4449 = vpop.f32.mrb[0].mxu0
        %v4450 = vadd.f32 %v716, %v4449
        %v4451 = vpop.f32.mrb[0].mxu0
        %4452 = vmatprep.mubr.bf16.mxu0 0
        %4453 = vmatmul.mubr.bf16.gmra.mrb[0].mxu0 %v4308
        %v4454 = vpop.f32.mrb[0].mxu0
        %v4455 = vadd.f32 %v721, %v4454
        %v4456 = vpop.f32.mrb[0].mxu0
        %v4457 = vpop.f32.mrb[0].mxu0
        %v4458 = vadd.f32 %v726, %v4457
        %v4459 = vpop.f32.mrb[0].mxu0
        %4460 = vmatprep.mubr.bf16.mxu0 0
        %4461 = vmatmul.mubr.bf16.gmra.mrb[0].mxu0 %v4311
        %v4462 = vpop.f32.mrb[0].mxu0
        %v4463 = vadd.f32 %v731, %v4462
        %v4464 = vpop.f32.mrb[0].mxu0
        %v4465 = vpop.f32.mrb[0].mxu0
        %v4466 = vadd.f32 %v736, %v4465
        %v4467 = vpop.f32.mrb[0].mxu0
        %4468 = vmatprep.mubr.bf16.mxu0 0
        %4469 = vmatmul.mubr.bf16.gmra.mrb[0].mxu0 %v4314
        %v4470 = vpop.f32.mrb[0].mxu0
        %v4471 = vadd.f32 %v741, %v4470
        %v4472 = vpop.f32.mrb[0].mxu0
        %v4473 = vpop.f32.mrb[0].mxu0
        %v4474 = vadd.f32 %v746, %v4473
        %v4475 = vpop.f32.mrb[0].mxu0
        %4476 = vdwg.mxu0
        %v4477 = vmax.f32 %v4351, 0.0
        %v4478 = vmax.f32 %v4354, 0.0
        %v4479 = vmax.f32 %v4359, 0.0
        %v4480 = vmax.f32 %v4362, 0.0
        %v4481 = vmax.f32 %v4367, 0.0
        %v4482 = vmax.f32 %v4370, 0.0
        %v4483 = vmax.f32 %v4375, 0.0
        %v4484 = vmax.f32 %v4378, 0.0
        %v4485 = vmax.f32 %v4383, 0.0
        %v4486 = vmax.f32 %v4386, 0.0
        %v4487 = vmax.f32 %v4391, 0.0
        %v4488 = vmax.f32 %v4394, 0.0
        %v4489 = vmax.f32 %v4399, 0.0
        %v4490 = vmax.f32 %v4402, 0.0
        %v4491 = vmax.f32 %v4407, 0.0
        %v4492 = vmax.f32 %v4410, 0.0
        %v4493 = vmax.f32 %v4415, 0.0
        %v4494 = vmax.f32 %v4418, 0.0
        %v4495 = vmax.f32 %v4423, 0.0
        %v4496 = vmax.f32 %v4426, 0.0
        %v4497 = vmax.f32 %v4431, 0.0
        %v4498 = vmax.f32 %v4434, 0.0
        %v4499 = vmax.f32 %v4439, 0.0
        %v4500 = vmax.f32 %v4442, 0.0
        %v4501 = vmax.f32 %v4447, 0.0
        %v4502 = vmax.f32 %v4450, 0.0
        %v4503 = vmax.f32 %v4455, 0.0
        %v4504 = vmax.f32 %v4458, 0.0
        %v4505 = vmax.f32 %v4463, 0.0
        %v4506 = vmax.f32 %v4466, 0.0
        %v4507 = vmax.f32 %v4471, 0.0
        %v4508 = vmax.f32 %v4474, 0.0
        %v4509 = vpack.c.bf16 %v4478, %v4477
        %v4510 = vpack.c.bf16 %v4480, %v4479
        %v4511 = vpack.c.bf16 %v4482, %v4481
        %v4512 = vpack.c.bf16 %v4484, %v4483
        %v4513 = vpack.c.bf16 %v4486, %v4485
        %v4514 = vpack.c.bf16 %v4488, %v4487
        %v4515 = vpack.c.bf16 %v4490, %v4489
        %v4516 = vpack.c.bf16 %v4492, %v4491
        %v4517 = vpack.c.bf16 %v4494, %v4493
        %v4518 = vpack.c.bf16 %v4496, %v4495
        %v4519 = vpack.c.bf16 %v4498, %v4497
        %v4520 = vpack.c.bf16 %v4500, %v4499
        %v4521 = vpack.c.bf16 %v4502, %v4501
        %v4522 = vpack.c.bf16 %v4504, %v4503
        %v4523 = vpack.c.bf16 %v4506, %v4505
        %v4524 = vpack.c.bf16 %v4508, %v4507
        %4525 = vmatprep.subr.bf16.mxu0 0
        %4526 = vmatpush1.bf16.msra.mxu0 %v4509
        %4527 = vmatprep.subr.bf16.mxu0 0
        %4528 = vmatpush1.bf16.msra.mxu0 %v4510
        %4529 = vmatprep.subr.bf16.mxu0 0
        %4530 = vmatpush1.bf16.msra.mxu0 %v4511
        %4531 = vmatprep.subr.bf16.mxu0 0
        %4532 = vmatpush1.bf16.msra.mxu0 %v4512
        %4533 = vmatprep.subr.bf16.mxu0 0
        %4534 = vmatpush1.bf16.msra.mxu0 %v4513
        %4535 = vmatprep.subr.bf16.mxu0 0
        %4536 = vmatpush1.bf16.msra.mxu0 %v4514
        %4537 = vmatprep.subr.bf16.mxu0 0
        %4538 = vmatpush1.bf16.msra.mxu0 %v4515
        %4539 = vmatprep.subr.bf16.mxu0 0
        %4540 = vmatpush1.bf16.msra.mxu0 %v4516
        %4541 = vmatprep.subr.bf16.mxu0 0
        %4542 = vmatpush1.bf16.msra.mxu0 %v4517
        %4543 = vmatprep.subr.bf16.mxu0 0
        %4544 = vmatpush1.bf16.msra.mxu0 %v4518
        %4545 = vmatprep.subr.bf16.mxu0 0
        %4546 = vmatpush1.bf16.msra.mxu0 %v4519
        %4547 = vmatprep.subr.bf16.mxu0 0
        %4548 = vmatpush1.bf16.msra.mxu0 %v4520
        %4549 = vmatprep.subr.bf16.mxu0 0
        %4550 = vmatpush1.bf16.msra.mxu0 %v4521
        %4551 = vmatprep.subr.bf16.mxu0 0
        %4552 = vmatpush1.bf16.msra.mxu0 %v4522
        %4553 = vmatprep.subr.bf16.mxu0 0
        %4554 = vmatpush1.bf16.msra.mxu0 %v4523
        %4555 = vmatprep.subr.bf16.mxu0 0
        %4556 = vmatpush1.bf16.msra.mxu0 %v4524
        %4557 = vmatprep.mubr.bf16.mxu0 %v1219
        %4558 = vmatmul.mubr.bf16.gmra.mrb[0].mxu0 %v1218
        %v4559 = vpop.f32.mrb[0].mxu0
        %v4560 = vadd.f32 %v1093, %v4559
        %v4561 = vpop.f32.mrb[0].mxu0
        %v4562 = vpop.f32.mrb[0].mxu0
        %v4563 = vadd.f32 %v1098, %v4562
        %v4564 = vpop.f32.mrb[0].mxu0
        %4565 = vmatprep.mubr.bf16.mxu0 %v1221
        %4566 = vmatmul.mubr.bf16.gmra.mrb[0].mxu0 %v1220
        %v4567 = vpop.f32.mrb[0].mxu0
        %v4568 = vadd.f32 %v1103, %v4567
        %v4569 = vpop.f32.mrb[0].mxu0
        %v4570 = vpop.f32.mrb[0].mxu0
        %v4571 = vadd.f32 %v1108, %v4570
        %v4572 = vpop.f32.mrb[0].mxu0
        %4573 = vmatprep.mubr.bf16.mxu0 %v1223
        %4574 = vmatmul.mubr.bf16.gmra.mrb[0].mxu0 %v1222
        %v4575 = vpop.f32.mrb[0].mxu0
        %v4576 = vadd.f32 %v1113, %v4575
        %v4577 = vpop.f32.mrb[0].mxu0
        %v4578 = vpop.f32.mrb[0].mxu0
        %v4579 = vadd.f32 %v1118, %v4578
        %v4580 = vpop.f32.mrb[0].mxu0
        %4581 = vmatprep.mubr.bf16.mxu0 %v1225
        %4582 = vmatmul.mubr.bf16.gmra.mrb[0].mxu0 %v1224
        %v4583 = vpop.f32.mrb[0].mxu0
        %v4584 = vadd.f32 %v1123, %v4583
        %v4585 = vpop.f32.mrb[0].mxu0
        %v4586 = vpop.f32.mrb[0].mxu0
        %v4587 = vadd.f32 %v1128, %v4586
        %v4588 = vpop.f32.mrb[0].mxu0
        %4589 = vmatprep.mubr.bf16.mxu0 %v1227
        %4590 = vmatmul.mubr.bf16.gmra.mrb[0].mxu0 %v1226
        %v4591 = vpop.f32.mrb[0].mxu0
        %v4592 = vadd.f32 %v1133, %v4591
        %v4593 = vpop.f32.mrb[0].mxu0
        %v4594 = vpop.f32.mrb[0].mxu0
        %v4595 = vadd.f32 %v1138, %v4594
        %v4596 = vpop.f32.mrb[0].mxu0
        %4597 = vmatprep.mubr.bf16.mxu0 %v1229
        %4598 = vmatmul.mubr.bf16.gmra.mrb[0].mxu0 %v1228
        %v4599 = vpop.f32.mrb[0].mxu0
        %v4600 = vadd.f32 %v1143, %v4599
        %v4601 = vpop.f32.mrb[0].mxu0
        %v4602 = vpop.f32.mrb[0].mxu0
        %v4603 = vadd.f32 %v1148, %v4602
        %v4604 = vpop.f32.mrb[0].mxu0
        %4605 = vmatprep.mubr.bf16.mxu0 %v1231
        %4606 = vmatmul.mubr.bf16.gmra.mrb[0].mxu0 %v1230
        %v4607 = vpop.f32.mrb[0].mxu0
        %v4608 = vadd.f32 %v1153, %v4607
        %v4609 = vpop.f32.mrb[0].mxu0
        %v4610 = vpop.f32.mrb[0].mxu0
        %v4611 = vadd.f32 %v1158, %v4610
        %v4612 = vpop.f32.mrb[0].mxu0
        %4613 = vmatprep.mubr.bf16.mxu0 %v1233
        %4614 = vmatmul.mubr.bf16.gmra.mrb[0].mxu0 %v1232
        %v4615 = vpop.f32.mrb[0].mxu0
        %v4616 = vadd.f32 %v1163, %v4615
        %v4617 = vpop.f32.mrb[0].mxu0
        %v4618 = vpop.f32.mrb[0].mxu0
        %v4619 = vadd.f32 %v1168, %v4618
        %v4620 = vpop.f32.mrb[0].mxu0
        %4621 = vdwg.mxu0
        %v4622 = vmax.f32 %v4560, 0.0
        %v4623 = vmax.f32 %v4563, 0.0
        %v4624 = vmax.f32 %v4568, 0.0
        %v4625 = vmax.f32 %v4571, 0.0
        %v4626 = vmax.f32 %v4576, 0.0
        %v4627 = vmax.f32 %v4579, 0.0
        %v4628 = vmax.f32 %v4584, 0.0
        %v4629 = vmax.f32 %v4587, 0.0
        %v4630 = vmax.f32 %v4592, 0.0
        %v4631 = vmax.f32 %v4595, 0.0
        %v4632 = vmax.f32 %v4600, 0.0
        %v4633 = vmax.f32 %v4603, 0.0
        %v4634 = vmax.f32 %v4608, 0.0
        %v4635 = vmax.f32 %v4611, 0.0
        %v4636 = vmax.f32 %v4616, 0.0
        %v4637 = vmax.f32 %v4619, 0.0
        %v4638 = vmul.f32 %v4622, %v1366
        %v4639 = vmul.f32 %v4623, %v1371
        %v4640 = vmul.f32 %v4624, %v1376
        %v4641 = vmul.f32 %v4625, %v1381
        %v4642 = vmul.f32 %v4626, %v1386
        %v4643 = vmul.f32 %v4627, %v1391
        %v4644 = vmul.f32 %v4628, %v1396
        %v4645 = vmul.f32 %v4629, %v1401
        %v4646 = vmul.f32 %v4630, %v1406
        %v4647 = vmul.f32 %v4631, %v1411
        %v4648 = vmul.f32 %v4632, %v1416
        %v4649 = vmul.f32 %v4633, %v1421
        %v4650 = vmul.f32 %v4634, %v1426
        %v4651 = vmul.f32 %v4635, %v1431
        %v4652 = vmul.f32 %v4636, %v1436
        %v4653 = vmul.f32 %v4637, %v1441
        %v4654 = vadd.f32 %v4638, %v4639
        %v4655 = vadd.f32 %v4654, %v4640
        %v4656 = vadd.f32 %v4655, %v4641
        %v4657 = vadd.f32 %v4656, %v4642
        %v4658 = vadd.f32 %v4657, %v4643
        %v4659 = vadd.f32 %v4658, %v4644
        %v4660 = vadd.f32 %v4659, %v4645
        %v4661 = vadd.f32 %v4660, %v4646
        %v4662 = vadd.f32 %v4661, %v4647
        %v4663 = vadd.f32 %v4662, %v4648
        %v4664 = vadd.f32 %v4663, %v4649
        %v4665 = vadd.f32 %v4664, %v4650
        %v4666 = vadd.f32 %v4665, %v4651
        %v4667 = vadd.f32 %v4666, %v4652
        %v4668 = vadd.f32 %v4667, %v4653
        %v4669 = vld [vmem:[%s465 + $0x30] sm:$0xff]
        %v4670 = vadd.f32 %v4668, %v1482
        %4672 = vset.pattern.permute.xlu0 0
        %4673 = vperm.xlu0 %4672, %v4669
        %v4674 = vpop.permute.xlu0 %4673
        %v4676 = vmul.f32 %v4674, %v1494
        %v4677 = vmul.f32 %v4670, %v4676
        %4678 = vst [vmem:[%s442 + $0x30] sm:$0xff] %v4677
        %v4679 = vxor.u32 %v4677, 2147483648
        %v4680 = vmul.f32 %v4679, 1.442695
        %v4681 = vpow.pop %v4680
        %v4682 = vadd.f32 %v4681, 1.0
        %v4683 = vrcp.pop %v4682
        %v4684 = vmul.f32 1.0, %v4683
        %4685 = vst [vmem:[%s435 + $0x30] sm:$0xff] %v4684
        %v4686 = vld [vmem:[%s451 + $0x380] sm:$0xf]
        %v4687 = vld [vmem:[%s451 + $0x384] sm:$0xf]
        %v4688 = vld [vmem:[%s451 + $0x388] sm:$0xf]
        %v4689 = vld [vmem:[%s451 + $0x38c] sm:$0xf]
        %v4690 = vld [vmem:[%s451 + $0x390] sm:$0xf]
        %v4691 = vld [vmem:[%s451 + $0x394] sm:$0xf]
        %v4692 = vld [vmem:[%s451 + $0x398] sm:$0xf]
        %v4693 = vld [vmem:[%s451 + $0x39c] sm:$0xf]
        %v4694 = vld [vmem:[%s451 + $0x3a0] sm:$0xf]
        %v4695 = vld [vmem:[%s451 + $0x3a4] sm:$0xf]
        %v4696 = vld [vmem:[%s451 + $0x3a8] sm:$0xf]
        %v4697 = vld [vmem:[%s451 + $0x3ac] sm:$0xf]
        %v4698 = vld [vmem:[%s451 + $0x3b0] sm:$0xf]
        %v4699 = vld [vmem:[%s451 + $0x3b4] sm:$0xf]
        %v4700 = vld [vmem:[%s451 + $0x3b8] sm:$0xf]
        %v4701 = vld [vmem:[%s451 + $0x3bc] sm:$0xf]
        %v4702 = vld [vmem:[%s451 + $0x3c0] sm:$0xf]
        %v4703 = vld [vmem:[%s451 + $0x3c4] sm:$0xf]
        %v4704 = vld [vmem:[%s451 + $0x3c8] sm:$0xf]
        %v4705 = vld [vmem:[%s451 + $0x3cc] sm:$0xf]
        %v4706 = vld [vmem:[%s451 + $0x3d0] sm:$0xf]
        %v4707 = vld [vmem:[%s451 + $0x3d4] sm:$0xf]
        %v4708 = vld [vmem:[%s451 + $0x3d8] sm:$0xf]
        %v4709 = vld [vmem:[%s451 + $0x3dc] sm:$0xf]
        %v4710 = vld [vmem:[%s451 + $0x3e0] sm:$0xf]
        %v4711 = vld [vmem:[%s451 + $0x3e4] sm:$0xf]
        %v4712 = vld [vmem:[%s451 + $0x3e8] sm:$0xf]
        %v4713 = vld [vmem:[%s451 + $0x3ec] sm:$0xf]
        %v4714 = vld [vmem:[%s451 + $0x3f0] sm:$0xf]
        %v4715 = vld [vmem:[%s451 + $0x3f4] sm:$0xf]
        %v4716 = vld [vmem:[%s451 + $0x3f8] sm:$0xf]
        %v4717 = vld [vmem:[%s451 + $0x3fc] sm:$0xf]
        %v4750 = vunpack.c.l.b16 %v4686
        %v4751 = vunpack.c.l.b16 %v4687
        %v4752 = vunpack.c.l.b16 %v4688
        %v4753 = vunpack.c.l.b16 %v4689
        %v4754 = vunpack.c.l.b16 %v4690
        %v4755 = vunpack.c.l.b16 %v4691
        %v4756 = vunpack.c.l.b16 %v4692
        %v4757 = vunpack.c.l.b16 %v4693
        %v4758 = vunpack.c.l.b16 %v4694
        %v4759 = vunpack.c.l.b16 %v4695
        %v4760 = vunpack.c.l.b16 %v4696
        %v4761 = vunpack.c.l.b16 %v4697
        %v4762 = vunpack.c.l.b16 %v4698
        %v4763 = vunpack.c.l.b16 %v4699
        %v4764 = vunpack.c.l.b16 %v4700
        %v4765 = vunpack.c.l.b16 %v4701
        %v4766 = vunpack.c.l.b16 %v4702
        %v4767 = vunpack.c.l.b16 %v4703
        %v4768 = vunpack.c.l.b16 %v4704
        %v4769 = vunpack.c.l.b16 %v4705
        %v4770 = vunpack.c.l.b16 %v4706
        %v4771 = vunpack.c.l.b16 %v4707
        %v4772 = vunpack.c.l.b16 %v4708
        %v4773 = vunpack.c.l.b16 %v4709
        %v4774 = vunpack.c.l.b16 %v4710
        %v4775 = vunpack.c.l.b16 %v4711
        %v4776 = vunpack.c.l.b16 %v4712
        %v4777 = vunpack.c.l.b16 %v4713
        %v4778 = vunpack.c.l.b16 %v4714
        %v4779 = vunpack.c.l.b16 %v4715
        %v4780 = vunpack.c.l.b16 %v4716
        %v4781 = vunpack.c.l.b16 %v4717
        %v4782 = vpack.c.b16 %v4751, %v4750
        %v4783 = vpack.c.b16 %v4753, %v4752
        %v4784 = vpack.c.b16 %v4755, %v4754
        %v4785 = vpack.c.b16 %v4757, %v4756
        %v4786 = vpack.c.b16 %v4759, %v4758
        %v4787 = vpack.c.b16 %v4761, %v4760
        %v4788 = vpack.c.b16 %v4763, %v4762
        %v4789 = vpack.c.b16 %v4765, %v4764
        %v4790 = vpack.c.b16 %v4767, %v4766
        %v4791 = vpack.c.b16 %v4769, %v4768
        %v4792 = vpack.c.b16 %v4771, %v4770
        %v4793 = vpack.c.b16 %v4773, %v4772
        %v4794 = vpack.c.b16 %v4775, %v4774
        %v4795 = vpack.c.b16 %v4777, %v4776
        %v4796 = vpack.c.b16 %v4779, %v4778
        %v4797 = vpack.c.b16 %v4781, %v4780
        %v4799 = vsel %vm828, %v4782, 0
        %v4802 = vsel %vm828, %v4783, 0
        %v4805 = vsel %vm828, %v4784, 0
        %v4808 = vsel %vm828, %v4785, 0
        %v4811 = vsel %vm828, %v4786, 0
        %v4814 = vsel %vm828, %v4787, 0
        %v4817 = vsel %vm828, %v4788, 0
        %v4820 = vsel %vm828, %v4789, 0
        %v4823 = vsel %vm828, %v4790, 0
        %v4826 = vsel %vm828, %v4791, 0
        %v4829 = vsel %vm828, %v4792, 0
        %v4832 = vsel %vm828, %v4793, 0
        %v4835 = vsel %vm828, %v4794, 0
        %v4838 = vsel %vm828, %v4795, 0
        %v4841 = vsel %vm828, %v4796, 0
        %v4844 = vsel %vm828, %v4797, 0
        %4846 = vmatprep.subr.bf16.mxu0 0
        %4847 = vmatpush1.bf16.msra.mxu0 %v879
        %4848 = vmatprep.subr.bf16.mxu0 0
        %4849 = vmatpush1.bf16.msra.mxu0 0
        %4850 = vmatprep.subr.bf16.mxu0 0
        %4851 = vmatpush1.bf16.msra.mxu0 0
        %4852 = vmatprep.subr.bf16.mxu0 0
        %4853 = vmatpush1.bf16.msra.mxu0 0
        %4854 = vmatprep.subr.bf16.mxu0 0
        %4855 = vmatpush1.bf16.msra.mxu0 0
        %4856 = vmatprep.subr.bf16.mxu0 0
        %4857 = vmatpush1.bf16.msra.mxu0 0
        %4858 = vmatprep.subr.bf16.mxu0 0
        %4859 = vmatpush1.bf16.msra.mxu0 0
        %4860 = vmatprep.subr.bf16.mxu0 0
        %4861 = vmatpush1.bf16.msra.mxu0 0
        %4862 = vmatprep.subr.bf16.mxu0 0
        %4863 = vmatpush1.bf16.msra.mxu0 0
        %4864 = vmatprep.subr.bf16.mxu0 0
        %4865 = vmatpush1.bf16.msra.mxu0 0
        %4866 = vmatprep.subr.bf16.mxu0 0
        %4867 = vmatpush1.bf16.msra.mxu0 0
        %4868 = vmatprep.subr.bf16.mxu0 0
        %4869 = vmatpush1.bf16.msra.mxu0 0
        %4870 = vmatprep.subr.bf16.mxu0 0
        %4871 = vmatpush1.bf16.msra.mxu0 0
        %4872 = vmatprep.subr.bf16.mxu0 0
        %4873 = vmatpush1.bf16.msra.mxu0 0
        %4874 = vmatprep.subr.bf16.mxu0 0
        %4875 = vmatpush1.bf16.msra.mxu0 0
        %4876 = vmatprep.subr.bf16.mxu0 0
        %4877 = vmatpush1.bf16.msra.mxu0 0
        %4878 = vmatprep.mubr.bf16.mxu0 0
        %4879 = vmatmul.mubr.bf16.gmra.mrb[0].mxu0 %v4799
        %v4880 = vpop.f32.mrb[0].mxu0
        %v4881 = vadd.f32 %v591, %v4880
        %v4882 = vpop.f32.mrb[0].mxu0
        %v4883 = vpop.f32.mrb[0].mxu0
        %v4884 = vadd.f32 %v596, %v4883
        %v4885 = vpop.f32.mrb[0].mxu0
        %4886 = vmatprep.mubr.bf16.mxu0 0
        %4887 = vmatmul.mubr.bf16.gmra.mrb[0].mxu0 %v4802
        %v4888 = vpop.f32.mrb[0].mxu0
        %v4889 = vadd.f32 %v601, %v4888
        %v4890 = vpop.f32.mrb[0].mxu0
        %v4891 = vpop.f32.mrb[0].mxu0
        %v4892 = vadd.f32 %v606, %v4891
        %v4893 = vpop.f32.mrb[0].mxu0
        %4894 = vmatprep.mubr.bf16.mxu0 0
        %4895 = vmatmul.mubr.bf16.gmra.mrb[0].mxu0 %v4805
        %v4896 = vpop.f32.mrb[0].mxu0
        %v4897 = vadd.f32 %v611, %v4896
        %v4898 = vpop.f32.mrb[0].mxu0
        %v4899 = vpop.f32.mrb[0].mxu0
        %v4900 = vadd.f32 %v616, %v4899
        %v4901 = vpop.f32.mrb[0].mxu0
        %4902 = vmatprep.mubr.bf16.mxu0 0
        %4903 = vmatmul.mubr.bf16.gmra.mrb[0].mxu0 %v4808
        %v4904 = vpop.f32.mrb[0].mxu0
        %v4905 = vadd.f32 %v621, %v4904
        %v4906 = vpop.f32.mrb[0].mxu0
        %v4907 = vpop.f32.mrb[0].mxu0
        %v4908 = vadd.f32 %v626, %v4907
        %v4909 = vpop.f32.mrb[0].mxu0
        %4910 = vmatprep.mubr.bf16.mxu0 0
        %4911 = vmatmul.mubr.bf16.gmra.mrb[0].mxu0 %v4811
        %v4912 = vpop.f32.mrb[0].mxu0
        %v4913 = vadd.f32 %v631, %v4912
        %v4914 = vpop.f32.mrb[0].mxu0
        %v4915 = vpop.f32.mrb[0].mxu0
        %v4916 = vadd.f32 %v636, %v4915
        %v4917 = vpop.f32.mrb[0].mxu0
        %4918 = vmatprep.mubr.bf16.mxu0 0
        %4919 = vmatmul.mubr.bf16.gmra.mrb[0].mxu0 %v4814
        %v4920 = vpop.f32.mrb[0].mxu0
        %v4921 = vadd.f32 %v641, %v4920
        %v4922 = vpop.f32.mrb[0].mxu0
        %v4923 = vpop.f32.mrb[0].mxu0
        %v4924 = vadd.f32 %v646, %v4923
        %v4925 = vpop.f32.mrb[0].mxu0
        %4926 = vmatprep.mubr.bf16.mxu0 0
        %4927 = vmatmul.mubr.bf16.gmra.mrb[0].mxu0 %v4817
        %v4928 = vpop.f32.mrb[0].mxu0
        %v4929 = vadd.f32 %v651, %v4928
        %v4930 = vpop.f32.mrb[0].mxu0
        %v4931 = vpop.f32.mrb[0].mxu0
        %v4932 = vadd.f32 %v656, %v4931
        %v4933 = vpop.f32.mrb[0].mxu0
        %4934 = vmatprep.mubr.bf16.mxu0 0
        %4935 = vmatmul.mubr.bf16.gmra.mrb[0].mxu0 %v4820
        %v4936 = vpop.f32.mrb[0].mxu0
        %v4937 = vadd.f32 %v661, %v4936
        %v4938 = vpop.f32.mrb[0].mxu0
        %v4939 = vpop.f32.mrb[0].mxu0
        %v4940 = vadd.f32 %v666, %v4939
        %v4941 = vpop.f32.mrb[0].mxu0
        %4942 = vmatprep.mubr.bf16.mxu0 0
        %4943 = vmatmul.mubr.bf16.gmra.mrb[0].mxu0 %v4823
        %v4944 = vpop.f32.mrb[0].mxu0
        %v4945 = vadd.f32 %v671, %v4944
        %v4946 = vpop.f32.mrb[0].mxu0
        %v4947 = vpop.f32.mrb[0].mxu0
        %v4948 = vadd.f32 %v676, %v4947
        %v4949 = vpop.f32.mrb[0].mxu0
        %4950 = vmatprep.mubr.bf16.mxu0 0
        %4951 = vmatmul.mubr.bf16.gmra.mrb[0].mxu0 %v4826
        %v4952 = vpop.f32.mrb[0].mxu0
        %v4953 = vadd.f32 %v681, %v4952
        %v4954 = vpop.f32.mrb[0].mxu0
        %v4955 = vpop.f32.mrb[0].mxu0
        %v4956 = vadd.f32 %v686, %v4955
        %v4957 = vpop.f32.mrb[0].mxu0
        %4958 = vmatprep.mubr.bf16.mxu0 0
        %4959 = vmatmul.mubr.bf16.gmra.mrb[0].mxu0 %v4829
        %v4960 = vpop.f32.mrb[0].mxu0
        %v4961 = vadd.f32 %v691, %v4960
        %v4962 = vpop.f32.mrb[0].mxu0
        %v4963 = vpop.f32.mrb[0].mxu0
        %v4964 = vadd.f32 %v696, %v4963
        %v4965 = vpop.f32.mrb[0].mxu0
        %4966 = vmatprep.mubr.bf16.mxu0 0
        %4967 = vmatmul.mubr.bf16.gmra.mrb[0].mxu0 %v4832
        %v4968 = vpop.f32.mrb[0].mxu0
        %v4969 = vadd.f32 %v701, %v4968
        %v4970 = vpop.f32.mrb[0].mxu0
        %v4971 = vpop.f32.mrb[0].mxu0
        %v4972 = vadd.f32 %v706, %v4971
        %v4973 = vpop.f32.mrb[0].mxu0
        %4974 = vmatprep.mubr.bf16.mxu0 0
        %4975 = vmatmul.mubr.bf16.gmra.mrb[0].mxu0 %v4835
        %v4976 = vpop.f32.mrb[0].mxu0
        %v4977 = vadd.f32 %v711, %v4976
        %v4978 = vpop.f32.mrb[0].mxu0
        %v4979 = vpop.f32.mrb[0].mxu0
        %v4980 = vadd.f32 %v716, %v4979
        %v4981 = vpop.f32.mrb[0].mxu0
        %4982 = vmatprep.mubr.bf16.mxu0 0
        %4983 = vmatmul.mubr.bf16.gmra.mrb[0].mxu0 %v4838
        %v4984 = vpop.f32.mrb[0].mxu0
        %v4985 = vadd.f32 %v721, %v4984
        %v4986 = vpop.f32.mrb[0].mxu0
        %v4987 = vpop.f32.mrb[0].mxu0
        %v4988 = vadd.f32 %v726, %v4987
        %v4989 = vpop.f32.mrb[0].mxu0
        %4990 = vmatprep.mubr.bf16.mxu0 0
        %4991 = vmatmul.mubr.bf16.gmra.mrb[0].mxu0 %v4841
        %v4992 = vpop.f32.mrb[0].mxu0
        %v4993 = vadd.f32 %v731, %v4992
        %v4994 = vpop.f32.mrb[0].mxu0
        %v4995 = vpop.f32.mrb[0].mxu0
        %v4996 = vadd.f32 %v736, %v4995
        %v4997 = vpop.f32.mrb[0].mxu0
        %4998 = vmatprep.mubr.bf16.mxu0 0
        %4999 = vmatmul.mubr.bf16.gmra.mrb[0].mxu0 %v4844
        %v5000 = vpop.f32.mrb[0].mxu0
        %v5001 = vadd.f32 %v741, %v5000
        %v5002 = vpop.f32.mrb[0].mxu0
        %v5003 = vpop.f32.mrb[0].mxu0
        %v5004 = vadd.f32 %v746, %v5003
        %v5005 = vpop.f32.mrb[0].mxu0
        %5006 = vdwg.mxu0
        %v5007 = vmax.f32 %v4881, 0.0
        %v5008 = vmax.f32 %v4884, 0.0
        %v5009 = vmax.f32 %v4889, 0.0
        %v5010 = vmax.f32 %v4892, 0.0
        %v5011 = vmax.f32 %v4897, 0.0
        %v5012 = vmax.f32 %v4900, 0.0
        %v5013 = vmax.f32 %v4905, 0.0
        %v5014 = vmax.f32 %v4908, 0.0
        %v5015 = vmax.f32 %v4913, 0.0
        %v5016 = vmax.f32 %v4916, 0.0
        %v5017 = vmax.f32 %v4921, 0.0
        %v5018 = vmax.f32 %v4924, 0.0
        %v5019 = vmax.f32 %v4929, 0.0
        %v5020 = vmax.f32 %v4932, 0.0
        %v5021 = vmax.f32 %v4937, 0.0
        %v5022 = vmax.f32 %v4940, 0.0
        %v5023 = vmax.f32 %v4945, 0.0
        %v5024 = vmax.f32 %v4948, 0.0
        %v5025 = vmax.f32 %v4953, 0.0
        %v5026 = vmax.f32 %v4956, 0.0
        %v5027 = vmax.f32 %v4961, 0.0
        %v5028 = vmax.f32 %v4964, 0.0
        %v5029 = vmax.f32 %v4969, 0.0
        %v5030 = vmax.f32 %v4972, 0.0
        %v5031 = vmax.f32 %v4977, 0.0
        %v5032 = vmax.f32 %v4980, 0.0
        %v5033 = vmax.f32 %v4985, 0.0
        %v5034 = vmax.f32 %v4988, 0.0
        %v5035 = vmax.f32 %v4993, 0.0
        %v5036 = vmax.f32 %v4996, 0.0
        %v5037 = vmax.f32 %v5001, 0.0
        %v5038 = vmax.f32 %v5004, 0.0
        %v5039 = vpack.c.bf16 %v5008, %v5007
        %v5040 = vpack.c.bf16 %v5010, %v5009
        %v5041 = vpack.c.bf16 %v5012, %v5011
        %v5042 = vpack.c.bf16 %v5014, %v5013
        %v5043 = vpack.c.bf16 %v5016, %v5015
        %v5044 = vpack.c.bf16 %v5018, %v5017
        %v5045 = vpack.c.bf16 %v5020, %v5019
        %v5046 = vpack.c.bf16 %v5022, %v5021
        %v5047 = vpack.c.bf16 %v5024, %v5023
        %v5048 = vpack.c.bf16 %v5026, %v5025
        %v5049 = vpack.c.bf16 %v5028, %v5027
        %v5050 = vpack.c.bf16 %v5030, %v5029
        %v5051 = vpack.c.bf16 %v5032, %v5031
        %v5052 = vpack.c.bf16 %v5034, %v5033
        %v5053 = vpack.c.bf16 %v5036, %v5035
        %v5054 = vpack.c.bf16 %v5038, %v5037
        %5055 = vmatprep.subr.bf16.mxu0 0
        %5056 = vmatpush1.bf16.msra.mxu0 %v5039
        %5057 = vmatprep.subr.bf16.mxu0 0
        %5058 = vmatpush1.bf16.msra.mxu0 %v5040
        %5059 = vmatprep.subr.bf16.mxu0 0
        %5060 = vmatpush1.bf16.msra.mxu0 %v5041
        %5061 = vmatprep.subr.bf16.mxu0 0
        %5062 = vmatpush1.bf16.msra.mxu0 %v5042
        %5063 = vmatprep.subr.bf16.mxu0 0
        %5064 = vmatpush1.bf16.msra.mxu0 %v5043
        %5065 = vmatprep.subr.bf16.mxu0 0
        %5066 = vmatpush1.bf16.msra.mxu0 %v5044
        %5067 = vmatprep.subr.bf16.mxu0 0
        %5068 = vmatpush1.bf16.msra.mxu0 %v5045
        %5069 = vmatprep.subr.bf16.mxu0 0
        %5070 = vmatpush1.bf16.msra.mxu0 %v5046
        %5071 = vmatprep.subr.bf16.mxu0 0
        %5072 = vmatpush1.bf16.msra.mxu0 %v5047
        %5073 = vmatprep.subr.bf16.mxu0 0
        %5074 = vmatpush1.bf16.msra.mxu0 %v5048
        %5075 = vmatprep.subr.bf16.mxu0 0
        %5076 = vmatpush1.bf16.msra.mxu0 %v5049
        %5077 = vmatprep.subr.bf16.mxu0 0
        %5078 = vmatpush1.bf16.msra.mxu0 %v5050
        %5079 = vmatprep.subr.bf16.mxu0 0
        %5080 = vmatpush1.bf16.msra.mxu0 %v5051
        %5081 = vmatprep.subr.bf16.mxu0 0
        %5082 = vmatpush1.bf16.msra.mxu0 %v5052
        %5083 = vmatprep.subr.bf16.mxu0 0
        %5084 = vmatpush1.bf16.msra.mxu0 %v5053
        %5085 = vmatprep.subr.bf16.mxu0 0
        %5086 = vmatpush1.bf16.msra.mxu0 %v5054
        %5087 = vmatprep.mubr.bf16.mxu0 %v1219
        %5088 = vmatmul.mubr.bf16.gmra.mrb[0].mxu0 %v1218
        %v5089 = vpop.f32.mrb[0].mxu0
        %v5090 = vadd.f32 %v1093, %v5089
        %v5091 = vpop.f32.mrb[0].mxu0
        %v5092 = vpop.f32.mrb[0].mxu0
        %v5093 = vadd.f32 %v1098, %v5092
        %v5094 = vpop.f32.mrb[0].mxu0
        %5095 = vmatprep.mubr.bf16.mxu0 %v1221
        %5096 = vmatmul.mubr.bf16.gmra.mrb[0].mxu0 %v1220
        %v5097 = vpop.f32.mrb[0].mxu0
        %v5098 = vadd.f32 %v1103, %v5097
        %v5099 = vpop.f32.mrb[0].mxu0
        %v5100 = vpop.f32.mrb[0].mxu0
        %v5101 = vadd.f32 %v1108, %v5100
        %v5102 = vpop.f32.mrb[0].mxu0
        %5103 = vmatprep.mubr.bf16.mxu0 %v1223
        %5104 = vmatmul.mubr.bf16.gmra.mrb[0].mxu0 %v1222
        %v5105 = vpop.f32.mrb[0].mxu0
        %v5106 = vadd.f32 %v1113, %v5105
        %v5107 = vpop.f32.mrb[0].mxu0
        %v5108 = vpop.f32.mrb[0].mxu0
        %v5109 = vadd.f32 %v1118, %v5108
        %v5110 = vpop.f32.mrb[0].mxu0
        %5111 = vmatprep.mubr.bf16.mxu0 %v1225
        %5112 = vmatmul.mubr.bf16.gmra.mrb[0].mxu0 %v1224
        %v5113 = vpop.f32.mrb[0].mxu0
        %v5114 = vadd.f32 %v1123, %v5113
        %v5115 = vpop.f32.mrb[0].mxu0
        %v5116 = vpop.f32.mrb[0].mxu0
        %v5117 = vadd.f32 %v1128, %v5116
        %v5118 = vpop.f32.mrb[0].mxu0
        %5119 = vmatprep.mubr.bf16.mxu0 %v1227
        %5120 = vmatmul.mubr.bf16.gmra.mrb[0].mxu0 %v1226
        %v5121 = vpop.f32.mrb[0].mxu0
        %v5122 = vadd.f32 %v1133, %v5121
        %v5123 = vpop.f32.mrb[0].mxu0
        %v5124 = vpop.f32.mrb[0].mxu0
        %v5125 = vadd.f32 %v1138, %v5124
        %v5126 = vpop.f32.mrb[0].mxu0
        %5127 = vmatprep.mubr.bf16.mxu0 %v1229
        %5128 = vmatmul.mubr.bf16.gmra.mrb[0].mxu0 %v1228
        %v5129 = vpop.f32.mrb[0].mxu0
        %v5130 = vadd.f32 %v1143, %v5129
        %v5131 = vpop.f32.mrb[0].mxu0
        %v5132 = vpop.f32.mrb[0].mxu0
        %v5133 = vadd.f32 %v1148, %v5132
        %v5134 = vpop.f32.mrb[0].mxu0
        %5135 = vmatprep.mubr.bf16.mxu0 %v1231
        %5136 = vmatmul.mubr.bf16.gmra.mrb[0].mxu0 %v1230
        %v5137 = vpop.f32.mrb[0].mxu0
        %v5138 = vadd.f32 %v1153, %v5137
        %v5139 = vpop.f32.mrb[0].mxu0
        %v5140 = vpop.f32.mrb[0].mxu0
        %v5141 = vadd.f32 %v1158, %v5140
        %v5142 = vpop.f32.mrb[0].mxu0
        %5143 = vmatprep.mubr.bf16.mxu0 %v1233
        %5144 = vmatmul.mubr.bf16.gmra.mrb[0].mxu0 %v1232
        %v5145 = vpop.f32.mrb[0].mxu0
        %v5146 = vadd.f32 %v1163, %v5145
        %v5147 = vpop.f32.mrb[0].mxu0
        %v5148 = vpop.f32.mrb[0].mxu0
        %v5149 = vadd.f32 %v1168, %v5148
        %v5150 = vpop.f32.mrb[0].mxu0
        %5151 = vdwg.mxu0
        %v5152 = vmax.f32 %v5090, 0.0
        %v5153 = vmax.f32 %v5093, 0.0
        %v5154 = vmax.f32 %v5098, 0.0
        %v5155 = vmax.f32 %v5101, 0.0
        %v5156 = vmax.f32 %v5106, 0.0
        %v5157 = vmax.f32 %v5109, 0.0
        %v5158 = vmax.f32 %v5114, 0.0
        %v5159 = vmax.f32 %v5117, 0.0
        %v5160 = vmax.f32 %v5122, 0.0
        %v5161 = vmax.f32 %v5125, 0.0
        %v5162 = vmax.f32 %v5130, 0.0
        %v5163 = vmax.f32 %v5133, 0.0
        %v5164 = vmax.f32 %v5138, 0.0
        %v5165 = vmax.f32 %v5141, 0.0
        %v5166 = vmax.f32 %v5146, 0.0
        %v5167 = vmax.f32 %v5149, 0.0
        %v5168 = vmul.f32 %v5152, %v1366
        %v5169 = vmul.f32 %v5153, %v1371
        %v5170 = vmul.f32 %v5154, %v1376
        %v5171 = vmul.f32 %v5155, %v1381
        %v5172 = vmul.f32 %v5156, %v1386
        %v5173 = vmul.f32 %v5157, %v1391
        %v5174 = vmul.f32 %v5158, %v1396
        %v5175 = vmul.f32 %v5159, %v1401
        %v5176 = vmul.f32 %v5160, %v1406
        %v5177 = vmul.f32 %v5161, %v1411
        %v5178 = vmul.f32 %v5162, %v1416
        %v5179 = vmul.f32 %v5163, %v1421
        %v5180 = vmul.f32 %v5164, %v1426
        %v5181 = vmul.f32 %v5165, %v1431
        %v5182 = vmul.f32 %v5166, %v1436
        %v5183 = vmul.f32 %v5167, %v1441
        %v5184 = vadd.f32 %v5168, %v5169
        %v5185 = vadd.f32 %v5184, %v5170
        %v5186 = vadd.f32 %v5185, %v5171
        %v5187 = vadd.f32 %v5186, %v5172
        %v5188 = vadd.f32 %v5187, %v5173
        %v5189 = vadd.f32 %v5188, %v5174
        %v5190 = vadd.f32 %v5189, %v5175
        %v5191 = vadd.f32 %v5190, %v5176
        %v5192 = vadd.f32 %v5191, %v5177
        %v5193 = vadd.f32 %v5192, %v5178
        %v5194 = vadd.f32 %v5193, %v5179
        %v5195 = vadd.f32 %v5194, %v5180
        %v5196 = vadd.f32 %v5195, %v5181
        %v5197 = vadd.f32 %v5196, %v5182
        %v5198 = vadd.f32 %v5197, %v5183
        %v5199 = vld [vmem:[%s465 + $0x38] sm:$0xff]
        %v5200 = vadd.f32 %v5198, %v1482
        %5202 = vset.pattern.permute.xlu0 0
        %5203 = vperm.xlu0 %5202, %v5199
        %v5204 = vpop.permute.xlu0 %5203
        %v5206 = vmul.f32 %v5204, %v1494
        %v5207 = vmul.f32 %v5200, %v5206
        %5208 = vst [vmem:[%s442 + $0x38] sm:$0xff] %v5207
        %v5209 = vxor.u32 %v5207, 2147483648
        %v5210 = vmul.f32 %v5209, 1.442695
        %v5211 = vpow.pop %v5210
        %v5212 = vadd.f32 %v5211, 1.0
        %v5213 = vrcp.pop %v5212
        %v5214 = vmul.f32 1.0, %v5213
        %5215 = vst [vmem:[%s435 + $0x38] sm:$0xff] %v5214
        %v5216 = vld [vmem:[%s451 + $0x400] sm:$0xf]
        %v5217 = vld [vmem:[%s451 + $0x404] sm:$0xf]
        %v5218 = vld [vmem:[%s451 + $0x408] sm:$0xf]
        %v5219 = vld [vmem:[%s451 + $0x40c] sm:$0xf]
        %v5220 = vld [vmem:[%s451 + $0x410] sm:$0xf]
        %v5221 = vld [vmem:[%s451 + $0x414] sm:$0xf]
        %v5222 = vld [vmem:[%s451 + $0x418] sm:$0xf]
        %v5223 = vld [vmem:[%s451 + $0x41c] sm:$0xf]
        %v5224 = vld [vmem:[%s451 + $0x420] sm:$0xf]
        %v5225 = vld [vmem:[%s451 + $0x424] sm:$0xf]
        %v5226 = vld [vmem:[%s451 + $0x428] sm:$0xf]
        %v5227 = vld [vmem:[%s451 + $0x42c] sm:$0xf]
        %v5228 = vld [vmem:[%s451 + $0x430] sm:$0xf]
        %v5229 = vld [vmem:[%s451 + $0x434] sm:$0xf]
        %v5230 = vld [vmem:[%s451 + $0x438] sm:$0xf]
        %v5231 = vld [vmem:[%s451 + $0x43c] sm:$0xf]
        %v5232 = vld [vmem:[%s451 + $0x440] sm:$0xf]
        %v5233 = vld [vmem:[%s451 + $0x444] sm:$0xf]
        %v5234 = vld [vmem:[%s451 + $0x448] sm:$0xf]
        %v5235 = vld [vmem:[%s451 + $0x44c] sm:$0xf]
        %v5236 = vld [vmem:[%s451 + $0x450] sm:$0xf]
        %v5237 = vld [vmem:[%s451 + $0x454] sm:$0xf]
        %v5238 = vld [vmem:[%s451 + $0x458] sm:$0xf]
        %v5239 = vld [vmem:[%s451 + $0x45c] sm:$0xf]
        %v5240 = vld [vmem:[%s451 + $0x460] sm:$0xf]
        %v5241 = vld [vmem:[%s451 + $0x464] sm:$0xf]
        %v5242 = vld [vmem:[%s451 + $0x468] sm:$0xf]
        %v5243 = vld [vmem:[%s451 + $0x46c] sm:$0xf]
        %v5244 = vld [vmem:[%s451 + $0x470] sm:$0xf]
        %v5245 = vld [vmem:[%s451 + $0x474] sm:$0xf]
        %v5246 = vld [vmem:[%s451 + $0x478] sm:$0xf]
        %v5247 = vld [vmem:[%s451 + $0x47c] sm:$0xf]
        %v5280 = vunpack.c.l.b16 %v5216
        %v5281 = vunpack.c.l.b16 %v5217
        %v5282 = vunpack.c.l.b16 %v5218
        %v5283 = vunpack.c.l.b16 %v5219
        %v5284 = vunpack.c.l.b16 %v5220
        %v5285 = vunpack.c.l.b16 %v5221
        %v5286 = vunpack.c.l.b16 %v5222
        %v5287 = vunpack.c.l.b16 %v5223
        %v5288 = vunpack.c.l.b16 %v5224
        %v5289 = vunpack.c.l.b16 %v5225
        %v5290 = vunpack.c.l.b16 %v5226
        %v5291 = vunpack.c.l.b16 %v5227
        %v5292 = vunpack.c.l.b16 %v5228
        %v5293 = vunpack.c.l.b16 %v5229
        %v5294 = vunpack.c.l.b16 %v5230
        %v5295 = vunpack.c.l.b16 %v5231
        %v5296 = vunpack.c.l.b16 %v5232
        %v5297 = vunpack.c.l.b16 %v5233
        %v5298 = vunpack.c.l.b16 %v5234
        %v5299 = vunpack.c.l.b16 %v5235
        %v5300 = vunpack.c.l.b16 %v5236
        %v5301 = vunpack.c.l.b16 %v5237
        %v5302 = vunpack.c.l.b16 %v5238
        %v5303 = vunpack.c.l.b16 %v5239
        %v5304 = vunpack.c.l.b16 %v5240
        %v5305 = vunpack.c.l.b16 %v5241
        %v5306 = vunpack.c.l.b16 %v5242
        %v5307 = vunpack.c.l.b16 %v5243
        %v5308 = vunpack.c.l.b16 %v5244
        %v5309 = vunpack.c.l.b16 %v5245
        %v5310 = vunpack.c.l.b16 %v5246
        %v5311 = vunpack.c.l.b16 %v5247
        %v5312 = vpack.c.b16 %v5281, %v5280
        %v5313 = vpack.c.b16 %v5283, %v5282
        %v5314 = vpack.c.b16 %v5285, %v5284
        %v5315 = vpack.c.b16 %v5287, %v5286
        %v5316 = vpack.c.b16 %v5289, %v5288
        %v5317 = vpack.c.b16 %v5291, %v5290
        %v5318 = vpack.c.b16 %v5293, %v5292
        %v5319 = vpack.c.b16 %v5295, %v5294
        %v5320 = vpack.c.b16 %v5297, %v5296
        %v5321 = vpack.c.b16 %v5299, %v5298
        %v5322 = vpack.c.b16 %v5301, %v5300
        %v5323 = vpack.c.b16 %v5303, %v5302
        %v5324 = vpack.c.b16 %v5305, %v5304
        %v5325 = vpack.c.b16 %v5307, %v5306
        %v5326 = vpack.c.b16 %v5309, %v5308
        %v5327 = vpack.c.b16 %v5311, %v5310
        %v5329 = vsel %vm828, %v5312, 0
        %v5332 = vsel %vm828, %v5313, 0
        %v5335 = vsel %vm828, %v5314, 0
        %v5338 = vsel %vm828, %v5315, 0
        %v5341 = vsel %vm828, %v5316, 0
        %v5344 = vsel %vm828, %v5317, 0
        %v5347 = vsel %vm828, %v5318, 0
        %v5350 = vsel %vm828, %v5319, 0
        %v5353 = vsel %vm828, %v5320, 0
        %v5356 = vsel %vm828, %v5321, 0
        %v5359 = vsel %vm828, %v5322, 0
        %v5362 = vsel %vm828, %v5323, 0
        %v5365 = vsel %vm828, %v5324, 0
        %v5368 = vsel %vm828, %v5325, 0
        %v5371 = vsel %vm828, %v5326, 0
        %v5374 = vsel %vm828, %v5327, 0
        %5376 = vmatprep.subr.bf16.mxu0 0
        %5377 = vmatpush1.bf16.msra.mxu0 %v879
        %5378 = vmatprep.subr.bf16.mxu0 0
        %5379 = vmatpush1.bf16.msra.mxu0 0
        %5380 = vmatprep.subr.bf16.mxu0 0
        %5381 = vmatpush1.bf16.msra.mxu0 0
        %5382 = vmatprep.subr.bf16.mxu0 0
        %5383 = vmatpush1.bf16.msra.mxu0 0
        %5384 = vmatprep.subr.bf16.mxu0 0
        %5385 = vmatpush1.bf16.msra.mxu0 0
        %5386 = vmatprep.subr.bf16.mxu0 0
        %5387 = vmatpush1.bf16.msra.mxu0 0
        %5388 = vmatprep.subr.bf16.mxu0 0
        %5389 = vmatpush1.bf16.msra.mxu0 0
        %5390 = vmatprep.subr.bf16.mxu0 0
        %5391 = vmatpush1.bf16.msra.mxu0 0
        %5392 = vmatprep.subr.bf16.mxu0 0
        %5393 = vmatpush1.bf16.msra.mxu0 0
        %5394 = vmatprep.subr.bf16.mxu0 0
        %5395 = vmatpush1.bf16.msra.mxu0 0
        %5396 = vmatprep.subr.bf16.mxu0 0
        %5397 = vmatpush1.bf16.msra.mxu0 0
        %5398 = vmatprep.subr.bf16.mxu0 0
        %5399 = vmatpush1.bf16.msra.mxu0 0
        %5400 = vmatprep.subr.bf16.mxu0 0
        %5401 = vmatpush1.bf16.msra.mxu0 0
        %5402 = vmatprep.subr.bf16.mxu0 0
        %5403 = vmatpush1.bf16.msra.mxu0 0
        %5404 = vmatprep.subr.bf16.mxu0 0
        %5405 = vmatpush1.bf16.msra.mxu0 0
        %5406 = vmatprep.subr.bf16.mxu0 0
        %5407 = vmatpush1.bf16.msra.mxu0 0
        %5408 = vmatprep.mubr.bf16.mxu0 0
        %5409 = vmatmul.mubr.bf16.gmra.mrb[0].mxu0 %v5329
        %v5410 = vpop.f32.mrb[0].mxu0
        %v5411 = vadd.f32 %v591, %v5410
        %v5412 = vpop.f32.mrb[0].mxu0
        %v5413 = vpop.f32.mrb[0].mxu0
        %v5414 = vadd.f32 %v596, %v5413
        %v5415 = vpop.f32.mrb[0].mxu0
        %5416 = vmatprep.mubr.bf16.mxu0 0
        %5417 = vmatmul.mubr.bf16.gmra.mrb[0].mxu0 %v5332
        %v5418 = vpop.f32.mrb[0].mxu0
        %v5419 = vadd.f32 %v601, %v5418
        %v5420 = vpop.f32.mrb[0].mxu0
        %v5421 = vpop.f32.mrb[0].mxu0
        %v5422 = vadd.f32 %v606, %v5421
        %v5423 = vpop.f32.mrb[0].mxu0
        %5424 = vmatprep.mubr.bf16.mxu0 0
        %5425 = vmatmul.mubr.bf16.gmra.mrb[0].mxu0 %v5335
        %v5426 = vpop.f32.mrb[0].mxu0
        %v5427 = vadd.f32 %v611, %v5426
        %v5428 = vpop.f32.mrb[0].mxu0
        %v5429 = vpop.f32.mrb[0].mxu0
        %v5430 = vadd.f32 %v616, %v5429
        %v5431 = vpop.f32.mrb[0].mxu0
        %5432 = vmatprep.mubr.bf16.mxu0 0
        %5433 = vmatmul.mubr.bf16.gmra.mrb[0].mxu0 %v5338
        %v5434 = vpop.f32.mrb[0].mxu0
        %v5435 = vadd.f32 %v621, %v5434
        %v5436 = vpop.f32.mrb[0].mxu0
        %v5437 = vpop.f32.mrb[0].mxu0
        %v5438 = vadd.f32 %v626, %v5437
        %v5439 = vpop.f32.mrb[0].mxu0
        %5440 = vmatprep.mubr.bf16.mxu0 0
        %5441 = vmatmul.mubr.bf16.gmra.mrb[0].mxu0 %v5341
        %v5442 = vpop.f32.mrb[0].mxu0
        %v5443 = vadd.f32 %v631, %v5442
        %v5444 = vpop.f32.mrb[0].mxu0
        %v5445 = vpop.f32.mrb[0].mxu0
        %v5446 = vadd.f32 %v636, %v5445
        %v5447 = vpop.f32.mrb[0].mxu0
        %5448 = vmatprep.mubr.bf16.mxu0 0
        %5449 = vmatmul.mubr.bf16.gmra.mrb[0].mxu0 %v5344
        %v5450 = vpop.f32.mrb[0].mxu0
        %v5451 = vadd.f32 %v641, %v5450
        %v5452 = vpop.f32.mrb[0].mxu0
        %v5453 = vpop.f32.mrb[0].mxu0
        %v5454 = vadd.f32 %v646, %v5453
        %v5455 = vpop.f32.mrb[0].mxu0
        %5456 = vmatprep.mubr.bf16.mxu0 0
        %5457 = vmatmul.mubr.bf16.gmra.mrb[0].mxu0 %v5347
        %v5458 = vpop.f32.mrb[0].mxu0
        %v5459 = vadd.f32 %v651, %v5458
        %v5460 = vpop.f32.mrb[0].mxu0
        %v5461 = vpop.f32.mrb[0].mxu0
        %v5462 = vadd.f32 %v656, %v5461
        %v5463 = vpop.f32.mrb[0].mxu0
        %5464 = vmatprep.mubr.bf16.mxu0 0
        %5465 = vmatmul.mubr.bf16.gmra.mrb[0].mxu0 %v5350
        %v5466 = vpop.f32.mrb[0].mxu0
        %v5467 = vadd.f32 %v661, %v5466
        %v5468 = vpop.f32.mrb[0].mxu0
        %v5469 = vpop.f32.mrb[0].mxu0
        %v5470 = vadd.f32 %v666, %v5469
        %v5471 = vpop.f32.mrb[0].mxu0
        %5472 = vmatprep.mubr.bf16.mxu0 0
        %5473 = vmatmul.mubr.bf16.gmra.mrb[0].mxu0 %v5353
        %v5474 = vpop.f32.mrb[0].mxu0
        %v5475 = vadd.f32 %v671, %v5474
        %v5476 = vpop.f32.mrb[0].mxu0
        %v5477 = vpop.f32.mrb[0].mxu0
        %v5478 = vadd.f32 %v676, %v5477
        %v5479 = vpop.f32.mrb[0].mxu0
        %5480 = vmatprep.mubr.bf16.mxu0 0
        %5481 = vmatmul.mubr.bf16.gmra.mrb[0].mxu0 %v5356
        %v5482 = vpop.f32.mrb[0].mxu0
        %v5483 = vadd.f32 %v681, %v5482
        %v5484 = vpop.f32.mrb[0].mxu0
        %v5485 = vpop.f32.mrb[0].mxu0
        %v5486 = vadd.f32 %v686, %v5485
        %v5487 = vpop.f32.mrb[0].mxu0
        %5488 = vmatprep.mubr.bf16.mxu0 0
        %5489 = vmatmul.mubr.bf16.gmra.mrb[0].mxu0 %v5359
        %v5490 = vpop.f32.mrb[0].mxu0
        %v5491 = vadd.f32 %v691, %v5490
        %v5492 = vpop.f32.mrb[0].mxu0
        %v5493 = vpop.f32.mrb[0].mxu0
        %v5494 = vadd.f32 %v696, %v5493
        %v5495 = vpop.f32.mrb[0].mxu0
        %5496 = vmatprep.mubr.bf16.mxu0 0
        %5497 = vmatmul.mubr.bf16.gmra.mrb[0].mxu0 %v5362
        %v5498 = vpop.f32.mrb[0].mxu0
        %v5499 = vadd.f32 %v701, %v5498
        %v5500 = vpop.f32.mrb[0].mxu0
        %v5501 = vpop.f32.mrb[0].mxu0
        %v5502 = vadd.f32 %v706, %v5501
        %v5503 = vpop.f32.mrb[0].mxu0
        %5504 = vmatprep.mubr.bf16.mxu0 0
        %5505 = vmatmul.mubr.bf16.gmra.mrb[0].mxu0 %v5365
        %v5506 = vpop.f32.mrb[0].mxu0
        %v5507 = vadd.f32 %v711, %v5506
        %v5508 = vpop.f32.mrb[0].mxu0
        %v5509 = vpop.f32.mrb[0].mxu0
        %v5510 = vadd.f32 %v716, %v5509
        %v5511 = vpop.f32.mrb[0].mxu0
        %5512 = vmatprep.mubr.bf16.mxu0 0
        %5513 = vmatmul.mubr.bf16.gmra.mrb[0].mxu0 %v5368
        %v5514 = vpop.f32.mrb[0].mxu0
        %v5515 = vadd.f32 %v721, %v5514
        %v5516 = vpop.f32.mrb[0].mxu0
        %v5517 = vpop.f32.mrb[0].mxu0
        %v5518 = vadd.f32 %v726, %v5517
        %v5519 = vpop.f32.mrb[0].mxu0
        %5520 = vmatprep.mubr.bf16.mxu0 0
        %5521 = vmatmul.mubr.bf16.gmra.mrb[0].mxu0 %v5371
        %v5522 = vpop.f32.mrb[0].mxu0
        %v5523 = vadd.f32 %v731, %v5522
        %v5524 = vpop.f32.mrb[0].mxu0
        %v5525 = vpop.f32.mrb[0].mxu0
        %v5526 = vadd.f32 %v736, %v5525
        %v5527 = vpop.f32.mrb[0].mxu0
        %5528 = vmatprep.mubr.bf16.mxu0 0
        %5529 = vmatmul.mubr.bf16.gmra.mrb[0].mxu0 %v5374
        %v5530 = vpop.f32.mrb[0].mxu0
        %v5531 = vadd.f32 %v741, %v5530
        %v5532 = vpop.f32.mrb[0].mxu0
        %v5533 = vpop.f32.mrb[0].mxu0
        %v5534 = vadd.f32 %v746, %v5533
        %v5535 = vpop.f32.mrb[0].mxu0
        %5536 = vdwg.mxu0
        %v5537 = vmax.f32 %v5411, 0.0
        %v5538 = vmax.f32 %v5414, 0.0
        %v5539 = vmax.f32 %v5419, 0.0
        %v5540 = vmax.f32 %v5422, 0.0
        %v5541 = vmax.f32 %v5427, 0.0
        %v5542 = vmax.f32 %v5430, 0.0
        %v5543 = vmax.f32 %v5435, 0.0
        %v5544 = vmax.f32 %v5438, 0.0
        %v5545 = vmax.f32 %v5443, 0.0
        %v5546 = vmax.f32 %v5446, 0.0
        %v5547 = vmax.f32 %v5451, 0.0
        %v5548 = vmax.f32 %v5454, 0.0
        %v5549 = vmax.f32 %v5459, 0.0
        %v5550 = vmax.f32 %v5462, 0.0
        %v5551 = vmax.f32 %v5467, 0.0
        %v5552 = vmax.f32 %v5470, 0.0
        %v5553 = vmax.f32 %v5475, 0.0
        %v5554 = vmax.f32 %v5478, 0.0
        %v5555 = vmax.f32 %v5483, 0.0
        %v5556 = vmax.f32 %v5486, 0.0
        %v5557 = vmax.f32 %v5491, 0.0
        %v5558 = vmax.f32 %v5494, 0.0
        %v5559 = vmax.f32 %v5499, 0.0
        %v5560 = vmax.f32 %v5502, 0.0
        %v5561 = vmax.f32 %v5507, 0.0
        %v5562 = vmax.f32 %v5510, 0.0
        %v5563 = vmax.f32 %v5515, 0.0
        %v5564 = vmax.f32 %v5518, 0.0
        %v5565 = vmax.f32 %v5523, 0.0
        %v5566 = vmax.f32 %v5526, 0.0
        %v5567 = vmax.f32 %v5531, 0.0
        %v5568 = vmax.f32 %v5534, 0.0
        %v5569 = vpack.c.bf16 %v5538, %v5537
        %v5570 = vpack.c.bf16 %v5540, %v5539
        %v5571 = vpack.c.bf16 %v5542, %v5541
        %v5572 = vpack.c.bf16 %v5544, %v5543
        %v5573 = vpack.c.bf16 %v5546, %v5545
        %v5574 = vpack.c.bf16 %v5548, %v5547
        %v5575 = vpack.c.bf16 %v5550, %v5549
        %v5576 = vpack.c.bf16 %v5552, %v5551
        %v5577 = vpack.c.bf16 %v5554, %v5553
        %v5578 = vpack.c.bf16 %v5556, %v5555
        %v5579 = vpack.c.bf16 %v5558, %v5557
        %v5580 = vpack.c.bf16 %v5560, %v5559
        %v5581 = vpack.c.bf16 %v5562, %v5561
        %v5582 = vpack.c.bf16 %v5564, %v5563
        %v5583 = vpack.c.bf16 %v5566, %v5565
        %v5584 = vpack.c.bf16 %v5568, %v5567
        %5585 = vmatprep.subr.bf16.mxu0 0
        %5586 = vmatpush1.bf16.msra.mxu0 %v5569
        %5587 = vmatprep.subr.bf16.mxu0 0
        %5588 = vmatpush1.bf16.msra.mxu0 %v5570
        %5589 = vmatprep.subr.bf16.mxu0 0
        %5590 = vmatpush1.bf16.msra.mxu0 %v5571
        %5591 = vmatprep.subr.bf16.mxu0 0
        %5592 = vmatpush1.bf16.msra.mxu0 %v5572
        %5593 = vmatprep.subr.bf16.mxu0 0
        %5594 = vmatpush1.bf16.msra.mxu0 %v5573
        %5595 = vmatprep.subr.bf16.mxu0 0
        %5596 = vmatpush1.bf16.msra.mxu0 %v5574
        %5597 = vmatprep.subr.bf16.mxu0 0
        %5598 = vmatpush1.bf16.msra.mxu0 %v5575
        %5599 = vmatprep.subr.bf16.mxu0 0
        %5600 = vmatpush1.bf16.msra.mxu0 %v5576
        %5601 = vmatprep.subr.bf16.mxu0 0
        %5602 = vmatpush1.bf16.msra.mxu0 %v5577
        %5603 = vmatprep.subr.bf16.mxu0 0
        %5604 = vmatpush1.bf16.msra.mxu0 %v5578
        %5605 = vmatprep.subr.bf16.mxu0 0
        %5606 = vmatpush1.bf16.msra.mxu0 %v5579
        %5607 = vmatprep.subr.bf16.mxu0 0
        %5608 = vmatpush1.bf16.msra.mxu0 %v5580
        %5609 = vmatprep.subr.bf16.mxu0 0
        %5610 = vmatpush1.bf16.msra.mxu0 %v5581
        %5611 = vmatprep.subr.bf16.mxu0 0
        %5612 = vmatpush1.bf16.msra.mxu0 %v5582
        %5613 = vmatprep.subr.bf16.mxu0 0
        %5614 = vmatpush1.bf16.msra.mxu0 %v5583
        %5615 = vmatprep.subr.bf16.mxu0 0
        %5616 = vmatpush1.bf16.msra.mxu0 %v5584
        %5617 = vmatprep.mubr.bf16.mxu0 %v1219
        %5618 = vmatmul.mubr.bf16.gmra.mrb[0].mxu0 %v1218
        %v5619 = vpop.f32.mrb[0].mxu0
        %v5620 = vadd.f32 %v1093, %v5619
        %v5621 = vpop.f32.mrb[0].mxu0
        %v5622 = vpop.f32.mrb[0].mxu0
        %v5623 = vadd.f32 %v1098, %v5622
        %v5624 = vpop.f32.mrb[0].mxu0
        %5625 = vmatprep.mubr.bf16.mxu0 %v1221
        %5626 = vmatmul.mubr.bf16.gmra.mrb[0].mxu0 %v1220
        %v5627 = vpop.f32.mrb[0].mxu0
        %v5628 = vadd.f32 %v1103, %v5627
        %v5629 = vpop.f32.mrb[0].mxu0
        %v5630 = vpop.f32.mrb[0].mxu0
        %v5631 = vadd.f32 %v1108, %v5630
        %v5632 = vpop.f32.mrb[0].mxu0
        %5633 = vmatprep.mubr.bf16.mxu0 %v1223
        %5634 = vmatmul.mubr.bf16.gmra.mrb[0].mxu0 %v1222
        %v5635 = vpop.f32.mrb[0].mxu0
        %v5636 = vadd.f32 %v1113, %v5635
        %v5637 = vpop.f32.mrb[0].mxu0
        %v5638 = vpop.f32.mrb[0].mxu0
        %v5639 = vadd.f32 %v1118, %v5638
        %v5640 = vpop.f32.mrb[0].mxu0
        %5641 = vmatprep.mubr.bf16.mxu0 %v1225
        %5642 = vmatmul.mubr.bf16.gmra.mrb[0].mxu0 %v1224
        %v5643 = vpop.f32.mrb[0].mxu0
        %v5644 = vadd.f32 %v1123, %v5643
        %v5645 = vpop.f32.mrb[0].mxu0
        %v5646 = vpop.f32.mrb[0].mxu0
        %v5647 = vadd.f32 %v1128, %v5646
        %v5648 = vpop.f32.mrb[0].mxu0
        %5649 = vmatprep.mubr.bf16.mxu0 %v1227
        %5650 = vmatmul.mubr.bf16.gmra.mrb[0].mxu0 %v1226
        %v5651 = vpop.f32.mrb[0].mxu0
        %v5652 = vadd.f32 %v1133, %v5651
        %v5653 = vpop.f32.mrb[0].mxu0
        %v5654 = vpop.f32.mrb[0].mxu0
        %v5655 = vadd.f32 %v1138, %v5654
        %v5656 = vpop.f32.mrb[0].mxu0
        %5657 = vmatprep.mubr.bf16.mxu0 %v1229
        %5658 = vmatmul.mubr.bf16.gmra.mrb[0].mxu0 %v1228
        %v5659 = vpop.f32.mrb[0].mxu0
        %v5660 = vadd.f32 %v1143, %v5659
        %v5661 = vpop.f32.mrb[0].mxu0
        %v5662 = vpop.f32.mrb[0].mxu0
        %v5663 = vadd.f32 %v1148, %v5662
        %v5664 = vpop.f32.mrb[0].mxu0
        %5665 = vmatprep.mubr.bf16.mxu0 %v1231
        %5666 = vmatmul.mubr.bf16.gmra.mrb[0].mxu0 %v1230
        %v5667 = vpop.f32.mrb[0].mxu0
        %v5668 = vadd.f32 %v1153, %v5667
        %v5669 = vpop.f32.mrb[0].mxu0
        %v5670 = vpop.f32.mrb[0].mxu0
        %v5671 = vadd.f32 %v1158, %v5670
        %v5672 = vpop.f32.mrb[0].mxu0
        %5673 = vmatprep.mubr.bf16.mxu0 %v1233
        %5674 = vmatmul.mubr.bf16.gmra.mrb[0].mxu0 %v1232
        %v5675 = vpop.f32.mrb[0].mxu0
        %v5676 = vadd.f32 %v1163, %v5675
        %v5677 = vpop.f32.mrb[0].mxu0
        %v5678 = vpop.f32.mrb[0].mxu0
        %v5679 = vadd.f32 %v1168, %v5678
        %v5680 = vpop.f32.mrb[0].mxu0
        %5681 = vdwg.mxu0
        %v5682 = vmax.f32 %v5620, 0.0
        %v5683 = vmax.f32 %v5623, 0.0
        %v5684 = vmax.f32 %v5628, 0.0
        %v5685 = vmax.f32 %v5631, 0.0
        %v5686 = vmax.f32 %v5636, 0.0
        %v5687 = vmax.f32 %v5639, 0.0
        %v5688 = vmax.f32 %v5644, 0.0
        %v5689 = vmax.f32 %v5647, 0.0
        %v5690 = vmax.f32 %v5652, 0.0
        %v5691 = vmax.f32 %v5655, 0.0
        %v5692 = vmax.f32 %v5660, 0.0
        %v5693 = vmax.f32 %v5663, 0.0
        %v5694 = vmax.f32 %v5668, 0.0
        %v5695 = vmax.f32 %v5671, 0.0
        %v5696 = vmax.f32 %v5676, 0.0
        %v5697 = vmax.f32 %v5679, 0.0
        %v5698 = vmul.f32 %v5682, %v1366
        %v5699 = vmul.f32 %v5683, %v1371
        %v5700 = vmul.f32 %v5684, %v1376
        %v5701 = vmul.f32 %v5685, %v1381
        %v5702 = vmul.f32 %v5686, %v1386
        %v5703 = vmul.f32 %v5687, %v1391
        %v5704 = vmul.f32 %v5688, %v1396
        %v5705 = vmul.f32 %v5689, %v1401
        %v5706 = vmul.f32 %v5690, %v1406
        %v5707 = vmul.f32 %v5691, %v1411
        %v5708 = vmul.f32 %v5692, %v1416
        %v5709 = vmul.f32 %v5693, %v1421
        %v5710 = vmul.f32 %v5694, %v1426
        %v5711 = vmul.f32 %v5695, %v1431
        %v5712 = vmul.f32 %v5696, %v1436
        %v5713 = vmul.f32 %v5697, %v1441
        %v5714 = vadd.f32 %v5698, %v5699
        %v5715 = vadd.f32 %v5714, %v5700
        %v5716 = vadd.f32 %v5715, %v5701
        %v5717 = vadd.f32 %v5716, %v5702
        %v5718 = vadd.f32 %v5717, %v5703
        %v5719 = vadd.f32 %v5718, %v5704
        %v5720 = vadd.f32 %v5719, %v5705
        %v5721 = vadd.f32 %v5720, %v5706
        %v5722 = vadd.f32 %v5721, %v5707
        %v5723 = vadd.f32 %v5722, %v5708
        %v5724 = vadd.f32 %v5723, %v5709
        %v5725 = vadd.f32 %v5724, %v5710
        %v5726 = vadd.f32 %v5725, %v5711
        %v5727 = vadd.f32 %v5726, %v5712
        %v5728 = vadd.f32 %v5727, %v5713
        %v5729 = vld [vmem:[%s465 + $0x40] sm:$0xff]
        %v5730 = vadd.f32 %v5728, %v1482
        %5732 = vset.pattern.permute.xlu0 0
        %5733 = vperm.xlu0 %5732, %v5729
        %v5734 = vpop.permute.xlu0 %5733
        %v5736 = vmul.f32 %v5734, %v1494
        %v5737 = vmul.f32 %v5730, %v5736
        %5738 = vst [vmem:[%s442 + $0x40] sm:$0xff] %v5737
        %v5739 = vxor.u32 %v5737, 2147483648
        %v5740 = vmul.f32 %v5739, 1.442695
        %v5741 = vpow.pop %v5740
        %v5742 = vadd.f32 %v5741, 1.0
        %v5743 = vrcp.pop %v5742
        %v5744 = vmul.f32 1.0, %v5743
        %5745 = vst [vmem:[%s435 + $0x40] sm:$0xff] %v5744
        %v5746 = vld [vmem:[%s451 + $0x480] sm:$0xf]
        %v5747 = vld [vmem:[%s451 + $0x484] sm:$0xf]
        %v5748 = vld [vmem:[%s451 + $0x488] sm:$0xf]
        %v5749 = vld [vmem:[%s451 + $0x48c] sm:$0xf]
        %v5750 = vld [vmem:[%s451 + $0x490] sm:$0xf]
        %v5751 = vld [vmem:[%s451 + $0x494] sm:$0xf]
        %v5752 = vld [vmem:[%s451 + $0x498] sm:$0xf]
        %v5753 = vld [vmem:[%s451 + $0x49c] sm:$0xf]
        %v5754 = vld [vmem:[%s451 + $0x4a0] sm:$0xf]
        %v5755 = vld [vmem:[%s451 + $0x4a4] sm:$0xf]
        %v5756 = vld [vmem:[%s451 + $0x4a8] sm:$0xf]
        %v5757 = vld [vmem:[%s451 + $0x4ac] sm:$0xf]
        %v5758 = vld [vmem:[%s451 + $0x4b0] sm:$0xf]
        %v5759 = vld [vmem:[%s451 + $0x4b4] sm:$0xf]
        %v5760 = vld [vmem:[%s451 + $0x4b8] sm:$0xf]
        %v5761 = vld [vmem:[%s451 + $0x4bc] sm:$0xf]
        %v5762 = vld [vmem:[%s451 + $0x4c0] sm:$0xf]
        %v5763 = vld [vmem:[%s451 + $0x4c4] sm:$0xf]
        %v5764 = vld [vmem:[%s451 + $0x4c8] sm:$0xf]
        %v5765 = vld [vmem:[%s451 + $0x4cc] sm:$0xf]
        %v5766 = vld [vmem:[%s451 + $0x4d0] sm:$0xf]
        %v5767 = vld [vmem:[%s451 + $0x4d4] sm:$0xf]
        %v5768 = vld [vmem:[%s451 + $0x4d8] sm:$0xf]
        %v5769 = vld [vmem:[%s451 + $0x4dc] sm:$0xf]
        %v5770 = vld [vmem:[%s451 + $0x4e0] sm:$0xf]
        %v5771 = vld [vmem:[%s451 + $0x4e4] sm:$0xf]
        %v5772 = vld [vmem:[%s451 + $0x4e8] sm:$0xf]
        %v5773 = vld [vmem:[%s451 + $0x4ec] sm:$0xf]
        %v5774 = vld [vmem:[%s451 + $0x4f0] sm:$0xf]
        %v5775 = vld [vmem:[%s451 + $0x4f4] sm:$0xf]
        %v5776 = vld [vmem:[%s451 + $0x4f8] sm:$0xf]
        %v5777 = vld [vmem:[%s451 + $0x4fc] sm:$0xf]
        %v5810 = vunpack.c.l.b16 %v5746
        %v5811 = vunpack.c.l.b16 %v5747
        %v5812 = vunpack.c.l.b16 %v5748
        %v5813 = vunpack.c.l.b16 %v5749
        %v5814 = vunpack.c.l.b16 %v5750
        %v5815 = vunpack.c.l.b16 %v5751
        %v5816 = vunpack.c.l.b16 %v5752
        %v5817 = vunpack.c.l.b16 %v5753
        %v5818 = vunpack.c.l.b16 %v5754
        %v5819 = vunpack.c.l.b16 %v5755
        %v5820 = vunpack.c.l.b16 %v5756
        %v5821 = vunpack.c.l.b16 %v5757
        %v5822 = vunpack.c.l.b16 %v5758
        %v5823 = vunpack.c.l.b16 %v5759
        %v5824 = vunpack.c.l.b16 %v5760
        %v5825 = vunpack.c.l.b16 %v5761
        %v5826 = vunpack.c.l.b16 %v5762
        %v5827 = vunpack.c.l.b16 %v5763
        %v5828 = vunpack.c.l.b16 %v5764
        %v5829 = vunpack.c.l.b16 %v5765
        %v5830 = vunpack.c.l.b16 %v5766
        %v5831 = vunpack.c.l.b16 %v5767
        %v5832 = vunpack.c.l.b16 %v5768
        %v5833 = vunpack.c.l.b16 %v5769
        %v5834 = vunpack.c.l.b16 %v5770
        %v5835 = vunpack.c.l.b16 %v5771
        %v5836 = vunpack.c.l.b16 %v5772
        %v5837 = vunpack.c.l.b16 %v5773
        %v5838 = vunpack.c.l.b16 %v5774
        %v5839 = vunpack.c.l.b16 %v5775
        %v5840 = vunpack.c.l.b16 %v5776
        %v5841 = vunpack.c.l.b16 %v5777
        %v5842 = vpack.c.b16 %v5811, %v5810
        %v5843 = vpack.c.b16 %v5813, %v5812
        %v5844 = vpack.c.b16 %v5815, %v5814
        %v5845 = vpack.c.b16 %v5817, %v5816
        %v5846 = vpack.c.b16 %v5819, %v5818
        %v5847 = vpack.c.b16 %v5821, %v5820
        %v5848 = vpack.c.b16 %v5823, %v5822
        %v5849 = vpack.c.b16 %v5825, %v5824
        %v5850 = vpack.c.b16 %v5827, %v5826
        %v5851 = vpack.c.b16 %v5829, %v5828
        %v5852 = vpack.c.b16 %v5831, %v5830
        %v5853 = vpack.c.b16 %v5833, %v5832
        %v5854 = vpack.c.b16 %v5835, %v5834
        %v5855 = vpack.c.b16 %v5837, %v5836
        %v5856 = vpack.c.b16 %v5839, %v5838
        %v5857 = vpack.c.b16 %v5841, %v5840
        %v5859 = vsel %vm828, %v5842, 0
        %v5862 = vsel %vm828, %v5843, 0
        %v5865 = vsel %vm828, %v5844, 0
        %v5868 = vsel %vm828, %v5845, 0
        %v5871 = vsel %vm828, %v5846, 0
        %v5874 = vsel %vm828, %v5847, 0
        %v5877 = vsel %vm828, %v5848, 0
        %v5880 = vsel %vm828, %v5849, 0
        %v5883 = vsel %vm828, %v5850, 0
        %v5886 = vsel %vm828, %v5851, 0
        %v5889 = vsel %vm828, %v5852, 0
        %v5892 = vsel %vm828, %v5853, 0
        %v5895 = vsel %vm828, %v5854, 0
        %v5898 = vsel %vm828, %v5855, 0
        %v5901 = vsel %vm828, %v5856, 0
        %v5904 = vsel %vm828, %v5857, 0
        %5906 = vmatprep.subr.bf16.mxu0 0
        %5907 = vmatpush1.bf16.msra.mxu0 %v879
        %5908 = vmatprep.subr.bf16.mxu0 0
        %5909 = vmatpush1.bf16.msra.mxu0 0
        %5910 = vmatprep.subr.bf16.mxu0 0
        %5911 = vmatpush1.bf16.msra.mxu0 0
        %5912 = vmatprep.subr.bf16.mxu0 0
        %5913 = vmatpush1.bf16.msra.mxu0 0
        %5914 = vmatprep.subr.bf16.mxu0 0
        %5915 = vmatpush1.bf16.msra.mxu0 0
        %5916 = vmatprep.subr.bf16.mxu0 0
        %5917 = vmatpush1.bf16.msra.mxu0 0
        %5918 = vmatprep.subr.bf16.mxu0 0
        %5919 = vmatpush1.bf16.msra.mxu0 0
        %5920 = vmatprep.subr.bf16.mxu0 0
        %5921 = vmatpush1.bf16.msra.mxu0 0
        %5922 = vmatprep.subr.bf16.mxu0 0
        %5923 = vmatpush1.bf16.msra.mxu0 0
        %5924 = vmatprep.subr.bf16.mxu0 0
        %5925 = vmatpush1.bf16.msra.mxu0 0
        %5926 = vmatprep.subr.bf16.mxu0 0
        %5927 = vmatpush1.bf16.msra.mxu0 0
        %5928 = vmatprep.subr.bf16.mxu0 0
        %5929 = vmatpush1.bf16.msra.mxu0 0
        %5930 = vmatprep.subr.bf16.mxu0 0
        %5931 = vmatpush1.bf16.msra.mxu0 0
        %5932 = vmatprep.subr.bf16.mxu0 0
        %5933 = vmatpush1.bf16.msra.mxu0 0
        %5934 = vmatprep.subr.bf16.mxu0 0
        %5935 = vmatpush1.bf16.msra.mxu0 0
        %5936 = vmatprep.subr.bf16.mxu0 0
        %5937 = vmatpush1.bf16.msra.mxu0 0
        %5938 = vmatprep.mubr.bf16.mxu0 0
        %5939 = vmatmul.mubr.bf16.gmra.mrb[0].mxu0 %v5859
        %v5940 = vpop.f32.mrb[0].mxu0
        %v5941 = vadd.f32 %v591, %v5940
        %v5942 = vpop.f32.mrb[0].mxu0
        %v5943 = vpop.f32.mrb[0].mxu0
        %v5944 = vadd.f32 %v596, %v5943
        %v5945 = vpop.f32.mrb[0].mxu0
        %5946 = vmatprep.mubr.bf16.mxu0 0
        %5947 = vmatmul.mubr.bf16.gmra.mrb[0].mxu0 %v5862
        %v5948 = vpop.f32.mrb[0].mxu0
        %v5949 = vadd.f32 %v601, %v5948
        %v5950 = vpop.f32.mrb[0].mxu0
        %v5951 = vpop.f32.mrb[0].mxu0
        %v5952 = vadd.f32 %v606, %v5951
        %v5953 = vpop.f32.mrb[0].mxu0
        %5954 = vmatprep.mubr.bf16.mxu0 0
        %5955 = vmatmul.mubr.bf16.gmra.mrb[0].mxu0 %v5865
        %v5956 = vpop.f32.mrb[0].mxu0
        %v5957 = vadd.f32 %v611, %v5956
        %v5958 = vpop.f32.mrb[0].mxu0
        %v5959 = vpop.f32.mrb[0].mxu0
        %v5960 = vadd.f32 %v616, %v5959
        %v5961 = vpop.f32.mrb[0].mxu0
        %5962 = vmatprep.mubr.bf16.mxu0 0
        %5963 = vmatmul.mubr.bf16.gmra.mrb[0].mxu0 %v5868
        %v5964 = vpop.f32.mrb[0].mxu0
        %v5965 = vadd.f32 %v621, %v5964
        %v5966 = vpop.f32.mrb[0].mxu0
        %v5967 = vpop.f32.mrb[0].mxu0
        %v5968 = vadd.f32 %v626, %v5967
        %v5969 = vpop.f32.mrb[0].mxu0
        %5970 = vmatprep.mubr.bf16.mxu0 0
        %5971 = vmatmul.mubr.bf16.gmra.mrb[0].mxu0 %v5871
        %v5972 = vpop.f32.mrb[0].mxu0
        %v5973 = vadd.f32 %v631, %v5972
        %v5974 = vpop.f32.mrb[0].mxu0
        %v5975 = vpop.f32.mrb[0].mxu0
        %v5976 = vadd.f32 %v636, %v5975
        %v5977 = vpop.f32.mrb[0].mxu0
        %5978 = vmatprep.mubr.bf16.mxu0 0
        %5979 = vmatmul.mubr.bf16.gmra.mrb[0].mxu0 %v5874
        %v5980 = vpop.f32.mrb[0].mxu0
        %v5981 = vadd.f32 %v641, %v5980
        %v5982 = vpop.f32.mrb[0].mxu0
        %v5983 = vpop.f32.mrb[0].mxu0
        %v5984 = vadd.f32 %v646, %v5983
        %v5985 = vpop.f32.mrb[0].mxu0
        %5986 = vmatprep.mubr.bf16.mxu0 0
        %5987 = vmatmul.mubr.bf16.gmra.mrb[0].mxu0 %v5877
        %v5988 = vpop.f32.mrb[0].mxu0
        %v5989 = vadd.f32 %v651, %v5988
        %v5990 = vpop.f32.mrb[0].mxu0
        %v5991 = vpop.f32.mrb[0].mxu0
        %v5992 = vadd.f32 %v656, %v5991
        %v5993 = vpop.f32.mrb[0].mxu0
        %5994 = vmatprep.mubr.bf16.mxu0 0
        %5995 = vmatmul.mubr.bf16.gmra.mrb[0].mxu0 %v5880
        %v5996 = vpop.f32.mrb[0].mxu0
        %v5997 = vadd.f32 %v661, %v5996
        %v5998 = vpop.f32.mrb[0].mxu0
        %v5999 = vpop.f32.mrb[0].mxu0
        %v6000 = vadd.f32 %v666, %v5999
        %v6001 = vpop.f32.mrb[0].mxu0
        %6002 = vmatprep.mubr.bf16.mxu0 0
        %6003 = vmatmul.mubr.bf16.gmra.mrb[0].mxu0 %v5883
        %v6004 = vpop.f32.mrb[0].mxu0
        %v6005 = vadd.f32 %v671, %v6004
        %v6006 = vpop.f32.mrb[0].mxu0
        %v6007 = vpop.f32.mrb[0].mxu0
        %v6008 = vadd.f32 %v676, %v6007
        %v6009 = vpop.f32.mrb[0].mxu0
        %6010 = vmatprep.mubr.bf16.mxu0 0
        %6011 = vmatmul.mubr.bf16.gmra.mrb[0].mxu0 %v5886
        %v6012 = vpop.f32.mrb[0].mxu0
        %v6013 = vadd.f32 %v681, %v6012
        %v6014 = vpop.f32.mrb[0].mxu0
        %v6015 = vpop.f32.mrb[0].mxu0
        %v6016 = vadd.f32 %v686, %v6015
        %v6017 = vpop.f32.mrb[0].mxu0
        %6018 = vmatprep.mubr.bf16.mxu0 0
        %6019 = vmatmul.mubr.bf16.gmra.mrb[0].mxu0 %v5889
        %v6020 = vpop.f32.mrb[0].mxu0
        %v6021 = vadd.f32 %v691, %v6020
        %v6022 = vpop.f32.mrb[0].mxu0
        %v6023 = vpop.f32.mrb[0].mxu0
        %v6024 = vadd.f32 %v696, %v6023
        %v6025 = vpop.f32.mrb[0].mxu0
        %6026 = vmatprep.mubr.bf16.mxu0 0
        %6027 = vmatmul.mubr.bf16.gmra.mrb[0].mxu0 %v5892
        %v6028 = vpop.f32.mrb[0].mxu0
        %v6029 = vadd.f32 %v701, %v6028
        %v6030 = vpop.f32.mrb[0].mxu0
        %v6031 = vpop.f32.mrb[0].mxu0
        %v6032 = vadd.f32 %v706, %v6031
        %v6033 = vpop.f32.mrb[0].mxu0
        %6034 = vmatprep.mubr.bf16.mxu0 0
        %6035 = vmatmul.mubr.bf16.gmra.mrb[0].mxu0 %v5895
        %v6036 = vpop.f32.mrb[0].mxu0
        %v6037 = vadd.f32 %v711, %v6036
        %v6038 = vpop.f32.mrb[0].mxu0
        %v6039 = vpop.f32.mrb[0].mxu0
        %v6040 = vadd.f32 %v716, %v6039
        %v6041 = vpop.f32.mrb[0].mxu0
        %6042 = vmatprep.mubr.bf16.mxu0 0
        %6043 = vmatmul.mubr.bf16.gmra.mrb[0].mxu0 %v5898
        %v6044 = vpop.f32.mrb[0].mxu0
        %v6045 = vadd.f32 %v721, %v6044
        %v6046 = vpop.f32.mrb[0].mxu0
        %v6047 = vpop.f32.mrb[0].mxu0
        %v6048 = vadd.f32 %v726, %v6047
        %v6049 = vpop.f32.mrb[0].mxu0
        %6050 = vmatprep.mubr.bf16.mxu0 0
        %6051 = vmatmul.mubr.bf16.gmra.mrb[0].mxu0 %v5901
        %v6052 = vpop.f32.mrb[0].mxu0
        %v6053 = vadd.f32 %v731, %v6052
        %v6054 = vpop.f32.mrb[0].mxu0
        %v6055 = vpop.f32.mrb[0].mxu0
        %v6056 = vadd.f32 %v736, %v6055
        %v6057 = vpop.f32.mrb[0].mxu0
        %6058 = vmatprep.mubr.bf16.mxu0 0
        %6059 = vmatmul.mubr.bf16.gmra.mrb[0].mxu0 %v5904
        %v6060 = vpop.f32.mrb[0].mxu0
        %v6061 = vadd.f32 %v741, %v6060
        %v6062 = vpop.f32.mrb[0].mxu0
        %v6063 = vpop.f32.mrb[0].mxu0
        %v6064 = vadd.f32 %v746, %v6063
        %v6065 = vpop.f32.mrb[0].mxu0
        %6066 = vdwg.mxu0
        %v6067 = vmax.f32 %v5941, 0.0
        %v6068 = vmax.f32 %v5944, 0.0
        %v6069 = vmax.f32 %v5949, 0.0
        %v6070 = vmax.f32 %v5952, 0.0
        %v6071 = vmax.f32 %v5957, 0.0
        %v6072 = vmax.f32 %v5960, 0.0
        %v6073 = vmax.f32 %v5965, 0.0
        %v6074 = vmax.f32 %v5968, 0.0
        %v6075 = vmax.f32 %v5973, 0.0
        %v6076 = vmax.f32 %v5976, 0.0
        %v6077 = vmax.f32 %v5981, 0.0
        %v6078 = vmax.f32 %v5984, 0.0
        %v6079 = vmax.f32 %v5989, 0.0
        %v6080 = vmax.f32 %v5992, 0.0
        %v6081 = vmax.f32 %v5997, 0.0
        %v6082 = vmax.f32 %v6000, 0.0
        %v6083 = vmax.f32 %v6005, 0.0
        %v6084 = vmax.f32 %v6008, 0.0
        %v6085 = vmax.f32 %v6013, 0.0
        %v6086 = vmax.f32 %v6016, 0.0
        %v6087 = vmax.f32 %v6021, 0.0
        %v6088 = vmax.f32 %v6024, 0.0
        %v6089 = vmax.f32 %v6029, 0.0
        %v6090 = vmax.f32 %v6032, 0.0
        %v6091 = vmax.f32 %v6037, 0.0
        %v6092 = vmax.f32 %v6040, 0.0
        %v6093 = vmax.f32 %v6045, 0.0
        %v6094 = vmax.f32 %v6048, 0.0
        %v6095 = vmax.f32 %v6053, 0.0
        %v6096 = vmax.f32 %v6056, 0.0
        %v6097 = vmax.f32 %v6061, 0.0
        %v6098 = vmax.f32 %v6064, 0.0
        %v6099 = vpack.c.bf16 %v6068, %v6067
        %v6100 = vpack.c.bf16 %v6070, %v6069
        %v6101 = vpack.c.bf16 %v6072, %v6071
        %v6102 = vpack.c.bf16 %v6074, %v6073
        %v6103 = vpack.c.bf16 %v6076, %v6075
        %v6104 = vpack.c.bf16 %v6078, %v6077
        %v6105 = vpack.c.bf16 %v6080, %v6079
        %v6106 = vpack.c.bf16 %v6082, %v6081
        %v6107 = vpack.c.bf16 %v6084, %v6083
        %v6108 = vpack.c.bf16 %v6086, %v6085
        %v6109 = vpack.c.bf16 %v6088, %v6087
        %v6110 = vpack.c.bf16 %v6090, %v6089
        %v6111 = vpack.c.bf16 %v6092, %v6091
        %v6112 = vpack.c.bf16 %v6094, %v6093
        %v6113 = vpack.c.bf16 %v6096, %v6095
        %v6114 = vpack.c.bf16 %v6098, %v6097
        %6115 = vmatprep.subr.bf16.mxu0 0
        %6116 = vmatpush1.bf16.msra.mxu0 %v6099
        %6117 = vmatprep.subr.bf16.mxu0 0
        %6118 = vmatpush1.bf16.msra.mxu0 %v6100
        %6119 = vmatprep.subr.bf16.mxu0 0
        %6120 = vmatpush1.bf16.msra.mxu0 %v6101
        %6121 = vmatprep.subr.bf16.mxu0 0
        %6122 = vmatpush1.bf16.msra.mxu0 %v6102
        %6123 = vmatprep.subr.bf16.mxu0 0
        %6124 = vmatpush1.bf16.msra.mxu0 %v6103
        %6125 = vmatprep.subr.bf16.mxu0 0
        %6126 = vmatpush1.bf16.msra.mxu0 %v6104
        %6127 = vmatprep.subr.bf16.mxu0 0
        %6128 = vmatpush1.bf16.msra.mxu0 %v6105
        %6129 = vmatprep.subr.bf16.mxu0 0
        %6130 = vmatpush1.bf16.msra.mxu0 %v6106
        %6131 = vmatprep.subr.bf16.mxu0 0
        %6132 = vmatpush1.bf16.msra.mxu0 %v6107
        %6133 = vmatprep.subr.bf16.mxu0 0
        %6134 = vmatpush1.bf16.msra.mxu0 %v6108
        %6135 = vmatprep.subr.bf16.mxu0 0
        %6136 = vmatpush1.bf16.msra.mxu0 %v6109
        %6137 = vmatprep.subr.bf16.mxu0 0
        %6138 = vmatpush1.bf16.msra.mxu0 %v6110
        %6139 = vmatprep.subr.bf16.mxu0 0
        %6140 = vmatpush1.bf16.msra.mxu0 %v6111
        %6141 = vmatprep.subr.bf16.mxu0 0
        %6142 = vmatpush1.bf16.msra.mxu0 %v6112
        %6143 = vmatprep.subr.bf16.mxu0 0
        %6144 = vmatpush1.bf16.msra.mxu0 %v6113
        %6145 = vmatprep.subr.bf16.mxu0 0
        %6146 = vmatpush1.bf16.msra.mxu0 %v6114
        %6147 = vmatprep.mubr.bf16.mxu0 %v1219
        %6148 = vmatmul.mubr.bf16.gmra.mrb[0].mxu0 %v1218
        %v6149 = vpop.f32.mrb[0].mxu0
        %v6150 = vadd.f32 %v1093, %v6149
        %v6151 = vpop.f32.mrb[0].mxu0
        %v6152 = vpop.f32.mrb[0].mxu0
        %v6153 = vadd.f32 %v1098, %v6152
        %v6154 = vpop.f32.mrb[0].mxu0
        %6155 = vmatprep.mubr.bf16.mxu0 %v1221
        %6156 = vmatmul.mubr.bf16.gmra.mrb[0].mxu0 %v1220
        %v6157 = vpop.f32.mrb[0].mxu0
        %v6158 = vadd.f32 %v1103, %v6157
        %v6159 = vpop.f32.mrb[0].mxu0
        %v6160 = vpop.f32.mrb[0].mxu0
        %v6161 = vadd.f32 %v1108, %v6160
        %v6162 = vpop.f32.mrb[0].mxu0
        %6163 = vmatprep.mubr.bf16.mxu0 %v1223
        %6164 = vmatmul.mubr.bf16.gmra.mrb[0].mxu0 %v1222
        %v6165 = vpop.f32.mrb[0].mxu0
        %v6166 = vadd.f32 %v1113, %v6165
        %v6167 = vpop.f32.mrb[0].mxu0
        %v6168 = vpop.f32.mrb[0].mxu0
        %v6169 = vadd.f32 %v1118, %v6168
        %v6170 = vpop.f32.mrb[0].mxu0
        %6171 = vmatprep.mubr.bf16.mxu0 %v1225
        %6172 = vmatmul.mubr.bf16.gmra.mrb[0].mxu0 %v1224
        %v6173 = vpop.f32.mrb[0].mxu0
        %v6174 = vadd.f32 %v1123, %v6173
        %v6175 = vpop.f32.mrb[0].mxu0
        %v6176 = vpop.f32.mrb[0].mxu0
        %v6177 = vadd.f32 %v1128, %v6176
        %v6178 = vpop.f32.mrb[0].mxu0
        %6179 = vmatprep.mubr.bf16.mxu0 %v1227
        %6180 = vmatmul.mubr.bf16.gmra.mrb[0].mxu0 %v1226
        %v6181 = vpop.f32.mrb[0].mxu0
        %v6182 = vadd.f32 %v1133, %v6181
        %v6183 = vpop.f32.mrb[0].mxu0
        %v6184 = vpop.f32.mrb[0].mxu0
        %v6185 = vadd.f32 %v1138, %v6184
        %v6186 = vpop.f32.mrb[0].mxu0
        %6187 = vmatprep.mubr.bf16.mxu0 %v1229
        %6188 = vmatmul.mubr.bf16.gmra.mrb[0].mxu0 %v1228
        %v6189 = vpop.f32.mrb[0].mxu0
        %v6190 = vadd.f32 %v1143, %v6189
        %v6191 = vpop.f32.mrb[0].mxu0
        %v6192 = vpop.f32.mrb[0].mxu0
        %v6193 = vadd.f32 %v1148, %v6192
        %v6194 = vpop.f32.mrb[0].mxu0
        %6195 = vmatprep.mubr.bf16.mxu0 %v1231
        %6196 = vmatmul.mubr.bf16.gmra.mrb[0].mxu0 %v1230
        %v6197 = vpop.f32.mrb[0].mxu0
        %v6198 = vadd.f32 %v1153, %v6197
        %v6199 = vpop.f32.mrb[0].mxu0
        %v6200 = vpop.f32.mrb[0].mxu0
        %v6201 = vadd.f32 %v1158, %v6200
        %v6202 = vpop.f32.mrb[0].mxu0
        %6203 = vmatprep.mubr.bf16.mxu0 %v1233
        %6204 = vmatmul.mubr.bf16.gmra.mrb[0].mxu0 %v1232
        %v6205 = vpop.f32.mrb[0].mxu0
        %v6206 = vadd.f32 %v1163, %v6205
        %v6207 = vpop.f32.mrb[0].mxu0
        %v6208 = vpop.f32.mrb[0].mxu0
        %v6209 = vadd.f32 %v1168, %v6208
        %v6210 = vpop.f32.mrb[0].mxu0
        %6211 = vdwg.mxu0
        %v6212 = vmax.f32 %v6150, 0.0
        %v6213 = vmax.f32 %v6153, 0.0
        %v6214 = vmax.f32 %v6158, 0.0
        %v6215 = vmax.f32 %v6161, 0.0
        %v6216 = vmax.f32 %v6166, 0.0
        %v6217 = vmax.f32 %v6169, 0.0
        %v6218 = vmax.f32 %v6174, 0.0
        %v6219 = vmax.f32 %v6177, 0.0
        %v6220 = vmax.f32 %v6182, 0.0
        %v6221 = vmax.f32 %v6185, 0.0
        %v6222 = vmax.f32 %v6190, 0.0
        %v6223 = vmax.f32 %v6193, 0.0
        %v6224 = vmax.f32 %v6198, 0.0
        %v6225 = vmax.f32 %v6201, 0.0
        %v6226 = vmax.f32 %v6206, 0.0
        %v6227 = vmax.f32 %v6209, 0.0
        %v6228 = vmul.f32 %v6212, %v1366
        %v6229 = vmul.f32 %v6213, %v1371
        %v6230 = vmul.f32 %v6214, %v1376
        %v6231 = vmul.f32 %v6215, %v1381
        %v6232 = vmul.f32 %v6216, %v1386
        %v6233 = vmul.f32 %v6217, %v1391
        %v6234 = vmul.f32 %v6218, %v1396
        %v6235 = vmul.f32 %v6219, %v1401
        %v6236 = vmul.f32 %v6220, %v1406
        %v6237 = vmul.f32 %v6221, %v1411
        %v6238 = vmul.f32 %v6222, %v1416
        %v6239 = vmul.f32 %v6223, %v1421
        %v6240 = vmul.f32 %v6224, %v1426
        %v6241 = vmul.f32 %v6225, %v1431
        %v6242 = vmul.f32 %v6226, %v1436
        %v6243 = vmul.f32 %v6227, %v1441
        %v6244 = vadd.f32 %v6228, %v6229
        %v6245 = vadd.f32 %v6244, %v6230
        %v6246 = vadd.f32 %v6245, %v6231
        %v6247 = vadd.f32 %v6246, %v6232
        %v6248 = vadd.f32 %v6247, %v6233
        %v6249 = vadd.f32 %v6248, %v6234
        %v6250 = vadd.f32 %v6249, %v6235
        %v6251 = vadd.f32 %v6250, %v6236
        %v6252 = vadd.f32 %v6251, %v6237
        %v6253 = vadd.f32 %v6252, %v6238
        %v6254 = vadd.f32 %v6253, %v6239
        %v6255 = vadd.f32 %v6254, %v6240
        %v6256 = vadd.f32 %v6255, %v6241
        %v6257 = vadd.f32 %v6256, %v6242
        %v6258 = vadd.f32 %v6257, %v6243
        %v6259 = vld [vmem:[%s465 + $0x48] sm:$0xff]
        %v6260 = vadd.f32 %v6258, %v1482
        %6262 = vset.pattern.permute.xlu0 0
        %6263 = vperm.xlu0 %6262, %v6259
        %v6264 = vpop.permute.xlu0 %6263
        %v6266 = vmul.f32 %v6264, %v1494
        %v6267 = vmul.f32 %v6260, %v6266
        %6268 = vst [vmem:[%s442 + $0x48] sm:$0xff] %v6267
        %v6269 = vxor.u32 %v6267, 2147483648
        %v6270 = vmul.f32 %v6269, 1.442695
        %v6271 = vpow.pop %v6270
        %v6272 = vadd.f32 %v6271, 1.0
        %v6273 = vrcp.pop %v6272
        %v6274 = vmul.f32 1.0, %v6273
        %6275 = vst [vmem:[%s435 + $0x48] sm:$0xff] %v6274
        %v6276 = vld [vmem:[%s451 + $0x500] sm:$0xf]
        %v6277 = vld [vmem:[%s451 + $0x504] sm:$0xf]
        %v6278 = vld [vmem:[%s451 + $0x508] sm:$0xf]
        %v6279 = vld [vmem:[%s451 + $0x50c] sm:$0xf]
        %v6280 = vld [vmem:[%s451 + $0x510] sm:$0xf]
        %v6281 = vld [vmem:[%s451 + $0x514] sm:$0xf]
        %v6282 = vld [vmem:[%s451 + $0x518] sm:$0xf]
        %v6283 = vld [vmem:[%s451 + $0x51c] sm:$0xf]
        %v6284 = vld [vmem:[%s451 + $0x520] sm:$0xf]
        %v6285 = vld [vmem:[%s451 + $0x524] sm:$0xf]
        %v6286 = vld [vmem:[%s451 + $0x528] sm:$0xf]
        %v6287 = vld [vmem:[%s451 + $0x52c] sm:$0xf]
        %v6288 = vld [vmem:[%s451 + $0x530] sm:$0xf]
        %v6289 = vld [vmem:[%s451 + $0x534] sm:$0xf]
        %v6290 = vld [vmem:[%s451 + $0x538] sm:$0xf]
        %v6291 = vld [vmem:[%s451 + $0x53c] sm:$0xf]
        %v6292 = vld [vmem:[%s451 + $0x540] sm:$0xf]
        %v6293 = vld [vmem:[%s451 + $0x544] sm:$0xf]
        %v6294 = vld [vmem:[%s451 + $0x548] sm:$0xf]
        %v6295 = vld [vmem:[%s451 + $0x54c] sm:$0xf]
        %v6296 = vld [vmem:[%s451 + $0x550] sm:$0xf]
        %v6297 = vld [vmem:[%s451 + $0x554] sm:$0xf]
        %v6298 = vld [vmem:[%s451 + $0x558] sm:$0xf]
        %v6299 = vld [vmem:[%s451 + $0x55c] sm:$0xf]
        %v6300 = vld [vmem:[%s451 + $0x560] sm:$0xf]
        %v6301 = vld [vmem:[%s451 + $0x564] sm:$0xf]
        %v6302 = vld [vmem:[%s451 + $0x568] sm:$0xf]
        %v6303 = vld [vmem:[%s451 + $0x56c] sm:$0xf]
        %v6304 = vld [vmem:[%s451 + $0x570] sm:$0xf]
        %v6305 = vld [vmem:[%s451 + $0x574] sm:$0xf]
        %v6306 = vld [vmem:[%s451 + $0x578] sm:$0xf]
        %v6307 = vld [vmem:[%s451 + $0x57c] sm:$0xf]
        %v6340 = vunpack.c.l.b16 %v6276
        %v6341 = vunpack.c.l.b16 %v6277
        %v6342 = vunpack.c.l.b16 %v6278
        %v6343 = vunpack.c.l.b16 %v6279
        %v6344 = vunpack.c.l.b16 %v6280
        %v6345 = vunpack.c.l.b16 %v6281
        %v6346 = vunpack.c.l.b16 %v6282
        %v6347 = vunpack.c.l.b16 %v6283
        %v6348 = vunpack.c.l.b16 %v6284
        %v6349 = vunpack.c.l.b16 %v6285
        %v6350 = vunpack.c.l.b16 %v6286
        %v6351 = vunpack.c.l.b16 %v6287
        %v6352 = vunpack.c.l.b16 %v6288
        %v6353 = vunpack.c.l.b16 %v6289
        %v6354 = vunpack.c.l.b16 %v6290
        %v6355 = vunpack.c.l.b16 %v6291
        %v6356 = vunpack.c.l.b16 %v6292
        %v6357 = vunpack.c.l.b16 %v6293
        %v6358 = vunpack.c.l.b16 %v6294
        %v6359 = vunpack.c.l.b16 %v6295
        %v6360 = vunpack.c.l.b16 %v6296
        %v6361 = vunpack.c.l.b16 %v6297
        %v6362 = vunpack.c.l.b16 %v6298
        %v6363 = vunpack.c.l.b16 %v6299
        %v6364 = vunpack.c.l.b16 %v6300
        %v6365 = vunpack.c.l.b16 %v6301
        %v6366 = vunpack.c.l.b16 %v6302
        %v6367 = vunpack.c.l.b16 %v6303
        %v6368 = vunpack.c.l.b16 %v6304
        %v6369 = vunpack.c.l.b16 %v6305
        %v6370 = vunpack.c.l.b16 %v6306
        %v6371 = vunpack.c.l.b16 %v6307
        %v6372 = vpack.c.b16 %v6341, %v6340
        %v6373 = vpack.c.b16 %v6343, %v6342
        %v6374 = vpack.c.b16 %v6345, %v6344
        %v6375 = vpack.c.b16 %v6347, %v6346
        %v6376 = vpack.c.b16 %v6349, %v6348
        %v6377 = vpack.c.b16 %v6351, %v6350
        %v6378 = vpack.c.b16 %v6353, %v6352
        %v6379 = vpack.c.b16 %v6355, %v6354
        %v6380 = vpack.c.b16 %v6357, %v6356
        %v6381 = vpack.c.b16 %v6359, %v6358
        %v6382 = vpack.c.b16 %v6361, %v6360
        %v6383 = vpack.c.b16 %v6363, %v6362
        %v6384 = vpack.c.b16 %v6365, %v6364
        %v6385 = vpack.c.b16 %v6367, %v6366
        %v6386 = vpack.c.b16 %v6369, %v6368
        %v6387 = vpack.c.b16 %v6371, %v6370
        %v6389 = vsel %vm828, %v6372, 0
        %v6392 = vsel %vm828, %v6373, 0
        %v6395 = vsel %vm828, %v6374, 0
        %v6398 = vsel %vm828, %v6375, 0
        %v6401 = vsel %vm828, %v6376, 0
        %v6404 = vsel %vm828, %v6377, 0
        %v6407 = vsel %vm828, %v6378, 0
        %v6410 = vsel %vm828, %v6379, 0
        %v6413 = vsel %vm828, %v6380, 0
        %v6416 = vsel %vm828, %v6381, 0
        %v6419 = vsel %vm828, %v6382, 0
        %v6422 = vsel %vm828, %v6383, 0
        %v6425 = vsel %vm828, %v6384, 0
        %v6428 = vsel %vm828, %v6385, 0
        %v6431 = vsel %vm828, %v6386, 0
        %v6434 = vsel %vm828, %v6387, 0
        %6436 = vmatprep.subr.bf16.mxu0 0
        %6437 = vmatpush1.bf16.msra.mxu0 %v879
        %6438 = vmatprep.subr.bf16.mxu0 0
        %6439 = vmatpush1.bf16.msra.mxu0 0
        %6440 = vmatprep.subr.bf16.mxu0 0
        %6441 = vmatpush1.bf16.msra.mxu0 0
        %6442 = vmatprep.subr.bf16.mxu0 0
        %6443 = vmatpush1.bf16.msra.mxu0 0
        %6444 = vmatprep.subr.bf16.mxu0 0
        %6445 = vmatpush1.bf16.msra.mxu0 0
        %6446 = vmatprep.subr.bf16.mxu0 0
        %6447 = vmatpush1.bf16.msra.mxu0 0
        %6448 = vmatprep.subr.bf16.mxu0 0
        %6449 = vmatpush1.bf16.msra.mxu0 0
        %6450 = vmatprep.subr.bf16.mxu0 0
        %6451 = vmatpush1.bf16.msra.mxu0 0
        %6452 = vmatprep.subr.bf16.mxu0 0
        %6453 = vmatpush1.bf16.msra.mxu0 0
        %6454 = vmatprep.subr.bf16.mxu0 0
        %6455 = vmatpush1.bf16.msra.mxu0 0
        %6456 = vmatprep.subr.bf16.mxu0 0
        %6457 = vmatpush1.bf16.msra.mxu0 0
        %6458 = vmatprep.subr.bf16.mxu0 0
        %6459 = vmatpush1.bf16.msra.mxu0 0
        %6460 = vmatprep.subr.bf16.mxu0 0
        %6461 = vmatpush1.bf16.msra.mxu0 0
        %6462 = vmatprep.subr.bf16.mxu0 0
        %6463 = vmatpush1.bf16.msra.mxu0 0
        %6464 = vmatprep.subr.bf16.mxu0 0
        %6465 = vmatpush1.bf16.msra.mxu0 0
        %6466 = vmatprep.subr.bf16.mxu0 0
        %6467 = vmatpush1.bf16.msra.mxu0 0
        %6468 = vmatprep.mubr.bf16.mxu0 0
        %6469 = vmatmul.mubr.bf16.gmra.mrb[0].mxu0 %v6389
        %v6470 = vpop.f32.mrb[0].mxu0
        %v6471 = vadd.f32 %v591, %v6470
        %v6472 = vpop.f32.mrb[0].mxu0
        %v6473 = vpop.f32.mrb[0].mxu0
        %v6474 = vadd.f32 %v596, %v6473
        %v6475 = vpop.f32.mrb[0].mxu0
        %6476 = vmatprep.mubr.bf16.mxu0 0
        %6477 = vmatmul.mubr.bf16.gmra.mrb[0].mxu0 %v6392
        %v6478 = vpop.f32.mrb[0].mxu0
        %v6479 = vadd.f32 %v601, %v6478
        %v6480 = vpop.f32.mrb[0].mxu0
        %v6481 = vpop.f32.mrb[0].mxu0
        %v6482 = vadd.f32 %v606, %v6481
        %v6483 = vpop.f32.mrb[0].mxu0
        %6484 = vmatprep.mubr.bf16.mxu0 0
        %6485 = vmatmul.mubr.bf16.gmra.mrb[0].mxu0 %v6395
        %v6486 = vpop.f32.mrb[0].mxu0
        %v6487 = vadd.f32 %v611, %v6486
        %v6488 = vpop.f32.mrb[0].mxu0
        %v6489 = vpop.f32.mrb[0].mxu0
        %v6490 = vadd.f32 %v616, %v6489
        %v6491 = vpop.f32.mrb[0].mxu0
        %6492 = vmatprep.mubr.bf16.mxu0 0
        %6493 = vmatmul.mubr.bf16.gmra.mrb[0].mxu0 %v6398
        %v6494 = vpop.f32.mrb[0].mxu0
        %v6495 = vadd.f32 %v621, %v6494
        %v6496 = vpop.f32.mrb[0].mxu0
        %v6497 = vpop.f32.mrb[0].mxu0
        %v6498 = vadd.f32 %v626, %v6497
        %v6499 = vpop.f32.mrb[0].mxu0
        %6500 = vmatprep.mubr.bf16.mxu0 0
        %6501 = vmatmul.mubr.bf16.gmra.mrb[0].mxu0 %v6401
        %v6502 = vpop.f32.mrb[0].mxu0
        %v6503 = vadd.f32 %v631, %v6502
        %v6504 = vpop.f32.mrb[0].mxu0
        %v6505 = vpop.f32.mrb[0].mxu0
        %v6506 = vadd.f32 %v636, %v6505
        %v6507 = vpop.f32.mrb[0].mxu0
        %6508 = vmatprep.mubr.bf16.mxu0 0
        %6509 = vmatmul.mubr.bf16.gmra.mrb[0].mxu0 %v6404
        %v6510 = vpop.f32.mrb[0].mxu0
        %v6511 = vadd.f32 %v641, %v6510
        %v6512 = vpop.f32.mrb[0].mxu0
        %v6513 = vpop.f32.mrb[0].mxu0
        %v6514 = vadd.f32 %v646, %v6513
        %v6515 = vpop.f32.mrb[0].mxu0
        %6516 = vmatprep.mubr.bf16.mxu0 0
        %6517 = vmatmul.mubr.bf16.gmra.mrb[0].mxu0 %v6407
        %v6518 = vpop.f32.mrb[0].mxu0
        %v6519 = vadd.f32 %v651, %v6518
        %v6520 = vpop.f32.mrb[0].mxu0
        %v6521 = vpop.f32.mrb[0].mxu0
        %v6522 = vadd.f32 %v656, %v6521
        %v6523 = vpop.f32.mrb[0].mxu0
        %6524 = vmatprep.mubr.bf16.mxu0 0
        %6525 = vmatmul.mubr.bf16.gmra.mrb[0].mxu0 %v6410
        %v6526 = vpop.f32.mrb[0].mxu0
        %v6527 = vadd.f32 %v661, %v6526
        %v6528 = vpop.f32.mrb[0].mxu0
        %v6529 = vpop.f32.mrb[0].mxu0
        %v6530 = vadd.f32 %v666, %v6529
        %v6531 = vpop.f32.mrb[0].mxu0
        %6532 = vmatprep.mubr.bf16.mxu0 0
        %6533 = vmatmul.mubr.bf16.gmra.mrb[0].mxu0 %v6413
        %v6534 = vpop.f32.mrb[0].mxu0
        %v6535 = vadd.f32 %v671, %v6534
        %v6536 = vpop.f32.mrb[0].mxu0
        %v6537 = vpop.f32.mrb[0].mxu0
        %v6538 = vadd.f32 %v676, %v6537
        %v6539 = vpop.f32.mrb[0].mxu0
        %6540 = vmatprep.mubr.bf16.mxu0 0
        %6541 = vmatmul.mubr.bf16.gmra.mrb[0].mxu0 %v6416
        %v6542 = vpop.f32.mrb[0].mxu0
        %v6543 = vadd.f32 %v681, %v6542
        %v6544 = vpop.f32.mrb[0].mxu0
        %v6545 = vpop.f32.mrb[0].mxu0
        %v6546 = vadd.f32 %v686, %v6545
        %v6547 = vpop.f32.mrb[0].mxu0
        %6548 = vmatprep.mubr.bf16.mxu0 0
        %6549 = vmatmul.mubr.bf16.gmra.mrb[0].mxu0 %v6419
        %v6550 = vpop.f32.mrb[0].mxu0
        %v6551 = vadd.f32 %v691, %v6550
        %v6552 = vpop.f32.mrb[0].mxu0
        %v6553 = vpop.f32.mrb[0].mxu0
        %v6554 = vadd.f32 %v696, %v6553
        %v6555 = vpop.f32.mrb[0].mxu0
        %6556 = vmatprep.mubr.bf16.mxu0 0
        %6557 = vmatmul.mubr.bf16.gmra.mrb[0].mxu0 %v6422
        %v6558 = vpop.f32.mrb[0].mxu0
        %v6559 = vadd.f32 %v701, %v6558
        %v6560 = vpop.f32.mrb[0].mxu0
        %v6561 = vpop.f32.mrb[0].mxu0
        %v6562 = vadd.f32 %v706, %v6561
        %v6563 = vpop.f32.mrb[0].mxu0
        %6564 = vmatprep.mubr.bf16.mxu0 0
        %6565 = vmatmul.mubr.bf16.gmra.mrb[0].mxu0 %v6425
        %v6566 = vpop.f32.mrb[0].mxu0
        %v6567 = vadd.f32 %v711, %v6566
        %v6568 = vpop.f32.mrb[0].mxu0
        %v6569 = vpop.f32.mrb[0].mxu0
        %v6570 = vadd.f32 %v716, %v6569
        %v6571 = vpop.f32.mrb[0].mxu0
        %6572 = vmatprep.mubr.bf16.mxu0 0
        %6573 = vmatmul.mubr.bf16.gmra.mrb[0].mxu0 %v6428
        %v6574 = vpop.f32.mrb[0].mxu0
        %v6575 = vadd.f32 %v721, %v6574
        %v6576 = vpop.f32.mrb[0].mxu0
        %v6577 = vpop.f32.mrb[0].mxu0
        %v6578 = vadd.f32 %v726, %v6577
        %v6579 = vpop.f32.mrb[0].mxu0
        %6580 = vmatprep.mubr.bf16.mxu0 0
        %6581 = vmatmul.mubr.bf16.gmra.mrb[0].mxu0 %v6431
        %v6582 = vpop.f32.mrb[0].mxu0
        %v6583 = vadd.f32 %v731, %v6582
        %v6584 = vpop.f32.mrb[0].mxu0
        %v6585 = vpop.f32.mrb[0].mxu0
        %v6586 = vadd.f32 %v736, %v6585
        %v6587 = vpop.f32.mrb[0].mxu0
        %6588 = vmatprep.mubr.bf16.mxu0 0
        %6589 = vmatmul.mubr.bf16.gmra.mrb[0].mxu0 %v6434
        %v6590 = vpop.f32.mrb[0].mxu0
        %v6591 = vadd.f32 %v741, %v6590
        %v6592 = vpop.f32.mrb[0].mxu0
        %v6593 = vpop.f32.mrb[0].mxu0
        %v6594 = vadd.f32 %v746, %v6593
        %v6595 = vpop.f32.mrb[0].mxu0
        %6596 = vdwg.mxu0
        %v6597 = vmax.f32 %v6471, 0.0
        %v6598 = vmax.f32 %v6474, 0.0
        %v6599 = vmax.f32 %v6479, 0.0
        %v6600 = vmax.f32 %v6482, 0.0
        %v6601 = vmax.f32 %v6487, 0.0
        %v6602 = vmax.f32 %v6490, 0.0
        %v6603 = vmax.f32 %v6495, 0.0
        %v6604 = vmax.f32 %v6498, 0.0
        %v6605 = vmax.f32 %v6503, 0.0
        %v6606 = vmax.f32 %v6506, 0.0
        %v6607 = vmax.f32 %v6511, 0.0
        %v6608 = vmax.f32 %v6514, 0.0
        %v6609 = vmax.f32 %v6519, 0.0
        %v6610 = vmax.f32 %v6522, 0.0
        %v6611 = vmax.f32 %v6527, 0.0
        %v6612 = vmax.f32 %v6530, 0.0
        %v6613 = vmax.f32 %v6535, 0.0
        %v6614 = vmax.f32 %v6538, 0.0
        %v6615 = vmax.f32 %v6543, 0.0
        %v6616 = vmax.f32 %v6546, 0.0
        %v6617 = vmax.f32 %v6551, 0.0
        %v6618 = vmax.f32 %v6554, 0.0
        %v6619 = vmax.f32 %v6559, 0.0
        %v6620 = vmax.f32 %v6562, 0.0
        %v6621 = vmax.f32 %v6567, 0.0
        %v6622 = vmax.f32 %v6570, 0.0
        %v6623 = vmax.f32 %v6575, 0.0
        %v6624 = vmax.f32 %v6578, 0.0
        %v6625 = vmax.f32 %v6583, 0.0
        %v6626 = vmax.f32 %v6586, 0.0
        %v6627 = vmax.f32 %v6591, 0.0
        %v6628 = vmax.f32 %v6594, 0.0
        %v6629 = vpack.c.bf16 %v6598, %v6597
        %v6630 = vpack.c.bf16 %v6600, %v6599
        %v6631 = vpack.c.bf16 %v6602, %v6601
        %v6632 = vpack.c.bf16 %v6604, %v6603
        %v6633 = vpack.c.bf16 %v6606, %v6605
        %v6634 = vpack.c.bf16 %v6608, %v6607
        %v6635 = vpack.c.bf16 %v6610, %v6609
        %v6636 = vpack.c.bf16 %v6612, %v6611
        %v6637 = vpack.c.bf16 %v6614, %v6613
        %v6638 = vpack.c.bf16 %v6616, %v6615
        %v6639 = vpack.c.bf16 %v6618, %v6617
        %v6640 = vpack.c.bf16 %v6620, %v6619
        %v6641 = vpack.c.bf16 %v6622, %v6621
        %v6642 = vpack.c.bf16 %v6624, %v6623
        %v6643 = vpack.c.bf16 %v6626, %v6625
        %v6644 = vpack.c.bf16 %v6628, %v6627
        %6645 = vmatprep.subr.bf16.mxu0 0
        %6646 = vmatpush1.bf16.msra.mxu0 %v6629
        %6647 = vmatprep.subr.bf16.mxu0 0
        %6648 = vmatpush1.bf16.msra.mxu0 %v6630
        %6649 = vmatprep.subr.bf16.mxu0 0
        %6650 = vmatpush1.bf16.msra.mxu0 %v6631
        %6651 = vmatprep.subr.bf16.mxu0 0
        %6652 = vmatpush1.bf16.msra.mxu0 %v6632
        %6653 = vmatprep.subr.bf16.mxu0 0
        %6654 = vmatpush1.bf16.msra.mxu0 %v6633
        %6655 = vmatprep.subr.bf16.mxu0 0
        %6656 = vmatpush1.bf16.msra.mxu0 %v6634
        %6657 = vmatprep.subr.bf16.mxu0 0
        %6658 = vmatpush1.bf16.msra.mxu0 %v6635
        %6659 = vmatprep.subr.bf16.mxu0 0
        %6660 = vmatpush1.bf16.msra.mxu0 %v6636
        %6661 = vmatprep.subr.bf16.mxu0 0
        %6662 = vmatpush1.bf16.msra.mxu0 %v6637
        %6663 = vmatprep.subr.bf16.mxu0 0
        %6664 = vmatpush1.bf16.msra.mxu0 %v6638
        %6665 = vmatprep.subr.bf16.mxu0 0
        %6666 = vmatpush1.bf16.msra.mxu0 %v6639
        %6667 = vmatprep.subr.bf16.mxu0 0
        %6668 = vmatpush1.bf16.msra.mxu0 %v6640
        %6669 = vmatprep.subr.bf16.mxu0 0
        %6670 = vmatpush1.bf16.msra.mxu0 %v6641
        %6671 = vmatprep.subr.bf16.mxu0 0
        %6672 = vmatpush1.bf16.msra.mxu0 %v6642
        %6673 = vmatprep.subr.bf16.mxu0 0
        %6674 = vmatpush1.bf16.msra.mxu0 %v6643
        %6675 = vmatprep.subr.bf16.mxu0 0
        %6676 = vmatpush1.bf16.msra.mxu0 %v6644
        %6677 = vmatprep.mubr.bf16.mxu0 %v1219
        %6678 = vmatmul.mubr.bf16.gmra.mrb[0].mxu0 %v1218
        %v6679 = vpop.f32.mrb[0].mxu0
        %v6680 = vadd.f32 %v1093, %v6679
        %v6681 = vpop.f32.mrb[0].mxu0
        %v6682 = vpop.f32.mrb[0].mxu0
        %v6683 = vadd.f32 %v1098, %v6682
        %v6684 = vpop.f32.mrb[0].mxu0
        %6685 = vmatprep.mubr.bf16.mxu0 %v1221
        %6686 = vmatmul.mubr.bf16.gmra.mrb[0].mxu0 %v1220
        %v6687 = vpop.f32.mrb[0].mxu0
        %v6688 = vadd.f32 %v1103, %v6687
        %v6689 = vpop.f32.mrb[0].mxu0
        %v6690 = vpop.f32.mrb[0].mxu0
        %v6691 = vadd.f32 %v1108, %v6690
        %v6692 = vpop.f32.mrb[0].mxu0
        %6693 = vmatprep.mubr.bf16.mxu0 %v1223
        %6694 = vmatmul.mubr.bf16.gmra.mrb[0].mxu0 %v1222
        %v6695 = vpop.f32.mrb[0].mxu0
        %v6696 = vadd.f32 %v1113, %v6695
        %v6697 = vpop.f32.mrb[0].mxu0
        %v6698 = vpop.f32.mrb[0].mxu0
        %v6699 = vadd.f32 %v1118, %v6698
        %v6700 = vpop.f32.mrb[0].mxu0
        %6701 = vmatprep.mubr.bf16.mxu0 %v1225
        %6702 = vmatmul.mubr.bf16.gmra.mrb[0].mxu0 %v1224
        %v6703 = vpop.f32.mrb[0].mxu0
        %v6704 = vadd.f32 %v1123, %v6703
        %v6705 = vpop.f32.mrb[0].mxu0
        %v6706 = vpop.f32.mrb[0].mxu0
        %v6707 = vadd.f32 %v1128, %v6706
        %v6708 = vpop.f32.mrb[0].mxu0
        %6709 = vmatprep.mubr.bf16.mxu0 %v1227
        %6710 = vmatmul.mubr.bf16.gmra.mrb[0].mxu0 %v1226
        %v6711 = vpop.f32.mrb[0].mxu0
        %v6712 = vadd.f32 %v1133, %v6711
        %v6713 = vpop.f32.mrb[0].mxu0
        %v6714 = vpop.f32.mrb[0].mxu0
        %v6715 = vadd.f32 %v1138, %v6714
        %v6716 = vpop.f32.mrb[0].mxu0
        %6717 = vmatprep.mubr.bf16.mxu0 %v1229
        %6718 = vmatmul.mubr.bf16.gmra.mrb[0].mxu0 %v1228
        %v6719 = vpop.f32.mrb[0].mxu0
        %v6720 = vadd.f32 %v1143, %v6719
        %v6721 = vpop.f32.mrb[0].mxu0
        %v6722 = vpop.f32.mrb[0].mxu0
        %v6723 = vadd.f32 %v1148, %v6722
        %v6724 = vpop.f32.mrb[0].mxu0
        %6725 = vmatprep.mubr.bf16.mxu0 %v1231
        %6726 = vmatmul.mubr.bf16.gmra.mrb[0].mxu0 %v1230
        %v6727 = vpop.f32.mrb[0].mxu0
        %v6728 = vadd.f32 %v1153, %v6727
        %v6729 = vpop.f32.mrb[0].mxu0
        %v6730 = vpop.f32.mrb[0].mxu0
        %v6731 = vadd.f32 %v1158, %v6730
        %v6732 = vpop.f32.mrb[0].mxu0
        %6733 = vmatprep.mubr.bf16.mxu0 %v1233
        %6734 = vmatmul.mubr.bf16.gmra.mrb[0].mxu0 %v1232
        %v6735 = vpop.f32.mrb[0].mxu0
        %v6736 = vadd.f32 %v1163, %v6735
        %v6737 = vpop.f32.mrb[0].mxu0
        %v6738 = vpop.f32.mrb[0].mxu0
        %v6739 = vadd.f32 %v1168, %v6738
        %v6740 = vpop.f32.mrb[0].mxu0
        %6741 = vdwg.mxu0
        %v6742 = vmax.f32 %v6680, 0.0
        %v6743 = vmax.f32 %v6683, 0.0
        %v6744 = vmax.f32 %v6688, 0.0
        %v6745 = vmax.f32 %v6691, 0.0
        %v6746 = vmax.f32 %v6696, 0.0
        %v6747 = vmax.f32 %v6699, 0.0
        %v6748 = vmax.f32 %v6704, 0.0
        %v6749 = vmax.f32 %v6707, 0.0
        %v6750 = vmax.f32 %v6712, 0.0
        %v6751 = vmax.f32 %v6715, 0.0
        %v6752 = vmax.f32 %v6720, 0.0
        %v6753 = vmax.f32 %v6723, 0.0
        %v6754 = vmax.f32 %v6728, 0.0
        %v6755 = vmax.f32 %v6731, 0.0
        %v6756 = vmax.f32 %v6736, 0.0
        %v6757 = vmax.f32 %v6739, 0.0
        %v6758 = vmul.f32 %v6742, %v1366
        %v6759 = vmul.f32 %v6743, %v1371
        %v6760 = vmul.f32 %v6744, %v1376
        %v6761 = vmul.f32 %v6745, %v1381
        %v6762 = vmul.f32 %v6746, %v1386
        %v6763 = vmul.f32 %v6747, %v1391
        %v6764 = vmul.f32 %v6748, %v1396
        %v6765 = vmul.f32 %v6749, %v1401
        %v6766 = vmul.f32 %v6750, %v1406
        %v6767 = vmul.f32 %v6751, %v1411
        %v6768 = vmul.f32 %v6752, %v1416
        %v6769 = vmul.f32 %v6753, %v1421
        %v6770 = vmul.f32 %v6754, %v1426
        %v6771 = vmul.f32 %v6755, %v1431
        %v6772 = vmul.f32 %v6756, %v1436
        %v6773 = vmul.f32 %v6757, %v1441
        %v6774 = vadd.f32 %v6758, %v6759
        %v6775 = vadd.f32 %v6774, %v6760
        %v6776 = vadd.f32 %v6775, %v6761
        %v6777 = vadd.f32 %v6776, %v6762
        %v6778 = vadd.f32 %v6777, %v6763
        %v6779 = vadd.f32 %v6778, %v6764
        %v6780 = vadd.f32 %v6779, %v6765
        %v6781 = vadd.f32 %v6780, %v6766
        %v6782 = vadd.f32 %v6781, %v6767
        %v6783 = vadd.f32 %v6782, %v6768
        %v6784 = vadd.f32 %v6783, %v6769
        %v6785 = vadd.f32 %v6784, %v6770
        %v6786 = vadd.f32 %v6785, %v6771
        %v6787 = vadd.f32 %v6786, %v6772
        %v6788 = vadd.f32 %v6787, %v6773
        %v6789 = vld [vmem:[%s465 + $0x50] sm:$0xff]
        %v6790 = vadd.f32 %v6788, %v1482
        %6792 = vset.pattern.permute.xlu0 0
        %6793 = vperm.xlu0 %6792, %v6789
        %v6794 = vpop.permute.xlu0 %6793
        %v6796 = vmul.f32 %v6794, %v1494
        %v6797 = vmul.f32 %v6790, %v6796
        %6798 = vst [vmem:[%s442 + $0x50] sm:$0xff] %v6797
        %v6799 = vxor.u32 %v6797, 2147483648
        %v6800 = vmul.f32 %v6799, 1.442695
        %v6801 = vpow.pop %v6800
        %v6802 = vadd.f32 %v6801, 1.0
        %v6803 = vrcp.pop %v6802
        %v6804 = vmul.f32 1.0, %v6803
        %6805 = vst [vmem:[%s435 + $0x50] sm:$0xff] %v6804
        %v6806 = vld [vmem:[%s451 + $0x580] sm:$0xf]
        %v6807 = vld [vmem:[%s451 + $0x584] sm:$0xf]
        %v6808 = vld [vmem:[%s451 + $0x588] sm:$0xf]
        %v6809 = vld [vmem:[%s451 + $0x58c] sm:$0xf]
        %v6810 = vld [vmem:[%s451 + $0x590] sm:$0xf]
        %v6811 = vld [vmem:[%s451 + $0x594] sm:$0xf]
        %v6812 = vld [vmem:[%s451 + $0x598] sm:$0xf]
        %v6813 = vld [vmem:[%s451 + $0x59c] sm:$0xf]
        %v6814 = vld [vmem:[%s451 + $0x5a0] sm:$0xf]
        %v6815 = vld [vmem:[%s451 + $0x5a4] sm:$0xf]
        %v6816 = vld [vmem:[%s451 + $0x5a8] sm:$0xf]
        %v6817 = vld [vmem:[%s451 + $0x5ac] sm:$0xf]
        %v6818 = vld [vmem:[%s451 + $0x5b0] sm:$0xf]
        %v6819 = vld [vmem:[%s451 + $0x5b4] sm:$0xf]
        %v6820 = vld [vmem:[%s451 + $0x5b8] sm:$0xf]
        %v6821 = vld [vmem:[%s451 + $0x5bc] sm:$0xf]
        %v6822 = vld [vmem:[%s451 + $0x5c0] sm:$0xf]
        %v6823 = vld [vmem:[%s451 + $0x5c4] sm:$0xf]
        %v6824 = vld [vmem:[%s451 + $0x5c8] sm:$0xf]
        %v6825 = vld [vmem:[%s451 + $0x5cc] sm:$0xf]
        %v6826 = vld [vmem:[%s451 + $0x5d0] sm:$0xf]
        %v6827 = vld [vmem:[%s451 + $0x5d4] sm:$0xf]
        %v6828 = vld [vmem:[%s451 + $0x5d8] sm:$0xf]
        %v6829 = vld [vmem:[%s451 + $0x5dc] sm:$0xf]
        %v6830 = vld [vmem:[%s451 + $0x5e0] sm:$0xf]
        %v6831 = vld [vmem:[%s451 + $0x5e4] sm:$0xf]
        %v6832 = vld [vmem:[%s451 + $0x5e8] sm:$0xf]
        %v6833 = vld [vmem:[%s451 + $0x5ec] sm:$0xf]
        %v6834 = vld [vmem:[%s451 + $0x5f0] sm:$0xf]
        %v6835 = vld [vmem:[%s451 + $0x5f4] sm:$0xf]
        %v6836 = vld [vmem:[%s451 + $0x5f8] sm:$0xf]
        %v6837 = vld [vmem:[%s451 + $0x5fc] sm:$0xf]
        %v6870 = vunpack.c.l.b16 %v6806
        %v6871 = vunpack.c.l.b16 %v6807
        %v6872 = vunpack.c.l.b16 %v6808
        %v6873 = vunpack.c.l.b16 %v6809
        %v6874 = vunpack.c.l.b16 %v6810
        %v6875 = vunpack.c.l.b16 %v6811
        %v6876 = vunpack.c.l.b16 %v6812
        %v6877 = vunpack.c.l.b16 %v6813
        %v6878 = vunpack.c.l.b16 %v6814
        %v6879 = vunpack.c.l.b16 %v6815
        %v6880 = vunpack.c.l.b16 %v6816
        %v6881 = vunpack.c.l.b16 %v6817
        %v6882 = vunpack.c.l.b16 %v6818
        %v6883 = vunpack.c.l.b16 %v6819
        %v6884 = vunpack.c.l.b16 %v6820
        %v6885 = vunpack.c.l.b16 %v6821
        %v6886 = vunpack.c.l.b16 %v6822
        %v6887 = vunpack.c.l.b16 %v6823
        %v6888 = vunpack.c.l.b16 %v6824
        %v6889 = vunpack.c.l.b16 %v6825
        %v6890 = vunpack.c.l.b16 %v6826
        %v6891 = vunpack.c.l.b16 %v6827
        %v6892 = vunpack.c.l.b16 %v6828
        %v6893 = vunpack.c.l.b16 %v6829
        %v6894 = vunpack.c.l.b16 %v6830
        %v6895 = vunpack.c.l.b16 %v6831
        %v6896 = vunpack.c.l.b16 %v6832
        %v6897 = vunpack.c.l.b16 %v6833
        %v6898 = vunpack.c.l.b16 %v6834
        %v6899 = vunpack.c.l.b16 %v6835
        %v6900 = vunpack.c.l.b16 %v6836
        %v6901 = vunpack.c.l.b16 %v6837
        %v6902 = vpack.c.b16 %v6871, %v6870
        %v6903 = vpack.c.b16 %v6873, %v6872
        %v6904 = vpack.c.b16 %v6875, %v6874
        %v6905 = vpack.c.b16 %v6877, %v6876
        %v6906 = vpack.c.b16 %v6879, %v6878
        %v6907 = vpack.c.b16 %v6881, %v6880
        %v6908 = vpack.c.b16 %v6883, %v6882
        %v6909 = vpack.c.b16 %v6885, %v6884
        %v6910 = vpack.c.b16 %v6887, %v6886
        %v6911 = vpack.c.b16 %v6889, %v6888
        %v6912 = vpack.c.b16 %v6891, %v6890
        %v6913 = vpack.c.b16 %v6893, %v6892
        %v6914 = vpack.c.b16 %v6895, %v6894
        %v6915 = vpack.c.b16 %v6897, %v6896
        %v6916 = vpack.c.b16 %v6899, %v6898
        %v6917 = vpack.c.b16 %v6901, %v6900
        %v6919 = vsel %vm828, %v6902, 0
        %v6922 = vsel %vm828, %v6903, 0
        %v6925 = vsel %vm828, %v6904, 0
        %v6928 = vsel %vm828, %v6905, 0
        %v6931 = vsel %vm828, %v6906, 0
        %v6934 = vsel %vm828, %v6907, 0
        %v6937 = vsel %vm828, %v6908, 0
        %v6940 = vsel %vm828, %v6909, 0
        %v6943 = vsel %vm828, %v6910, 0
        %v6946 = vsel %vm828, %v6911, 0
        %v6949 = vsel %vm828, %v6912, 0
        %v6952 = vsel %vm828, %v6913, 0
        %v6955 = vsel %vm828, %v6914, 0
        %v6958 = vsel %vm828, %v6915, 0
        %v6961 = vsel %vm828, %v6916, 0
        %v6964 = vsel %vm828, %v6917, 0
        %6966 = vmatprep.subr.bf16.mxu0 0
        %6967 = vmatpush1.bf16.msra.mxu0 %v879
        %6968 = vmatprep.subr.bf16.mxu0 0
        %6969 = vmatpush1.bf16.msra.mxu0 0
        %6970 = vmatprep.subr.bf16.mxu0 0
        %6971 = vmatpush1.bf16.msra.mxu0 0
        %6972 = vmatprep.subr.bf16.mxu0 0
        %6973 = vmatpush1.bf16.msra.mxu0 0
        %6974 = vmatprep.subr.bf16.mxu0 0
        %6975 = vmatpush1.bf16.msra.mxu0 0
        %6976 = vmatprep.subr.bf16.mxu0 0
        %6977 = vmatpush1.bf16.msra.mxu0 0
        %6978 = vmatprep.subr.bf16.mxu0 0
        %6979 = vmatpush1.bf16.msra.mxu0 0
        %6980 = vmatprep.subr.bf16.mxu0 0
        %6981 = vmatpush1.bf16.msra.mxu0 0
        %6982 = vmatprep.subr.bf16.mxu0 0
        %6983 = vmatpush1.bf16.msra.mxu0 0
        %6984 = vmatprep.subr.bf16.mxu0 0
        %6985 = vmatpush1.bf16.msra.mxu0 0
        %6986 = vmatprep.subr.bf16.mxu0 0
        %6987 = vmatpush1.bf16.msra.mxu0 0
        %6988 = vmatprep.subr.bf16.mxu0 0
        %6989 = vmatpush1.bf16.msra.mxu0 0
        %6990 = vmatprep.subr.bf16.mxu0 0
        %6991 = vmatpush1.bf16.msra.mxu0 0
        %6992 = vmatprep.subr.bf16.mxu0 0
        %6993 = vmatpush1.bf16.msra.mxu0 0
        %6994 = vmatprep.subr.bf16.mxu0 0
        %6995 = vmatpush1.bf16.msra.mxu0 0
        %6996 = vmatprep.subr.bf16.mxu0 0
        %6997 = vmatpush1.bf16.msra.mxu0 0
        %6998 = vmatprep.mubr.bf16.mxu0 0
        %6999 = vmatmul.mubr.bf16.gmra.mrb[0].mxu0 %v6919
        %v7000 = vpop.f32.mrb[0].mxu0
        %v7001 = vadd.f32 %v591, %v7000
        %v7002 = vpop.f32.mrb[0].mxu0
        %v7003 = vpop.f32.mrb[0].mxu0
        %v7004 = vadd.f32 %v596, %v7003
        %v7005 = vpop.f32.mrb[0].mxu0
        %7006 = vmatprep.mubr.bf16.mxu0 0
        %7007 = vmatmul.mubr.bf16.gmra.mrb[0].mxu0 %v6922
        %v7008 = vpop.f32.mrb[0].mxu0
        %v7009 = vadd.f32 %v601, %v7008
        %v7010 = vpop.f32.mrb[0].mxu0
        %v7011 = vpop.f32.mrb[0].mxu0
        %v7012 = vadd.f32 %v606, %v7011
        %v7013 = vpop.f32.mrb[0].mxu0
        %7014 = vmatprep.mubr.bf16.mxu0 0
        %7015 = vmatmul.mubr.bf16.gmra.mrb[0].mxu0 %v6925
        %v7016 = vpop.f32.mrb[0].mxu0
        %v7017 = vadd.f32 %v611, %v7016
        %v7018 = vpop.f32.mrb[0].mxu0
        %v7019 = vpop.f32.mrb[0].mxu0
        %v7020 = vadd.f32 %v616, %v7019
        %v7021 = vpop.f32.mrb[0].mxu0
        %7022 = vmatprep.mubr.bf16.mxu0 0
        %7023 = vmatmul.mubr.bf16.gmra.mrb[0].mxu0 %v6928
        %v7024 = vpop.f32.mrb[0].mxu0
        %v7025 = vadd.f32 %v621, %v7024
        %v7026 = vpop.f32.mrb[0].mxu0
        %v7027 = vpop.f32.mrb[0].mxu0
        %v7028 = vadd.f32 %v626, %v7027
        %v7029 = vpop.f32.mrb[0].mxu0
        %7030 = vmatprep.mubr.bf16.mxu0 0
        %7031 = vmatmul.mubr.bf16.gmra.mrb[0].mxu0 %v6931
        %v7032 = vpop.f32.mrb[0].mxu0
        %v7033 = vadd.f32 %v631, %v7032
        %v7034 = vpop.f32.mrb[0].mxu0
        %v7035 = vpop.f32.mrb[0].mxu0
        %v7036 = vadd.f32 %v636, %v7035
        %v7037 = vpop.f32.mrb[0].mxu0
        %7038 = vmatprep.mubr.bf16.mxu0 0
        %7039 = vmatmul.mubr.bf16.gmra.mrb[0].mxu0 %v6934
        %v7040 = vpop.f32.mrb[0].mxu0
        %v7041 = vadd.f32 %v641, %v7040
        %v7042 = vpop.f32.mrb[0].mxu0
        %v7043 = vpop.f32.mrb[0].mxu0
        %v7044 = vadd.f32 %v646, %v7043
        %v7045 = vpop.f32.mrb[0].mxu0
        %7046 = vmatprep.mubr.bf16.mxu0 0
        %7047 = vmatmul.mubr.bf16.gmra.mrb[0].mxu0 %v6937
        %v7048 = vpop.f32.mrb[0].mxu0
        %v7049 = vadd.f32 %v651, %v7048
        %v7050 = vpop.f32.mrb[0].mxu0
        %v7051 = vpop.f32.mrb[0].mxu0
        %v7052 = vadd.f32 %v656, %v7051
        %v7053 = vpop.f32.mrb[0].mxu0
        %7054 = vmatprep.mubr.bf16.mxu0 0
        %7055 = vmatmul.mubr.bf16.gmra.mrb[0].mxu0 %v6940
        %v7056 = vpop.f32.mrb[0].mxu0
        %v7057 = vadd.f32 %v661, %v7056
        %v7058 = vpop.f32.mrb[0].mxu0
        %v7059 = vpop.f32.mrb[0].mxu0
        %v7060 = vadd.f32 %v666, %v7059
        %v7061 = vpop.f32.mrb[0].mxu0
        %7062 = vmatprep.mubr.bf16.mxu0 0
        %7063 = vmatmul.mubr.bf16.gmra.mrb[0].mxu0 %v6943
        %v7064 = vpop.f32.mrb[0].mxu0
        %v7065 = vadd.f32 %v671, %v7064
        %v7066 = vpop.f32.mrb[0].mxu0
        %v7067 = vpop.f32.mrb[0].mxu0
        %v7068 = vadd.f32 %v676, %v7067
        %v7069 = vpop.f32.mrb[0].mxu0
        %7070 = vmatprep.mubr.bf16.mxu0 0
        %7071 = vmatmul.mubr.bf16.gmra.mrb[0].mxu0 %v6946
        %v7072 = vpop.f32.mrb[0].mxu0
        %v7073 = vadd.f32 %v681, %v7072
        %v7074 = vpop.f32.mrb[0].mxu0
        %v7075 = vpop.f32.mrb[0].mxu0
        %v7076 = vadd.f32 %v686, %v7075
        %v7077 = vpop.f32.mrb[0].mxu0
        %7078 = vmatprep.mubr.bf16.mxu0 0
        %7079 = vmatmul.mubr.bf16.gmra.mrb[0].mxu0 %v6949
        %v7080 = vpop.f32.mrb[0].mxu0
        %v7081 = vadd.f32 %v691, %v7080
        %v7082 = vpop.f32.mrb[0].mxu0
        %v7083 = vpop.f32.mrb[0].mxu0
        %v7084 = vadd.f32 %v696, %v7083
        %v7085 = vpop.f32.mrb[0].mxu0
        %7086 = vmatprep.mubr.bf16.mxu0 0
        %7087 = vmatmul.mubr.bf16.gmra.mrb[0].mxu0 %v6952
        %v7088 = vpop.f32.mrb[0].mxu0
        %v7089 = vadd.f32 %v701, %v7088
        %v7090 = vpop.f32.mrb[0].mxu0
        %v7091 = vpop.f32.mrb[0].mxu0
        %v7092 = vadd.f32 %v706, %v7091
        %v7093 = vpop.f32.mrb[0].mxu0
        %7094 = vmatprep.mubr.bf16.mxu0 0
        %7095 = vmatmul.mubr.bf16.gmra.mrb[0].mxu0 %v6955
        %v7096 = vpop.f32.mrb[0].mxu0
        %v7097 = vadd.f32 %v711, %v7096
        %v7098 = vpop.f32.mrb[0].mxu0
        %v7099 = vpop.f32.mrb[0].mxu0
        %v7100 = vadd.f32 %v716, %v7099
        %v7101 = vpop.f32.mrb[0].mxu0
        %7102 = vmatprep.mubr.bf16.mxu0 0
        %7103 = vmatmul.mubr.bf16.gmra.mrb[0].mxu0 %v6958
        %v7104 = vpop.f32.mrb[0].mxu0
        %v7105 = vadd.f32 %v721, %v7104
        %v7106 = vpop.f32.mrb[0].mxu0
        %v7107 = vpop.f32.mrb[0].mxu0
        %v7108 = vadd.f32 %v726, %v7107
        %v7109 = vpop.f32.mrb[0].mxu0
        %7110 = vmatprep.mubr.bf16.mxu0 0
        %7111 = vmatmul.mubr.bf16.gmra.mrb[0].mxu0 %v6961
        %v7112 = vpop.f32.mrb[0].mxu0
        %v7113 = vadd.f32 %v731, %v7112
        %v7114 = vpop.f32.mrb[0].mxu0
        %v7115 = vpop.f32.mrb[0].mxu0
        %v7116 = vadd.f32 %v736, %v7115
        %v7117 = vpop.f32.mrb[0].mxu0
        %7118 = vmatprep.mubr.bf16.mxu0 0
        %7119 = vmatmul.mubr.bf16.gmra.mrb[0].mxu0 %v6964
        %v7120 = vpop.f32.mrb[0].mxu0
        %v7121 = vadd.f32 %v741, %v7120
        %v7122 = vpop.f32.mrb[0].mxu0
        %v7123 = vpop.f32.mrb[0].mxu0
        %v7124 = vadd.f32 %v746, %v7123
        %v7125 = vpop.f32.mrb[0].mxu0
        %7126 = vdwg.mxu0
        %v7127 = vmax.f32 %v7001, 0.0
        %v7128 = vmax.f32 %v7004, 0.0
        %v7129 = vmax.f32 %v7009, 0.0
        %v7130 = vmax.f32 %v7012, 0.0
        %v7131 = vmax.f32 %v7017, 0.0
        %v7132 = vmax.f32 %v7020, 0.0
        %v7133 = vmax.f32 %v7025, 0.0
        %v7134 = vmax.f32 %v7028, 0.0
        %v7135 = vmax.f32 %v7033, 0.0
        %v7136 = vmax.f32 %v7036, 0.0
        %v7137 = vmax.f32 %v7041, 0.0
        %v7138 = vmax.f32 %v7044, 0.0
        %v7139 = vmax.f32 %v7049, 0.0
        %v7140 = vmax.f32 %v7052, 0.0
        %v7141 = vmax.f32 %v7057, 0.0
        %v7142 = vmax.f32 %v7060, 0.0
        %v7143 = vmax.f32 %v7065, 0.0
        %v7144 = vmax.f32 %v7068, 0.0
        %v7145 = vmax.f32 %v7073, 0.0
        %v7146 = vmax.f32 %v7076, 0.0
        %v7147 = vmax.f32 %v7081, 0.0
        %v7148 = vmax.f32 %v7084, 0.0
        %v7149 = vmax.f32 %v7089, 0.0
        %v7150 = vmax.f32 %v7092, 0.0
        %v7151 = vmax.f32 %v7097, 0.0
        %v7152 = vmax.f32 %v7100, 0.0
        %v7153 = vmax.f32 %v7105, 0.0
        %v7154 = vmax.f32 %v7108, 0.0
        %v7155 = vmax.f32 %v7113, 0.0
        %v7156 = vmax.f32 %v7116, 0.0
        %v7157 = vmax.f32 %v7121, 0.0
        %v7158 = vmax.f32 %v7124, 0.0
        %v7159 = vpack.c.bf16 %v7128, %v7127
        %v7160 = vpack.c.bf16 %v7130, %v7129
        %v7161 = vpack.c.bf16 %v7132, %v7131
        %v7162 = vpack.c.bf16 %v7134, %v7133
        %v7163 = vpack.c.bf16 %v7136, %v7135
        %v7164 = vpack.c.bf16 %v7138, %v7137
        %v7165 = vpack.c.bf16 %v7140, %v7139
        %v7166 = vpack.c.bf16 %v7142, %v7141
        %v7167 = vpack.c.bf16 %v7144, %v7143
        %v7168 = vpack.c.bf16 %v7146, %v7145
        %v7169 = vpack.c.bf16 %v7148, %v7147
        %v7170 = vpack.c.bf16 %v7150, %v7149
        %v7171 = vpack.c.bf16 %v7152, %v7151
        %v7172 = vpack.c.bf16 %v7154, %v7153
        %v7173 = vpack.c.bf16 %v7156, %v7155
        %v7174 = vpack.c.bf16 %v7158, %v7157
        %7175 = vmatprep.subr.bf16.mxu0 0
        %7176 = vmatpush1.bf16.msra.mxu0 %v7159
        %7177 = vmatprep.subr.bf16.mxu0 0
        %7178 = vmatpush1.bf16.msra.mxu0 %v7160
        %7179 = vmatprep.subr.bf16.mxu0 0
        %7180 = vmatpush1.bf16.msra.mxu0 %v7161
        %7181 = vmatprep.subr.bf16.mxu0 0
        %7182 = vmatpush1.bf16.msra.mxu0 %v7162
        %7183 = vmatprep.subr.bf16.mxu0 0
        %7184 = vmatpush1.bf16.msra.mxu0 %v7163
        %7185 = vmatprep.subr.bf16.mxu0 0
        %7186 = vmatpush1.bf16.msra.mxu0 %v7164
        %7187 = vmatprep.subr.bf16.mxu0 0
        %7188 = vmatpush1.bf16.msra.mxu0 %v7165
        %7189 = vmatprep.subr.bf16.mxu0 0
        %7190 = vmatpush1.bf16.msra.mxu0 %v7166
        %7191 = vmatprep.subr.bf16.mxu0 0
        %7192 = vmatpush1.bf16.msra.mxu0 %v7167
        %7193 = vmatprep.subr.bf16.mxu0 0
        %7194 = vmatpush1.bf16.msra.mxu0 %v7168
        %7195 = vmatprep.subr.bf16.mxu0 0
        %7196 = vmatpush1.bf16.msra.mxu0 %v7169
        %7197 = vmatprep.subr.bf16.mxu0 0
        %7198 = vmatpush1.bf16.msra.mxu0 %v7170
        %7199 = vmatprep.subr.bf16.mxu0 0
        %7200 = vmatpush1.bf16.msra.mxu0 %v7171
        %7201 = vmatprep.subr.bf16.mxu0 0
        %7202 = vmatpush1.bf16.msra.mxu0 %v7172
        %7203 = vmatprep.subr.bf16.mxu0 0
        %7204 = vmatpush1.bf16.msra.mxu0 %v7173
        %7205 = vmatprep.subr.bf16.mxu0 0
        %7206 = vmatpush1.bf16.msra.mxu0 %v7174
        %7207 = vmatprep.mubr.bf16.mxu0 %v1219
        %7208 = vmatmul.mubr.bf16.gmra.mrb[0].mxu0 %v1218
        %v7209 = vpop.f32.mrb[0].mxu0
        %v7210 = vadd.f32 %v1093, %v7209
        %v7211 = vpop.f32.mrb[0].mxu0
        %v7212 = vpop.f32.mrb[0].mxu0
        %v7213 = vadd.f32 %v1098, %v7212
        %v7214 = vpop.f32.mrb[0].mxu0
        %7215 = vmatprep.mubr.bf16.mxu0 %v1221
        %7216 = vmatmul.mubr.bf16.gmra.mrb[0].mxu0 %v1220
        %v7217 = vpop.f32.mrb[0].mxu0
        %v7218 = vadd.f32 %v1103, %v7217
        %v7219 = vpop.f32.mrb[0].mxu0
        %v7220 = vpop.f32.mrb[0].mxu0
        %v7221 = vadd.f32 %v1108, %v7220
        %v7222 = vpop.f32.mrb[0].mxu0
        %7223 = vmatprep.mubr.bf16.mxu0 %v1223
        %7224 = vmatmul.mubr.bf16.gmra.mrb[0].mxu0 %v1222
        %v7225 = vpop.f32.mrb[0].mxu0
        %v7226 = vadd.f32 %v1113, %v7225
        %v7227 = vpop.f32.mrb[0].mxu0
        %v7228 = vpop.f32.mrb[0].mxu0
        %v7229 = vadd.f32 %v1118, %v7228
        %v7230 = vpop.f32.mrb[0].mxu0
        %7231 = vmatprep.mubr.bf16.mxu0 %v1225
        %7232 = vmatmul.mubr.bf16.gmra.mrb[0].mxu0 %v1224
        %v7233 = vpop.f32.mrb[0].mxu0
        %v7234 = vadd.f32 %v1123, %v7233
        %v7235 = vpop.f32.mrb[0].mxu0
        %v7236 = vpop.f32.mrb[0].mxu0
        %v7237 = vadd.f32 %v1128, %v7236
        %v7238 = vpop.f32.mrb[0].mxu0
        %7239 = vmatprep.mubr.bf16.mxu0 %v1227
        %7240 = vmatmul.mubr.bf16.gmra.mrb[0].mxu0 %v1226
        %v7241 = vpop.f32.mrb[0].mxu0
        %v7242 = vadd.f32 %v1133, %v7241
        %v7243 = vpop.f32.mrb[0].mxu0
        %v7244 = vpop.f32.mrb[0].mxu0
        %v7245 = vadd.f32 %v1138, %v7244
        %v7246 = vpop.f32.mrb[0].mxu0
        %7247 = vmatprep.mubr.bf16.mxu0 %v1229
        %7248 = vmatmul.mubr.bf16.gmra.mrb[0].mxu0 %v1228
        %v7249 = vpop.f32.mrb[0].mxu0
        %v7250 = vadd.f32 %v1143, %v7249
        %v7251 = vpop.f32.mrb[0].mxu0
        %v7252 = vpop.f32.mrb[0].mxu0
        %v7253 = vadd.f32 %v1148, %v7252
        %v7254 = vpop.f32.mrb[0].mxu0
        %7255 = vmatprep.mubr.bf16.mxu0 %v1231
        %7256 = vmatmul.mubr.bf16.gmra.mrb[0].mxu0 %v1230
        %v7257 = vpop.f32.mrb[0].mxu0
        %v7258 = vadd.f32 %v1153, %v7257
        %v7259 = vpop.f32.mrb[0].mxu0
        %v7260 = vpop.f32.mrb[0].mxu0
        %v7261 = vadd.f32 %v1158, %v7260
        %v7262 = vpop.f32.mrb[0].mxu0
        %7263 = vmatprep.mubr.bf16.mxu0 %v1233
        %7264 = vmatmul.mubr.bf16.gmra.mrb[0].mxu0 %v1232
        %v7265 = vpop.f32.mrb[0].mxu0
        %v7266 = vadd.f32 %v1163, %v7265
        %v7267 = vpop.f32.mrb[0].mxu0
        %v7268 = vpop.f32.mrb[0].mxu0
        %v7269 = vadd.f32 %v1168, %v7268
        %v7270 = vpop.f32.mrb[0].mxu0
        %7271 = vdwg.mxu0
        %v7272 = vmax.f32 %v7210, 0.0
        %v7273 = vmax.f32 %v7213, 0.0
        %v7274 = vmax.f32 %v7218, 0.0
        %v7275 = vmax.f32 %v7221, 0.0
        %v7276 = vmax.f32 %v7226, 0.0
        %v7277 = vmax.f32 %v7229, 0.0
        %v7278 = vmax.f32 %v7234, 0.0
        %v7279 = vmax.f32 %v7237, 0.0
        %v7280 = vmax.f32 %v7242, 0.0
        %v7281 = vmax.f32 %v7245, 0.0
        %v7282 = vmax.f32 %v7250, 0.0
        %v7283 = vmax.f32 %v7253, 0.0
        %v7284 = vmax.f32 %v7258, 0.0
        %v7285 = vmax.f32 %v7261, 0.0
        %v7286 = vmax.f32 %v7266, 0.0
        %v7287 = vmax.f32 %v7269, 0.0
        %v7288 = vmul.f32 %v7272, %v1366
        %v7289 = vmul.f32 %v7273, %v1371
        %v7290 = vmul.f32 %v7274, %v1376
        %v7291 = vmul.f32 %v7275, %v1381
        %v7292 = vmul.f32 %v7276, %v1386
        %v7293 = vmul.f32 %v7277, %v1391
        %v7294 = vmul.f32 %v7278, %v1396
        %v7295 = vmul.f32 %v7279, %v1401
        %v7296 = vmul.f32 %v7280, %v1406
        %v7297 = vmul.f32 %v7281, %v1411
        %v7298 = vmul.f32 %v7282, %v1416
        %v7299 = vmul.f32 %v7283, %v1421
        %v7300 = vmul.f32 %v7284, %v1426
        %v7301 = vmul.f32 %v7285, %v1431
        %v7302 = vmul.f32 %v7286, %v1436
        %v7303 = vmul.f32 %v7287, %v1441
        %v7304 = vadd.f32 %v7288, %v7289
        %v7305 = vadd.f32 %v7304, %v7290
        %v7306 = vadd.f32 %v7305, %v7291
        %v7307 = vadd.f32 %v7306, %v7292
        %v7308 = vadd.f32 %v7307, %v7293
        %v7309 = vadd.f32 %v7308, %v7294
        %v7310 = vadd.f32 %v7309, %v7295
        %v7311 = vadd.f32 %v7310, %v7296
        %v7312 = vadd.f32 %v7311, %v7297
        %v7313 = vadd.f32 %v7312, %v7298
        %v7314 = vadd.f32 %v7313, %v7299
        %v7315 = vadd.f32 %v7314, %v7300
        %v7316 = vadd.f32 %v7315, %v7301
        %v7317 = vadd.f32 %v7316, %v7302
        %v7318 = vadd.f32 %v7317, %v7303
        %v7319 = vld [vmem:[%s465 + $0x58] sm:$0xff]
        %v7320 = vadd.f32 %v7318, %v1482
        %7322 = vset.pattern.permute.xlu0 0
        %7323 = vperm.xlu0 %7322, %v7319
        %v7324 = vpop.permute.xlu0 %7323
        %v7326 = vmul.f32 %v7324, %v1494
        %v7327 = vmul.f32 %v7320, %v7326
        %7328 = vst [vmem:[%s442 + $0x58] sm:$0xff] %v7327
        %v7329 = vxor.u32 %v7327, 2147483648
        %v7330 = vmul.f32 %v7329, 1.442695
        %v7331 = vpow.pop %v7330
        %v7332 = vadd.f32 %v7331, 1.0
        %v7333 = vrcp.pop %v7332
        %v7334 = vmul.f32 1.0, %v7333
        %7335 = vst [vmem:[%s435 + $0x58] sm:$0xff] %v7334
        %v7336 = vld [vmem:[%s451 + $0x600] sm:$0xf]
        %v7337 = vld [vmem:[%s451 + $0x604] sm:$0xf]
        %v7338 = vld [vmem:[%s451 + $0x608] sm:$0xf]
        %v7339 = vld [vmem:[%s451 + $0x60c] sm:$0xf]
        %v7340 = vld [vmem:[%s451 + $0x610] sm:$0xf]
        %v7341 = vld [vmem:[%s451 + $0x614] sm:$0xf]
        %v7342 = vld [vmem:[%s451 + $0x618] sm:$0xf]
        %v7343 = vld [vmem:[%s451 + $0x61c] sm:$0xf]
        %v7344 = vld [vmem:[%s451 + $0x620] sm:$0xf]
        %v7345 = vld [vmem:[%s451 + $0x624] sm:$0xf]
        %v7346 = vld [vmem:[%s451 + $0x628] sm:$0xf]
        %v7347 = vld [vmem:[%s451 + $0x62c] sm:$0xf]
        %v7348 = vld [vmem:[%s451 + $0x630] sm:$0xf]
        %v7349 = vld [vmem:[%s451 + $0x634] sm:$0xf]
        %v7350 = vld [vmem:[%s451 + $0x638] sm:$0xf]
        %v7351 = vld [vmem:[%s451 + $0x63c] sm:$0xf]
        %v7352 = vld [vmem:[%s451 + $0x640] sm:$0xf]
        %v7353 = vld [vmem:[%s451 + $0x644] sm:$0xf]
        %v7354 = vld [vmem:[%s451 + $0x648] sm:$0xf]
        %v7355 = vld [vmem:[%s451 + $0x64c] sm:$0xf]
        %v7356 = vld [vmem:[%s451 + $0x650] sm:$0xf]
        %v7357 = vld [vmem:[%s451 + $0x654] sm:$0xf]
        %v7358 = vld [vmem:[%s451 + $0x658] sm:$0xf]
        %v7359 = vld [vmem:[%s451 + $0x65c] sm:$0xf]
        %v7360 = vld [vmem:[%s451 + $0x660] sm:$0xf]
        %v7361 = vld [vmem:[%s451 + $0x664] sm:$0xf]
        %v7362 = vld [vmem:[%s451 + $0x668] sm:$0xf]
        %v7363 = vld [vmem:[%s451 + $0x66c] sm:$0xf]
        %v7364 = vld [vmem:[%s451 + $0x670] sm:$0xf]
        %v7365 = vld [vmem:[%s451 + $0x674] sm:$0xf]
        %v7366 = vld [vmem:[%s451 + $0x678] sm:$0xf]
        %v7367 = vld [vmem:[%s451 + $0x67c] sm:$0xf]
        %v7400 = vunpack.c.l.b16 %v7336
        %v7401 = vunpack.c.l.b16 %v7337
        %v7402 = vunpack.c.l.b16 %v7338
        %v7403 = vunpack.c.l.b16 %v7339
        %v7404 = vunpack.c.l.b16 %v7340
        %v7405 = vunpack.c.l.b16 %v7341
        %v7406 = vunpack.c.l.b16 %v7342
        %v7407 = vunpack.c.l.b16 %v7343
        %v7408 = vunpack.c.l.b16 %v7344
        %v7409 = vunpack.c.l.b16 %v7345
        %v7410 = vunpack.c.l.b16 %v7346
        %v7411 = vunpack.c.l.b16 %v7347
        %v7412 = vunpack.c.l.b16 %v7348
        %v7413 = vunpack.c.l.b16 %v7349
        %v7414 = vunpack.c.l.b16 %v7350
        %v7415 = vunpack.c.l.b16 %v7351
        %v7416 = vunpack.c.l.b16 %v7352
        %v7417 = vunpack.c.l.b16 %v7353
        %v7418 = vunpack.c.l.b16 %v7354
        %v7419 = vunpack.c.l.b16 %v7355
        %v7420 = vunpack.c.l.b16 %v7356
        %v7421 = vunpack.c.l.b16 %v7357
        %v7422 = vunpack.c.l.b16 %v7358
        %v7423 = vunpack.c.l.b16 %v7359
        %v7424 = vunpack.c.l.b16 %v7360
        %v7425 = vunpack.c.l.b16 %v7361
        %v7426 = vunpack.c.l.b16 %v7362
        %v7427 = vunpack.c.l.b16 %v7363
        %v7428 = vunpack.c.l.b16 %v7364
        %v7429 = vunpack.c.l.b16 %v7365
        %v7430 = vunpack.c.l.b16 %v7366
        %v7431 = vunpack.c.l.b16 %v7367
        %v7432 = vpack.c.b16 %v7401, %v7400
        %v7433 = vpack.c.b16 %v7403, %v7402
        %v7434 = vpack.c.b16 %v7405, %v7404
        %v7435 = vpack.c.b16 %v7407, %v7406
        %v7436 = vpack.c.b16 %v7409, %v7408
        %v7437 = vpack.c.b16 %v7411, %v7410
        %v7438 = vpack.c.b16 %v7413, %v7412
        %v7439 = vpack.c.b16 %v7415, %v7414
        %v7440 = vpack.c.b16 %v7417, %v7416
        %v7441 = vpack.c.b16 %v7419, %v7418
        %v7442 = vpack.c.b16 %v7421, %v7420
        %v7443 = vpack.c.b16 %v7423, %v7422
        %v7444 = vpack.c.b16 %v7425, %v7424
        %v7445 = vpack.c.b16 %v7427, %v7426
        %v7446 = vpack.c.b16 %v7429, %v7428
        %v7447 = vpack.c.b16 %v7431, %v7430
        %v7449 = vsel %vm828, %v7432, 0
        %v7452 = vsel %vm828, %v7433, 0
        %v7455 = vsel %vm828, %v7434, 0
        %v7458 = vsel %vm828, %v7435, 0
        %v7461 = vsel %vm828, %v7436, 0
        %v7464 = vsel %vm828, %v7437, 0
        %v7467 = vsel %vm828, %v7438, 0
        %v7470 = vsel %vm828, %v7439, 0
        %v7473 = vsel %vm828, %v7440, 0
        %v7476 = vsel %vm828, %v7441, 0
        %v7479 = vsel %vm828, %v7442, 0
        %v7482 = vsel %vm828, %v7443, 0
        %v7485 = vsel %vm828, %v7444, 0
        %v7488 = vsel %vm828, %v7445, 0
        %v7491 = vsel %vm828, %v7446, 0
        %v7494 = vsel %vm828, %v7447, 0
        %7496 = vmatprep.subr.bf16.mxu0 0
        %7497 = vmatpush1.bf16.msra.mxu0 %v879
        %7498 = vmatprep.subr.bf16.mxu0 0
        %7499 = vmatpush1.bf16.msra.mxu0 0
        %7500 = vmatprep.subr.bf16.mxu0 0
        %7501 = vmatpush1.bf16.msra.mxu0 0
        %7502 = vmatprep.subr.bf16.mxu0 0
        %7503 = vmatpush1.bf16.msra.mxu0 0
        %7504 = vmatprep.subr.bf16.mxu0 0
        %7505 = vmatpush1.bf16.msra.mxu0 0
        %7506 = vmatprep.subr.bf16.mxu0 0
        %7507 = vmatpush1.bf16.msra.mxu0 0
        %7508 = vmatprep.subr.bf16.mxu0 0
        %7509 = vmatpush1.bf16.msra.mxu0 0
        %7510 = vmatprep.subr.bf16.mxu0 0
        %7511 = vmatpush1.bf16.msra.mxu0 0
        %7512 = vmatprep.subr.bf16.mxu0 0
        %7513 = vmatpush1.bf16.msra.mxu0 0
        %7514 = vmatprep.subr.bf16.mxu0 0
        %7515 = vmatpush1.bf16.msra.mxu0 0
        %7516 = vmatprep.subr.bf16.mxu0 0
        %7517 = vmatpush1.bf16.msra.mxu0 0
        %7518 = vmatprep.subr.bf16.mxu0 0
        %7519 = vmatpush1.bf16.msra.mxu0 0
        %7520 = vmatprep.subr.bf16.mxu0 0
        %7521 = vmatpush1.bf16.msra.mxu0 0
        %7522 = vmatprep.subr.bf16.mxu0 0
        %7523 = vmatpush1.bf16.msra.mxu0 0
        %7524 = vmatprep.subr.bf16.mxu0 0
        %7525 = vmatpush1.bf16.msra.mxu0 0
        %7526 = vmatprep.subr.bf16.mxu0 0
        %7527 = vmatpush1.bf16.msra.mxu0 0
        %7528 = vmatprep.mubr.bf16.mxu0 0
        %7529 = vmatmul.mubr.bf16.gmra.mrb[0].mxu0 %v7449
        %v7530 = vpop.f32.mrb[0].mxu0
        %v7531 = vadd.f32 %v591, %v7530
        %v7532 = vpop.f32.mrb[0].mxu0
        %v7533 = vpop.f32.mrb[0].mxu0
        %v7534 = vadd.f32 %v596, %v7533
        %v7535 = vpop.f32.mrb[0].mxu0
        %7536 = vmatprep.mubr.bf16.mxu0 0
        %7537 = vmatmul.mubr.bf16.gmra.mrb[0].mxu0 %v7452
        %v7538 = vpop.f32.mrb[0].mxu0
        %v7539 = vadd.f32 %v601, %v7538
        %v7540 = vpop.f32.mrb[0].mxu0
        %v7541 = vpop.f32.mrb[0].mxu0
        %v7542 = vadd.f32 %v606, %v7541
        %v7543 = vpop.f32.mrb[0].mxu0
        %7544 = vmatprep.mubr.bf16.mxu0 0
        %7545 = vmatmul.mubr.bf16.gmra.mrb[0].mxu0 %v7455
        %v7546 = vpop.f32.mrb[0].mxu0
        %v7547 = vadd.f32 %v611, %v7546
        %v7548 = vpop.f32.mrb[0].mxu0
        %v7549 = vpop.f32.mrb[0].mxu0
        %v7550 = vadd.f32 %v616, %v7549
        %v7551 = vpop.f32.mrb[0].mxu0
        %7552 = vmatprep.mubr.bf16.mxu0 0
        %7553 = vmatmul.mubr.bf16.gmra.mrb[0].mxu0 %v7458
        %v7554 = vpop.f32.mrb[0].mxu0
        %v7555 = vadd.f32 %v621, %v7554
        %v7556 = vpop.f32.mrb[0].mxu0
        %v7557 = vpop.f32.mrb[0].mxu0
        %v7558 = vadd.f32 %v626, %v7557
        %v7559 = vpop.f32.mrb[0].mxu0
        %7560 = vmatprep.mubr.bf16.mxu0 0
        %7561 = vmatmul.mubr.bf16.gmra.mrb[0].mxu0 %v7461
        %v7562 = vpop.f32.mrb[0].mxu0
        %v7563 = vadd.f32 %v631, %v7562
        %v7564 = vpop.f32.mrb[0].mxu0
        %v7565 = vpop.f32.mrb[0].mxu0
        %v7566 = vadd.f32 %v636, %v7565
        %v7567 = vpop.f32.mrb[0].mxu0
        %7568 = vmatprep.mubr.bf16.mxu0 0
        %7569 = vmatmul.mubr.bf16.gmra.mrb[0].mxu0 %v7464
        %v7570 = vpop.f32.mrb[0].mxu0
        %v7571 = vadd.f32 %v641, %v7570
        %v7572 = vpop.f32.mrb[0].mxu0
        %v7573 = vpop.f32.mrb[0].mxu0
        %v7574 = vadd.f32 %v646, %v7573
        %v7575 = vpop.f32.mrb[0].mxu0
        %7576 = vmatprep.mubr.bf16.mxu0 0
        %7577 = vmatmul.mubr.bf16.gmra.mrb[0].mxu0 %v7467
        %v7578 = vpop.f32.mrb[0].mxu0
        %v7579 = vadd.f32 %v651, %v7578
        %v7580 = vpop.f32.mrb[0].mxu0
        %v7581 = vpop.f32.mrb[0].mxu0
        %v7582 = vadd.f32 %v656, %v7581
        %v7583 = vpop.f32.mrb[0].mxu0
        %7584 = vmatprep.mubr.bf16.mxu0 0
        %7585 = vmatmul.mubr.bf16.gmra.mrb[0].mxu0 %v7470
        %v7586 = vpop.f32.mrb[0].mxu0
        %v7587 = vadd.f32 %v661, %v7586
        %v7588 = vpop.f32.mrb[0].mxu0
        %v7589 = vpop.f32.mrb[0].mxu0
        %v7590 = vadd.f32 %v666, %v7589
        %v7591 = vpop.f32.mrb[0].mxu0
        %7592 = vmatprep.mubr.bf16.mxu0 0
        %7593 = vmatmul.mubr.bf16.gmra.mrb[0].mxu0 %v7473
        %v7594 = vpop.f32.mrb[0].mxu0
        %v7595 = vadd.f32 %v671, %v7594
        %v7596 = vpop.f32.mrb[0].mxu0
        %v7597 = vpop.f32.mrb[0].mxu0
        %v7598 = vadd.f32 %v676, %v7597
        %v7599 = vpop.f32.mrb[0].mxu0
        %7600 = vmatprep.mubr.bf16.mxu0 0
        %7601 = vmatmul.mubr.bf16.gmra.mrb[0].mxu0 %v7476
        %v7602 = vpop.f32.mrb[0].mxu0
        %v7603 = vadd.f32 %v681, %v7602
        %v7604 = vpop.f32.mrb[0].mxu0
        %v7605 = vpop.f32.mrb[0].mxu0
        %v7606 = vadd.f32 %v686, %v7605
        %v7607 = vpop.f32.mrb[0].mxu0
        %7608 = vmatprep.mubr.bf16.mxu0 0
        %7609 = vmatmul.mubr.bf16.gmra.mrb[0].mxu0 %v7479
        %v7610 = vpop.f32.mrb[0].mxu0
        %v7611 = vadd.f32 %v691, %v7610
        %v7612 = vpop.f32.mrb[0].mxu0
        %v7613 = vpop.f32.mrb[0].mxu0
        %v7614 = vadd.f32 %v696, %v7613
        %v7615 = vpop.f32.mrb[0].mxu0
        %7616 = vmatprep.mubr.bf16.mxu0 0
        %7617 = vmatmul.mubr.bf16.gmra.mrb[0].mxu0 %v7482
        %v7618 = vpop.f32.mrb[0].mxu0
        %v7619 = vadd.f32 %v701, %v7618
        %v7620 = vpop.f32.mrb[0].mxu0
        %v7621 = vpop.f32.mrb[0].mxu0
        %v7622 = vadd.f32 %v706, %v7621
        %v7623 = vpop.f32.mrb[0].mxu0
        %7624 = vmatprep.mubr.bf16.mxu0 0
        %7625 = vmatmul.mubr.bf16.gmra.mrb[0].mxu0 %v7485
        %v7626 = vpop.f32.mrb[0].mxu0
        %v7627 = vadd.f32 %v711, %v7626
        %v7628 = vpop.f32.mrb[0].mxu0
        %v7629 = vpop.f32.mrb[0].mxu0
        %v7630 = vadd.f32 %v716, %v7629
        %v7631 = vpop.f32.mrb[0].mxu0
        %7632 = vmatprep.mubr.bf16.mxu0 0
        %7633 = vmatmul.mubr.bf16.gmra.mrb[0].mxu0 %v7488
        %v7634 = vpop.f32.mrb[0].mxu0
        %v7635 = vadd.f32 %v721, %v7634
        %v7636 = vpop.f32.mrb[0].mxu0
        %v7637 = vpop.f32.mrb[0].mxu0
        %v7638 = vadd.f32 %v726, %v7637
        %v7639 = vpop.f32.mrb[0].mxu0
        %7640 = vmatprep.mubr.bf16.mxu0 0
        %7641 = vmatmul.mubr.bf16.gmra.mrb[0].mxu0 %v7491
        %v7642 = vpop.f32.mrb[0].mxu0
        %v7643 = vadd.f32 %v731, %v7642
        %v7644 = vpop.f32.mrb[0].mxu0
        %v7645 = vpop.f32.mrb[0].mxu0
        %v7646 = vadd.f32 %v736, %v7645
        %v7647 = vpop.f32.mrb[0].mxu0
        %7648 = vmatprep.mubr.bf16.mxu0 0
        %7649 = vmatmul.mubr.bf16.gmra.mrb[0].mxu0 %v7494
        %v7650 = vpop.f32.mrb[0].mxu0
        %v7651 = vadd.f32 %v741, %v7650
        %v7652 = vpop.f32.mrb[0].mxu0
        %v7653 = vpop.f32.mrb[0].mxu0
        %v7654 = vadd.f32 %v746, %v7653
        %v7655 = vpop.f32.mrb[0].mxu0
        %7656 = vdwg.mxu0
        %v7657 = vmax.f32 %v7531, 0.0
        %v7658 = vmax.f32 %v7534, 0.0
        %v7659 = vmax.f32 %v7539, 0.0
        %v7660 = vmax.f32 %v7542, 0.0
        %v7661 = vmax.f32 %v7547, 0.0
        %v7662 = vmax.f32 %v7550, 0.0
        %v7663 = vmax.f32 %v7555, 0.0
        %v7664 = vmax.f32 %v7558, 0.0
        %v7665 = vmax.f32 %v7563, 0.0
        %v7666 = vmax.f32 %v7566, 0.0
        %v7667 = vmax.f32 %v7571, 0.0
        %v7668 = vmax.f32 %v7574, 0.0
        %v7669 = vmax.f32 %v7579, 0.0
        %v7670 = vmax.f32 %v7582, 0.0
        %v7671 = vmax.f32 %v7587, 0.0
        %v7672 = vmax.f32 %v7590, 0.0
        %v7673 = vmax.f32 %v7595, 0.0
        %v7674 = vmax.f32 %v7598, 0.0
        %v7675 = vmax.f32 %v7603, 0.0
        %v7676 = vmax.f32 %v7606, 0.0
        %v7677 = vmax.f32 %v7611, 0.0
        %v7678 = vmax.f32 %v7614, 0.0
        %v7679 = vmax.f32 %v7619, 0.0
        %v7680 = vmax.f32 %v7622, 0.0
        %v7681 = vmax.f32 %v7627, 0.0
        %v7682 = vmax.f32 %v7630, 0.0
        %v7683 = vmax.f32 %v7635, 0.0
        %v7684 = vmax.f32 %v7638, 0.0
        %v7685 = vmax.f32 %v7643, 0.0
        %v7686 = vmax.f32 %v7646, 0.0
        %v7687 = vmax.f32 %v7651, 0.0
        %v7688 = vmax.f32 %v7654, 0.0
        %v7689 = vpack.c.bf16 %v7658, %v7657
        %v7690 = vpack.c.bf16 %v7660, %v7659
        %v7691 = vpack.c.bf16 %v7662, %v7661
        %v7692 = vpack.c.bf16 %v7664, %v7663
        %v7693 = vpack.c.bf16 %v7666, %v7665
        %v7694 = vpack.c.bf16 %v7668, %v7667
        %v7695 = vpack.c.bf16 %v7670, %v7669
        %v7696 = vpack.c.bf16 %v7672, %v7671
        %v7697 = vpack.c.bf16 %v7674, %v7673
        %v7698 = vpack.c.bf16 %v7676, %v7675
        %v7699 = vpack.c.bf16 %v7678, %v7677
        %v7700 = vpack.c.bf16 %v7680, %v7679
        %v7701 = vpack.c.bf16 %v7682, %v7681
        %v7702 = vpack.c.bf16 %v7684, %v7683
        %v7703 = vpack.c.bf16 %v7686, %v7685
        %v7704 = vpack.c.bf16 %v7688, %v7687
        %7705 = vmatprep.subr.bf16.mxu0 0
        %7706 = vmatpush1.bf16.msra.mxu0 %v7689
        %7707 = vmatprep.subr.bf16.mxu0 0
        %7708 = vmatpush1.bf16.msra.mxu0 %v7690
        %7709 = vmatprep.subr.bf16.mxu0 0
        %7710 = vmatpush1.bf16.msra.mxu0 %v7691
        %7711 = vmatprep.subr.bf16.mxu0 0
        %7712 = vmatpush1.bf16.msra.mxu0 %v7692
        %7713 = vmatprep.subr.bf16.mxu0 0
        %7714 = vmatpush1.bf16.msra.mxu0 %v7693
        %7715 = vmatprep.subr.bf16.mxu0 0
        %7716 = vmatpush1.bf16.msra.mxu0 %v7694
        %7717 = vmatprep.subr.bf16.mxu0 0
        %7718 = vmatpush1.bf16.msra.mxu0 %v7695
        %7719 = vmatprep.subr.bf16.mxu0 0
        %7720 = vmatpush1.bf16.msra.mxu0 %v7696
        %7721 = vmatprep.subr.bf16.mxu0 0
        %7722 = vmatpush1.bf16.msra.mxu0 %v7697
        %7723 = vmatprep.subr.bf16.mxu0 0
        %7724 = vmatpush1.bf16.msra.mxu0 %v7698
        %7725 = vmatprep.subr.bf16.mxu0 0
        %7726 = vmatpush1.bf16.msra.mxu0 %v7699
        %7727 = vmatprep.subr.bf16.mxu0 0
        %7728 = vmatpush1.bf16.msra.mxu0 %v7700
        %7729 = vmatprep.subr.bf16.mxu0 0
        %7730 = vmatpush1.bf16.msra.mxu0 %v7701
        %7731 = vmatprep.subr.bf16.mxu0 0
        %7732 = vmatpush1.bf16.msra.mxu0 %v7702
        %7733 = vmatprep.subr.bf16.mxu0 0
        %7734 = vmatpush1.bf16.msra.mxu0 %v7703
        %7735 = vmatprep.subr.bf16.mxu0 0
        %7736 = vmatpush1.bf16.msra.mxu0 %v7704
        %7737 = vmatprep.mubr.bf16.mxu0 %v1219
        %7738 = vmatmul.mubr.bf16.gmra.mrb[0].mxu0 %v1218
        %v7739 = vpop.f32.mrb[0].mxu0
        %v7740 = vadd.f32 %v1093, %v7739
        %v7741 = vpop.f32.mrb[0].mxu0
        %v7742 = vpop.f32.mrb[0].mxu0
        %v7743 = vadd.f32 %v1098, %v7742
        %v7744 = vpop.f32.mrb[0].mxu0
        %7745 = vmatprep.mubr.bf16.mxu0 %v1221
        %7746 = vmatmul.mubr.bf16.gmra.mrb[0].mxu0 %v1220
        %v7747 = vpop.f32.mrb[0].mxu0
        %v7748 = vadd.f32 %v1103, %v7747
        %v7749 = vpop.f32.mrb[0].mxu0
        %v7750 = vpop.f32.mrb[0].mxu0
        %v7751 = vadd.f32 %v1108, %v7750
        %v7752 = vpop.f32.mrb[0].mxu0
        %7753 = vmatprep.mubr.bf16.mxu0 %v1223
        %7754 = vmatmul.mubr.bf16.gmra.mrb[0].mxu0 %v1222
        %v7755 = vpop.f32.mrb[0].mxu0
        %v7756 = vadd.f32 %v1113, %v7755
        %v7757 = vpop.f32.mrb[0].mxu0
        %v7758 = vpop.f32.mrb[0].mxu0
        %v7759 = vadd.f32 %v1118, %v7758
        %v7760 = vpop.f32.mrb[0].mxu0
        %7761 = vmatprep.mubr.bf16.mxu0 %v1225
        %7762 = vmatmul.mubr.bf16.gmra.mrb[0].mxu0 %v1224
        %v7763 = vpop.f32.mrb[0].mxu0
        %v7764 = vadd.f32 %v1123, %v7763
        %v7765 = vpop.f32.mrb[0].mxu0
        %v7766 = vpop.f32.mrb[0].mxu0
        %v7767 = vadd.f32 %v1128, %v7766
        %v7768 = vpop.f32.mrb[0].mxu0
        %7769 = vmatprep.mubr.bf16.mxu0 %v1227
        %7770 = vmatmul.mubr.bf16.gmra.mrb[0].mxu0 %v1226
        %v7771 = vpop.f32.mrb[0].mxu0
        %v7772 = vadd.f32 %v1133, %v7771
        %v7773 = vpop.f32.mrb[0].mxu0
        %v7774 = vpop.f32.mrb[0].mxu0
        %v7775 = vadd.f32 %v1138, %v7774
        %v7776 = vpop.f32.mrb[0].mxu0
        %7777 = vmatprep.mubr.bf16.mxu0 %v1229
        %7778 = vmatmul.mubr.bf16.gmra.mrb[0].mxu0 %v1228
        %v7779 = vpop.f32.mrb[0].mxu0
        %v7780 = vadd.f32 %v1143, %v7779
        %v7781 = vpop.f32.mrb[0].mxu0
        %v7782 = vpop.f32.mrb[0].mxu0
        %v7783 = vadd.f32 %v1148, %v7782
        %v7784 = vpop.f32.mrb[0].mxu0
        %7785 = vmatprep.mubr.bf16.mxu0 %v1231
        %7786 = vmatmul.mubr.bf16.gmra.mrb[0].mxu0 %v1230
        %v7787 = vpop.f32.mrb[0].mxu0
        %v7788 = vadd.f32 %v1153, %v7787
        %v7789 = vpop.f32.mrb[0].mxu0
        %v7790 = vpop.f32.mrb[0].mxu0
        %v7791 = vadd.f32 %v1158, %v7790
        %v7792 = vpop.f32.mrb[0].mxu0
        %7793 = vmatprep.mubr.bf16.mxu0 %v1233
        %7794 = vmatmul.mubr.bf16.gmra.mrb[0].mxu0 %v1232
        %v7795 = vpop.f32.mrb[0].mxu0
        %v7796 = vadd.f32 %v1163, %v7795
        %v7797 = vpop.f32.mrb[0].mxu0
        %v7798 = vpop.f32.mrb[0].mxu0
        %v7799 = vadd.f32 %v1168, %v7798
        %v7800 = vpop.f32.mrb[0].mxu0
        %7801 = vdwg.mxu0
        %v7802 = vmax.f32 %v7740, 0.0
        %v7803 = vmax.f32 %v7743, 0.0
        %v7804 = vmax.f32 %v7748, 0.0
        %v7805 = vmax.f32 %v7751, 0.0
        %v7806 = vmax.f32 %v7756, 0.0
        %v7807 = vmax.f32 %v7759, 0.0
        %v7808 = vmax.f32 %v7764, 0.0
        %v7809 = vmax.f32 %v7767, 0.0
        %v7810 = vmax.f32 %v7772, 0.0
        %v7811 = vmax.f32 %v7775, 0.0
        %v7812 = vmax.f32 %v7780, 0.0
        %v7813 = vmax.f32 %v7783, 0.0
        %v7814 = vmax.f32 %v7788, 0.0
        %v7815 = vmax.f32 %v7791, 0.0
        %v7816 = vmax.f32 %v7796, 0.0
        %v7817 = vmax.f32 %v7799, 0.0
        %v7818 = vmul.f32 %v7802, %v1366
        %v7819 = vmul.f32 %v7803, %v1371
        %v7820 = vmul.f32 %v7804, %v1376
        %v7821 = vmul.f32 %v7805, %v1381
        %v7822 = vmul.f32 %v7806, %v1386
        %v7823 = vmul.f32 %v7807, %v1391
        %v7824 = vmul.f32 %v7808, %v1396
        %v7825 = vmul.f32 %v7809, %v1401
        %v7826 = vmul.f32 %v7810, %v1406
        %v7827 = vmul.f32 %v7811, %v1411
        %v7828 = vmul.f32 %v7812, %v1416
        %v7829 = vmul.f32 %v7813, %v1421
        %v7830 = vmul.f32 %v7814, %v1426
        %v7831 = vmul.f32 %v7815, %v1431
        %v7832 = vmul.f32 %v7816, %v1436
        %v7833 = vmul.f32 %v7817, %v1441
        %v7834 = vadd.f32 %v7818, %v7819
        %v7835 = vadd.f32 %v7834, %v7820
        %v7836 = vadd.f32 %v7835, %v7821
        %v7837 = vadd.f32 %v7836, %v7822
        %v7838 = vadd.f32 %v7837, %v7823
        %v7839 = vadd.f32 %v7838, %v7824
        %v7840 = vadd.f32 %v7839, %v7825
        %v7841 = vadd.f32 %v7840, %v7826
        %v7842 = vadd.f32 %v7841, %v7827
        %v7843 = vadd.f32 %v7842, %v7828
        %v7844 = vadd.f32 %v7843, %v7829
        %v7845 = vadd.f32 %v7844, %v7830
        %v7846 = vadd.f32 %v7845, %v7831
        %v7847 = vadd.f32 %v7846, %v7832
        %v7848 = vadd.f32 %v7847, %v7833
        %v7849 = vld [vmem:[%s465 + $0x60] sm:$0xff]
        %v7850 = vadd.f32 %v7848, %v1482
        %7852 = vset.pattern.permute.xlu0 0
        %7853 = vperm.xlu0 %7852, %v7849
        %v7854 = vpop.permute.xlu0 %7853
        %v7856 = vmul.f32 %v7854, %v1494
        %v7857 = vmul.f32 %v7850, %v7856
        %7858 = vst [vmem:[%s442 + $0x60] sm:$0xff] %v7857
        %v7859 = vxor.u32 %v7857, 2147483648
        %v7860 = vmul.f32 %v7859, 1.442695
        %v7861 = vpow.pop %v7860
        %v7862 = vadd.f32 %v7861, 1.0
        %v7863 = vrcp.pop %v7862
        %v7864 = vmul.f32 1.0, %v7863
        %7865 = vst [vmem:[%s435 + $0x60] sm:$0xff] %v7864
        %v7866 = vld [vmem:[%s451 + $0x680] sm:$0xf]
        %v7867 = vld [vmem:[%s451 + $0x684] sm:$0xf]
        %v7868 = vld [vmem:[%s451 + $0x688] sm:$0xf]
        %v7869 = vld [vmem:[%s451 + $0x68c] sm:$0xf]
        %v7870 = vld [vmem:[%s451 + $0x690] sm:$0xf]
        %v7871 = vld [vmem:[%s451 + $0x694] sm:$0xf]
        %v7872 = vld [vmem:[%s451 + $0x698] sm:$0xf]
        %v7873 = vld [vmem:[%s451 + $0x69c] sm:$0xf]
        %v7874 = vld [vmem:[%s451 + $0x6a0] sm:$0xf]
        %v7875 = vld [vmem:[%s451 + $0x6a4] sm:$0xf]
        %v7876 = vld [vmem:[%s451 + $0x6a8] sm:$0xf]
        %v7877 = vld [vmem:[%s451 + $0x6ac] sm:$0xf]
        %v7878 = vld [vmem:[%s451 + $0x6b0] sm:$0xf]
        %v7879 = vld [vmem:[%s451 + $0x6b4] sm:$0xf]
        %v7880 = vld [vmem:[%s451 + $0x6b8] sm:$0xf]
        %v7881 = vld [vmem:[%s451 + $0x6bc] sm:$0xf]
        %v7882 = vld [vmem:[%s451 + $0x6c0] sm:$0xf]
        %v7883 = vld [vmem:[%s451 + $0x6c4] sm:$0xf]
        %v7884 = vld [vmem:[%s451 + $0x6c8] sm:$0xf]
        %v7885 = vld [vmem:[%s451 + $0x6cc] sm:$0xf]
        %v7886 = vld [vmem:[%s451 + $0x6d0] sm:$0xf]
        %v7887 = vld [vmem:[%s451 + $0x6d4] sm:$0xf]
        %v7888 = vld [vmem:[%s451 + $0x6d8] sm:$0xf]
        %v7889 = vld [vmem:[%s451 + $0x6dc] sm:$0xf]
        %v7890 = vld [vmem:[%s451 + $0x6e0] sm:$0xf]
        %v7891 = vld [vmem:[%s451 + $0x6e4] sm:$0xf]
        %v7892 = vld [vmem:[%s451 + $0x6e8] sm:$0xf]
        %v7893 = vld [vmem:[%s451 + $0x6ec] sm:$0xf]
        %v7894 = vld [vmem:[%s451 + $0x6f0] sm:$0xf]
        %v7895 = vld [vmem:[%s451 + $0x6f4] sm:$0xf]
        %v7896 = vld [vmem:[%s451 + $0x6f8] sm:$0xf]
        %v7897 = vld [vmem:[%s451 + $0x6fc] sm:$0xf]
        %v7930 = vunpack.c.l.b16 %v7866
        %v7931 = vunpack.c.l.b16 %v7867
        %v7932 = vunpack.c.l.b16 %v7868
        %v7933 = vunpack.c.l.b16 %v7869
        %v7934 = vunpack.c.l.b16 %v7870
        %v7935 = vunpack.c.l.b16 %v7871
        %v7936 = vunpack.c.l.b16 %v7872
        %v7937 = vunpack.c.l.b16 %v7873
        %v7938 = vunpack.c.l.b16 %v7874
        %v7939 = vunpack.c.l.b16 %v7875
        %v7940 = vunpack.c.l.b16 %v7876
        %v7941 = vunpack.c.l.b16 %v7877
        %v7942 = vunpack.c.l.b16 %v7878
        %v7943 = vunpack.c.l.b16 %v7879
        %v7944 = vunpack.c.l.b16 %v7880
        %v7945 = vunpack.c.l.b16 %v7881
        %v7946 = vunpack.c.l.b16 %v7882
        %v7947 = vunpack.c.l.b16 %v7883
        %v7948 = vunpack.c.l.b16 %v7884
        %v7949 = vunpack.c.l.b16 %v7885
        %v7950 = vunpack.c.l.b16 %v7886
        %v7951 = vunpack.c.l.b16 %v7887
        %v7952 = vunpack.c.l.b16 %v7888
        %v7953 = vunpack.c.l.b16 %v7889
        %v7954 = vunpack.c.l.b16 %v7890
        %v7955 = vunpack.c.l.b16 %v7891
        %v7956 = vunpack.c.l.b16 %v7892
        %v7957 = vunpack.c.l.b16 %v7893
        %v7958 = vunpack.c.l.b16 %v7894
        %v7959 = vunpack.c.l.b16 %v7895
        %v7960 = vunpack.c.l.b16 %v7896
        %v7961 = vunpack.c.l.b16 %v7897
        %v7962 = vpack.c.b16 %v7931, %v7930
        %v7963 = vpack.c.b16 %v7933, %v7932
        %v7964 = vpack.c.b16 %v7935, %v7934
        %v7965 = vpack.c.b16 %v7937, %v7936
        %v7966 = vpack.c.b16 %v7939, %v7938
        %v7967 = vpack.c.b16 %v7941, %v7940
        %v7968 = vpack.c.b16 %v7943, %v7942
        %v7969 = vpack.c.b16 %v7945, %v7944
        %v7970 = vpack.c.b16 %v7947, %v7946
        %v7971 = vpack.c.b16 %v7949, %v7948
        %v7972 = vpack.c.b16 %v7951, %v7950
        %v7973 = vpack.c.b16 %v7953, %v7952
        %v7974 = vpack.c.b16 %v7955, %v7954
        %v7975 = vpack.c.b16 %v7957, %v7956
        %v7976 = vpack.c.b16 %v7959, %v7958
        %v7977 = vpack.c.b16 %v7961, %v7960
        %v7979 = vsel %vm828, %v7962, 0
        %v7982 = vsel %vm828, %v7963, 0
        %v7985 = vsel %vm828, %v7964, 0
        %v7988 = vsel %vm828, %v7965, 0
        %v7991 = vsel %vm828, %v7966, 0
        %v7994 = vsel %vm828, %v7967, 0
        %v7997 = vsel %vm828, %v7968, 0
        %v8000 = vsel %vm828, %v7969, 0
        %v8003 = vsel %vm828, %v7970, 0
        %v8006 = vsel %vm828, %v7971, 0
        %v8009 = vsel %vm828, %v7972, 0
        %v8012 = vsel %vm828, %v7973, 0
        %v8015 = vsel %vm828, %v7974, 0
        %v8018 = vsel %vm828, %v7975, 0
        %v8021 = vsel %vm828, %v7976, 0
        %v8024 = vsel %vm828, %v7977, 0
        %8026 = vmatprep.subr.bf16.mxu0 0
        %8027 = vmatpush1.bf16.msra.mxu0 %v879
        %8028 = vmatprep.subr.bf16.mxu0 0
        %8029 = vmatpush1.bf16.msra.mxu0 0
        %8030 = vmatprep.subr.bf16.mxu0 0
        %8031 = vmatpush1.bf16.msra.mxu0 0
        %8032 = vmatprep.subr.bf16.mxu0 0
        %8033 = vmatpush1.bf16.msra.mxu0 0
        %8034 = vmatprep.subr.bf16.mxu0 0
        %8035 = vmatpush1.bf16.msra.mxu0 0
        %8036 = vmatprep.subr.bf16.mxu0 0
        %8037 = vmatpush1.bf16.msra.mxu0 0
        %8038 = vmatprep.subr.bf16.mxu0 0
        %8039 = vmatpush1.bf16.msra.mxu0 0
        %8040 = vmatprep.subr.bf16.mxu0 0
        %8041 = vmatpush1.bf16.msra.mxu0 0
        %8042 = vmatprep.subr.bf16.mxu0 0
        %8043 = vmatpush1.bf16.msra.mxu0 0
        %8044 = vmatprep.subr.bf16.mxu0 0
        %8045 = vmatpush1.bf16.msra.mxu0 0
        %8046 = vmatprep.subr.bf16.mxu0 0
        %8047 = vmatpush1.bf16.msra.mxu0 0
        %8048 = vmatprep.subr.bf16.mxu0 0
        %8049 = vmatpush1.bf16.msra.mxu0 0
        %8050 = vmatprep.subr.bf16.mxu0 0
        %8051 = vmatpush1.bf16.msra.mxu0 0
        %8052 = vmatprep.subr.bf16.mxu0 0
        %8053 = vmatpush1.bf16.msra.mxu0 0
        %8054 = vmatprep.subr.bf16.mxu0 0
        %8055 = vmatpush1.bf16.msra.mxu0 0
        %8056 = vmatprep.subr.bf16.mxu0 0
        %8057 = vmatpush1.bf16.msra.mxu0 0
        %8058 = vmatprep.mubr.bf16.mxu0 0
        %8059 = vmatmul.mubr.bf16.gmra.mrb[0].mxu0 %v7979
        %v8060 = vpop.f32.mrb[0].mxu0
        %v8061 = vadd.f32 %v591, %v8060
        %v8062 = vpop.f32.mrb[0].mxu0
        %v8063 = vpop.f32.mrb[0].mxu0
        %v8064 = vadd.f32 %v596, %v8063
        %v8065 = vpop.f32.mrb[0].mxu0
        %8066 = vmatprep.mubr.bf16.mxu0 0
        %8067 = vmatmul.mubr.bf16.gmra.mrb[0].mxu0 %v7982
        %v8068 = vpop.f32.mrb[0].mxu0
        %v8069 = vadd.f32 %v601, %v8068
        %v8070 = vpop.f32.mrb[0].mxu0
        %v8071 = vpop.f32.mrb[0].mxu0
        %v8072 = vadd.f32 %v606, %v8071
        %v8073 = vpop.f32.mrb[0].mxu0
        %8074 = vmatprep.mubr.bf16.mxu0 0
        %8075 = vmatmul.mubr.bf16.gmra.mrb[0].mxu0 %v7985
        %v8076 = vpop.f32.mrb[0].mxu0
        %v8077 = vadd.f32 %v611, %v8076
        %v8078 = vpop.f32.mrb[0].mxu0
        %v8079 = vpop.f32.mrb[0].mxu0
        %v8080 = vadd.f32 %v616, %v8079
        %v8081 = vpop.f32.mrb[0].mxu0
        %8082 = vmatprep.mubr.bf16.mxu0 0
        %8083 = vmatmul.mubr.bf16.gmra.mrb[0].mxu0 %v7988
        %v8084 = vpop.f32.mrb[0].mxu0
        %v8085 = vadd.f32 %v621, %v8084
        %v8086 = vpop.f32.mrb[0].mxu0
        %v8087 = vpop.f32.mrb[0].mxu0
        %v8088 = vadd.f32 %v626, %v8087
        %v8089 = vpop.f32.mrb[0].mxu0
        %8090 = vmatprep.mubr.bf16.mxu0 0
        %8091 = vmatmul.mubr.bf16.gmra.mrb[0].mxu0 %v7991
        %v8092 = vpop.f32.mrb[0].mxu0
        %v8093 = vadd.f32 %v631, %v8092
        %v8094 = vpop.f32.mrb[0].mxu0
        %v8095 = vpop.f32.mrb[0].mxu0
        %v8096 = vadd.f32 %v636, %v8095
        %v8097 = vpop.f32.mrb[0].mxu0
        %8098 = vmatprep.mubr.bf16.mxu0 0
        %8099 = vmatmul.mubr.bf16.gmra.mrb[0].mxu0 %v7994
        %v8100 = vpop.f32.mrb[0].mxu0
        %v8101 = vadd.f32 %v641, %v8100
        %v8102 = vpop.f32.mrb[0].mxu0
        %v8103 = vpop.f32.mrb[0].mxu0
        %v8104 = vadd.f32 %v646, %v8103
        %v8105 = vpop.f32.mrb[0].mxu0
        %8106 = vmatprep.mubr.bf16.mxu0 0
        %8107 = vmatmul.mubr.bf16.gmra.mrb[0].mxu0 %v7997
        %v8108 = vpop.f32.mrb[0].mxu0
        %v8109 = vadd.f32 %v651, %v8108
        %v8110 = vpop.f32.mrb[0].mxu0
        %v8111 = vpop.f32.mrb[0].mxu0
        %v8112 = vadd.f32 %v656, %v8111
        %v8113 = vpop.f32.mrb[0].mxu0
        %8114 = vmatprep.mubr.bf16.mxu0 0
        %8115 = vmatmul.mubr.bf16.gmra.mrb[0].mxu0 %v8000
        %v8116 = vpop.f32.mrb[0].mxu0
        %v8117 = vadd.f32 %v661, %v8116
        %v8118 = vpop.f32.mrb[0].mxu0
        %v8119 = vpop.f32.mrb[0].mxu0
        %v8120 = vadd.f32 %v666, %v8119
        %v8121 = vpop.f32.mrb[0].mxu0
        %8122 = vmatprep.mubr.bf16.mxu0 0
        %8123 = vmatmul.mubr.bf16.gmra.mrb[0].mxu0 %v8003
        %v8124 = vpop.f32.mrb[0].mxu0
        %v8125 = vadd.f32 %v671, %v8124
        %v8126 = vpop.f32.mrb[0].mxu0
        %v8127 = vpop.f32.mrb[0].mxu0
        %v8128 = vadd.f32 %v676, %v8127
        %v8129 = vpop.f32.mrb[0].mxu0
        %8130 = vmatprep.mubr.bf16.mxu0 0
        %8131 = vmatmul.mubr.bf16.gmra.mrb[0].mxu0 %v8006
        %v8132 = vpop.f32.mrb[0].mxu0
        %v8133 = vadd.f32 %v681, %v8132
        %v8134 = vpop.f32.mrb[0].mxu0
        %v8135 = vpop.f32.mrb[0].mxu0
        %v8136 = vadd.f32 %v686, %v8135
        %v8137 = vpop.f32.mrb[0].mxu0
        %8138 = vmatprep.mubr.bf16.mxu0 0
        %8139 = vmatmul.mubr.bf16.gmra.mrb[0].mxu0 %v8009
        %v8140 = vpop.f32.mrb[0].mxu0
        %v8141 = vadd.f32 %v691, %v8140
        %v8142 = vpop.f32.mrb[0].mxu0
        %v8143 = vpop.f32.mrb[0].mxu0
        %v8144 = vadd.f32 %v696, %v8143
        %v8145 = vpop.f32.mrb[0].mxu0
        %8146 = vmatprep.mubr.bf16.mxu0 0
        %8147 = vmatmul.mubr.bf16.gmra.mrb[0].mxu0 %v8012
        %v8148 = vpop.f32.mrb[0].mxu0
        %v8149 = vadd.f32 %v701, %v8148
        %v8150 = vpop.f32.mrb[0].mxu0
        %v8151 = vpop.f32.mrb[0].mxu0
        %v8152 = vadd.f32 %v706, %v8151
        %v8153 = vpop.f32.mrb[0].mxu0
        %8154 = vmatprep.mubr.bf16.mxu0 0
        %8155 = vmatmul.mubr.bf16.gmra.mrb[0].mxu0 %v8015
        %v8156 = vpop.f32.mrb[0].mxu0
        %v8157 = vadd.f32 %v711, %v8156
        %v8158 = vpop.f32.mrb[0].mxu0
        %v8159 = vpop.f32.mrb[0].mxu0
        %v8160 = vadd.f32 %v716, %v8159
        %v8161 = vpop.f32.mrb[0].mxu0
        %8162 = vmatprep.mubr.bf16.mxu0 0
        %8163 = vmatmul.mubr.bf16.gmra.mrb[0].mxu0 %v8018
        %v8164 = vpop.f32.mrb[0].mxu0
        %v8165 = vadd.f32 %v721, %v8164
        %v8166 = vpop.f32.mrb[0].mxu0
        %v8167 = vpop.f32.mrb[0].mxu0
        %v8168 = vadd.f32 %v726, %v8167
        %v8169 = vpop.f32.mrb[0].mxu0
        %8170 = vmatprep.mubr.bf16.mxu0 0
        %8171 = vmatmul.mubr.bf16.gmra.mrb[0].mxu0 %v8021
        %v8172 = vpop.f32.mrb[0].mxu0
        %v8173 = vadd.f32 %v731, %v8172
        %v8174 = vpop.f32.mrb[0].mxu0
        %v8175 = vpop.f32.mrb[0].mxu0
        %v8176 = vadd.f32 %v736, %v8175
        %v8177 = vpop.f32.mrb[0].mxu0
        %8178 = vmatprep.mubr.bf16.mxu0 0
        %8179 = vmatmul.mubr.bf16.gmra.mrb[0].mxu0 %v8024
        %v8180 = vpop.f32.mrb[0].mxu0
        %v8181 = vadd.f32 %v741, %v8180
        %v8182 = vpop.f32.mrb[0].mxu0
        %v8183 = vpop.f32.mrb[0].mxu0
        %v8184 = vadd.f32 %v746, %v8183
        %v8185 = vpop.f32.mrb[0].mxu0
        %8186 = vdwg.mxu0
        %v8187 = vmax.f32 %v8061, 0.0
        %v8188 = vmax.f32 %v8064, 0.0
        %v8189 = vmax.f32 %v8069, 0.0
        %v8190 = vmax.f32 %v8072, 0.0
        %v8191 = vmax.f32 %v8077, 0.0
        %v8192 = vmax.f32 %v8080, 0.0
        %v8193 = vmax.f32 %v8085, 0.0
        %v8194 = vmax.f32 %v8088, 0.0
        %v8195 = vmax.f32 %v8093, 0.0
        %v8196 = vmax.f32 %v8096, 0.0
        %v8197 = vmax.f32 %v8101, 0.0
        %v8198 = vmax.f32 %v8104, 0.0
        %v8199 = vmax.f32 %v8109, 0.0
        %v8200 = vmax.f32 %v8112, 0.0
        %v8201 = vmax.f32 %v8117, 0.0
        %v8202 = vmax.f32 %v8120, 0.0
        %v8203 = vmax.f32 %v8125, 0.0
        %v8204 = vmax.f32 %v8128, 0.0
        %v8205 = vmax.f32 %v8133, 0.0
        %v8206 = vmax.f32 %v8136, 0.0
        %v8207 = vmax.f32 %v8141, 0.0
        %v8208 = vmax.f32 %v8144, 0.0
        %v8209 = vmax.f32 %v8149, 0.0
        %v8210 = vmax.f32 %v8152, 0.0
        %v8211 = vmax.f32 %v8157, 0.0
        %v8212 = vmax.f32 %v8160, 0.0
        %v8213 = vmax.f32 %v8165, 0.0
        %v8214 = vmax.f32 %v8168, 0.0
        %v8215 = vmax.f32 %v8173, 0.0
        %v8216 = vmax.f32 %v8176, 0.0
        %v8217 = vmax.f32 %v8181, 0.0
        %v8218 = vmax.f32 %v8184, 0.0
        %v8219 = vpack.c.bf16 %v8188, %v8187
        %v8220 = vpack.c.bf16 %v8190, %v8189
        %v8221 = vpack.c.bf16 %v8192, %v8191
        %v8222 = vpack.c.bf16 %v8194, %v8193
        %v8223 = vpack.c.bf16 %v8196, %v8195
        %v8224 = vpack.c.bf16 %v8198, %v8197
        %v8225 = vpack.c.bf16 %v8200, %v8199
        %v8226 = vpack.c.bf16 %v8202, %v8201
        %v8227 = vpack.c.bf16 %v8204, %v8203
        %v8228 = vpack.c.bf16 %v8206, %v8205
        %v8229 = vpack.c.bf16 %v8208, %v8207
        %v8230 = vpack.c.bf16 %v8210, %v8209
        %v8231 = vpack.c.bf16 %v8212, %v8211
        %v8232 = vpack.c.bf16 %v8214, %v8213
        %v8233 = vpack.c.bf16 %v8216, %v8215
        %v8234 = vpack.c.bf16 %v8218, %v8217
        %8235 = vmatprep.subr.bf16.mxu0 0
        %8236 = vmatpush1.bf16.msra.mxu0 %v8219
        %8237 = vmatprep.subr.bf16.mxu0 0
        %8238 = vmatpush1.bf16.msra.mxu0 %v8220
        %8239 = vmatprep.subr.bf16.mxu0 0
        %8240 = vmatpush1.bf16.msra.mxu0 %v8221
        %8241 = vmatprep.subr.bf16.mxu0 0
        %8242 = vmatpush1.bf16.msra.mxu0 %v8222
        %8243 = vmatprep.subr.bf16.mxu0 0
        %8244 = vmatpush1.bf16.msra.mxu0 %v8223
        %8245 = vmatprep.subr.bf16.mxu0 0
        %8246 = vmatpush1.bf16.msra.mxu0 %v8224
        %8247 = vmatprep.subr.bf16.mxu0 0
        %8248 = vmatpush1.bf16.msra.mxu0 %v8225
        %8249 = vmatprep.subr.bf16.mxu0 0
        %8250 = vmatpush1.bf16.msra.mxu0 %v8226
        %8251 = vmatprep.subr.bf16.mxu0 0
        %8252 = vmatpush1.bf16.msra.mxu0 %v8227
        %8253 = vmatprep.subr.bf16.mxu0 0
        %8254 = vmatpush1.bf16.msra.mxu0 %v8228
        %8255 = vmatprep.subr.bf16.mxu0 0
        %8256 = vmatpush1.bf16.msra.mxu0 %v8229
        %8257 = vmatprep.subr.bf16.mxu0 0
        %8258 = vmatpush1.bf16.msra.mxu0 %v8230
        %8259 = vmatprep.subr.bf16.mxu0 0
        %8260 = vmatpush1.bf16.msra.mxu0 %v8231
        %8261 = vmatprep.subr.bf16.mxu0 0
        %8262 = vmatpush1.bf16.msra.mxu0 %v8232
        %8263 = vmatprep.subr.bf16.mxu0 0
        %8264 = vmatpush1.bf16.msra.mxu0 %v8233
        %8265 = vmatprep.subr.bf16.mxu0 0
        %8266 = vmatpush1.bf16.msra.mxu0 %v8234
        %8267 = vmatprep.mubr.bf16.mxu0 %v1219
        %8268 = vmatmul.mubr.bf16.gmra.mrb[0].mxu0 %v1218
        %v8269 = vpop.f32.mrb[0].mxu0
        %v8270 = vadd.f32 %v1093, %v8269
        %v8271 = vpop.f32.mrb[0].mxu0
        %v8272 = vpop.f32.mrb[0].mxu0
        %v8273 = vadd.f32 %v1098, %v8272
        %v8274 = vpop.f32.mrb[0].mxu0
        %8275 = vmatprep.mubr.bf16.mxu0 %v1221
        %8276 = vmatmul.mubr.bf16.gmra.mrb[0].mxu0 %v1220
        %v8277 = vpop.f32.mrb[0].mxu0
        %v8278 = vadd.f32 %v1103, %v8277
        %v8279 = vpop.f32.mrb[0].mxu0
        %v8280 = vpop.f32.mrb[0].mxu0
        %v8281 = vadd.f32 %v1108, %v8280
        %v8282 = vpop.f32.mrb[0].mxu0
        %8283 = vmatprep.mubr.bf16.mxu0 %v1223
        %8284 = vmatmul.mubr.bf16.gmra.mrb[0].mxu0 %v1222
        %v8285 = vpop.f32.mrb[0].mxu0
        %v8286 = vadd.f32 %v1113, %v8285
        %v8287 = vpop.f32.mrb[0].mxu0
        %v8288 = vpop.f32.mrb[0].mxu0
        %v8289 = vadd.f32 %v1118, %v8288
        %v8290 = vpop.f32.mrb[0].mxu0
        %8291 = vmatprep.mubr.bf16.mxu0 %v1225
        %8292 = vmatmul.mubr.bf16.gmra.mrb[0].mxu0 %v1224
        %v8293 = vpop.f32.mrb[0].mxu0
        %v8294 = vadd.f32 %v1123, %v8293
        %v8295 = vpop.f32.mrb[0].mxu0
        %v8296 = vpop.f32.mrb[0].mxu0
        %v8297 = vadd.f32 %v1128, %v8296
        %v8298 = vpop.f32.mrb[0].mxu0
        %8299 = vmatprep.mubr.bf16.mxu0 %v1227
        %8300 = vmatmul.mubr.bf16.gmra.mrb[0].mxu0 %v1226
        %v8301 = vpop.f32.mrb[0].mxu0
        %v8302 = vadd.f32 %v1133, %v8301
        %v8303 = vpop.f32.mrb[0].mxu0
        %v8304 = vpop.f32.mrb[0].mxu0
        %v8305 = vadd.f32 %v1138, %v8304
        %v8306 = vpop.f32.mrb[0].mxu0
        %8307 = vmatprep.mubr.bf16.mxu0 %v1229
        %8308 = vmatmul.mubr.bf16.gmra.mrb[0].mxu0 %v1228
        %v8309 = vpop.f32.mrb[0].mxu0
        %v8310 = vadd.f32 %v1143, %v8309
        %v8311 = vpop.f32.mrb[0].mxu0
        %v8312 = vpop.f32.mrb[0].mxu0
        %v8313 = vadd.f32 %v1148, %v8312
        %v8314 = vpop.f32.mrb[0].mxu0
        %8315 = vmatprep.mubr.bf16.mxu0 %v1231
        %8316 = vmatmul.mubr.bf16.gmra.mrb[0].mxu0 %v1230
        %v8317 = vpop.f32.mrb[0].mxu0
        %v8318 = vadd.f32 %v1153, %v8317
        %v8319 = vpop.f32.mrb[0].mxu0
        %v8320 = vpop.f32.mrb[0].mxu0
        %v8321 = vadd.f32 %v1158, %v8320
        %v8322 = vpop.f32.mrb[0].mxu0
        %8323 = vmatprep.mubr.bf16.mxu0 %v1233
        %8324 = vmatmul.mubr.bf16.gmra.mrb[0].mxu0 %v1232
        %v8325 = vpop.f32.mrb[0].mxu0
        %v8326 = vadd.f32 %v1163, %v8325
        %v8327 = vpop.f32.mrb[0].mxu0
        %v8328 = vpop.f32.mrb[0].mxu0
        %v8329 = vadd.f32 %v1168, %v8328
        %v8330 = vpop.f32.mrb[0].mxu0
        %8331 = vdwg.mxu0
        %v8332 = vmax.f32 %v8270, 0.0
        %v8333 = vmax.f32 %v8273, 0.0
        %v8334 = vmax.f32 %v8278, 0.0
        %v8335 = vmax.f32 %v8281, 0.0
        %v8336 = vmax.f32 %v8286, 0.0
        %v8337 = vmax.f32 %v8289, 0.0
        %v8338 = vmax.f32 %v8294, 0.0
        %v8339 = vmax.f32 %v8297, 0.0
        %v8340 = vmax.f32 %v8302, 0.0
        %v8341 = vmax.f32 %v8305, 0.0
        %v8342 = vmax.f32 %v8310, 0.0
        %v8343 = vmax.f32 %v8313, 0.0
        %v8344 = vmax.f32 %v8318, 0.0
        %v8345 = vmax.f32 %v8321, 0.0
        %v8346 = vmax.f32 %v8326, 0.0
        %v8347 = vmax.f32 %v8329, 0.0
        %v8348 = vmul.f32 %v8332, %v1366
        %v8349 = vmul.f32 %v8333, %v1371
        %v8350 = vmul.f32 %v8334, %v1376
        %v8351 = vmul.f32 %v8335, %v1381
        %v8352 = vmul.f32 %v8336, %v1386
        %v8353 = vmul.f32 %v8337, %v1391
        %v8354 = vmul.f32 %v8338, %v1396
        %v8355 = vmul.f32 %v8339, %v1401
        %v8356 = vmul.f32 %v8340, %v1406
        %v8357 = vmul.f32 %v8341, %v1411
        %v8358 = vmul.f32 %v8342, %v1416
        %v8359 = vmul.f32 %v8343, %v1421
        %v8360 = vmul.f32 %v8344, %v1426
        %v8361 = vmul.f32 %v8345, %v1431
        %v8362 = vmul.f32 %v8346, %v1436
        %v8363 = vmul.f32 %v8347, %v1441
        %v8364 = vadd.f32 %v8348, %v8349
        %v8365 = vadd.f32 %v8364, %v8350
        %v8366 = vadd.f32 %v8365, %v8351
        %v8367 = vadd.f32 %v8366, %v8352
        %v8368 = vadd.f32 %v8367, %v8353
        %v8369 = vadd.f32 %v8368, %v8354
        %v8370 = vadd.f32 %v8369, %v8355
        %v8371 = vadd.f32 %v8370, %v8356
        %v8372 = vadd.f32 %v8371, %v8357
        %v8373 = vadd.f32 %v8372, %v8358
        %v8374 = vadd.f32 %v8373, %v8359
        %v8375 = vadd.f32 %v8374, %v8360
        %v8376 = vadd.f32 %v8375, %v8361
        %v8377 = vadd.f32 %v8376, %v8362
        %v8378 = vadd.f32 %v8377, %v8363
        %v8379 = vld [vmem:[%s465 + $0x68] sm:$0xff]
        %v8380 = vadd.f32 %v8378, %v1482
        %8382 = vset.pattern.permute.xlu0 0
        %8383 = vperm.xlu0 %8382, %v8379
        %v8384 = vpop.permute.xlu0 %8383
        %v8386 = vmul.f32 %v8384, %v1494
        %v8387 = vmul.f32 %v8380, %v8386
        %8388 = vst [vmem:[%s442 + $0x68] sm:$0xff] %v8387
        %v8389 = vxor.u32 %v8387, 2147483648
        %v8390 = vmul.f32 %v8389, 1.442695
        %v8391 = vpow.pop %v8390
        %v8392 = vadd.f32 %v8391, 1.0
        %v8393 = vrcp.pop %v8392
        %v8394 = vmul.f32 1.0, %v8393
        %8395 = vst [vmem:[%s435 + $0x68] sm:$0xff] %v8394
        %v8396 = vld [vmem:[%s451 + $0x700] sm:$0xf]
        %v8397 = vld [vmem:[%s451 + $0x704] sm:$0xf]
        %v8398 = vld [vmem:[%s451 + $0x708] sm:$0xf]
        %v8399 = vld [vmem:[%s451 + $0x70c] sm:$0xf]
        %v8400 = vld [vmem:[%s451 + $0x710] sm:$0xf]
        %v8401 = vld [vmem:[%s451 + $0x714] sm:$0xf]
        %v8402 = vld [vmem:[%s451 + $0x718] sm:$0xf]
        %v8403 = vld [vmem:[%s451 + $0x71c] sm:$0xf]
        %v8404 = vld [vmem:[%s451 + $0x720] sm:$0xf]
        %v8405 = vld [vmem:[%s451 + $0x724] sm:$0xf]
        %v8406 = vld [vmem:[%s451 + $0x728] sm:$0xf]
        %v8407 = vld [vmem:[%s451 + $0x72c] sm:$0xf]
        %v8408 = vld [vmem:[%s451 + $0x730] sm:$0xf]
        %v8409 = vld [vmem:[%s451 + $0x734] sm:$0xf]
        %v8410 = vld [vmem:[%s451 + $0x738] sm:$0xf]
        %v8411 = vld [vmem:[%s451 + $0x73c] sm:$0xf]
        %v8412 = vld [vmem:[%s451 + $0x740] sm:$0xf]
        %v8413 = vld [vmem:[%s451 + $0x744] sm:$0xf]
        %v8414 = vld [vmem:[%s451 + $0x748] sm:$0xf]
        %v8415 = vld [vmem:[%s451 + $0x74c] sm:$0xf]
        %v8416 = vld [vmem:[%s451 + $0x750] sm:$0xf]
        %v8417 = vld [vmem:[%s451 + $0x754] sm:$0xf]
        %v8418 = vld [vmem:[%s451 + $0x758] sm:$0xf]
        %v8419 = vld [vmem:[%s451 + $0x75c] sm:$0xf]
        %v8420 = vld [vmem:[%s451 + $0x760] sm:$0xf]
        %v8421 = vld [vmem:[%s451 + $0x764] sm:$0xf]
        %v8422 = vld [vmem:[%s451 + $0x768] sm:$0xf]
        %v8423 = vld [vmem:[%s451 + $0x76c] sm:$0xf]
        %v8424 = vld [vmem:[%s451 + $0x770] sm:$0xf]
        %v8425 = vld [vmem:[%s451 + $0x774] sm:$0xf]
        %v8426 = vld [vmem:[%s451 + $0x778] sm:$0xf]
        %v8427 = vld [vmem:[%s451 + $0x77c] sm:$0xf]
        %v8460 = vunpack.c.l.b16 %v8396
        %v8461 = vunpack.c.l.b16 %v8397
        %v8462 = vunpack.c.l.b16 %v8398
        %v8463 = vunpack.c.l.b16 %v8399
        %v8464 = vunpack.c.l.b16 %v8400
        %v8465 = vunpack.c.l.b16 %v8401
        %v8466 = vunpack.c.l.b16 %v8402
        %v8467 = vunpack.c.l.b16 %v8403
        %v8468 = vunpack.c.l.b16 %v8404
        %v8469 = vunpack.c.l.b16 %v8405
        %v8470 = vunpack.c.l.b16 %v8406
        %v8471 = vunpack.c.l.b16 %v8407
        %v8472 = vunpack.c.l.b16 %v8408
        %v8473 = vunpack.c.l.b16 %v8409
        %v8474 = vunpack.c.l.b16 %v8410
        %v8475 = vunpack.c.l.b16 %v8411
        %v8476 = vunpack.c.l.b16 %v8412
        %v8477 = vunpack.c.l.b16 %v8413
        %v8478 = vunpack.c.l.b16 %v8414
        %v8479 = vunpack.c.l.b16 %v8415
        %v8480 = vunpack.c.l.b16 %v8416
        %v8481 = vunpack.c.l.b16 %v8417
        %v8482 = vunpack.c.l.b16 %v8418
        %v8483 = vunpack.c.l.b16 %v8419
        %v8484 = vunpack.c.l.b16 %v8420
        %v8485 = vunpack.c.l.b16 %v8421
        %v8486 = vunpack.c.l.b16 %v8422
        %v8487 = vunpack.c.l.b16 %v8423
        %v8488 = vunpack.c.l.b16 %v8424
        %v8489 = vunpack.c.l.b16 %v8425
        %v8490 = vunpack.c.l.b16 %v8426
        %v8491 = vunpack.c.l.b16 %v8427
        %v8492 = vpack.c.b16 %v8461, %v8460
        %v8493 = vpack.c.b16 %v8463, %v8462
        %v8494 = vpack.c.b16 %v8465, %v8464
        %v8495 = vpack.c.b16 %v8467, %v8466
        %v8496 = vpack.c.b16 %v8469, %v8468
        %v8497 = vpack.c.b16 %v8471, %v8470
        %v8498 = vpack.c.b16 %v8473, %v8472
        %v8499 = vpack.c.b16 %v8475, %v8474
        %v8500 = vpack.c.b16 %v8477, %v8476
        %v8501 = vpack.c.b16 %v8479, %v8478
        %v8502 = vpack.c.b16 %v8481, %v8480
        %v8503 = vpack.c.b16 %v8483, %v8482
        %v8504 = vpack.c.b16 %v8485, %v8484
        %v8505 = vpack.c.b16 %v8487, %v8486
        %v8506 = vpack.c.b16 %v8489, %v8488
        %v8507 = vpack.c.b16 %v8491, %v8490
        %v8509 = vsel %vm828, %v8492, 0
        %v8512 = vsel %vm828, %v8493, 0
        %v8515 = vsel %vm828, %v8494, 0
        %v8518 = vsel %vm828, %v8495, 0
        %v8521 = vsel %vm828, %v8496, 0
        %v8524 = vsel %vm828, %v8497, 0
        %v8527 = vsel %vm828, %v8498, 0
        %v8530 = vsel %vm828, %v8499, 0
        %v8533 = vsel %vm828, %v8500, 0
        %v8536 = vsel %vm828, %v8501, 0
        %v8539 = vsel %vm828, %v8502, 0
        %v8542 = vsel %vm828, %v8503, 0
        %v8545 = vsel %vm828, %v8504, 0
        %v8548 = vsel %vm828, %v8505, 0
        %v8551 = vsel %vm828, %v8506, 0
        %v8554 = vsel %vm828, %v8507, 0
        %8556 = vmatprep.subr.bf16.mxu0 0
        %8557 = vmatpush1.bf16.msra.mxu0 %v879
        %8558 = vmatprep.subr.bf16.mxu0 0
        %8559 = vmatpush1.bf16.msra.mxu0 0
        %8560 = vmatprep.subr.bf16.mxu0 0
        %8561 = vmatpush1.bf16.msra.mxu0 0
        %8562 = vmatprep.subr.bf16.mxu0 0
        %8563 = vmatpush1.bf16.msra.mxu0 0
        %8564 = vmatprep.subr.bf16.mxu0 0
        %8565 = vmatpush1.bf16.msra.mxu0 0
        %8566 = vmatprep.subr.bf16.mxu0 0
        %8567 = vmatpush1.bf16.msra.mxu0 0
        %8568 = vmatprep.subr.bf16.mxu0 0
        %8569 = vmatpush1.bf16.msra.mxu0 0
        %8570 = vmatprep.subr.bf16.mxu0 0
        %8571 = vmatpush1.bf16.msra.mxu0 0
        %8572 = vmatprep.subr.bf16.mxu0 0
        %8573 = vmatpush1.bf16.msra.mxu0 0
        %8574 = vmatprep.subr.bf16.mxu0 0
        %8575 = vmatpush1.bf16.msra.mxu0 0
        %8576 = vmatprep.subr.bf16.mxu0 0
        %8577 = vmatpush1.bf16.msra.mxu0 0
        %8578 = vmatprep.subr.bf16.mxu0 0
        %8579 = vmatpush1.bf16.msra.mxu0 0
        %8580 = vmatprep.subr.bf16.mxu0 0
        %8581 = vmatpush1.bf16.msra.mxu0 0
        %8582 = vmatprep.subr.bf16.mxu0 0
        %8583 = vmatpush1.bf16.msra.mxu0 0
        %8584 = vmatprep.subr.bf16.mxu0 0
        %8585 = vmatpush1.bf16.msra.mxu0 0
        %8586 = vmatprep.subr.bf16.mxu0 0
        %8587 = vmatpush1.bf16.msra.mxu0 0
        %8588 = vmatprep.mubr.bf16.mxu0 0
        %8589 = vmatmul.mubr.bf16.gmra.mrb[0].mxu0 %v8509
        %v8590 = vpop.f32.mrb[0].mxu0
        %v8591 = vadd.f32 %v591, %v8590
        %v8592 = vpop.f32.mrb[0].mxu0
        %v8593 = vpop.f32.mrb[0].mxu0
        %v8594 = vadd.f32 %v596, %v8593
        %v8595 = vpop.f32.mrb[0].mxu0
        %8596 = vmatprep.mubr.bf16.mxu0 0
        %8597 = vmatmul.mubr.bf16.gmra.mrb[0].mxu0 %v8512
        %v8598 = vpop.f32.mrb[0].mxu0
        %v8599 = vadd.f32 %v601, %v8598
        %v8600 = vpop.f32.mrb[0].mxu0
        %v8601 = vpop.f32.mrb[0].mxu0
        %v8602 = vadd.f32 %v606, %v8601
        %v8603 = vpop.f32.mrb[0].mxu0
        %8604 = vmatprep.mubr.bf16.mxu0 0
        %8605 = vmatmul.mubr.bf16.gmra.mrb[0].mxu0 %v8515
        %v8606 = vpop.f32.mrb[0].mxu0
        %v8607 = vadd.f32 %v611, %v8606
        %v8608 = vpop.f32.mrb[0].mxu0
        %v8609 = vpop.f32.mrb[0].mxu0
        %v8610 = vadd.f32 %v616, %v8609
        %v8611 = vpop.f32.mrb[0].mxu0
        %8612 = vmatprep.mubr.bf16.mxu0 0
        %8613 = vmatmul.mubr.bf16.gmra.mrb[0].mxu0 %v8518
        %v8614 = vpop.f32.mrb[0].mxu0
        %v8615 = vadd.f32 %v621, %v8614
        %v8616 = vpop.f32.mrb[0].mxu0
        %v8617 = vpop.f32.mrb[0].mxu0
        %v8618 = vadd.f32 %v626, %v8617
        %v8619 = vpop.f32.mrb[0].mxu0
        %8620 = vmatprep.mubr.bf16.mxu0 0
        %8621 = vmatmul.mubr.bf16.gmra.mrb[0].mxu0 %v8521
        %v8622 = vpop.f32.mrb[0].mxu0
        %v8623 = vadd.f32 %v631, %v8622
        %v8624 = vpop.f32.mrb[0].mxu0
        %v8625 = vpop.f32.mrb[0].mxu0
        %v8626 = vadd.f32 %v636, %v8625
        %v8627 = vpop.f32.mrb[0].mxu0
        %8628 = vmatprep.mubr.bf16.mxu0 0
        %8629 = vmatmul.mubr.bf16.gmra.mrb[0].mxu0 %v8524
        %v8630 = vpop.f32.mrb[0].mxu0
        %v8631 = vadd.f32 %v641, %v8630
        %v8632 = vpop.f32.mrb[0].mxu0
        %v8633 = vpop.f32.mrb[0].mxu0
        %v8634 = vadd.f32 %v646, %v8633
        %v8635 = vpop.f32.mrb[0].mxu0
        %8636 = vmatprep.mubr.bf16.mxu0 0
        %8637 = vmatmul.mubr.bf16.gmra.mrb[0].mxu0 %v8527
        %v8638 = vpop.f32.mrb[0].mxu0
        %v8639 = vadd.f32 %v651, %v8638
        %v8640 = vpop.f32.mrb[0].mxu0
        %v8641 = vpop.f32.mrb[0].mxu0
        %v8642 = vadd.f32 %v656, %v8641
        %v8643 = vpop.f32.mrb[0].mxu0
        %8644 = vmatprep.mubr.bf16.mxu0 0
        %8645 = vmatmul.mubr.bf16.gmra.mrb[0].mxu0 %v8530
        %v8646 = vpop.f32.mrb[0].mxu0
        %v8647 = vadd.f32 %v661, %v8646
        %v8648 = vpop.f32.mrb[0].mxu0
        %v8649 = vpop.f32.mrb[0].mxu0
        %v8650 = vadd.f32 %v666, %v8649
        %v8651 = vpop.f32.mrb[0].mxu0
        %8652 = vmatprep.mubr.bf16.mxu0 0
        %8653 = vmatmul.mubr.bf16.gmra.mrb[0].mxu0 %v8533
        %v8654 = vpop.f32.mrb[0].mxu0
        %v8655 = vadd.f32 %v671, %v8654
        %v8656 = vpop.f32.mrb[0].mxu0
        %v8657 = vpop.f32.mrb[0].mxu0
        %v8658 = vadd.f32 %v676, %v8657
        %v8659 = vpop.f32.mrb[0].mxu0
        %8660 = vmatprep.mubr.bf16.mxu0 0
        %8661 = vmatmul.mubr.bf16.gmra.mrb[0].mxu0 %v8536
        %v8662 = vpop.f32.mrb[0].mxu0
        %v8663 = vadd.f32 %v681, %v8662
        %v8664 = vpop.f32.mrb[0].mxu0
        %v8665 = vpop.f32.mrb[0].mxu0
        %v8666 = vadd.f32 %v686, %v8665
        %v8667 = vpop.f32.mrb[0].mxu0
        %8668 = vmatprep.mubr.bf16.mxu0 0
        %8669 = vmatmul.mubr.bf16.gmra.mrb[0].mxu0 %v8539
        %v8670 = vpop.f32.mrb[0].mxu0
        %v8671 = vadd.f32 %v691, %v8670
        %v8672 = vpop.f32.mrb[0].mxu0
        %v8673 = vpop.f32.mrb[0].mxu0
        %v8674 = vadd.f32 %v696, %v8673
        %v8675 = vpop.f32.mrb[0].mxu0
        %8676 = vmatprep.mubr.bf16.mxu0 0
        %8677 = vmatmul.mubr.bf16.gmra.mrb[0].mxu0 %v8542
        %v8678 = vpop.f32.mrb[0].mxu0
        %v8679 = vadd.f32 %v701, %v8678
        %v8680 = vpop.f32.mrb[0].mxu0
        %v8681 = vpop.f32.mrb[0].mxu0
        %v8682 = vadd.f32 %v706, %v8681
        %v8683 = vpop.f32.mrb[0].mxu0
        %8684 = vmatprep.mubr.bf16.mxu0 0
        %8685 = vmatmul.mubr.bf16.gmra.mrb[0].mxu0 %v8545
        %v8686 = vpop.f32.mrb[0].mxu0
        %v8687 = vadd.f32 %v711, %v8686
        %v8688 = vpop.f32.mrb[0].mxu0
        %v8689 = vpop.f32.mrb[0].mxu0
        %v8690 = vadd.f32 %v716, %v8689
        %v8691 = vpop.f32.mrb[0].mxu0
        %8692 = vmatprep.mubr.bf16.mxu0 0
        %8693 = vmatmul.mubr.bf16.gmra.mrb[0].mxu0 %v8548
        %v8694 = vpop.f32.mrb[0].mxu0
        %v8695 = vadd.f32 %v721, %v8694
        %v8696 = vpop.f32.mrb[0].mxu0
        %v8697 = vpop.f32.mrb[0].mxu0
        %v8698 = vadd.f32 %v726, %v8697
        %v8699 = vpop.f32.mrb[0].mxu0
        %8700 = vmatprep.mubr.bf16.mxu0 0
        %8701 = vmatmul.mubr.bf16.gmra.mrb[0].mxu0 %v8551
        %v8702 = vpop.f32.mrb[0].mxu0
        %v8703 = vadd.f32 %v731, %v8702
        %v8704 = vpop.f32.mrb[0].mxu0
        %v8705 = vpop.f32.mrb[0].mxu0
        %v8706 = vadd.f32 %v736, %v8705
        %v8707 = vpop.f32.mrb[0].mxu0
        %8708 = vmatprep.mubr.bf16.mxu0 0
        %8709 = vmatmul.mubr.bf16.gmra.mrb[0].mxu0 %v8554
        %v8710 = vpop.f32.mrb[0].mxu0
        %v8711 = vadd.f32 %v741, %v8710
        %v8712 = vpop.f32.mrb[0].mxu0
        %v8713 = vpop.f32.mrb[0].mxu0
        %v8714 = vadd.f32 %v746, %v8713
        %v8715 = vpop.f32.mrb[0].mxu0
        %8716 = vdwg.mxu0
        %v8717 = vmax.f32 %v8591, 0.0
        %v8718 = vmax.f32 %v8594, 0.0
        %v8719 = vmax.f32 %v8599, 0.0
        %v8720 = vmax.f32 %v8602, 0.0
        %v8721 = vmax.f32 %v8607, 0.0
        %v8722 = vmax.f32 %v8610, 0.0
        %v8723 = vmax.f32 %v8615, 0.0
        %v8724 = vmax.f32 %v8618, 0.0
        %v8725 = vmax.f32 %v8623, 0.0
        %v8726 = vmax.f32 %v8626, 0.0
        %v8727 = vmax.f32 %v8631, 0.0
        %v8728 = vmax.f32 %v8634, 0.0
        %v8729 = vmax.f32 %v8639, 0.0
        %v8730 = vmax.f32 %v8642, 0.0
        %v8731 = vmax.f32 %v8647, 0.0
        %v8732 = vmax.f32 %v8650, 0.0
        %v8733 = vmax.f32 %v8655, 0.0
        %v8734 = vmax.f32 %v8658, 0.0
        %v8735 = vmax.f32 %v8663, 0.0
        %v8736 = vmax.f32 %v8666, 0.0
        %v8737 = vmax.f32 %v8671, 0.0
        %v8738 = vmax.f32 %v8674, 0.0
        %v8739 = vmax.f32 %v8679, 0.0
        %v8740 = vmax.f32 %v8682, 0.0
        %v8741 = vmax.f32 %v8687, 0.0
        %v8742 = vmax.f32 %v8690, 0.0
        %v8743 = vmax.f32 %v8695, 0.0
        %v8744 = vmax.f32 %v8698, 0.0
        %v8745 = vmax.f32 %v8703, 0.0
        %v8746 = vmax.f32 %v8706, 0.0
        %v8747 = vmax.f32 %v8711, 0.0
        %v8748 = vmax.f32 %v8714, 0.0
        %v8749 = vpack.c.bf16 %v8718, %v8717
        %v8750 = vpack.c.bf16 %v8720, %v8719
        %v8751 = vpack.c.bf16 %v8722, %v8721
        %v8752 = vpack.c.bf16 %v8724, %v8723
        %v8753 = vpack.c.bf16 %v8726, %v8725
        %v8754 = vpack.c.bf16 %v8728, %v8727
        %v8755 = vpack.c.bf16 %v8730, %v8729
        %v8756 = vpack.c.bf16 %v8732, %v8731
        %v8757 = vpack.c.bf16 %v8734, %v8733
        %v8758 = vpack.c.bf16 %v8736, %v8735
        %v8759 = vpack.c.bf16 %v8738, %v8737
        %v8760 = vpack.c.bf16 %v8740, %v8739
        %v8761 = vpack.c.bf16 %v8742, %v8741
        %v8762 = vpack.c.bf16 %v8744, %v8743
        %v8763 = vpack.c.bf16 %v8746, %v8745
        %v8764 = vpack.c.bf16 %v8748, %v8747
        %8765 = vmatprep.subr.bf16.mxu0 0
        %8766 = vmatpush1.bf16.msra.mxu0 %v8749
        %8767 = vmatprep.subr.bf16.mxu0 0
        %8768 = vmatpush1.bf16.msra.mxu0 %v8750
        %8769 = vmatprep.subr.bf16.mxu0 0
        %8770 = vmatpush1.bf16.msra.mxu0 %v8751
        %8771 = vmatprep.subr.bf16.mxu0 0
        %8772 = vmatpush1.bf16.msra.mxu0 %v8752
        %8773 = vmatprep.subr.bf16.mxu0 0
        %8774 = vmatpush1.bf16.msra.mxu0 %v8753
        %8775 = vmatprep.subr.bf16.mxu0 0
        %8776 = vmatpush1.bf16.msra.mxu0 %v8754
        %8777 = vmatprep.subr.bf16.mxu0 0
        %8778 = vmatpush1.bf16.msra.mxu0 %v8755
        %8779 = vmatprep.subr.bf16.mxu0 0
        %8780 = vmatpush1.bf16.msra.mxu0 %v8756
        %8781 = vmatprep.subr.bf16.mxu0 0
        %8782 = vmatpush1.bf16.msra.mxu0 %v8757
        %8783 = vmatprep.subr.bf16.mxu0 0
        %8784 = vmatpush1.bf16.msra.mxu0 %v8758
        %8785 = vmatprep.subr.bf16.mxu0 0
        %8786 = vmatpush1.bf16.msra.mxu0 %v8759
        %8787 = vmatprep.subr.bf16.mxu0 0
        %8788 = vmatpush1.bf16.msra.mxu0 %v8760
        %8789 = vmatprep.subr.bf16.mxu0 0
        %8790 = vmatpush1.bf16.msra.mxu0 %v8761
        %8791 = vmatprep.subr.bf16.mxu0 0
        %8792 = vmatpush1.bf16.msra.mxu0 %v8762
        %8793 = vmatprep.subr.bf16.mxu0 0
        %8794 = vmatpush1.bf16.msra.mxu0 %v8763
        %8795 = vmatprep.subr.bf16.mxu0 0
        %8796 = vmatpush1.bf16.msra.mxu0 %v8764
        %8797 = vmatprep.mubr.bf16.mxu0 %v1219
        %8798 = vmatmul.mubr.bf16.gmra.mrb[0].mxu0 %v1218
        %v8799 = vpop.f32.mrb[0].mxu0
        %v8800 = vadd.f32 %v1093, %v8799
        %v8801 = vpop.f32.mrb[0].mxu0
        %v8802 = vpop.f32.mrb[0].mxu0
        %v8803 = vadd.f32 %v1098, %v8802
        %v8804 = vpop.f32.mrb[0].mxu0
        %8805 = vmatprep.mubr.bf16.mxu0 %v1221
        %8806 = vmatmul.mubr.bf16.gmra.mrb[0].mxu0 %v1220
        %v8807 = vpop.f32.mrb[0].mxu0
        %v8808 = vadd.f32 %v1103, %v8807
        %v8809 = vpop.f32.mrb[0].mxu0
        %v8810 = vpop.f32.mrb[0].mxu0
        %v8811 = vadd.f32 %v1108, %v8810
        %v8812 = vpop.f32.mrb[0].mxu0
        %8813 = vmatprep.mubr.bf16.mxu0 %v1223
        %8814 = vmatmul.mubr.bf16.gmra.mrb[0].mxu0 %v1222
        %v8815 = vpop.f32.mrb[0].mxu0
        %v8816 = vadd.f32 %v1113, %v8815
        %v8817 = vpop.f32.mrb[0].mxu0
        %v8818 = vpop.f32.mrb[0].mxu0
        %v8819 = vadd.f32 %v1118, %v8818
        %v8820 = vpop.f32.mrb[0].mxu0
        %8821 = vmatprep.mubr.bf16.mxu0 %v1225
        %8822 = vmatmul.mubr.bf16.gmra.mrb[0].mxu0 %v1224
        %v8823 = vpop.f32.mrb[0].mxu0
        %v8824 = vadd.f32 %v1123, %v8823
        %v8825 = vpop.f32.mrb[0].mxu0
        %v8826 = vpop.f32.mrb[0].mxu0
        %v8827 = vadd.f32 %v1128, %v8826
        %v8828 = vpop.f32.mrb[0].mxu0
        %8829 = vmatprep.mubr.bf16.mxu0 %v1227
        %8830 = vmatmul.mubr.bf16.gmra.mrb[0].mxu0 %v1226
        %v8831 = vpop.f32.mrb[0].mxu0
        %v8832 = vadd.f32 %v1133, %v8831
        %v8833 = vpop.f32.mrb[0].mxu0
        %v8834 = vpop.f32.mrb[0].mxu0
        %v8835 = vadd.f32 %v1138, %v8834
        %v8836 = vpop.f32.mrb[0].mxu0
        %8837 = vmatprep.mubr.bf16.mxu0 %v1229
        %8838 = vmatmul.mubr.bf16.gmra.mrb[0].mxu0 %v1228
        %v8839 = vpop.f32.mrb[0].mxu0
        %v8840 = vadd.f32 %v1143, %v8839
        %v8841 = vpop.f32.mrb[0].mxu0
        %v8842 = vpop.f32.mrb[0].mxu0
        %v8843 = vadd.f32 %v1148, %v8842
        %v8844 = vpop.f32.mrb[0].mxu0
        %8845 = vmatprep.mubr.bf16.mxu0 %v1231
        %8846 = vmatmul.mubr.bf16.gmra.mrb[0].mxu0 %v1230
        %v8847 = vpop.f32.mrb[0].mxu0
        %v8848 = vadd.f32 %v1153, %v8847
        %v8849 = vpop.f32.mrb[0].mxu0
        %v8850 = vpop.f32.mrb[0].mxu0
        %v8851 = vadd.f32 %v1158, %v8850
        %v8852 = vpop.f32.mrb[0].mxu0
        %8853 = vmatprep.mubr.bf16.mxu0 %v1233
        %8854 = vmatmul.mubr.bf16.gmra.mrb[0].mxu0 %v1232
        %v8855 = vpop.f32.mrb[0].mxu0
        %v8856 = vadd.f32 %v1163, %v8855
        %v8857 = vpop.f32.mrb[0].mxu0
        %v8858 = vpop.f32.mrb[0].mxu0
        %v8859 = vadd.f32 %v1168, %v8858
        %v8860 = vpop.f32.mrb[0].mxu0
        %8861 = vdwg.mxu0
        %v8862 = vmax.f32 %v8800, 0.0
        %v8863 = vmax.f32 %v8803, 0.0
        %v8864 = vmax.f32 %v8808, 0.0
        %v8865 = vmax.f32 %v8811, 0.0
        %v8866 = vmax.f32 %v8816, 0.0
        %v8867 = vmax.f32 %v8819, 0.0
        %v8868 = vmax.f32 %v8824, 0.0
        %v8869 = vmax.f32 %v8827, 0.0
        %v8870 = vmax.f32 %v8832, 0.0
        %v8871 = vmax.f32 %v8835, 0.0
        %v8872 = vmax.f32 %v8840, 0.0
        %v8873 = vmax.f32 %v8843, 0.0
        %v8874 = vmax.f32 %v8848, 0.0
        %v8875 = vmax.f32 %v8851, 0.0
        %v8876 = vmax.f32 %v8856, 0.0
        %v8877 = vmax.f32 %v8859, 0.0
        %v8878 = vmul.f32 %v8862, %v1366
        %v8879 = vmul.f32 %v8863, %v1371
        %v8880 = vmul.f32 %v8864, %v1376
        %v8881 = vmul.f32 %v8865, %v1381
        %v8882 = vmul.f32 %v8866, %v1386
        %v8883 = vmul.f32 %v8867, %v1391
        %v8884 = vmul.f32 %v8868, %v1396
        %v8885 = vmul.f32 %v8869, %v1401
        %v8886 = vmul.f32 %v8870, %v1406
        %v8887 = vmul.f32 %v8871, %v1411
        %v8888 = vmul.f32 %v8872, %v1416
        %v8889 = vmul.f32 %v8873, %v1421
        %v8890 = vmul.f32 %v8874, %v1426
        %v8891 = vmul.f32 %v8875, %v1431
        %v8892 = vmul.f32 %v8876, %v1436
        %v8893 = vmul.f32 %v8877, %v1441
        %v8894 = vadd.f32 %v8878, %v8879
        %v8895 = vadd.f32 %v8894, %v8880
        %v8896 = vadd.f32 %v8895, %v8881
        %v8897 = vadd.f32 %v8896, %v8882
        %v8898 = vadd.f32 %v8897, %v8883
        %v8899 = vadd.f32 %v8898, %v8884
        %v8900 = vadd.f32 %v8899, %v8885
        %v8901 = vadd.f32 %v8900, %v8886
        %v8902 = vadd.f32 %v8901, %v8887
        %v8903 = vadd.f32 %v8902, %v8888
        %v8904 = vadd.f32 %v8903, %v8889
        %v8905 = vadd.f32 %v8904, %v8890
        %v8906 = vadd.f32 %v8905, %v8891
        %v8907 = vadd.f32 %v8906, %v8892
        %v8908 = vadd.f32 %v8907, %v8893
        %v8909 = vld [vmem:[%s465 + $0x70] sm:$0xff]
        %v8910 = vadd.f32 %v8908, %v1482
        %8912 = vset.pattern.permute.xlu0 0
        %8913 = vperm.xlu0 %8912, %v8909
        %v8914 = vpop.permute.xlu0 %8913
        %v8916 = vmul.f32 %v8914, %v1494
        %v8917 = vmul.f32 %v8910, %v8916
        %8918 = vst [vmem:[%s442 + $0x70] sm:$0xff] %v8917
        %v8919 = vxor.u32 %v8917, 2147483648
        %v8920 = vmul.f32 %v8919, 1.442695
        %v8921 = vpow.pop %v8920
        %v8922 = vadd.f32 %v8921, 1.0
        %v8923 = vrcp.pop %v8922
        %v8924 = vmul.f32 1.0, %v8923
        %8925 = vst [vmem:[%s435 + $0x70] sm:$0xff] %v8924
        %v8926 = vld [vmem:[%s451 + $0x780] sm:$0xf]
        %v8927 = vld [vmem:[%s451 + $0x784] sm:$0xf]
        %v8928 = vld [vmem:[%s451 + $0x788] sm:$0xf]
        %v8929 = vld [vmem:[%s451 + $0x78c] sm:$0xf]
        %v8930 = vld [vmem:[%s451 + $0x790] sm:$0xf]
        %v8931 = vld [vmem:[%s451 + $0x794] sm:$0xf]
        %v8932 = vld [vmem:[%s451 + $0x798] sm:$0xf]
        %v8933 = vld [vmem:[%s451 + $0x79c] sm:$0xf]
        %v8934 = vld [vmem:[%s451 + $0x7a0] sm:$0xf]
        %v8935 = vld [vmem:[%s451 + $0x7a4] sm:$0xf]
        %v8936 = vld [vmem:[%s451 + $0x7a8] sm:$0xf]
        %v8937 = vld [vmem:[%s451 + $0x7ac] sm:$0xf]
        %v8938 = vld [vmem:[%s451 + $0x7b0] sm:$0xf]
        %v8939 = vld [vmem:[%s451 + $0x7b4] sm:$0xf]
        %v8940 = vld [vmem:[%s451 + $0x7b8] sm:$0xf]
        %v8941 = vld [vmem:[%s451 + $0x7bc] sm:$0xf]
        %v8942 = vld [vmem:[%s451 + $0x7c0] sm:$0xf]
        %v8943 = vld [vmem:[%s451 + $0x7c4] sm:$0xf]
        %v8944 = vld [vmem:[%s451 + $0x7c8] sm:$0xf]
        %v8945 = vld [vmem:[%s451 + $0x7cc] sm:$0xf]
        %v8946 = vld [vmem:[%s451 + $0x7d0] sm:$0xf]
        %v8947 = vld [vmem:[%s451 + $0x7d4] sm:$0xf]
        %v8948 = vld [vmem:[%s451 + $0x7d8] sm:$0xf]
        %v8949 = vld [vmem:[%s451 + $0x7dc] sm:$0xf]
        %v8950 = vld [vmem:[%s451 + $0x7e0] sm:$0xf]
        %v8951 = vld [vmem:[%s451 + $0x7e4] sm:$0xf]
        %v8952 = vld [vmem:[%s451 + $0x7e8] sm:$0xf]
        %v8953 = vld [vmem:[%s451 + $0x7ec] sm:$0xf]
        %v8954 = vld [vmem:[%s451 + $0x7f0] sm:$0xf]
        %v8955 = vld [vmem:[%s451 + $0x7f4] sm:$0xf]
        %v8956 = vld [vmem:[%s451 + $0x7f8] sm:$0xf]
        %v8957 = vld [vmem:[%s451 + $0x7fc] sm:$0xf]
        %v8990 = vunpack.c.l.b16 %v8926
        %v8991 = vunpack.c.l.b16 %v8927
        %v8992 = vunpack.c.l.b16 %v8928
        %v8993 = vunpack.c.l.b16 %v8929
        %v8994 = vunpack.c.l.b16 %v8930
        %v8995 = vunpack.c.l.b16 %v8931
        %v8996 = vunpack.c.l.b16 %v8932
        %v8997 = vunpack.c.l.b16 %v8933
        %v8998 = vunpack.c.l.b16 %v8934
        %v8999 = vunpack.c.l.b16 %v8935
        %v9000 = vunpack.c.l.b16 %v8936
        %v9001 = vunpack.c.l.b16 %v8937
        %v9002 = vunpack.c.l.b16 %v8938
        %v9003 = vunpack.c.l.b16 %v8939
        %v9004 = vunpack.c.l.b16 %v8940
        %v9005 = vunpack.c.l.b16 %v8941
        %v9006 = vunpack.c.l.b16 %v8942
        %v9007 = vunpack.c.l.b16 %v8943
        %v9008 = vunpack.c.l.b16 %v8944
        %v9009 = vunpack.c.l.b16 %v8945
        %v9010 = vunpack.c.l.b16 %v8946
        %v9011 = vunpack.c.l.b16 %v8947
        %v9012 = vunpack.c.l.b16 %v8948
        %v9013 = vunpack.c.l.b16 %v8949
        %v9014 = vunpack.c.l.b16 %v8950
        %v9015 = vunpack.c.l.b16 %v8951
        %v9016 = vunpack.c.l.b16 %v8952
        %v9017 = vunpack.c.l.b16 %v8953
        %v9018 = vunpack.c.l.b16 %v8954
        %v9019 = vunpack.c.l.b16 %v8955
        %v9020 = vunpack.c.l.b16 %v8956
        %v9021 = vunpack.c.l.b16 %v8957
        %v9022 = vpack.c.b16 %v8991, %v8990
        %v9023 = vpack.c.b16 %v8993, %v8992
        %v9024 = vpack.c.b16 %v8995, %v8994
        %v9025 = vpack.c.b16 %v8997, %v8996
        %v9026 = vpack.c.b16 %v8999, %v8998
        %v9027 = vpack.c.b16 %v9001, %v9000
        %v9028 = vpack.c.b16 %v9003, %v9002
        %v9029 = vpack.c.b16 %v9005, %v9004
        %v9030 = vpack.c.b16 %v9007, %v9006
        %v9031 = vpack.c.b16 %v9009, %v9008
        %v9032 = vpack.c.b16 %v9011, %v9010
        %v9033 = vpack.c.b16 %v9013, %v9012
        %v9034 = vpack.c.b16 %v9015, %v9014
        %v9035 = vpack.c.b16 %v9017, %v9016
        %v9036 = vpack.c.b16 %v9019, %v9018
        %v9037 = vpack.c.b16 %v9021, %v9020
        %v9039 = vsel %vm828, %v9022, 0
        %v9042 = vsel %vm828, %v9023, 0
        %v9045 = vsel %vm828, %v9024, 0
        %v9048 = vsel %vm828, %v9025, 0
        %v9051 = vsel %vm828, %v9026, 0
        %v9054 = vsel %vm828, %v9027, 0
        %v9057 = vsel %vm828, %v9028, 0
        %v9060 = vsel %vm828, %v9029, 0
        %v9063 = vsel %vm828, %v9030, 0
        %v9066 = vsel %vm828, %v9031, 0
        %v9069 = vsel %vm828, %v9032, 0
        %v9072 = vsel %vm828, %v9033, 0
        %v9075 = vsel %vm828, %v9034, 0
        %v9078 = vsel %vm828, %v9035, 0
        %v9081 = vsel %vm828, %v9036, 0
        %v9084 = vsel %vm828, %v9037, 0
        %9086 = vmatprep.subr.bf16.mxu0 0
        %9087 = vmatpush1.bf16.msra.mxu0 %v879
        %9088 = vmatprep.subr.bf16.mxu0 0
        %9089 = vmatpush1.bf16.msra.mxu0 0
        %9090 = vmatprep.subr.bf16.mxu0 0
        %9091 = vmatpush1.bf16.msra.mxu0 0
        %9092 = vmatprep.subr.bf16.mxu0 0
        %9093 = vmatpush1.bf16.msra.mxu0 0
        %9094 = vmatprep.subr.bf16.mxu0 0
        %9095 = vmatpush1.bf16.msra.mxu0 0
        %9096 = vmatprep.subr.bf16.mxu0 0
        %9097 = vmatpush1.bf16.msra.mxu0 0
        %9098 = vmatprep.subr.bf16.mxu0 0
        %9099 = vmatpush1.bf16.msra.mxu0 0
        %9100 = vmatprep.subr.bf16.mxu0 0
        %9101 = vmatpush1.bf16.msra.mxu0 0
        %9102 = vmatprep.subr.bf16.mxu0 0
        %9103 = vmatpush1.bf16.msra.mxu0 0
        %9104 = vmatprep.subr.bf16.mxu0 0
        %9105 = vmatpush1.bf16.msra.mxu0 0
        %9106 = vmatprep.subr.bf16.mxu0 0
        %9107 = vmatpush1.bf16.msra.mxu0 0
        %9108 = vmatprep.subr.bf16.mxu0 0
        %9109 = vmatpush1.bf16.msra.mxu0 0
        %9110 = vmatprep.subr.bf16.mxu0 0
        %9111 = vmatpush1.bf16.msra.mxu0 0
        %9112 = vmatprep.subr.bf16.mxu0 0
        %9113 = vmatpush1.bf16.msra.mxu0 0
        %9114 = vmatprep.subr.bf16.mxu0 0
        %9115 = vmatpush1.bf16.msra.mxu0 0
        %9116 = vmatprep.subr.bf16.mxu0 0
        %9117 = vmatpush1.bf16.msra.mxu0 0
        %9118 = vmatprep.mubr.bf16.mxu0 0
        %9119 = vmatmul.mubr.bf16.gmra.mrb[0].mxu0 %v9039
        %v9120 = vpop.f32.mrb[0].mxu0
        %v9121 = vadd.f32 %v591, %v9120
        %v9122 = vpop.f32.mrb[0].mxu0
        %v9123 = vpop.f32.mrb[0].mxu0
        %v9124 = vadd.f32 %v596, %v9123
        %v9125 = vpop.f32.mrb[0].mxu0
        %9126 = vmatprep.mubr.bf16.mxu0 0
        %9127 = vmatmul.mubr.bf16.gmra.mrb[0].mxu0 %v9042
        %v9128 = vpop.f32.mrb[0].mxu0
        %v9129 = vadd.f32 %v601, %v9128
        %v9130 = vpop.f32.mrb[0].mxu0
        %v9131 = vpop.f32.mrb[0].mxu0
        %v9132 = vadd.f32 %v606, %v9131
        %v9133 = vpop.f32.mrb[0].mxu0
        %9134 = vmatprep.mubr.bf16.mxu0 0
        %9135 = vmatmul.mubr.bf16.gmra.mrb[0].mxu0 %v9045
        %v9136 = vpop.f32.mrb[0].mxu0
        %v9137 = vadd.f32 %v611, %v9136
        %v9138 = vpop.f32.mrb[0].mxu0
        %v9139 = vpop.f32.mrb[0].mxu0
        %v9140 = vadd.f32 %v616, %v9139
        %v9141 = vpop.f32.mrb[0].mxu0
        %9142 = vmatprep.mubr.bf16.mxu0 0
        %9143 = vmatmul.mubr.bf16.gmra.mrb[0].mxu0 %v9048
        %v9144 = vpop.f32.mrb[0].mxu0
        %v9145 = vadd.f32 %v621, %v9144
        %v9146 = vpop.f32.mrb[0].mxu0
        %v9147 = vpop.f32.mrb[0].mxu0
        %v9148 = vadd.f32 %v626, %v9147
        %v9149 = vpop.f32.mrb[0].mxu0
        %9150 = vmatprep.mubr.bf16.mxu0 0
        %9151 = vmatmul.mubr.bf16.gmra.mrb[0].mxu0 %v9051
        %v9152 = vpop.f32.mrb[0].mxu0
        %v9153 = vadd.f32 %v631, %v9152
        %v9154 = vpop.f32.mrb[0].mxu0
        %v9155 = vpop.f32.mrb[0].mxu0
        %v9156 = vadd.f32 %v636, %v9155
        %v9157 = vpop.f32.mrb[0].mxu0
        %9158 = vmatprep.mubr.bf16.mxu0 0
        %9159 = vmatmul.mubr.bf16.gmra.mrb[0].mxu0 %v9054
        %v9160 = vpop.f32.mrb[0].mxu0
        %v9161 = vadd.f32 %v641, %v9160
        %v9162 = vpop.f32.mrb[0].mxu0
        %v9163 = vpop.f32.mrb[0].mxu0
        %v9164 = vadd.f32 %v646, %v9163
        %v9165 = vpop.f32.mrb[0].mxu0
        %9166 = vmatprep.mubr.bf16.mxu0 0
        %9167 = vmatmul.mubr.bf16.gmra.mrb[0].mxu0 %v9057
        %v9168 = vpop.f32.mrb[0].mxu0
        %v9169 = vadd.f32 %v651, %v9168
        %v9170 = vpop.f32.mrb[0].mxu0
        %v9171 = vpop.f32.mrb[0].mxu0
        %v9172 = vadd.f32 %v656, %v9171
        %v9173 = vpop.f32.mrb[0].mxu0
        %9174 = vmatprep.mubr.bf16.mxu0 0
        %9175 = vmatmul.mubr.bf16.gmra.mrb[0].mxu0 %v9060
        %v9176 = vpop.f32.mrb[0].mxu0
        %v9177 = vadd.f32 %v661, %v9176
        %v9178 = vpop.f32.mrb[0].mxu0
        %v9179 = vpop.f32.mrb[0].mxu0
        %v9180 = vadd.f32 %v666, %v9179
        %v9181 = vpop.f32.mrb[0].mxu0
        %9182 = vmatprep.mubr.bf16.mxu0 0
        %9183 = vmatmul.mubr.bf16.gmra.mrb[0].mxu0 %v9063
        %v9184 = vpop.f32.mrb[0].mxu0
        %v9185 = vadd.f32 %v671, %v9184
        %v9186 = vpop.f32.mrb[0].mxu0
        %v9187 = vpop.f32.mrb[0].mxu0
        %v9188 = vadd.f32 %v676, %v9187
        %v9189 = vpop.f32.mrb[0].mxu0
        %9190 = vmatprep.mubr.bf16.mxu0 0
        %9191 = vmatmul.mubr.bf16.gmra.mrb[0].mxu0 %v9066
        %v9192 = vpop.f32.mrb[0].mxu0
        %v9193 = vadd.f32 %v681, %v9192
        %v9194 = vpop.f32.mrb[0].mxu0
        %v9195 = vpop.f32.mrb[0].mxu0
        %v9196 = vadd.f32 %v686, %v9195
        %v9197 = vpop.f32.mrb[0].mxu0
        %9198 = vmatprep.mubr.bf16.mxu0 0
        %9199 = vmatmul.mubr.bf16.gmra.mrb[0].mxu0 %v9069
        %v9200 = vpop.f32.mrb[0].mxu0
        %v9201 = vadd.f32 %v691, %v9200
        %v9202 = vpop.f32.mrb[0].mxu0
        %v9203 = vpop.f32.mrb[0].mxu0
        %v9204 = vadd.f32 %v696, %v9203
        %v9205 = vpop.f32.mrb[0].mxu0
        %9206 = vmatprep.mubr.bf16.mxu0 0
        %9207 = vmatmul.mubr.bf16.gmra.mrb[0].mxu0 %v9072
        %v9208 = vpop.f32.mrb[0].mxu0
        %v9209 = vadd.f32 %v701, %v9208
        %v9210 = vpop.f32.mrb[0].mxu0
        %v9211 = vpop.f32.mrb[0].mxu0
        %v9212 = vadd.f32 %v706, %v9211
        %v9213 = vpop.f32.mrb[0].mxu0
        %9214 = vmatprep.mubr.bf16.mxu0 0
        %9215 = vmatmul.mubr.bf16.gmra.mrb[0].mxu0 %v9075
        %v9216 = vpop.f32.mrb[0].mxu0
        %v9217 = vadd.f32 %v711, %v9216
        %v9218 = vpop.f32.mrb[0].mxu0
        %v9219 = vpop.f32.mrb[0].mxu0
        %v9220 = vadd.f32 %v716, %v9219
        %v9221 = vpop.f32.mrb[0].mxu0
        %9222 = vmatprep.mubr.bf16.mxu0 0
        %9223 = vmatmul.mubr.bf16.gmra.mrb[0].mxu0 %v9078
        %v9224 = vpop.f32.mrb[0].mxu0
        %v9225 = vadd.f32 %v721, %v9224
        %v9226 = vpop.f32.mrb[0].mxu0
        %v9227 = vpop.f32.mrb[0].mxu0
        %v9228 = vadd.f32 %v726, %v9227
        %v9229 = vpop.f32.mrb[0].mxu0
        %9230 = vmatprep.mubr.bf16.mxu0 0
        %9231 = vmatmul.mubr.bf16.gmra.mrb[0].mxu0 %v9081
        %v9232 = vpop.f32.mrb[0].mxu0
        %v9233 = vadd.f32 %v731, %v9232
        %v9234 = vpop.f32.mrb[0].mxu0
        %v9235 = vpop.f32.mrb[0].mxu0
        %v9236 = vadd.f32 %v736, %v9235
        %v9237 = vpop.f32.mrb[0].mxu0
        %9238 = vmatprep.mubr.bf16.mxu0 0
        %9239 = vmatmul.mubr.bf16.gmra.mrb[0].mxu0 %v9084
        %v9240 = vpop.f32.mrb[0].mxu0
        %v9241 = vadd.f32 %v741, %v9240
        %v9242 = vpop.f32.mrb[0].mxu0
        %v9243 = vpop.f32.mrb[0].mxu0
        %v9244 = vadd.f32 %v746, %v9243
        %v9245 = vpop.f32.mrb[0].mxu0
        %9246 = vdwg.mxu0
        %v9247 = vmax.f32 %v9121, 0.0
        %v9248 = vmax.f32 %v9124, 0.0
        %v9249 = vmax.f32 %v9129, 0.0
        %v9250 = vmax.f32 %v9132, 0.0
        %v9251 = vmax.f32 %v9137, 0.0
        %v9252 = vmax.f32 %v9140, 0.0
        %v9253 = vmax.f32 %v9145, 0.0
        %v9254 = vmax.f32 %v9148, 0.0
        %v9255 = vmax.f32 %v9153, 0.0
        %v9256 = vmax.f32 %v9156, 0.0
        %v9257 = vmax.f32 %v9161, 0.0
        %v9258 = vmax.f32 %v9164, 0.0
        %v9259 = vmax.f32 %v9169, 0.0
        %v9260 = vmax.f32 %v9172, 0.0
        %v9261 = vmax.f32 %v9177, 0.0
        %v9262 = vmax.f32 %v9180, 0.0
        %v9263 = vmax.f32 %v9185, 0.0
        %v9264 = vmax.f32 %v9188, 0.0
        %v9265 = vmax.f32 %v9193, 0.0
        %v9266 = vmax.f32 %v9196, 0.0
        %v9267 = vmax.f32 %v9201, 0.0
        %v9268 = vmax.f32 %v9204, 0.0
        %v9269 = vmax.f32 %v9209, 0.0
        %v9270 = vmax.f32 %v9212, 0.0
        %v9271 = vmax.f32 %v9217, 0.0
        %v9272 = vmax.f32 %v9220, 0.0
        %v9273 = vmax.f32 %v9225, 0.0
        %v9274 = vmax.f32 %v9228, 0.0
        %v9275 = vmax.f32 %v9233, 0.0
        %v9276 = vmax.f32 %v9236, 0.0
        %v9277 = vmax.f32 %v9241, 0.0
        %v9278 = vmax.f32 %v9244, 0.0
        %v9279 = vpack.c.bf16 %v9248, %v9247
        %v9280 = vpack.c.bf16 %v9250, %v9249
        %v9281 = vpack.c.bf16 %v9252, %v9251
        %v9282 = vpack.c.bf16 %v9254, %v9253
        %v9283 = vpack.c.bf16 %v9256, %v9255
        %v9284 = vpack.c.bf16 %v9258, %v9257
        %v9285 = vpack.c.bf16 %v9260, %v9259
        %v9286 = vpack.c.bf16 %v9262, %v9261
        %v9287 = vpack.c.bf16 %v9264, %v9263
        %v9288 = vpack.c.bf16 %v9266, %v9265
        %v9289 = vpack.c.bf16 %v9268, %v9267
        %v9290 = vpack.c.bf16 %v9270, %v9269
        %v9291 = vpack.c.bf16 %v9272, %v9271
        %v9292 = vpack.c.bf16 %v9274, %v9273
        %v9293 = vpack.c.bf16 %v9276, %v9275
        %v9294 = vpack.c.bf16 %v9278, %v9277
        %9295 = vmatprep.subr.bf16.mxu0 0
        %9296 = vmatpush1.bf16.msra.mxu0 %v9279
        %9297 = vmatprep.subr.bf16.mxu0 0
        %9298 = vmatpush1.bf16.msra.mxu0 %v9280
        %9299 = vmatprep.subr.bf16.mxu0 0
        %9300 = vmatpush1.bf16.msra.mxu0 %v9281
        %9301 = vmatprep.subr.bf16.mxu0 0
        %9302 = vmatpush1.bf16.msra.mxu0 %v9282
        %9303 = vmatprep.subr.bf16.mxu0 0
        %9304 = vmatpush1.bf16.msra.mxu0 %v9283
        %9305 = vmatprep.subr.bf16.mxu0 0
        %9306 = vmatpush1.bf16.msra.mxu0 %v9284
        %9307 = vmatprep.subr.bf16.mxu0 0
        %9308 = vmatpush1.bf16.msra.mxu0 %v9285
        %9309 = vmatprep.subr.bf16.mxu0 0
        %9310 = vmatpush1.bf16.msra.mxu0 %v9286
        %9311 = vmatprep.subr.bf16.mxu0 0
        %9312 = vmatpush1.bf16.msra.mxu0 %v9287
        %9313 = vmatprep.subr.bf16.mxu0 0
        %9314 = vmatpush1.bf16.msra.mxu0 %v9288
        %9315 = vmatprep.subr.bf16.mxu0 0
        %9316 = vmatpush1.bf16.msra.mxu0 %v9289
        %9317 = vmatprep.subr.bf16.mxu0 0
        %9318 = vmatpush1.bf16.msra.mxu0 %v9290
        %9319 = vmatprep.subr.bf16.mxu0 0
        %9320 = vmatpush1.bf16.msra.mxu0 %v9291
        %9321 = vmatprep.subr.bf16.mxu0 0
        %9322 = vmatpush1.bf16.msra.mxu0 %v9292
        %9323 = vmatprep.subr.bf16.mxu0 0
        %9324 = vmatpush1.bf16.msra.mxu0 %v9293
        %9325 = vmatprep.subr.bf16.mxu0 0
        %9326 = vmatpush1.bf16.msra.mxu0 %v9294
        %9327 = vmatprep.mubr.bf16.mxu0 %v1219
        %9328 = vmatmul.mubr.bf16.gmra.mrb[0].mxu0 %v1218
        %v9329 = vpop.f32.mrb[0].mxu0
        %v9330 = vadd.f32 %v1093, %v9329
        %v9331 = vpop.f32.mrb[0].mxu0
        %v9332 = vpop.f32.mrb[0].mxu0
        %v9333 = vadd.f32 %v1098, %v9332
        %v9334 = vpop.f32.mrb[0].mxu0
        %9335 = vmatprep.mubr.bf16.mxu0 %v1221
        %9336 = vmatmul.mubr.bf16.gmra.mrb[0].mxu0 %v1220
        %v9337 = vpop.f32.mrb[0].mxu0
        %v9338 = vadd.f32 %v1103, %v9337
        %v9339 = vpop.f32.mrb[0].mxu0
        %v9340 = vpop.f32.mrb[0].mxu0
        %v9341 = vadd.f32 %v1108, %v9340
        %v9342 = vpop.f32.mrb[0].mxu0
        %9343 = vmatprep.mubr.bf16.mxu0 %v1223
        %9344 = vmatmul.mubr.bf16.gmra.mrb[0].mxu0 %v1222
        %v9345 = vpop.f32.mrb[0].mxu0
        %v9346 = vadd.f32 %v1113, %v9345
        %v9347 = vpop.f32.mrb[0].mxu0
        %v9348 = vpop.f32.mrb[0].mxu0
        %v9349 = vadd.f32 %v1118, %v9348
        %v9350 = vpop.f32.mrb[0].mxu0
        %9351 = vmatprep.mubr.bf16.mxu0 %v1225
        %9352 = vmatmul.mubr.bf16.gmra.mrb[0].mxu0 %v1224
        %v9353 = vpop.f32.mrb[0].mxu0
        %v9354 = vadd.f32 %v1123, %v9353
        %v9355 = vpop.f32.mrb[0].mxu0
        %v9356 = vpop.f32.mrb[0].mxu0
        %v9357 = vadd.f32 %v1128, %v9356
        %v9358 = vpop.f32.mrb[0].mxu0
        %9359 = vmatprep.mubr.bf16.mxu0 %v1227
        %9360 = vmatmul.mubr.bf16.gmra.mrb[0].mxu0 %v1226
        %v9361 = vpop.f32.mrb[0].mxu0
        %v9362 = vadd.f32 %v1133, %v9361
        %v9363 = vpop.f32.mrb[0].mxu0
        %v9364 = vpop.f32.mrb[0].mxu0
        %v9365 = vadd.f32 %v1138, %v9364
        %v9366 = vpop.f32.mrb[0].mxu0
        %9367 = vmatprep.mubr.bf16.mxu0 %v1229
        %9368 = vmatmul.mubr.bf16.gmra.mrb[0].mxu0 %v1228
        %v9369 = vpop.f32.mrb[0].mxu0
        %v9370 = vadd.f32 %v1143, %v9369
        %v9371 = vpop.f32.mrb[0].mxu0
        %v9372 = vpop.f32.mrb[0].mxu0
        %v9373 = vadd.f32 %v1148, %v9372
        %v9374 = vpop.f32.mrb[0].mxu0
        %9375 = vmatprep.mubr.bf16.mxu0 %v1231
        %9376 = vmatmul.mubr.bf16.gmra.mrb[0].mxu0 %v1230
        %v9377 = vpop.f32.mrb[0].mxu0
        %v9378 = vadd.f32 %v1153, %v9377
        %v9379 = vpop.f32.mrb[0].mxu0
        %v9380 = vpop.f32.mrb[0].mxu0
        %v9381 = vadd.f32 %v1158, %v9380
        %v9382 = vpop.f32.mrb[0].mxu0
        %9383 = vmatprep.mubr.bf16.mxu0 %v1233
        %9384 = vmatmul.mubr.bf16.gmra.mrb[0].mxu0 %v1232
        %v9385 = vpop.f32.mrb[0].mxu0
        %v9386 = vadd.f32 %v1163, %v9385
        %v9387 = vpop.f32.mrb[0].mxu0
        %v9388 = vpop.f32.mrb[0].mxu0
        %v9389 = vadd.f32 %v1168, %v9388
        %v9390 = vpop.f32.mrb[0].mxu0
        %9391 = vdwg.mxu0
        %v9392 = vmax.f32 %v9330, 0.0
        %v9393 = vmax.f32 %v9333, 0.0
        %v9394 = vmax.f32 %v9338, 0.0
        %v9395 = vmax.f32 %v9341, 0.0
        %v9396 = vmax.f32 %v9346, 0.0
        %v9397 = vmax.f32 %v9349, 0.0
        %v9398 = vmax.f32 %v9354, 0.0
        %v9399 = vmax.f32 %v9357, 0.0
        %v9400 = vmax.f32 %v9362, 0.0
        %v9401 = vmax.f32 %v9365, 0.0
        %v9402 = vmax.f32 %v9370, 0.0
        %v9403 = vmax.f32 %v9373, 0.0
        %v9404 = vmax.f32 %v9378, 0.0
        %v9405 = vmax.f32 %v9381, 0.0
        %v9406 = vmax.f32 %v9386, 0.0
        %v9407 = vmax.f32 %v9389, 0.0
        %v9408 = vmul.f32 %v9392, %v1366
        %v9409 = vmul.f32 %v9393, %v1371
        %v9410 = vmul.f32 %v9394, %v1376
        %v9411 = vmul.f32 %v9395, %v1381
        %v9412 = vmul.f32 %v9396, %v1386
        %v9413 = vmul.f32 %v9397, %v1391
        %v9414 = vmul.f32 %v9398, %v1396
        %v9415 = vmul.f32 %v9399, %v1401
        %v9416 = vmul.f32 %v9400, %v1406
        %v9417 = vmul.f32 %v9401, %v1411
        %v9418 = vmul.f32 %v9402, %v1416
        %v9419 = vmul.f32 %v9403, %v1421
        %v9420 = vmul.f32 %v9404, %v1426
        %v9421 = vmul.f32 %v9405, %v1431
        %v9422 = vmul.f32 %v9406, %v1436
        %v9423 = vmul.f32 %v9407, %v1441
        %v9424 = vadd.f32 %v9408, %v9409
        %v9425 = vadd.f32 %v9424, %v9410
        %v9426 = vadd.f32 %v9425, %v9411
        %v9427 = vadd.f32 %v9426, %v9412
        %v9428 = vadd.f32 %v9427, %v9413
        %v9429 = vadd.f32 %v9428, %v9414
        %v9430 = vadd.f32 %v9429, %v9415
        %v9431 = vadd.f32 %v9430, %v9416
        %v9432 = vadd.f32 %v9431, %v9417
        %v9433 = vadd.f32 %v9432, %v9418
        %v9434 = vadd.f32 %v9433, %v9419
        %v9435 = vadd.f32 %v9434, %v9420
        %v9436 = vadd.f32 %v9435, %v9421
        %v9437 = vadd.f32 %v9436, %v9422
        %v9438 = vadd.f32 %v9437, %v9423
        %v9439 = vld [vmem:[%s465 + $0x78] sm:$0xff]
        %v9440 = vadd.f32 %v9438, %v1482
        %9442 = vset.pattern.permute.xlu0 0
        %9443 = vperm.xlu0 %9442, %v9439
        %v9444 = vpop.permute.xlu0 %9443
        %v9446 = vmul.f32 %v9444, %v1494
        %v9447 = vmul.f32 %v9440, %v9446
        %9448 = vst [vmem:[%s442 + $0x78] sm:$0xff] %v9447
        %v9449 = vxor.u32 %v9447, 2147483648
        %v9450 = vmul.f32 %v9449, 1.442695
        %v9451 = vpow.pop %v9450
        %v9452 = vadd.f32 %v9451, 1.0
        %v9453 = vrcp.pop %v9452
        %v9454 = vmul.f32 1.0, %v9453
        %9455 = vst [vmem:[%s435 + $0x78] sm:$0xff] %v9454
        %s9456 = sand.u32 %s265, 1
        %s9457 = scalar_lea.sflag [#allocation4], %s9456
        %s9458 = sand.u32 %s265, 1
        %s9459 = smul.addr %s9458, 128
        %s9460 = scalar_lea.vmem [#allocation3], %s9459
        %s9461 = sand.u32 %s293, 1
        %s9462 = scalar_lea.sflag [#allocation6], %s9461
        %s9463 = sand.u32 %s293, 1
        %s9464 = smul.addr %s9463, 128
        %s9465 = scalar_lea.vmem [#allocation5], %s9464
        // Predicated region
        $region57: #{tpu_custom_call.1} parent=55 // pred_check
          %p9466 = pneg %p275
        $region58: #{tpu_custom_call.1} parent=55 // pred_check_branch
          %9468 = sbr.rel (%p9466) target = $region60
        $region59: #{tpu_custom_call.1} parent=55 // pred_region
          %s9469 = smul.u32 16, %s35
          %s9471 = ssub.s32 2048, 2048
          %9472 = vsyncadd %s9457, %s9471
          %s9473 = smul.addr %s34, 16
          %s9474 = sadd.s32 %s9469, %s9473
          %s9475 = smul.addr %s9474, 128
          %s9476 = scalar_lea.hbm %s9, %s9475
          %s9477 = sshll.u32 %s9460, 4
          %s9478 = int_to_ptr.vmem [resolvable:$true] %s9477
          %9483 = dma.vmem_to_hbm [thread:$0]  %s9478, 2048, %s9476, %s9457, 128, 128, 8
        $region60: #{tpu_custom_call.1} parent=55 // pred_fallthru
          _
        // Predicated region
        $region61: #{tpu_custom_call.1} parent=55 // pred_check
          %p9484 = pneg %p303
        $region62: #{tpu_custom_call.1} parent=55 // pred_check_branch
          %9486 = sbr.rel (%p9484) target = $region64
        $region63: #{tpu_custom_call.1} parent=55 // pred_region
          %s9487 = smul.u32 16, %s35
          %s9489 = ssub.s32 2048, 2048
          %9490 = vsyncadd %s9462, %s9489
          %s9491 = smul.addr %s34, 16
          %s9492 = sadd.s32 %s9487, %s9491
          %s9493 = smul.addr %s9492, 128
          %s9494 = scalar_lea.hbm %s10, %s9493
          %s9495 = sshll.u32 %s9465, 4
          %s9496 = int_to_ptr.vmem [resolvable:$true] %s9495
          %9501 = dma.vmem_to_hbm [thread:$0]  %s9496, 2048, %s9494, %s9462, 128, 128, 8
        $region64: #{tpu_custom_call.1} parent=55 // pred_fallthru
          _
      $region56: #{tpu_custom_call.1} parent=5 // pred_fallthru
        _
      %p9502 = scmp.le.s32.totalorder 2, %s25
      // Predicated region
      $region65: #{tpu_custom_call.1} parent=5 // pred_check
        %p9503 = pneg %p9502
      $region66: #{tpu_custom_call.1} parent=5 // pred_check_branch
        %9505 = sbr.rel (%p9503) target = $region68
      $region67: #{tpu_custom_call.1} parent=5 // pred_region
        %s9506 = ssub.s32 %s25, 2
        // Predicated region
        $region69: #{tpu_custom_call.1} parent=67 // pred_check
          %p9507 = pneg %p281
        $region70: #{tpu_custom_call.1} parent=67 // pred_check_branch
          %9509 = sbr.rel (%p9507) target = $region72
        $region71: #{tpu_custom_call.1} parent=67 // pred_region
          %s9510 = sand.u32 %s266, 1
          %s9511 = scalar_lea.sflag [#allocation4], %s9510
          %s9512 = sand.u32 %s266, 1
          %s9513 = smul.addr %s9512, 128
          %s9514 = scalar_lea.vmem [#allocation3], %s9513
          %9515 = dma.done %s9511, 2048
        $region72: #{tpu_custom_call.1} parent=67 // pred_fallthru
          _
        // Predicated region
        $region73: #{tpu_custom_call.1} parent=67 // pred_check
          %p9516 = pneg %p309
        $region74: #{tpu_custom_call.1} parent=67 // pred_check_branch
          %9518 = sbr.rel (%p9516) target = $region76
        $region75: #{tpu_custom_call.1} parent=67 // pred_region
          %s9519 = sand.u32 %s294, 1
          %s9520 = scalar_lea.sflag [#allocation6], %s9519
          %s9521 = sand.u32 %s294, 1
          %s9522 = smul.addr %s9521, 128
          %s9523 = scalar_lea.vmem [#allocation5], %s9522
          %9524 = dma.done %s9520, 2048
        $region76: #{tpu_custom_call.1} parent=67 // pred_fallthru
          _
      $region68: #{tpu_custom_call.1} parent=5 // pred_fallthru
        _
    $region6: #{tpu_custom_call.1} parent=1 // loop_footer
      %s29 = sadd.s32 1, %s25
    $region7: #{tpu_custom_call.1} parent=1 // loop_footer_branch
      %24 = sbr.rel target = $region3
    $region8: #{tpu_custom_call.1} parent=1 // loop_exit
      _
    %9525 = vsyncpa [#allocation4], 1
    %s9526 = scalar_lea.sflag [#allocation4], 1
    %9527 = vsyncpa %s9526, 1
    %9528 = vsyncpa [#allocation6], 1
    %s9529 = scalar_lea.sflag [#allocation6], 1
    %9530 = vsyncpa %s9529, 1

</llo_original>
